<compile_context>
chip_gen: v7x
topology: tpu7x:2x2x1
jax: 0.10.0
libtpu: 0.0.40
codegen_flags: <defaults>
</compile_context>

<pallas_src>
import functools

import jax
import jax.numpy as jnp
from jax.experimental import pallas as pl
from jax.experimental.pallas import tpu as pltpu

# ----------------------------- small ViT config ------------------------------
IMG = 16          # img_size
PATCH = 4         # patch_size
IN_C = 4          # in_c
EMBED = 32        # embed_dim
DEPTH = 2         # depth
HEADS = 4         # num_heads
MLP_RATIO = 4.0
NUM_CLASSES = 10
BATCH = 2

GRID_HW = IMG // PATCH
NUM_PATCHES = GRID_HW * GRID_HW
NUM_TOKENS = NUM_PATCHES + 1            # + cls token (not distilled)
PATCH_DIM = IN_C * PATCH * PATCH
HEAD_DIM = EMBED // HEADS
MLP_HIDDEN = int(EMBED * MLP_RATIO)
SCALE = HEAD_DIM ** -0.5                # qk_scale default
LN_EPS = 1e-6
INV_SQRT2 = 0.7071067811865476

PAD_N = 24                              # tokens padded to a multiple of 8 sublanes
TOK_ROWS = BATCH * PAD_N                # fused activation rows
QKV_PAD = 128                           # 3*EMBED (=96) padded to one lane group
NC_PAD = 128                            # class dim padded -> lane-dense output store
MASK_VAL = -1e30

# ---------------- packed-parameter slab layouts (128-lane aligned) -----------
# per-block matrix slab (DEPTH, EMBED, BM_COLS): [qkv_w|pad | att_w|pad | fc1_w | fc2_w^T]
BM_QKV = 0
BM_ATT = 128
BM_FC1 = 256
BM_FC2 = 384
BM_COLS = 512
# per-block vector slab (DEPTH, 1, BV_COLS): every segment in its own 128-lane group
BV_LN1W = 0
BV_LN1B = 128
BV_LN2W = 256
BV_LN2B = 384
BV_QKVB = 512
BV_ATTB = 640
BV_FC1B = 768
BV_FC2B = 896
BV_COLS = 1024
# globals slab (G_ROWS, EMBED): [proj_w | norm_w (8-row padded) | norm_b]
G_PROJW = 0
G_NORMW = PATCH_DIM                     # 64 (sublane aligned)
G_NORMB = G_NORMW + 8                   # 72 (sublane aligned)
G_ROWS = G_NORMB + 1                    # 73


# ------------------------------ math helpers ---------------------------------
def _layernorm(x, w, b):
    mu = jnp.mean(x, axis=-1, keepdims=True)
    xc = x - mu
    var = jnp.mean(xc * xc, axis=-1, keepdims=True)
    return xc * jax.lax.rsqrt(var + LN_EPS) * w + b


def _softmax_kernel(x):
    # kernel-only: denominator via EUP approximate reciprocal (frees VALU slots)
    m = jnp.max(x, axis=-1, keepdims=True)
    e = jnp.exp(x - m)
    return e * pl.reciprocal(jnp.sum(e, axis=-1, keepdims=True), approx=True)


def _gelu(x):
    # exact (erf) GELU == torch.nn.GELU(approximate='none')
    return 0.5 * x * (1.0 + jax.lax.erf(x * INV_SQRT2))


# ------------------------------- Pallas kernel --------------------------------
def vit_kernel(tokens_ref, bias_pos_ref, glob_ref, head_ref, bm_ref, bv_ref, out_ref):
    # key-padding mask (cols >= NUM_TOKENS are pad rows) — one iota + compare,
    # hoisted out of every loop.
    col = jax.lax.broadcasted_iota(jnp.int32, (PAD_N, PAD_N), 1)
    attn_mask = jnp.where(col < NUM_TOKENS, 0.0, MASK_VAL).astype(jnp.float32)

    # ---- patch embed + cls + pos: ONE batched matmul over all BATCH*PAD_N rows ----
    # tokens row 0 (per batch) is zero, bias_pos row 0 = cls + pos[0]; rows 1..16 get
    # proj_b + pos[1:]; pad rows 17..23 stay zero.
    x = jnp.dot(tokens_ref[...], glob_ref[G_PROJW:G_PROJW + PATCH_DIM, :],
                preferred_element_type=jnp.float32) + bias_pos_ref[...]

    # ---- transformer blocks (weights sliced from refs at use sites) ----
    for d in range(DEPTH):
        # --- multi-head self-attention ---
        h = _layernorm(x, bv_ref[d, :, BV_LN1W:BV_LN1W + EMBED],
                       bv_ref[d, :, BV_LN1B:BV_LN1B + EMBED])
        # qk scale pre-folded into the q columns of qkv_w / qkv_b at pack time.
        qkv = jnp.dot(h, bm_ref[d, :, BM_QKV:BM_QKV + QKV_PAD],
                      preferred_element_type=jnp.float32) \
            + bv_ref[d, :, BV_QKVB:BV_QKVB + QKV_PAD]

        att_w = bm_ref[d, :, BM_ATT:BM_ATT + EMBED]          # (E, E), reused 8x
        pieces = []
        for b in range(BATCH):                               # per-batch only for attention
            r = b * PAD_N                                    # sublane-aligned (0, 24)
            q = qkv[r:r + PAD_N, 0:EMBED]
            k = qkv[r:r + PAD_N, EMBED:2 * EMBED]
            v = qkv[r:r + PAD_N, 2 * EMBED:3 * EMBED]
            acc = jnp.zeros((PAD_N, EMBED), jnp.float32)
            for hh in range(HEADS):
                lo, hi = hh * HEAD_DIM, (hh + 1) * HEAD_DIM
                a = jax.lax.dot_general(q[:, lo:hi], k[:, lo:hi],
                                        (((1,), (1,)), ((), ())),
                                        preferred_element_type=jnp.float32)
                a = _softmax_kernel(a + attn_mask)           # (PAD_N, PAD_N)
                o_h = jnp.dot(a, v[:, lo:hi],
                              preferred_element_type=jnp.float32)        # (PAD_N, hd)
                # concat(o_h) @ W == sum_h o_h @ W[h]; explicit accumulate (MRB-friendly)
                acc = acc + jnp.dot(o_h, att_w[lo:hi, :],
                                    preferred_element_type=jnp.float32)  # (PAD_N, E)
            pieces.append(acc)
        attn_out = jnp.concatenate(pieces, axis=0)           # (TOK_ROWS, E)
        x = x + attn_out + bv_ref[d, :, BV_ATTB:BV_ATTB + EMBED]

        # --- MLP (fully batched) ---
        h = _layernorm(x, bv_ref[d, :, BV_LN2W:BV_LN2W + EMBED],
                       bv_ref[d, :, BV_LN2B:BV_LN2B + EMBED])
        h = _gelu(jnp.dot(h, bm_ref[d, :, BM_FC1:BM_FC1 + MLP_HIDDEN],
                          preferred_element_type=jnp.float32)
                  + bv_ref[d, :, BV_FC1B:BV_FC1B + MLP_HIDDEN])
        h = jax.lax.dot_general(h, bm_ref[d, :, BM_FC2:BM_FC2 + MLP_HIDDEN],
                                (((1,), (1,)), ((), ())),
                                preferred_element_type=jnp.float32) \
            + bv_ref[d, :, BV_FC2B:BV_FC2B + EMBED]
        x = x + h

    # ---- gather cls rows (sublane-aligned offsets), final norm, head ----
    cls = jnp.concatenate([x[b * PAD_N:b * PAD_N + 1, :] for b in range(BATCH)],
                          axis=0)                            # (BATCH, E)
    cls = _layernorm(cls, glob_ref[G_NORMW:G_NORMW + 1, :],
                     glob_ref[G_NORMB:G_NORMB + 1, :])
    logits = jnp.dot(cls, head_ref[0:EMBED, :],
                     preferred_element_type=jnp.float32) + head_ref[EMBED:EMBED + 1, :]
    out_ref[...] = logits                                    # one lane-dense store


# ------------------------------- glue / wrapper --------------------------------
def extract_patches(x_img):
    """NCHW (B,C,H,W) -> (B, num_patches, C*ph*pw), channel-major within a patch
    (matches PyTorch Conv2d weight flatten order (c, kh, kw))."""
    b = x_img.shape[0]
    x = x_img.reshape(b, IN_C, GRID_HW, PATCH, GRID_HW, PATCH)
    x = x.transpose(0, 2, 4, 1, 3, 5)                        # (B, gh, gw, C, ph, pw)
    return x.reshape(b, NUM_PATCHES, PATCH_DIM)


def _padc(a, width):
    """Zero-pad last axis to `width` (128-lane segment alignment)."""
    return jnp.pad(a, [(0, 0)] * (a.ndim - 1) + [(0, width - a.shape[-1])])


def pack_params(p):
    """One-time parameter packing (do NOT call per forward):
    fold qk scale into q columns of qkv, fold proj_b/cls/pos into an additive
    pre-tiled bias slab, 128-lane-align every slab segment, zero-pad the head
    to a lane-dense 128-class output."""
    qkv_w = p['qkv_w'].at[:, :, :EMBED].multiply(SCALE)
    qkv_b = p['qkv_b'].at[:, :, :EMBED].multiply(SCALE)
    fc2_wt = jnp.swapaxes(p['fc2_w'], 1, 2)                  # (D, E, H)
    blk_mat = jnp.concatenate(
        [_padc(qkv_w, 128), _padc(p['att_w'], 128), p['fc1_w'], fc2_wt],
        axis=-1)                                             # (D, E, 512)
    blk_vec = jnp.concatenate(
        [_padc(p['ln1_w'], 128), _padc(p['ln1_b'], 128),
         _padc(p['ln2_w'], 128), _padc(p['ln2_b'], 128),
         _padc(qkv_b, 128), _padc(p['att_b'], 128),
         p['fc1_b'], _padc(p['fc2_b'], 128)], axis=-1)       # (D, 1, 1024)
    # additive bias slab, pre-tiled to the fused (BATCH*PAD_N, E) layout
    bp = jnp.concatenate([p['cls'] + p['pos'][0:1], p['proj_b'] + p['pos'][1:]],
                         axis=0)                             # (NUM_TOKENS, E)
    bp = jnp.pad(bp, ((0, PAD_N - NUM_TOKENS), (0, 0)))      # (PAD_N, E)
    bias_pos = jnp.tile(bp, (BATCH, 1))                      # (TOK_ROWS, E)
    glob = jnp.concatenate(
        [p['proj_w'], jnp.pad(p['norm_w'], ((0, 7), (0, 0))), p['norm_b']],
        axis=0)                                              # (G_ROWS, E)
    head = jnp.concatenate(
        [jnp.pad(p['head_w'], ((0, 0), (0, NC_PAD - NUM_CLASSES))),
         jnp.pad(p['head_b'], ((0, 0), (0, NC_PAD - NUM_CLASSES)))],
        axis=0)                                              # (E+1, NC_PAD)
    return {'bias_pos': bias_pos, 'glob': glob, 'head': head,
            'blk_mat': blk_mat, 'blk_vec': blk_vec}


def vit_forward_pallas(x_img, packed):
    patches = extract_patches(x_img).astype(jnp.float32)     # (B, 16, PATCH_DIM)
    # fused, sublane-padded token slab: row 0 per batch = zero "cls row",
    # rows 1..16 = patches, rows 17..23 = zero padding
    tokens = jnp.zeros((BATCH, PAD_N, PATCH_DIM), jnp.float32)
    tokens = tokens.at[:, 1:NUM_TOKENS, :].set(patches)
    tokens = tokens.reshape(TOK_ROWS, PATCH_DIM)

    weights = [packed['bias_pos'], packed['glob'], packed['head'],
               packed['blk_mat'], packed['blk_vec']]

    def full_spec(a):
        nd = a.ndim
        return pl.BlockSpec(a.shape, lambda i, nd=nd: (0,) * nd)

    out = pl.pallas_call(
        vit_kernel,
        out_shape=jax.ShapeDtypeStruct((BATCH, NC_PAD), jnp.float32),
        grid=(1,),
        in_specs=[full_spec(tokens)] + [full_spec(a) for a in weights],
        out_specs=pl.BlockSpec((BATCH, NC_PAD), lambda i: (0, 0)),
        compiler_params=pltpu.CompilerParams(dimension_semantics=("arbitrary",)),
    )(tokens, *weights)
    return out[:, :NUM_CLASSES]


# ------------------------------- parameters ------------------------------------
def init_params(key):
    ks = jax.random.split(key, 20)
    nrm = lambda k, s, std: std * jax.random.normal(k, s, jnp.float32)
    p = {}
    # Conv2d weight (D, C, ph, pw) -> matmul weight (C*ph*pw, D)
    conv_w = nrm(ks[0], (EMBED, IN_C, PATCH, PATCH), 0.1)
    p['proj_w'] = conv_w.reshape(EMBED, PATCH_DIM).T
    p['proj_b'] = nrm(ks[1], (1, EMBED), 0.02)
    p['cls'] = nrm(ks[2], (1, EMBED), 0.02)
    p['pos'] = nrm(ks[3], (NUM_TOKENS, EMBED), 0.02)
    p['ln1_w'] = jnp.ones((DEPTH, 1, EMBED), jnp.float32) + nrm(ks[4], (DEPTH, 1, EMBED), 0.02)
    p['ln1_b'] = nrm(ks[5], (DEPTH, 1, EMBED), 0.02)
    p['qkv_w'] = nrm(ks[6], (DEPTH, EMBED, 3 * EMBED), 0.05)     # stored as (in, out)
    p['qkv_b'] = nrm(ks[7], (DEPTH, 1, 3 * EMBED), 0.02)
    p['att_w'] = nrm(ks[8], (DEPTH, EMBED, EMBED), 0.05)
    p['att_b'] = nrm(ks[9], (DEPTH, 1, EMBED), 0.02)
    p['ln2_w'] = jnp.ones((DEPTH, 1, EMBED), jnp.float32) + nrm(ks[10], (DEPTH, 1, EMBED), 0.02)
    p['ln2_b'] = nrm(ks[11], (DEPTH, 1, EMBED), 0.02)
    p['fc1_w'] = nrm(ks[12], (DEPTH, EMBED, MLP_HIDDEN), 0.05)
    p['fc1_b'] = nrm(ks[13], (DEPTH, 1, MLP_HIDDEN), 0.02)
    p['fc2_w'] = nrm(ks[14], (DEPTH, MLP_HIDDEN, EMBED), 0.05)
    p['fc2_b'] = nrm(ks[15], (DEPTH, 1, EMBED), 0.02)
    p['norm_w'] = jnp.ones((1, EMBED), jnp.float32)
    p['norm_b'] = jnp.zeros((1, EMBED), jnp.float32)
    p['head_w'] = nrm(ks[16], (EMBED, NUM_CLASSES), 0.05)
    p['head_b'] = nrm(ks[17], (1, NUM_CLASSES), 0.02)
    return p


# ------------------------------- pure-JAX reference ----------------------------
def vit_forward_ref(x_img, p):
    mm = functools.partial(jnp.matmul, precision=jax.lax.Precision.HIGHEST)
    b = x_img.shape[0]
    patches = extract_patches(x_img)
    emb = mm(patches, p['proj_w']) + p['proj_b']
    cls = jnp.broadcast_to(p['cls'][None], (b, 1, EMBED))
    x = jnp.concatenate([cls, emb], axis=1) + p['pos'][None]
    for d in range(DEPTH):
        h = _layernorm(x, p['ln1_w'][d], p['ln1_b'][d])
        qkv = mm(h, p['qkv_w'][d]) + p['qkv_b'][d]
        qkv = qkv.reshape(b, NUM_TOKENS, 3, HEADS, HEAD_DIM).transpose(2, 0, 3, 1, 4)
        q, k, v = qkv[0], qkv[1], qkv[2]
        a = jnp.einsum('bhnd,bhmd->bhnm', q, k,
                       precision=jax.lax.Precision.HIGHEST) * SCALE
        a = jax.nn.softmax(a, axis=-1)
        o = jnp.einsum('bhnm,bhmd->bhnd', a, v,
                       precision=jax.lax.Precision.HIGHEST)
        o = o.transpose(0, 2, 1, 3).reshape(b, NUM_TOKENS, EMBED)
        x = x + (mm(o, p['att_w'][d]) + p['att_b'][d])
        h = _layernorm(x, p['ln2_w'][d], p['ln2_b'][d])
        h = _gelu(mm(h, p['fc1_w'][d]) + p['fc1_b'][d])
        x = x + (mm(h, p['fc2_w'][d]) + p['fc2_b'][d])
    x = _layernorm(x, p['norm_w'], p['norm_b'])
    return mm(x[:, 0, :], p['head_w']) + p['head_b']


# ----------------------------------- main ---------------------------------------
if __name__ == "__main__":
    key = jax.random.PRNGKey(0)
    kx, kp = jax.random.split(key)
    x_img = jax.random.normal(kx, (BATCH, IN_C, IMG, IMG), jnp.float32)
    params = init_params(kp)
    packed = pack_params(params)       # one-time parameter packing

    out = jax.block_until_ready(vit_forward_pallas(x_img, packed))
    ref = vit_forward_ref(x_img, params)

    assert out.shape == (BATCH, NUM_CLASSES)
    assert bool(jnp.all(jnp.isfinite(out)))
    assert bool(jnp.allclose(out, ref, rtol=5e-3, atol=5e-3)), (out, ref)
    print("KERNEL_OK")
</pallas_src>

<mosaic_0001>
module attributes {stable_mosaic.version = 11 : i64} {
  func.func @vit_kernel(%arg0: i32, %arg1: memref<48x64xf32, #tpu.memory_space<vmem>>, %arg2: memref<48x32xf32, #tpu.memory_space<vmem>>, %arg3: memref<73x32xf32, #tpu.memory_space<vmem>>, %arg4: memref<33x128xf32, #tpu.memory_space<vmem>>, %arg5: memref<2x32x512xf32, #tpu.memory_space<vmem>>, %arg6: memref<2x1x1024xf32, #tpu.memory_space<vmem>>, %arg7: memref<2x128xf32, #tpu.memory_space<vmem>>) attributes {dimension_semantics = [#tpu.dimension_semantics<arbitrary>], iteration_bounds = array<i64: 1>, scalar_prefetch = 0 : i64, scratch_operands = 0 : i64, tpu.core_type = #tpu.core_type<tc>, window_params = [{pipeline_mode = #tpu.pipeline_mode<synchronous>, transform_indices = @transform_0, window_bounds = array<i64: 48, 64>}, {pipeline_mode = #tpu.pipeline_mode<synchronous>, transform_indices = @transform_1, window_bounds = array<i64: 48, 32>}, {pipeline_mode = #tpu.pipeline_mode<synchronous>, transform_indices = @transform_2, window_bounds = array<i64: 73, 32>}, {pipeline_mode = #tpu.pipeline_mode<synchronous>, transform_indices = @transform_3, window_bounds = array<i64: 33, 128>}, {pipeline_mode = #tpu.pipeline_mode<synchronous>, transform_indices = @transform_4, window_bounds = array<i64: 2, 32, 512>}, {pipeline_mode = #tpu.pipeline_mode<synchronous>, transform_indices = @transform_5, window_bounds = array<i64: 2, 1, 1024>}, {pipeline_mode = #tpu.pipeline_mode<synchronous>, transform_indices = @transform_6, window_bounds = array<i64: 2, 128>}]} {
    %0 = tpu.iota {dimensions = array<i32: 1>} : vector<24x24xi32>
    %c17_i32 = arith.constant 17 : i32
    %1 = vector.broadcast %c17_i32 : i32 to vector<24x24xi32>
    %2 = arith.cmpi slt, %0, %1 : vector<24x24xi32>
    %cst = arith.constant 0.000000e+00 : f32
    %cst_0 = arith.constant -1.000000e+30 : f32
    %3 = vector.broadcast %cst : f32 to vector<24x24xf32>
    %4 = vector.broadcast %cst_0 : f32 to vector<24x24xf32>
    %5 = arith.select %2, %3, %4 : vector<24x24xi1>, vector<24x24xf32>
    %c0 = arith.constant 0 : index
    %c0_1 = arith.constant 0 : index
    %6 = vector.load %arg1[%c0, %c0_1] : memref<48x64xf32, #tpu.memory_space<vmem>>, vector<48x64xf32>
    %c0_2 = arith.constant 0 : index
    %c0_3 = arith.constant 0 : index
    %7 = vector.load %arg3[%c0_2, %c0_3] : memref<73x32xf32, #tpu.memory_space<vmem>>, vector<64x32xf32>
    %cst_4 = arith.constant dense<0.000000e+00> : vector<48x32xf32>
    %8 = tpu.matmul %6, %7, %cst_4 {dimension_numbers = #tpu.dot_dimension_numbers<[1], [0], [0], [1], [0, 0, 1, 1], [], []>} : vector<48x64xf32>, vector<64x32xf32>, vector<48x32xf32> -> vector<48x32xf32>
    %c0_5 = arith.constant 0 : index
    %c0_6 = arith.constant 0 : index
    %9 = vector.load %arg2[%c0_5, %c0_6] : memref<48x32xf32, #tpu.memory_space<vmem>>, vector<48x32xf32>
    %10 = arith.addf %8, %9 : vector<48x32xf32>
    %c0_7 = arith.constant 0 : index
    %c0_8 = arith.constant 0 : index
    %c0_9 = arith.constant 0 : index
    %11 = vector.load %arg6[%c0_7, %c0_8, %c0_9] : memref<2x1x1024xf32, #tpu.memory_space<vmem>>, vector<1x1x32xf32>
    %12 = vector.shape_cast %11 : vector<1x1x32xf32> to vector<1x32xf32>
    %c0_10 = arith.constant 0 : index
    %c0_11 = arith.constant 0 : index
    %c128 = arith.constant 128 : index
    %13 = vector.load %arg6[%c0_10, %c0_11, %c128] : memref<2x1x1024xf32, #tpu.memory_space<vmem>>, vector<1x1x32xf32>
    %14 = vector.shape_cast %13 : vector<1x1x32xf32> to vector<1x32xf32>
    %cst_12 = arith.constant dense<0.000000e+00> : vector<48xf32>
    %15 = vector.multi_reduction <add>, %10, %cst_12 [1] : vector<48x32xf32> to vector<48xf32>
    %16 = vector.shape_cast %15 : vector<48xf32> to vector<48x1xf32>
    %cst_13 = arith.constant 3.200000e+01 : f32
    %17 = vector.broadcast %cst_13 : f32 to vector<48x1xf32>
    %18 = arith.divf %16, %17 : vector<48x1xf32>
    %19 = vector.broadcast %18 : vector<48x1xf32> to vector<48x32xf32>
    %20 = arith.subf %10, %19 : vector<48x32xf32>
    %21 = arith.mulf %20, %20 : vector<48x32xf32>
    %cst_14 = arith.constant dense<0.000000e+00> : vector<48xf32>
    %22 = vector.multi_reduction <add>, %21, %cst_14 [1] : vector<48x32xf32> to vector<48xf32>
    %23 = vector.shape_cast %22 : vector<48xf32> to vector<48x1xf32>
    %cst_15 = arith.constant 3.200000e+01 : f32
    %24 = vector.broadcast %cst_15 : f32 to vector<48x1xf32>
    %25 = arith.divf %23, %24 : vector<48x1xf32>
    %cst_16 = arith.constant 9.99999997E-7 : f32
    %26 = vector.broadcast %cst_16 : f32 to vector<48x1xf32>
    %27 = arith.addf %25, %26 : vector<48x1xf32>
    %28 = math.rsqrt %27 : vector<48x1xf32>
    %29 = vector.broadcast %28 : vector<48x1xf32> to vector<48x32xf32>
    %30 = arith.mulf %20, %29 : vector<48x32xf32>
    %31 = vector.broadcast %12 : vector<1x32xf32> to vector<48x32xf32>
    %32 = arith.mulf %30, %31 : vector<48x32xf32>
    %33 = vector.broadcast %14 : vector<1x32xf32> to vector<48x32xf32>
    %34 = arith.addf %32, %33 : vector<48x32xf32>
    %c0_17 = arith.constant 0 : index
    %c0_18 = arith.constant 0 : index
    %c0_19 = arith.constant 0 : index
    %35 = vector.load %arg5[%c0_17, %c0_18, %c0_19] : memref<2x32x512xf32, #tpu.memory_space<vmem>>, vector<1x32x128xf32>
    %36 = vector.shape_cast %35 : vector<1x32x128xf32> to vector<32x128xf32>
    %cst_20 = arith.constant dense<0.000000e+00> : vector<48x128xf32>
    %37 = tpu.matmul %34, %36, %cst_20 {dimension_numbers = #tpu.dot_dimension_numbers<[1], [0], [0], [1], [0, 0, 1, 1], [], []>} : vector<48x32xf32>, vector<32x128xf32>, vector<48x128xf32> -> vector<48x128xf32>
    %c0_21 = arith.constant 0 : index
    %c0_22 = arith.constant 0 : index
    %c512 = arith.constant 512 : index
    %38 = vector.load %arg6[%c0_21, %c0_22, %c512] : memref<2x1x1024xf32, #tpu.memory_space<vmem>>, vector<1x1x128xf32>
    %39 = vector.shape_cast %38 : vector<1x1x128xf32> to vector<1x128xf32>
    %40 = vector.broadcast %39 : vector<1x128xf32> to vector<48x128xf32>
    %41 = arith.addf %37, %40 : vector<48x128xf32>
    %c0_23 = arith.constant 0 : index
    %c0_24 = arith.constant 0 : index
    %c128_25 = arith.constant 128 : index
    %42 = vector.load %arg5[%c0_23, %c0_24, %c128_25] : memref<2x32x512xf32, #tpu.memory_space<vmem>>, vector<1x32x32xf32>
    %43 = vector.shape_cast %42 : vector<1x32x32xf32> to vector<32x32xf32>
    %44 = vector.extract_strided_slice %41 {offsets = [0, 0], sizes = [24, 32], strides = [1, 1]} : vector<48x128xf32> to vector<24x32xf32>
    %45 = vector.extract_strided_slice %41 {offsets = [0, 32], sizes = [24, 32], strides = [1, 1]} : vector<48x128xf32> to vector<24x32xf32>
    %46 = vector.extract_strided_slice %41 {offsets = [0, 64], sizes = [24, 32], strides = [1, 1]} : vector<48x128xf32> to vector<24x32xf32>
    %cst_26 = arith.constant 0.000000e+00 : f32
    %47 = vector.broadcast %cst_26 : f32 to vector<24x32xf32>
    %48 = vector.extract_strided_slice %44 {offsets = [0, 0], sizes = [24, 8], strides = [1, 1]} : vector<24x32xf32> to vector<24x8xf32>
    %49 = vector.extract_strided_slice %45 {offsets = [0, 0], sizes = [24, 8], strides = [1, 1]} : vector<24x32xf32> to vector<24x8xf32>
    %cst_27 = arith.constant dense<0.000000e+00> : vector<24x24xf32>
    %50 = tpu.matmul %48, %49, %cst_27 {dimension_numbers = #tpu.dot_dimension_numbers<[1], [1], [0], [0], [0, 0, 1, 0], [], []>} : vector<24x8xf32>, vector<24x8xf32>, vector<24x24xf32> -> vector<24x24xf32>
    %51 = arith.addf %50, %5 : vector<24x24xf32>
    %cst_28 = arith.constant dense<0xFF800000> : vector<24xf32>
    %52 = vector.multi_reduction <maximumf>, %51, %cst_28 [1] : vector<24x24xf32> to vector<24xf32>
    %53 = vector.shape_cast %52 : vector<24xf32> to vector<24x1xf32>
    %54 = vector.broadcast %53 : vector<24x1xf32> to vector<24x24xf32>
    %55 = arith.subf %51, %54 : vector<24x24xf32>
    %56 = math.exp %55 : vector<24x24xf32>
    %cst_29 = arith.constant dense<0.000000e+00> : vector<24xf32>
    %57 = vector.multi_reduction <add>, %56, %cst_29 [1] : vector<24x24xf32> to vector<24xf32>
    %58 = vector.shape_cast %57 : vector<24xf32> to vector<24x1xf32>
    %59 = tpu.reciprocal %58 {approx = true} : vector<24x1xf32> -> vector<24x1xf32>
    %60 = vector.broadcast %59 : vector<24x1xf32> to vector<24x24xf32>
    %61 = arith.mulf %56, %60 : vector<24x24xf32>
    %62 = vector.extract_strided_slice %46 {offsets = [0, 0], sizes = [24, 8], strides = [1, 1]} : vector<24x32xf32> to vector<24x8xf32>
    %cst_30 = arith.constant dense<0.000000e+00> : vector<24x8xf32>
    %63 = tpu.matmul %61, %62, %cst_30 {dimension_numbers = #tpu.dot_dimension_numbers<[1], [0], [0], [1], [0, 0, 1, 1], [], []>} : vector<24x24xf32>, vector<24x8xf32>, vector<24x8xf32> -> vector<24x8xf32>
    %64 = vector.extract_strided_slice %43 {offsets = [0, 0], sizes = [8, 32], strides = [1, 1]} : vector<32x32xf32> to vector<8x32xf32>
    %cst_31 = arith.constant dense<0.000000e+00> : vector<24x32xf32>
    %65 = tpu.matmul %63, %64, %cst_31 {dimension_numbers = #tpu.dot_dimension_numbers<[1], [0], [0], [1], [0, 0, 1, 1], [], []>} : vector<24x8xf32>, vector<8x32xf32>, vector<24x32xf32> -> vector<24x32xf32>
    %66 = arith.addf %47, %65 : vector<24x32xf32>
    %67 = vector.extract_strided_slice %44 {offsets = [0, 8], sizes = [24, 8], strides = [1, 1]} : vector<24x32xf32> to vector<24x8xf32>
    %68 = vector.extract_strided_slice %45 {offsets = [0, 8], sizes = [24, 8], strides = [1, 1]} : vector<24x32xf32> to vector<24x8xf32>
    %cst_32 = arith.constant dense<0.000000e+00> : vector<24x24xf32>
    %69 = tpu.matmul %67, %68, %cst_32 {dimension_numbers = #tpu.dot_dimension_numbers<[1], [1], [0], [0], [0, 0, 1, 0], [], []>} : vector<24x8xf32>, vector<24x8xf32>, vector<24x24xf32> -> vector<24x24xf32>
    %70 = arith.addf %69, %5 : vector<24x24xf32>
    %cst_33 = arith.constant dense<0xFF800000> : vector<24xf32>
    %71 = vector.multi_reduction <maximumf>, %70, %cst_33 [1] : vector<24x24xf32> to vector<24xf32>
    %72 = vector.shape_cast %71 : vector<24xf32> to vector<24x1xf32>
    %73 = vector.broadcast %72 : vector<24x1xf32> to vector<24x24xf32>
    %74 = arith.subf %70, %73 : vector<24x24xf32>
    %75 = math.exp %74 : vector<24x24xf32>
    %cst_34 = arith.constant dense<0.000000e+00> : vector<24xf32>
    %76 = vector.multi_reduction <add>, %75, %cst_34 [1] : vector<24x24xf32> to vector<24xf32>
    %77 = vector.shape_cast %76 : vector<24xf32> to vector<24x1xf32>
    %78 = tpu.reciprocal %77 {approx = true} : vector<24x1xf32> -> vector<24x1xf32>
    %79 = vector.broadcast %78 : vector<24x1xf32> to vector<24x24xf32>
    %80 = arith.mulf %75, %79 : vector<24x24xf32>
    %81 = vector.extract_strided_slice %46 {offsets = [0, 8], sizes = [24, 8], strides = [1, 1]} : vector<24x32xf32> to vector<24x8xf32>
    %cst_35 = arith.constant dense<0.000000e+00> : vector<24x8xf32>
    %82 = tpu.matmul %80, %81, %cst_35 {dimension_numbers = #tpu.dot_dimension_numbers<[1], [0], [0], [1], [0, 0, 1, 1], [], []>} : vector<24x24xf32>, vector<24x8xf32>, vector<24x8xf32> -> vector<24x8xf32>
    %83 = vector.extract_strided_slice %43 {offsets = [8, 0], sizes = [8, 32], strides = [1, 1]} : vector<32x32xf32> to vector<8x32xf32>
    %cst_36 = arith.constant dense<0.000000e+00> : vector<24x32xf32>
    %84 = tpu.matmul %82, %83, %cst_36 {dimension_numbers = #tpu.dot_dimension_numbers<[1], [0], [0], [1], [0, 0, 1, 1], [], []>} : vector<24x8xf32>, vector<8x32xf32>, vector<24x32xf32> -> vector<24x32xf32>
    %85 = arith.addf %66, %84 : vector<24x32xf32>
    %86 = vector.extract_strided_slice %44 {offsets = [0, 16], sizes = [24, 8], strides = [1, 1]} : vector<24x32xf32> to vector<24x8xf32>
    %87 = vector.extract_strided_slice %45 {offsets = [0, 16], sizes = [24, 8], strides = [1, 1]} : vector<24x32xf32> to vector<24x8xf32>
    %cst_37 = arith.constant dense<0.000000e+00> : vector<24x24xf32>
    %88 = tpu.matmul %86, %87, %cst_37 {dimension_numbers = #tpu.dot_dimension_numbers<[1], [1], [0], [0], [0, 0, 1, 0], [], []>} : vector<24x8xf32>, vector<24x8xf32>, vector<24x24xf32> -> vector<24x24xf32>
    %89 = arith.addf %88, %5 : vector<24x24xf32>
    %cst_38 = arith.constant dense<0xFF800000> : vector<24xf32>
    %90 = vector.multi_reduction <maximumf>, %89, %cst_38 [1] : vector<24x24xf32> to vector<24xf32>
    %91 = vector.shape_cast %90 : vector<24xf32> to vector<24x1xf32>
    %92 = vector.broadcast %91 : vector<24x1xf32> to vector<24x24xf32>
    %93 = arith.subf %89, %92 : vector<24x24xf32>
    %94 = math.exp %93 : vector<24x24xf32>
    %cst_39 = arith.constant dense<0.000000e+00> : vector<24xf32>
    %95 = vector.multi_reduction <add>, %94, %cst_39 [1] : vector<24x24xf32> to vector<24xf32>
    %96 = vector.shape_cast %95 : vector<24xf32> to vector<24x1xf32>
    %97 = tpu.reciprocal %96 {approx = true} : vector<24x1xf32> -> vector<24x1xf32>
    %98 = vector.broadcast %97 : vector<24x1xf32> to vector<24x24xf32>
    %99 = arith.mulf %94, %98 : vector<24x24xf32>
    %100 = vector.extract_strided_slice %46 {offsets = [0, 16], sizes = [24, 8], strides = [1, 1]} : vector<24x32xf32> to vector<24x8xf32>
    %cst_40 = arith.constant dense<0.000000e+00> : vector<24x8xf32>
    %101 = tpu.matmul %99, %100, %cst_40 {dimension_numbers = #tpu.dot_dimension_numbers<[1], [0], [0], [1], [0, 0, 1, 1], [], []>} : vector<24x24xf32>, vector<24x8xf32>, vector<24x8xf32> -> vector<24x8xf32>
    %102 = vector.extract_strided_slice %43 {offsets = [16, 0], sizes = [8, 32], strides = [1, 1]} : vector<32x32xf32> to vector<8x32xf32>
    %cst_41 = arith.constant dense<0.000000e+00> : vector<24x32xf32>
    %103 = tpu.matmul %101, %102, %cst_41 {dimension_numbers = #tpu.dot_dimension_numbers<[1], [0], [0], [1], [0, 0, 1, 1], [], []>} : vector<24x8xf32>, vector<8x32xf32>, vector<24x32xf32> -> vector<24x32xf32>
    %104 = arith.addf %85, %103 : vector<24x32xf32>
    %105 = vector.extract_strided_slice %44 {offsets = [0, 24], sizes = [24, 8], strides = [1, 1]} : vector<24x32xf32> to vector<24x8xf32>
    %106 = vector.extract_strided_slice %45 {offsets = [0, 24], sizes = [24, 8], strides = [1, 1]} : vector<24x32xf32> to vector<24x8xf32>
    %cst_42 = arith.constant dense<0.000000e+00> : vector<24x24xf32>
    %107 = tpu.matmul %105, %106, %cst_42 {dimension_numbers = #tpu.dot_dimension_numbers<[1], [1], [0], [0], [0, 0, 1, 0], [], []>} : vector<24x8xf32>, vector<24x8xf32>, vector<24x24xf32> -> vector<24x24xf32>
    %108 = arith.addf %107, %5 : vector<24x24xf32>
    %cst_43 = arith.constant dense<0xFF800000> : vector<24xf32>
    %109 = vector.multi_reduction <maximumf>, %108, %cst_43 [1] : vector<24x24xf32> to vector<24xf32>
    %110 = vector.shape_cast %109 : vector<24xf32> to vector<24x1xf32>
    %111 = vector.broadcast %110 : vector<24x1xf32> to vector<24x24xf32>
    %112 = arith.subf %108, %111 : vector<24x24xf32>
    %113 = math.exp %112 : vector<24x24xf32>
    %cst_44 = arith.constant dense<0.000000e+00> : vector<24xf32>
    %114 = vector.multi_reduction <add>, %113, %cst_44 [1] : vector<24x24xf32> to vector<24xf32>
    %115 = vector.shape_cast %114 : vector<24xf32> to vector<24x1xf32>
    %116 = tpu.reciprocal %115 {approx = true} : vector<24x1xf32> -> vector<24x1xf32>
    %117 = vector.broadcast %116 : vector<24x1xf32> to vector<24x24xf32>
    %118 = arith.mulf %113, %117 : vector<24x24xf32>
    %119 = vector.extract_strided_slice %46 {offsets = [0, 24], sizes = [24, 8], strides = [1, 1]} : vector<24x32xf32> to vector<24x8xf32>
    %cst_45 = arith.constant dense<0.000000e+00> : vector<24x8xf32>
    %120 = tpu.matmul %118, %119, %cst_45 {dimension_numbers = #tpu.dot_dimension_numbers<[1], [0], [0], [1], [0, 0, 1, 1], [], []>} : vector<24x24xf32>, vector<24x8xf32>, vector<24x8xf32> -> vector<24x8xf32>
    %121 = vector.extract_strided_slice %43 {offsets = [24, 0], sizes = [8, 32], strides = [1, 1]} : vector<32x32xf32> to vector<8x32xf32>
    %cst_46 = arith.constant dense<0.000000e+00> : vector<24x32xf32>
    %122 = tpu.matmul %120, %121, %cst_46 {dimension_numbers = #tpu.dot_dimension_numbers<[1], [0], [0], [1], [0, 0, 1, 1], [], []>} : vector<24x8xf32>, vector<8x32xf32>, vector<24x32xf32> -> vector<24x32xf32>
    %123 = arith.addf %104, %122 : vector<24x32xf32>
    %124 = vector.extract_strided_slice %41 {offsets = [24, 0], sizes = [24, 32], strides = [1, 1]} : vector<48x128xf32> to vector<24x32xf32>
    %125 = vector.extract_strided_slice %41 {offsets = [24, 32], sizes = [24, 32], strides = [1, 1]} : vector<48x128xf32> to vector<24x32xf32>
    %126 = vector.extract_strided_slice %41 {offsets = [24, 64], sizes = [24, 32], strides = [1, 1]} : vector<48x128xf32> to vector<24x32xf32>
    %cst_47 = arith.constant 0.000000e+00 : f32
    %127 = vector.broadcast %cst_47 : f32 to vector<24x32xf32>
    %128 = vector.extract_strided_slice %124 {offsets = [0, 0], sizes = [24, 8], strides = [1, 1]} : vector<24x32xf32> to vector<24x8xf32>
    %129 = vector.extract_strided_slice %125 {offsets = [0, 0], sizes = [24, 8], strides = [1, 1]} : vector<24x32xf32> to vector<24x8xf32>
    %cst_48 = arith.constant dense<0.000000e+00> : vector<24x24xf32>
    %130 = tpu.matmul %128, %129, %cst_48 {dimension_numbers = #tpu.dot_dimension_numbers<[1], [1], [0], [0], [0, 0, 1, 0], [], []>} : vector<24x8xf32>, vector<24x8xf32>, vector<24x24xf32> -> vector<24x24xf32>
    %131 = arith.addf %130, %5 : vector<24x24xf32>
    %cst_49 = arith.constant dense<0xFF800000> : vector<24xf32>
    %132 = vector.multi_reduction <maximumf>, %131, %cst_49 [1] : vector<24x24xf32> to vector<24xf32>
    %133 = vector.shape_cast %132 : vector<24xf32> to vector<24x1xf32>
    %134 = vector.broadcast %133 : vector<24x1xf32> to vector<24x24xf32>
    %135 = arith.subf %131, %134 : vector<24x24xf32>
    %136 = math.exp %135 : vector<24x24xf32>
    %cst_50 = arith.constant dense<0.000000e+00> : vector<24xf32>
    %137 = vector.multi_reduction <add>, %136, %cst_50 [1] : vector<24x24xf32> to vector<24xf32>
    %138 = vector.shape_cast %137 : vector<24xf32> to vector<24x1xf32>
    %139 = tpu.reciprocal %138 {approx = true} : vector<24x1xf32> -> vector<24x1xf32>
    %140 = vector.broadcast %139 : vector<24x1xf32> to vector<24x24xf32>
    %141 = arith.mulf %136, %140 : vector<24x24xf32>
    %142 = vector.extract_strided_slice %126 {offsets = [0, 0], sizes = [24, 8], strides = [1, 1]} : vector<24x32xf32> to vector<24x8xf32>
    %cst_51 = arith.constant dense<0.000000e+00> : vector<24x8xf32>
    %143 = tpu.matmul %141, %142, %cst_51 {dimension_numbers = #tpu.dot_dimension_numbers<[1], [0], [0], [1], [0, 0, 1, 1], [], []>} : vector<24x24xf32>, vector<24x8xf32>, vector<24x8xf32> -> vector<24x8xf32>
    %144 = vector.extract_strided_slice %43 {offsets = [0, 0], sizes = [8, 32], strides = [1, 1]} : vector<32x32xf32> to vector<8x32xf32>
    %cst_52 = arith.constant dense<0.000000e+00> : vector<24x32xf32>
    %145 = tpu.matmul %143, %144, %cst_52 {dimension_numbers = #tpu.dot_dimension_numbers<[1], [0], [0], [1], [0, 0, 1, 1], [], []>} : vector<24x8xf32>, vector<8x32xf32>, vector<24x32xf32> -> vector<24x32xf32>
    %146 = arith.addf %127, %145 : vector<24x32xf32>
    %147 = vector.extract_strided_slice %124 {offsets = [0, 8], sizes = [24, 8], strides = [1, 1]} : vector<24x32xf32> to vector<24x8xf32>
    %148 = vector.extract_strided_slice %125 {offsets = [0, 8], sizes = [24, 8], strides = [1, 1]} : vector<24x32xf32> to vector<24x8xf32>
    %cst_53 = arith.constant dense<0.000000e+00> : vector<24x24xf32>
    %149 = tpu.matmul %147, %148, %cst_53 {dimension_numbers = #tpu.dot_dimension_numbers<[1], [1], [0], [0], [0, 0, 1, 0], [], []>} : vector<24x8xf32>, vector<24x8xf32>, vector<24x24xf32> -> vector<24x24xf32>
    %150 = arith.addf %149, %5 : vector<24x24xf32>
    %cst_54 = arith.constant dense<0xFF800000> : vector<24xf32>
    %151 = vector.multi_reduction <maximumf>, %150, %cst_54 [1] : vector<24x24xf32> to vector<24xf32>
    %152 = vector.shape_cast %151 : vector<24xf32> to vector<24x1xf32>
    %153 = vector.broadcast %152 : vector<24x1xf32> to vector<24x24xf32>
    %154 = arith.subf %150, %153 : vector<24x24xf32>
    %155 = math.exp %154 : vector<24x24xf32>
    %cst_55 = arith.constant dense<0.000000e+00> : vector<24xf32>
    %156 = vector.multi_reduction <add>, %155, %cst_55 [1] : vector<24x24xf32> to vector<24xf32>
    %157 = vector.shape_cast %156 : vector<24xf32> to vector<24x1xf32>
    %158 = tpu.reciprocal %157 {approx = true} : vector<24x1xf32> -> vector<24x1xf32>
    %159 = vector.broadcast %158 : vector<24x1xf32> to vector<24x24xf32>
    %160 = arith.mulf %155, %159 : vector<24x24xf32>
    %161 = vector.extract_strided_slice %126 {offsets = [0, 8], sizes = [24, 8], strides = [1, 1]} : vector<24x32xf32> to vector<24x8xf32>
    %cst_56 = arith.constant dense<0.000000e+00> : vector<24x8xf32>
    %162 = tpu.matmul %160, %161, %cst_56 {dimension_numbers = #tpu.dot_dimension_numbers<[1], [0], [0], [1], [0, 0, 1, 1], [], []>} : vector<24x24xf32>, vector<24x8xf32>, vector<24x8xf32> -> vector<24x8xf32>
    %163 = vector.extract_strided_slice %43 {offsets = [8, 0], sizes = [8, 32], strides = [1, 1]} : vector<32x32xf32> to vector<8x32xf32>
    %cst_57 = arith.constant dense<0.000000e+00> : vector<24x32xf32>
    %164 = tpu.matmul %162, %163, %cst_57 {dimension_numbers = #tpu.dot_dimension_numbers<[1], [0], [0], [1], [0, 0, 1, 1], [], []>} : vector<24x8xf32>, vector<8x32xf32>, vector<24x32xf32> -> vector<24x32xf32>
    %165 = arith.addf %146, %164 : vector<24x32xf32>
    %166 = vector.extract_strided_slice %124 {offsets = [0, 16], sizes = [24, 8], strides = [1, 1]} : vector<24x32xf32> to vector<24x8xf32>
    %167 = vector.extract_strided_slice %125 {offsets = [0, 16], sizes = [24, 8], strides = [1, 1]} : vector<24x32xf32> to vector<24x8xf32>
    %cst_58 = arith.constant dense<0.000000e+00> : vector<24x24xf32>
    %168 = tpu.matmul %166, %167, %cst_58 {dimension_numbers = #tpu.dot_dimension_numbers<[1], [1], [0], [0], [0, 0, 1, 0], [], []>} : vector<24x8xf32>, vector<24x8xf32>, vector<24x24xf32> -> vector<24x24xf32>
    %169 = arith.addf %168, %5 : vector<24x24xf32>
    %cst_59 = arith.constant dense<0xFF800000> : vector<24xf32>
    %170 = vector.multi_reduction <maximumf>, %169, %cst_59 [1] : vector<24x24xf32> to vector<24xf32>
    %171 = vector.shape_cast %170 : vector<24xf32> to vector<24x1xf32>
    %172 = vector.broadcast %171 : vector<24x1xf32> to vector<24x24xf32>
    %173 = arith.subf %169, %172 : vector<24x24xf32>
    %174 = math.exp %173 : vector<24x24xf32>
    %cst_60 = arith.constant dense<0.000000e+00> : vector<24xf32>
    %175 = vector.multi_reduction <add>, %174, %cst_60 [1] : vector<24x24xf32> to vector<24xf32>
    %176 = vector.shape_cast %175 : vector<24xf32> to vector<24x1xf32>
    %177 = tpu.reciprocal %176 {approx = true} : vector<24x1xf32> -> vector<24x1xf32>
    %178 = vector.broadcast %177 : vector<24x1xf32> to vector<24x24xf32>
    %179 = arith.mulf %174, %178 : vector<24x24xf32>
    %180 = vector.extract_strided_slice %126 {offsets = [0, 16], sizes = [24, 8], strides = [1, 1]} : vector<24x32xf32> to vector<24x8xf32>
    %cst_61 = arith.constant dense<0.000000e+00> : vector<24x8xf32>
    %181 = tpu.matmul %179, %180, %cst_61 {dimension_numbers = #tpu.dot_dimension_numbers<[1], [0], [0], [1], [0, 0, 1, 1], [], []>} : vector<24x24xf32>, vector<24x8xf32>, vector<24x8xf32> -> vector<24x8xf32>
    %182 = vector.extract_strided_slice %43 {offsets = [16, 0], sizes = [8, 32], strides = [1, 1]} : vector<32x32xf32> to vector<8x32xf32>
    %cst_62 = arith.constant dense<0.000000e+00> : vector<24x32xf32>
    %183 = tpu.matmul %181, %182, %cst_62 {dimension_numbers = #tpu.dot_dimension_numbers<[1], [0], [0], [1], [0, 0, 1, 1], [], []>} : vector<24x8xf32>, vector<8x32xf32>, vector<24x32xf32> -> vector<24x32xf32>
    %184 = arith.addf %165, %183 : vector<24x32xf32>
    %185 = vector.extract_strided_slice %124 {offsets = [0, 24], sizes = [24, 8], strides = [1, 1]} : vector<24x32xf32> to vector<24x8xf32>
    %186 = vector.extract_strided_slice %125 {offsets = [0, 24], sizes = [24, 8], strides = [1, 1]} : vector<24x32xf32> to vector<24x8xf32>
    %cst_63 = arith.constant dense<0.000000e+00> : vector<24x24xf32>
    %187 = tpu.matmul %185, %186, %cst_63 {dimension_numbers = #tpu.dot_dimension_numbers<[1], [1], [0], [0], [0, 0, 1, 0], [], []>} : vector<24x8xf32>, vector<24x8xf32>, vector<24x24xf32> -> vector<24x24xf32>
    %188 = arith.addf %187, %5 : vector<24x24xf32>
    %cst_64 = arith.constant dense<0xFF800000> : vector<24xf32>
    %189 = vector.multi_reduction <maximumf>, %188, %cst_64 [1] : vector<24x24xf32> to vector<24xf32>
    %190 = vector.shape_cast %189 : vector<24xf32> to vector<24x1xf32>
    %191 = vector.broadcast %190 : vector<24x1xf32> to vector<24x24xf32>
    %192 = arith.subf %188, %191 : vector<24x24xf32>
    %193 = math.exp %192 : vector<24x24xf32>
    %cst_65 = arith.constant dense<0.000000e+00> : vector<24xf32>
    %194 = vector.multi_reduction <add>, %193, %cst_65 [1] : vector<24x24xf32> to vector<24xf32>
    %195 = vector.shape_cast %194 : vector<24xf32> to vector<24x1xf32>
    %196 = tpu.reciprocal %195 {approx = true} : vector<24x1xf32> -> vector<24x1xf32>
    %197 = vector.broadcast %196 : vector<24x1xf32> to vector<24x24xf32>
    %198 = arith.mulf %193, %197 : vector<24x24xf32>
    %199 = vector.extract_strided_slice %126 {offsets = [0, 24], sizes = [24, 8], strides = [1, 1]} : vector<24x32xf32> to vector<24x8xf32>
    %cst_66 = arith.constant dense<0.000000e+00> : vector<24x8xf32>
    %200 = tpu.matmul %198, %199, %cst_66 {dimension_numbers = #tpu.dot_dimension_numbers<[1], [0], [0], [1], [0, 0, 1, 1], [], []>} : vector<24x24xf32>, vector<24x8xf32>, vector<24x8xf32> -> vector<24x8xf32>
    %201 = vector.extract_strided_slice %43 {offsets = [24, 0], sizes = [8, 32], strides = [1, 1]} : vector<32x32xf32> to vector<8x32xf32>
    %cst_67 = arith.constant dense<0.000000e+00> : vector<24x32xf32>
    %202 = tpu.matmul %200, %201, %cst_67 {dimension_numbers = #tpu.dot_dimension_numbers<[1], [0], [0], [1], [0, 0, 1, 1], [], []>} : vector<24x8xf32>, vector<8x32xf32>, vector<24x32xf32> -> vector<24x32xf32>
    %203 = arith.addf %184, %202 : vector<24x32xf32>
    %204 = tpu.concatenate %123, %203 in 0 : vector<24x32xf32>, vector<24x32xf32> -> vector<48x32xf32>
    %205 = arith.addf %10, %204 : vector<48x32xf32>
    %c0_68 = arith.constant 0 : index
    %c0_69 = arith.constant 0 : index
    %c640 = arith.constant 640 : index
    %206 = vector.load %arg6[%c0_68, %c0_69, %c640] : memref<2x1x1024xf32, #tpu.memory_space<vmem>>, vector<1x1x32xf32>
    %207 = vector.shape_cast %206 : vector<1x1x32xf32> to vector<1x32xf32>
    %208 = vector.broadcast %207 : vector<1x32xf32> to vector<48x32xf32>
    %209 = arith.addf %205, %208 : vector<48x32xf32>
    %c0_70 = arith.constant 0 : index
    %c0_71 = arith.constant 0 : index
    %c256 = arith.constant 256 : index
    %210 = vector.load %arg6[%c0_70, %c0_71, %c256] : memref<2x1x1024xf32, #tpu.memory_space<vmem>>, vector<1x1x32xf32>
    %211 = vector.shape_cast %210 : vector<1x1x32xf32> to vector<1x32xf32>
    %c0_72 = arith.constant 0 : index
    %c0_73 = arith.constant 0 : index
    %c384 = arith.constant 384 : index
    %212 = vector.load %arg6[%c0_72, %c0_73, %c384] : memref<2x1x1024xf32, #tpu.memory_space<vmem>>, vector<1x1x32xf32>
    %213 = vector.shape_cast %212 : vector<1x1x32xf32> to vector<1x32xf32>
    %cst_74 = arith.constant dense<0.000000e+00> : vector<48xf32>
    %214 = vector.multi_reduction <add>, %209, %cst_74 [1] : vector<48x32xf32> to vector<48xf32>
    %215 = vector.shape_cast %214 : vector<48xf32> to vector<48x1xf32>
    %cst_75 = arith.constant 3.200000e+01 : f32
    %216 = vector.broadcast %cst_75 : f32 to vector<48x1xf32>
    %217 = arith.divf %215, %216 : vector<48x1xf32>
    %218 = vector.broadcast %217 : vector<48x1xf32> to vector<48x32xf32>
    %219 = arith.subf %209, %218 : vector<48x32xf32>
    %220 = arith.mulf %219, %219 : vector<48x32xf32>
    %cst_76 = arith.constant dense<0.000000e+00> : vector<48xf32>
    %221 = vector.multi_reduction <add>, %220, %cst_76 [1] : vector<48x32xf32> to vector<48xf32>
    %222 = vector.shape_cast %221 : vector<48xf32> to vector<48x1xf32>
    %cst_77 = arith.constant 3.200000e+01 : f32
    %223 = vector.broadcast %cst_77 : f32 to vector<48x1xf32>
    %224 = arith.divf %222, %223 : vector<48x1xf32>
    %cst_78 = arith.constant 9.99999997E-7 : f32
    %225 = vector.broadcast %cst_78 : f32 to vector<48x1xf32>
    %226 = arith.addf %224, %225 : vector<48x1xf32>
    %227 = math.rsqrt %226 : vector<48x1xf32>
    %228 = vector.broadcast %227 : vector<48x1xf32> to vector<48x32xf32>
    %229 = arith.mulf %219, %228 : vector<48x32xf32>
    %230 = vector.broadcast %211 : vector<1x32xf32> to vector<48x32xf32>
    %231 = arith.mulf %229, %230 : vector<48x32xf32>
    %232 = vector.broadcast %213 : vector<1x32xf32> to vector<48x32xf32>
    %233 = arith.addf %231, %232 : vector<48x32xf32>
    %c0_79 = arith.constant 0 : index
    %c0_80 = arith.constant 0 : index
    %c256_81 = arith.constant 256 : index
    %234 = vector.load %arg5[%c0_79, %c0_80, %c256_81] : memref<2x32x512xf32, #tpu.memory_space<vmem>>, vector<1x32x128xf32>
    %235 = vector.shape_cast %234 : vector<1x32x128xf32> to vector<32x128xf32>
    %cst_82 = arith.constant dense<0.000000e+00> : vector<48x128xf32>
    %236 = tpu.matmul %233, %235, %cst_82 {dimension_numbers = #tpu.dot_dimension_numbers<[1], [0], [0], [1], [0, 0, 1, 1], [], []>} : vector<48x32xf32>, vector<32x128xf32>, vector<48x128xf32> -> vector<48x128xf32>
    %c0_83 = arith.constant 0 : index
    %c0_84 = arith.constant 0 : index
    %c768 = arith.constant 768 : index
    %237 = vector.load %arg6[%c0_83, %c0_84, %c768] : memref<2x1x1024xf32, #tpu.memory_space<vmem>>, vector<1x1x128xf32>
    %238 = vector.shape_cast %237 : vector<1x1x128xf32> to vector<1x128xf32>
    %239 = vector.broadcast %238 : vector<1x128xf32> to vector<48x128xf32>
    %240 = arith.addf %236, %239 : vector<48x128xf32>
    %cst_85 = arith.constant 5.000000e-01 : f32
    %241 = vector.broadcast %cst_85 : f32 to vector<48x128xf32>
    %242 = arith.mulf %241, %240 : vector<48x128xf32>
    %cst_86 = arith.constant 0.707106769 : f32
    %243 = vector.broadcast %cst_86 : f32 to vector<48x128xf32>
    %244 = arith.mulf %240, %243 : vector<48x128xf32>
    %245 = math.erf %244 : vector<48x128xf32>
    %cst_87 = arith.constant 1.000000e+00 : f32
    %246 = vector.broadcast %cst_87 : f32 to vector<48x128xf32>
    %247 = arith.addf %246, %245 : vector<48x128xf32>
    %248 = arith.mulf %242, %247 : vector<48x128xf32>
    %c0_88 = arith.constant 0 : index
    %c0_89 = arith.constant 0 : index
    %c384_90 = arith.constant 384 : index
    %249 = vector.load %arg5[%c0_88, %c0_89, %c384_90] : memref<2x32x512xf32, #tpu.memory_space<vmem>>, vector<1x32x128xf32>
    %250 = vector.shape_cast %249 : vector<1x32x128xf32> to vector<32x128xf32>
    %cst_91 = arith.constant dense<0.000000e+00> : vector<48x32xf32>
    %251 = tpu.matmul %248, %250, %cst_91 {dimension_numbers = #tpu.dot_dimension_numbers<[1], [1], [0], [0], [0, 0, 1, 0], [], []>} : vector<48x128xf32>, vector<32x128xf32>, vector<48x32xf32> -> vector<48x32xf32>
    %c0_92 = arith.constant 0 : index
    %c0_93 = arith.constant 0 : index
    %c896 = arith.constant 896 : index
    %252 = vector.load %arg6[%c0_92, %c0_93, %c896] : memref<2x1x1024xf32, #tpu.memory_space<vmem>>, vector<1x1x32xf32>
    %253 = vector.shape_cast %252 : vector<1x1x32xf32> to vector<1x32xf32>
    %254 = vector.broadcast %253 : vector<1x32xf32> to vector<48x32xf32>
    %255 = arith.addf %251, %254 : vector<48x32xf32>
    %256 = arith.addf %209, %255 : vector<48x32xf32>
    %c1 = arith.constant 1 : index
    %c0_94 = arith.constant 0 : index
    %c0_95 = arith.constant 0 : index
    %257 = vector.load %arg6[%c1, %c0_94, %c0_95] : memref<2x1x1024xf32, #tpu.memory_space<vmem>>, vector<1x1x32xf32>
    %258 = vector.shape_cast %257 : vector<1x1x32xf32> to vector<1x32xf32>
    %c1_96 = arith.constant 1 : index
    %c0_97 = arith.constant 0 : index
    %c128_98 = arith.constant 128 : index
    %259 = vector.load %arg6[%c1_96, %c0_97, %c128_98] : memref<2x1x1024xf32, #tpu.memory_space<vmem>>, vector<1x1x32xf32>
    %260 = vector.shape_cast %259 : vector<1x1x32xf32> to vector<1x32xf32>
    %cst_99 = arith.constant dense<0.000000e+00> : vector<48xf32>
    %261 = vector.multi_reduction <add>, %256, %cst_99 [1] : vector<48x32xf32> to vector<48xf32>
    %262 = vector.shape_cast %261 : vector<48xf32> to vector<48x1xf32>
    %cst_100 = arith.constant 3.200000e+01 : f32
    %263 = vector.broadcast %cst_100 : f32 to vector<48x1xf32>
    %264 = arith.divf %262, %263 : vector<48x1xf32>
    %265 = vector.broadcast %264 : vector<48x1xf32> to vector<48x32xf32>
    %266 = arith.subf %256, %265 : vector<48x32xf32>
    %267 = arith.mulf %266, %266 : vector<48x32xf32>
    %cst_101 = arith.constant dense<0.000000e+00> : vector<48xf32>
    %268 = vector.multi_reduction <add>, %267, %cst_101 [1] : vector<48x32xf32> to vector<48xf32>
    %269 = vector.shape_cast %268 : vector<48xf32> to vector<48x1xf32>
    %cst_102 = arith.constant 3.200000e+01 : f32
    %270 = vector.broadcast %cst_102 : f32 to vector<48x1xf32>
    %271 = arith.divf %269, %270 : vector<48x1xf32>
    %cst_103 = arith.constant 9.99999997E-7 : f32
    %272 = vector.broadcast %cst_103 : f32 to vector<48x1xf32>
    %273 = arith.addf %271, %272 : vector<48x1xf32>
    %274 = math.rsqrt %273 : vector<48x1xf32>
    %275 = vector.broadcast %274 : vector<48x1xf32> to vector<48x32xf32>
    %276 = arith.mulf %266, %275 : vector<48x32xf32>
    %277 = vector.broadcast %258 : vector<1x32xf32> to vector<48x32xf32>
    %278 = arith.mulf %276, %277 : vector<48x32xf32>
    %279 = vector.broadcast %260 : vector<1x32xf32> to vector<48x32xf32>
    %280 = arith.addf %278, %279 : vector<48x32xf32>
    %c1_104 = arith.constant 1 : index
    %c0_105 = arith.constant 0 : index
    %c0_106 = arith.constant 0 : index
    %281 = vector.load %arg5[%c1_104, %c0_105, %c0_106] : memref<2x32x512xf32, #tpu.memory_space<vmem>>, vector<1x32x128xf32>
    %282 = vector.shape_cast %281 : vector<1x32x128xf32> to vector<32x128xf32>
    %cst_107 = arith.constant dense<0.000000e+00> : vector<48x128xf32>
    %283 = tpu.matmul %280, %282, %cst_107 {dimension_numbers = #tpu.dot_dimension_numbers<[1], [0], [0], [1], [0, 0, 1, 1], [], []>} : vector<48x32xf32>, vector<32x128xf32>, vector<48x128xf32> -> vector<48x128xf32>
    %c1_108 = arith.constant 1 : index
    %c0_109 = arith.constant 0 : index
    %c512_110 = arith.constant 512 : index
    %284 = vector.load %arg6[%c1_108, %c0_109, %c512_110] : memref<2x1x1024xf32, #tpu.memory_space<vmem>>, vector<1x1x128xf32>
    %285 = vector.shape_cast %284 : vector<1x1x128xf32> to vector<1x128xf32>
    %286 = vector.broadcast %285 : vector<1x128xf32> to vector<48x128xf32>
    %287 = arith.addf %283, %286 : vector<48x128xf32>
    %c1_111 = arith.constant 1 : index
    %c0_112 = arith.constant 0 : index
    %c128_113 = arith.constant 128 : index
    %288 = vector.load %arg5[%c1_111, %c0_112, %c128_113] : memref<2x32x512xf32, #tpu.memory_space<vmem>>, vector<1x32x32xf32>
    %289 = vector.shape_cast %288 : vector<1x32x32xf32> to vector<32x32xf32>
    %290 = vector.extract_strided_slice %287 {offsets = [0, 0], sizes = [24, 32], strides = [1, 1]} : vector<48x128xf32> to vector<24x32xf32>
    %291 = vector.extract_strided_slice %287 {offsets = [0, 32], sizes = [24, 32], strides = [1, 1]} : vector<48x128xf32> to vector<24x32xf32>
    %292 = vector.extract_strided_slice %287 {offsets = [0, 64], sizes = [24, 32], strides = [1, 1]} : vector<48x128xf32> to vector<24x32xf32>
    %cst_114 = arith.constant 0.000000e+00 : f32
    %293 = vector.broadcast %cst_114 : f32 to vector<24x32xf32>
    %294 = vector.extract_strided_slice %290 {offsets = [0, 0], sizes = [24, 8], strides = [1, 1]} : vector<24x32xf32> to vector<24x8xf32>
    %295 = vector.extract_strided_slice %291 {offsets = [0, 0], sizes = [24, 8], strides = [1, 1]} : vector<24x32xf32> to vector<24x8xf32>
    %cst_115 = arith.constant dense<0.000000e+00> : vector<24x24xf32>
    %296 = tpu.matmul %294, %295, %cst_115 {dimension_numbers = #tpu.dot_dimension_numbers<[1], [1], [0], [0], [0, 0, 1, 0], [], []>} : vector<24x8xf32>, vector<24x8xf32>, vector<24x24xf32> -> vector<24x24xf32>
    %297 = arith.addf %296, %5 : vector<24x24xf32>
    %cst_116 = arith.constant dense<0xFF800000> : vector<24xf32>
    %298 = vector.multi_reduction <maximumf>, %297, %cst_116 [1] : vector<24x24xf32> to vector<24xf32>
    %299 = vector.shape_cast %298 : vector<24xf32> to vector<24x1xf32>
    %300 = vector.broadcast %299 : vector<24x1xf32> to vector<24x24xf32>
    %301 = arith.subf %297, %300 : vector<24x24xf32>
    %302 = math.exp %301 : vector<24x24xf32>
    %cst_117 = arith.constant dense<0.000000e+00> : vector<24xf32>
    %303 = vector.multi_reduction <add>, %302, %cst_117 [1] : vector<24x24xf32> to vector<24xf32>
    %304 = vector.shape_cast %303 : vector<24xf32> to vector<24x1xf32>
    %305 = tpu.reciprocal %304 {approx = true} : vector<24x1xf32> -> vector<24x1xf32>
    %306 = vector.broadcast %305 : vector<24x1xf32> to vector<24x24xf32>
    %307 = arith.mulf %302, %306 : vector<24x24xf32>
    %308 = vector.extract_strided_slice %292 {offsets = [0, 0], sizes = [24, 8], strides = [1, 1]} : vector<24x32xf32> to vector<24x8xf32>
    %cst_118 = arith.constant dense<0.000000e+00> : vector<24x8xf32>
    %309 = tpu.matmul %307, %308, %cst_118 {dimension_numbers = #tpu.dot_dimension_numbers<[1], [0], [0], [1], [0, 0, 1, 1], [], []>} : vector<24x24xf32>, vector<24x8xf32>, vector<24x8xf32> -> vector<24x8xf32>
    %310 = vector.extract_strided_slice %289 {offsets = [0, 0], sizes = [8, 32], strides = [1, 1]} : vector<32x32xf32> to vector<8x32xf32>
    %cst_119 = arith.constant dense<0.000000e+00> : vector<24x32xf32>
    %311 = tpu.matmul %309, %310, %cst_119 {dimension_numbers = #tpu.dot_dimension_numbers<[1], [0], [0], [1], [0, 0, 1, 1], [], []>} : vector<24x8xf32>, vector<8x32xf32>, vector<24x32xf32> -> vector<24x32xf32>
    %312 = arith.addf %293, %311 : vector<24x32xf32>
    %313 = vector.extract_strided_slice %290 {offsets = [0, 8], sizes = [24, 8], strides = [1, 1]} : vector<24x32xf32> to vector<24x8xf32>
    %314 = vector.extract_strided_slice %291 {offsets = [0, 8], sizes = [24, 8], strides = [1, 1]} : vector<24x32xf32> to vector<24x8xf32>
    %cst_120 = arith.constant dense<0.000000e+00> : vector<24x24xf32>
    %315 = tpu.matmul %313, %314, %cst_120 {dimension_numbers = #tpu.dot_dimension_numbers<[1], [1], [0], [0], [0, 0, 1, 0], [], []>} : vector<24x8xf32>, vector<24x8xf32>, vector<24x24xf32> -> vector<24x24xf32>
    %316 = arith.addf %315, %5 : vector<24x24xf32>
    %cst_121 = arith.constant dense<0xFF800000> : vector<24xf32>
    %317 = vector.multi_reduction <maximumf>, %316, %cst_121 [1] : vector<24x24xf32> to vector<24xf32>
    %318 = vector.shape_cast %317 : vector<24xf32> to vector<24x1xf32>
    %319 = vector.broadcast %318 : vector<24x1xf32> to vector<24x24xf32>
    %320 = arith.subf %316, %319 : vector<24x24xf32>
    %321 = math.exp %320 : vector<24x24xf32>
    %cst_122 = arith.constant dense<0.000000e+00> : vector<24xf32>
    %322 = vector.multi_reduction <add>, %321, %cst_122 [1] : vector<24x24xf32> to vector<24xf32>
    %323 = vector.shape_cast %322 : vector<24xf32> to vector<24x1xf32>
    %324 = tpu.reciprocal %323 {approx = true} : vector<24x1xf32> -> vector<24x1xf32>
    %325 = vector.broadcast %324 : vector<24x1xf32> to vector<24x24xf32>
    %326 = arith.mulf %321, %325 : vector<24x24xf32>
    %327 = vector.extract_strided_slice %292 {offsets = [0, 8], sizes = [24, 8], strides = [1, 1]} : vector<24x32xf32> to vector<24x8xf32>
    %cst_123 = arith.constant dense<0.000000e+00> : vector<24x8xf32>
    %328 = tpu.matmul %326, %327, %cst_123 {dimension_numbers = #tpu.dot_dimension_numbers<[1], [0], [0], [1], [0, 0, 1, 1], [], []>} : vector<24x24xf32>, vector<24x8xf32>, vector<24x8xf32> -> vector<24x8xf32>
    %329 = vector.extract_strided_slice %289 {offsets = [8, 0], sizes = [8, 32], strides = [1, 1]} : vector<32x32xf32> to vector<8x32xf32>
    %cst_124 = arith.constant dense<0.000000e+00> : vector<24x32xf32>
    %330 = tpu.matmul %328, %329, %cst_124 {dimension_numbers = #tpu.dot_dimension_numbers<[1], [0], [0], [1], [0, 0, 1, 1], [], []>} : vector<24x8xf32>, vector<8x32xf32>, vector<24x32xf32> -> vector<24x32xf32>
    %331 = arith.addf %312, %330 : vector<24x32xf32>
    %332 = vector.extract_strided_slice %290 {offsets = [0, 16], sizes = [24, 8], strides = [1, 1]} : vector<24x32xf32> to vector<24x8xf32>
    %333 = vector.extract_strided_slice %291 {offsets = [0, 16], sizes = [24, 8], strides = [1, 1]} : vector<24x32xf32> to vector<24x8xf32>
    %cst_125 = arith.constant dense<0.000000e+00> : vector<24x24xf32>
    %334 = tpu.matmul %332, %333, %cst_125 {dimension_numbers = #tpu.dot_dimension_numbers<[1], [1], [0], [0], [0, 0, 1, 0], [], []>} : vector<24x8xf32>, vector<24x8xf32>, vector<24x24xf32> -> vector<24x24xf32>
    %335 = arith.addf %334, %5 : vector<24x24xf32>
    %cst_126 = arith.constant dense<0xFF800000> : vector<24xf32>
    %336 = vector.multi_reduction <maximumf>, %335, %cst_126 [1] : vector<24x24xf32> to vector<24xf32>
    %337 = vector.shape_cast %336 : vector<24xf32> to vector<24x1xf32>
    %338 = vector.broadcast %337 : vector<24x1xf32> to vector<24x24xf32>
    %339 = arith.subf %335, %338 : vector<24x24xf32>
    %340 = math.exp %339 : vector<24x24xf32>
    %cst_127 = arith.constant dense<0.000000e+00> : vector<24xf32>
    %341 = vector.multi_reduction <add>, %340, %cst_127 [1] : vector<24x24xf32> to vector<24xf32>
    %342 = vector.shape_cast %341 : vector<24xf32> to vector<24x1xf32>
    %343 = tpu.reciprocal %342 {approx = true} : vector<24x1xf32> -> vector<24x1xf32>
    %344 = vector.broadcast %343 : vector<24x1xf32> to vector<24x24xf32>
    %345 = arith.mulf %340, %344 : vector<24x24xf32>
    %346 = vector.extract_strided_slice %292 {offsets = [0, 16], sizes = [24, 8], strides = [1, 1]} : vector<24x32xf32> to vector<24x8xf32>
    %cst_128 = arith.constant dense<0.000000e+00> : vector<24x8xf32>
    %347 = tpu.matmul %345, %346, %cst_128 {dimension_numbers = #tpu.dot_dimension_numbers<[1], [0], [0], [1], [0, 0, 1, 1], [], []>} : vector<24x24xf32>, vector<24x8xf32>, vector<24x8xf32> -> vector<24x8xf32>
    %348 = vector.extract_strided_slice %289 {offsets = [16, 0], sizes = [8, 32], strides = [1, 1]} : vector<32x32xf32> to vector<8x32xf32>
    %cst_129 = arith.constant dense<0.000000e+00> : vector<24x32xf32>
    %349 = tpu.matmul %347, %348, %cst_129 {dimension_numbers = #tpu.dot_dimension_numbers<[1], [0], [0], [1], [0, 0, 1, 1], [], []>} : vector<24x8xf32>, vector<8x32xf32>, vector<24x32xf32> -> vector<24x32xf32>
    %350 = arith.addf %331, %349 : vector<24x32xf32>
    %351 = vector.extract_strided_slice %290 {offsets = [0, 24], sizes = [24, 8], strides = [1, 1]} : vector<24x32xf32> to vector<24x8xf32>
    %352 = vector.extract_strided_slice %291 {offsets = [0, 24], sizes = [24, 8], strides = [1, 1]} : vector<24x32xf32> to vector<24x8xf32>
    %cst_130 = arith.constant dense<0.000000e+00> : vector<24x24xf32>
    %353 = tpu.matmul %351, %352, %cst_130 {dimension_numbers = #tpu.dot_dimension_numbers<[1], [1], [0], [0], [0, 0, 1, 0], [], []>} : vector<24x8xf32>, vector<24x8xf32>, vector<24x24xf32> -> vector<24x24xf32>
    %354 = arith.addf %353, %5 : vector<24x24xf32>
    %cst_131 = arith.constant dense<0xFF800000> : vector<24xf32>
    %355 = vector.multi_reduction <maximumf>, %354, %cst_131 [1] : vector<24x24xf32> to vector<24xf32>
    %356 = vector.shape_cast %355 : vector<24xf32> to vector<24x1xf32>
    %357 = vector.broadcast %356 : vector<24x1xf32> to vector<24x24xf32>
    %358 = arith.subf %354, %357 : vector<24x24xf32>
    %359 = math.exp %358 : vector<24x24xf32>
    %cst_132 = arith.constant dense<0.000000e+00> : vector<24xf32>
    %360 = vector.multi_reduction <add>, %359, %cst_132 [1] : vector<24x24xf32> to vector<24xf32>
    %361 = vector.shape_cast %360 : vector<24xf32> to vector<24x1xf32>
    %362 = tpu.reciprocal %361 {approx = true} : vector<24x1xf32> -> vector<24x1xf32>
    %363 = vector.broadcast %362 : vector<24x1xf32> to vector<24x24xf32>
    %364 = arith.mulf %359, %363 : vector<24x24xf32>
    %365 = vector.extract_strided_slice %292 {offsets = [0, 24], sizes = [24, 8], strides = [1, 1]} : vector<24x32xf32> to vector<24x8xf32>
    %cst_133 = arith.constant dense<0.000000e+00> : vector<24x8xf32>
    %366 = tpu.matmul %364, %365, %cst_133 {dimension_numbers = #tpu.dot_dimension_numbers<[1], [0], [0], [1], [0, 0, 1, 1], [], []>} : vector<24x24xf32>, vector<24x8xf32>, vector<24x8xf32> -> vector<24x8xf32>
    %367 = vector.extract_strided_slice %289 {offsets = [24, 0], sizes = [8, 32], strides = [1, 1]} : vector<32x32xf32> to vector<8x32xf32>
    %cst_134 = arith.constant dense<0.000000e+00> : vector<24x32xf32>
    %368 = tpu.matmul %366, %367, %cst_134 {dimension_numbers = #tpu.dot_dimension_numbers<[1], [0], [0], [1], [0, 0, 1, 1], [], []>} : vector<24x8xf32>, vector<8x32xf32>, vector<24x32xf32> -> vector<24x32xf32>
    %369 = arith.addf %350, %368 : vector<24x32xf32>
    %370 = vector.extract_strided_slice %287 {offsets = [24, 0], sizes = [24, 32], strides = [1, 1]} : vector<48x128xf32> to vector<24x32xf32>
    %371 = vector.extract_strided_slice %287 {offsets = [24, 32], sizes = [24, 32], strides = [1, 1]} : vector<48x128xf32> to vector<24x32xf32>
    %372 = vector.extract_strided_slice %287 {offsets = [24, 64], sizes = [24, 32], strides = [1, 1]} : vector<48x128xf32> to vector<24x32xf32>
    %cst_135 = arith.constant 0.000000e+00 : f32
    %373 = vector.broadcast %cst_135 : f32 to vector<24x32xf32>
    %374 = vector.extract_strided_slice %370 {offsets = [0, 0], sizes = [24, 8], strides = [1, 1]} : vector<24x32xf32> to vector<24x8xf32>
    %375 = vector.extract_strided_slice %371 {offsets = [0, 0], sizes = [24, 8], strides = [1, 1]} : vector<24x32xf32> to vector<24x8xf32>
    %cst_136 = arith.constant dense<0.000000e+00> : vector<24x24xf32>
    %376 = tpu.matmul %374, %375, %cst_136 {dimension_numbers = #tpu.dot_dimension_numbers<[1], [1], [0], [0], [0, 0, 1, 0], [], []>} : vector<24x8xf32>, vector<24x8xf32>, vector<24x24xf32> -> vector<24x24xf32>
    %377 = arith.addf %376, %5 : vector<24x24xf32>
    %cst_137 = arith.constant dense<0xFF800000> : vector<24xf32>
    %378 = vector.multi_reduction <maximumf>, %377, %cst_137 [1] : vector<24x24xf32> to vector<24xf32>
    %379 = vector.shape_cast %378 : vector<24xf32> to vector<24x1xf32>
    %380 = vector.broadcast %379 : vector<24x1xf32> to vector<24x24xf32>
    %381 = arith.subf %377, %380 : vector<24x24xf32>
    %382 = math.exp %381 : vector<24x24xf32>
    %cst_138 = arith.constant dense<0.000000e+00> : vector<24xf32>
    %383 = vector.multi_reduction <add>, %382, %cst_138 [1] : vector<24x24xf32> to vector<24xf32>
    %384 = vector.shape_cast %383 : vector<24xf32> to vector<24x1xf32>
    %385 = tpu.reciprocal %384 {approx = true} : vector<24x1xf32> -> vector<24x1xf32>
    %386 = vector.broadcast %385 : vector<24x1xf32> to vector<24x24xf32>
    %387 = arith.mulf %382, %386 : vector<24x24xf32>
    %388 = vector.extract_strided_slice %372 {offsets = [0, 0], sizes = [24, 8], strides = [1, 1]} : vector<24x32xf32> to vector<24x8xf32>
    %cst_139 = arith.constant dense<0.000000e+00> : vector<24x8xf32>
    %389 = tpu.matmul %387, %388, %cst_139 {dimension_numbers = #tpu.dot_dimension_numbers<[1], [0], [0], [1], [0, 0, 1, 1], [], []>} : vector<24x24xf32>, vector<24x8xf32>, vector<24x8xf32> -> vector<24x8xf32>
    %390 = vector.extract_strided_slice %289 {offsets = [0, 0], sizes = [8, 32], strides = [1, 1]} : vector<32x32xf32> to vector<8x32xf32>
    %cst_140 = arith.constant dense<0.000000e+00> : vector<24x32xf32>
    %391 = tpu.matmul %389, %390, %cst_140 {dimension_numbers = #tpu.dot_dimension_numbers<[1], [0], [0], [1], [0, 0, 1, 1], [], []>} : vector<24x8xf32>, vector<8x32xf32>, vector<24x32xf32> -> vector<24x32xf32>
    %392 = arith.addf %373, %391 : vector<24x32xf32>
    %393 = vector.extract_strided_slice %370 {offsets = [0, 8], sizes = [24, 8], strides = [1, 1]} : vector<24x32xf32> to vector<24x8xf32>
    %394 = vector.extract_strided_slice %371 {offsets = [0, 8], sizes = [24, 8], strides = [1, 1]} : vector<24x32xf32> to vector<24x8xf32>
    %cst_141 = arith.constant dense<0.000000e+00> : vector<24x24xf32>
    %395 = tpu.matmul %393, %394, %cst_141 {dimension_numbers = #tpu.dot_dimension_numbers<[1], [1], [0], [0], [0, 0, 1, 0], [], []>} : vector<24x8xf32>, vector<24x8xf32>, vector<24x24xf32> -> vector<24x24xf32>
    %396 = arith.addf %395, %5 : vector<24x24xf32>
    %cst_142 = arith.constant dense<0xFF800000> : vector<24xf32>
    %397 = vector.multi_reduction <maximumf>, %396, %cst_142 [1] : vector<24x24xf32> to vector<24xf32>
    %398 = vector.shape_cast %397 : vector<24xf32> to vector<24x1xf32>
    %399 = vector.broadcast %398 : vector<24x1xf32> to vector<24x24xf32>
    %400 = arith.subf %396, %399 : vector<24x24xf32>
    %401 = math.exp %400 : vector<24x24xf32>
    %cst_143 = arith.constant dense<0.000000e+00> : vector<24xf32>
    %402 = vector.multi_reduction <add>, %401, %cst_143 [1] : vector<24x24xf32> to vector<24xf32>
    %403 = vector.shape_cast %402 : vector<24xf32> to vector<24x1xf32>
    %404 = tpu.reciprocal %403 {approx = true} : vector<24x1xf32> -> vector<24x1xf32>
    %405 = vector.broadcast %404 : vector<24x1xf32> to vector<24x24xf32>
    %406 = arith.mulf %401, %405 : vector<24x24xf32>
    %407 = vector.extract_strided_slice %372 {offsets = [0, 8], sizes = [24, 8], strides = [1, 1]} : vector<24x32xf32> to vector<24x8xf32>
    %cst_144 = arith.constant dense<0.000000e+00> : vector<24x8xf32>
    %408 = tpu.matmul %406, %407, %cst_144 {dimension_numbers = #tpu.dot_dimension_numbers<[1], [0], [0], [1], [0, 0, 1, 1], [], []>} : vector<24x24xf32>, vector<24x8xf32>, vector<24x8xf32> -> vector<24x8xf32>
    %409 = vector.extract_strided_slice %289 {offsets = [8, 0], sizes = [8, 32], strides = [1, 1]} : vector<32x32xf32> to vector<8x32xf32>
    %cst_145 = arith.constant dense<0.000000e+00> : vector<24x32xf32>
    %410 = tpu.matmul %408, %409, %cst_145 {dimension_numbers = #tpu.dot_dimension_numbers<[1], [0], [0], [1], [0, 0, 1, 1], [], []>} : vector<24x8xf32>, vector<8x32xf32>, vector<24x32xf32> -> vector<24x32xf32>
    %411 = arith.addf %392, %410 : vector<24x32xf32>
    %412 = vector.extract_strided_slice %370 {offsets = [0, 16], sizes = [24, 8], strides = [1, 1]} : vector<24x32xf32> to vector<24x8xf32>
    %413 = vector.extract_strided_slice %371 {offsets = [0, 16], sizes = [24, 8], strides = [1, 1]} : vector<24x32xf32> to vector<24x8xf32>
    %cst_146 = arith.constant dense<0.000000e+00> : vector<24x24xf32>
    %414 = tpu.matmul %412, %413, %cst_146 {dimension_numbers = #tpu.dot_dimension_numbers<[1], [1], [0], [0], [0, 0, 1, 0], [], []>} : vector<24x8xf32>, vector<24x8xf32>, vector<24x24xf32> -> vector<24x24xf32>
    %415 = arith.addf %414, %5 : vector<24x24xf32>
    %cst_147 = arith.constant dense<0xFF800000> : vector<24xf32>
    %416 = vector.multi_reduction <maximumf>, %415, %cst_147 [1] : vector<24x24xf32> to vector<24xf32>
    %417 = vector.shape_cast %416 : vector<24xf32> to vector<24x1xf32>
    %418 = vector.broadcast %417 : vector<24x1xf32> to vector<24x24xf32>
    %419 = arith.subf %415, %418 : vector<24x24xf32>
    %420 = math.exp %419 : vector<24x24xf32>
    %cst_148 = arith.constant dense<0.000000e+00> : vector<24xf32>
    %421 = vector.multi_reduction <add>, %420, %cst_148 [1] : vector<24x24xf32> to vector<24xf32>
    %422 = vector.shape_cast %421 : vector<24xf32> to vector<24x1xf32>
    %423 = tpu.reciprocal %422 {approx = true} : vector<24x1xf32> -> vector<24x1xf32>
    %424 = vector.broadcast %423 : vector<24x1xf32> to vector<24x24xf32>
    %425 = arith.mulf %420, %424 : vector<24x24xf32>
    %426 = vector.extract_strided_slice %372 {offsets = [0, 16], sizes = [24, 8], strides = [1, 1]} : vector<24x32xf32> to vector<24x8xf32>
    %cst_149 = arith.constant dense<0.000000e+00> : vector<24x8xf32>
    %427 = tpu.matmul %425, %426, %cst_149 {dimension_numbers = #tpu.dot_dimension_numbers<[1], [0], [0], [1], [0, 0, 1, 1], [], []>} : vector<24x24xf32>, vector<24x8xf32>, vector<24x8xf32> -> vector<24x8xf32>
    %428 = vector.extract_strided_slice %289 {offsets = [16, 0], sizes = [8, 32], strides = [1, 1]} : vector<32x32xf32> to vector<8x32xf32>
    %cst_150 = arith.constant dense<0.000000e+00> : vector<24x32xf32>
    %429 = tpu.matmul %427, %428, %cst_150 {dimension_numbers = #tpu.dot_dimension_numbers<[1], [0], [0], [1], [0, 0, 1, 1], [], []>} : vector<24x8xf32>, vector<8x32xf32>, vector<24x32xf32> -> vector<24x32xf32>
    %430 = arith.addf %411, %429 : vector<24x32xf32>
    %431 = vector.extract_strided_slice %370 {offsets = [0, 24], sizes = [24, 8], strides = [1, 1]} : vector<24x32xf32> to vector<24x8xf32>
    %432 = vector.extract_strided_slice %371 {offsets = [0, 24], sizes = [24, 8], strides = [1, 1]} : vector<24x32xf32> to vector<24x8xf32>
    %cst_151 = arith.constant dense<0.000000e+00> : vector<24x24xf32>
    %433 = tpu.matmul %431, %432, %cst_151 {dimension_numbers = #tpu.dot_dimension_numbers<[1], [1], [0], [0], [0, 0, 1, 0], [], []>} : vector<24x8xf32>, vector<24x8xf32>, vector<24x24xf32> -> vector<24x24xf32>
    %434 = arith.addf %433, %5 : vector<24x24xf32>
    %cst_152 = arith.constant dense<0xFF800000> : vector<24xf32>
    %435 = vector.multi_reduction <maximumf>, %434, %cst_152 [1] : vector<24x24xf32> to vector<24xf32>
    %436 = vector.shape_cast %435 : vector<24xf32> to vector<24x1xf32>
    %437 = vector.broadcast %436 : vector<24x1xf32> to vector<24x24xf32>
    %438 = arith.subf %434, %437 : vector<24x24xf32>
    %439 = math.exp %438 : vector<24x24xf32>
    %cst_153 = arith.constant dense<0.000000e+00> : vector<24xf32>
    %440 = vector.multi_reduction <add>, %439, %cst_153 [1] : vector<24x24xf32> to vector<24xf32>
    %441 = vector.shape_cast %440 : vector<24xf32> to vector<24x1xf32>
    %442 = tpu.reciprocal %441 {approx = true} : vector<24x1xf32> -> vector<24x1xf32>
    %443 = vector.broadcast %442 : vector<24x1xf32> to vector<24x24xf32>
    %444 = arith.mulf %439, %443 : vector<24x24xf32>
    %445 = vector.extract_strided_slice %372 {offsets = [0, 24], sizes = [24, 8], strides = [1, 1]} : vector<24x32xf32> to vector<24x8xf32>
    %cst_154 = arith.constant dense<0.000000e+00> : vector<24x8xf32>
    %446 = tpu.matmul %444, %445, %cst_154 {dimension_numbers = #tpu.dot_dimension_numbers<[1], [0], [0], [1], [0, 0, 1, 1], [], []>} : vector<24x24xf32>, vector<24x8xf32>, vector<24x8xf32> -> vector<24x8xf32>
    %447 = vector.extract_strided_slice %289 {offsets = [24, 0], sizes = [8, 32], strides = [1, 1]} : vector<32x32xf32> to vector<8x32xf32>
    %cst_155 = arith.constant dense<0.000000e+00> : vector<24x32xf32>
    %448 = tpu.matmul %446, %447, %cst_155 {dimension_numbers = #tpu.dot_dimension_numbers<[1], [0], [0], [1], [0, 0, 1, 1], [], []>} : vector<24x8xf32>, vector<8x32xf32>, vector<24x32xf32> -> vector<24x32xf32>
    %449 = arith.addf %430, %448 : vector<24x32xf32>
    %450 = tpu.concatenate %369, %449 in 0 : vector<24x32xf32>, vector<24x32xf32> -> vector<48x32xf32>
    %451 = arith.addf %256, %450 : vector<48x32xf32>
    %c1_156 = arith.constant 1 : index
    %c0_157 = arith.constant 0 : index
    %c640_158 = arith.constant 640 : index
    %452 = vector.load %arg6[%c1_156, %c0_157, %c640_158] : memref<2x1x1024xf32, #tpu.memory_space<vmem>>, vector<1x1x32xf32>
    %453 = vector.shape_cast %452 : vector<1x1x32xf32> to vector<1x32xf32>
    %454 = vector.broadcast %453 : vector<1x32xf32> to vector<48x32xf32>
    %455 = arith.addf %451, %454 : vector<48x32xf32>
    %c1_159 = arith.constant 1 : index
    %c0_160 = arith.constant 0 : index
    %c256_161 = arith.constant 256 : index
    %456 = vector.load %arg6[%c1_159, %c0_160, %c256_161] : memref<2x1x1024xf32, #tpu.memory_space<vmem>>, vector<1x1x32xf32>
    %457 = vector.shape_cast %456 : vector<1x1x32xf32> to vector<1x32xf32>
    %c1_162 = arith.constant 1 : index
    %c0_163 = arith.constant 0 : index
    %c384_164 = arith.constant 384 : index
    %458 = vector.load %arg6[%c1_162, %c0_163, %c384_164] : memref<2x1x1024xf32, #tpu.memory_space<vmem>>, vector<1x1x32xf32>
    %459 = vector.shape_cast %458 : vector<1x1x32xf32> to vector<1x32xf32>
    %cst_165 = arith.constant dense<0.000000e+00> : vector<48xf32>
    %460 = vector.multi_reduction <add>, %455, %cst_165 [1] : vector<48x32xf32> to vector<48xf32>
    %461 = vector.shape_cast %460 : vector<48xf32> to vector<48x1xf32>
    %cst_166 = arith.constant 3.200000e+01 : f32
    %462 = vector.broadcast %cst_166 : f32 to vector<48x1xf32>
    %463 = arith.divf %461, %462 : vector<48x1xf32>
    %464 = vector.broadcast %463 : vector<48x1xf32> to vector<48x32xf32>
    %465 = arith.subf %455, %464 : vector<48x32xf32>
    %466 = arith.mulf %465, %465 : vector<48x32xf32>
    %cst_167 = arith.constant dense<0.000000e+00> : vector<48xf32>
    %467 = vector.multi_reduction <add>, %466, %cst_167 [1] : vector<48x32xf32> to vector<48xf32>
    %468 = vector.shape_cast %467 : vector<48xf32> to vector<48x1xf32>
    %cst_168 = arith.constant 3.200000e+01 : f32
    %469 = vector.broadcast %cst_168 : f32 to vector<48x1xf32>
    %470 = arith.divf %468, %469 : vector<48x1xf32>
    %cst_169 = arith.constant 9.99999997E-7 : f32
    %471 = vector.broadcast %cst_169 : f32 to vector<48x1xf32>
    %472 = arith.addf %470, %471 : vector<48x1xf32>
    %473 = math.rsqrt %472 : vector<48x1xf32>
    %474 = vector.broadcast %473 : vector<48x1xf32> to vector<48x32xf32>
    %475 = arith.mulf %465, %474 : vector<48x32xf32>
    %476 = vector.broadcast %457 : vector<1x32xf32> to vector<48x32xf32>
    %477 = arith.mulf %475, %476 : vector<48x32xf32>
    %478 = vector.broadcast %459 : vector<1x32xf32> to vector<48x32xf32>
    %479 = arith.addf %477, %478 : vector<48x32xf32>
    %c1_170 = arith.constant 1 : index
    %c0_171 = arith.constant 0 : index
    %c256_172 = arith.constant 256 : index
    %480 = vector.load %arg5[%c1_170, %c0_171, %c256_172] : memref<2x32x512xf32, #tpu.memory_space<vmem>>, vector<1x32x128xf32>
    %481 = vector.shape_cast %480 : vector<1x32x128xf32> to vector<32x128xf32>
    %cst_173 = arith.constant dense<0.000000e+00> : vector<48x128xf32>
    %482 = tpu.matmul %479, %481, %cst_173 {dimension_numbers = #tpu.dot_dimension_numbers<[1], [0], [0], [1], [0, 0, 1, 1], [], []>} : vector<48x32xf32>, vector<32x128xf32>, vector<48x128xf32> -> vector<48x128xf32>
    %c1_174 = arith.constant 1 : index
    %c0_175 = arith.constant 0 : index
    %c768_176 = arith.constant 768 : index
    %483 = vector.load %arg6[%c1_174, %c0_175, %c768_176] : memref<2x1x1024xf32, #tpu.memory_space<vmem>>, vector<1x1x128xf32>
    %484 = vector.shape_cast %483 : vector<1x1x128xf32> to vector<1x128xf32>
    %485 = vector.broadcast %484 : vector<1x128xf32> to vector<48x128xf32>
    %486 = arith.addf %482, %485 : vector<48x128xf32>
    %cst_177 = arith.constant 5.000000e-01 : f32
    %487 = vector.broadcast %cst_177 : f32 to vector<48x128xf32>
    %488 = arith.mulf %487, %486 : vector<48x128xf32>
    %cst_178 = arith.constant 0.707106769 : f32
    %489 = vector.broadcast %cst_178 : f32 to vector<48x128xf32>
    %490 = arith.mulf %486, %489 : vector<48x128xf32>
    %491 = math.erf %490 : vector<48x128xf32>
    %cst_179 = arith.constant 1.000000e+00 : f32
    %492 = vector.broadcast %cst_179 : f32 to vector<48x128xf32>
    %493 = arith.addf %492, %491 : vector<48x128xf32>
    %494 = arith.mulf %488, %493 : vector<48x128xf32>
    %c1_180 = arith.constant 1 : index
    %c0_181 = arith.constant 0 : index
    %c384_182 = arith.constant 384 : index
    %495 = vector.load %arg5[%c1_180, %c0_181, %c384_182] : memref<2x32x512xf32, #tpu.memory_space<vmem>>, vector<1x32x128xf32>
    %496 = vector.shape_cast %495 : vector<1x32x128xf32> to vector<32x128xf32>
    %cst_183 = arith.constant dense<0.000000e+00> : vector<48x32xf32>
    %497 = tpu.matmul %494, %496, %cst_183 {dimension_numbers = #tpu.dot_dimension_numbers<[1], [1], [0], [0], [0, 0, 1, 0], [], []>} : vector<48x128xf32>, vector<32x128xf32>, vector<48x32xf32> -> vector<48x32xf32>
    %c1_184 = arith.constant 1 : index
    %c0_185 = arith.constant 0 : index
    %c896_186 = arith.constant 896 : index
    %498 = vector.load %arg6[%c1_184, %c0_185, %c896_186] : memref<2x1x1024xf32, #tpu.memory_space<vmem>>, vector<1x1x32xf32>
    %499 = vector.shape_cast %498 : vector<1x1x32xf32> to vector<1x32xf32>
    %500 = vector.broadcast %499 : vector<1x32xf32> to vector<48x32xf32>
    %501 = arith.addf %497, %500 : vector<48x32xf32>
    %502 = arith.addf %455, %501 : vector<48x32xf32>
    %503 = vector.extract_strided_slice %502 {offsets = [0, 0], sizes = [1, 32], strides = [1, 1]} : vector<48x32xf32> to vector<1x32xf32>
    %504 = vector.extract_strided_slice %502 {offsets = [24, 0], sizes = [1, 32], strides = [1, 1]} : vector<48x32xf32> to vector<1x32xf32>
    %505 = tpu.concatenate %503, %504 in 0 : vector<1x32xf32>, vector<1x32xf32> -> vector<2x32xf32>
    %c64 = arith.constant 64 : index
    %c0_187 = arith.constant 0 : index
    %506 = vector.load %arg3[%c64, %c0_187] : memref<73x32xf32, #tpu.memory_space<vmem>>, vector<1x32xf32>
    %c72 = arith.constant 72 : index
    %c0_188 = arith.constant 0 : index
    %507 = vector.load %arg3[%c72, %c0_188] : memref<73x32xf32, #tpu.memory_space<vmem>>, vector<1x32xf32>
    %cst_189 = arith.constant dense<0.000000e+00> : vector<2xf32>
    %508 = vector.multi_reduction <add>, %505, %cst_189 [1] : vector<2x32xf32> to vector<2xf32>
    %509 = vector.shape_cast %508 : vector<2xf32> to vector<2x1xf32>
    %cst_190 = arith.constant 3.200000e+01 : f32
    %510 = vector.broadcast %cst_190 : f32 to vector<2x1xf32>
    %511 = arith.divf %509, %510 : vector<2x1xf32>
    %512 = vector.broadcast %511 : vector<2x1xf32> to vector<2x32xf32>
    %513 = arith.subf %505, %512 : vector<2x32xf32>
    %514 = arith.mulf %513, %513 : vector<2x32xf32>
    %cst_191 = arith.constant dense<0.000000e+00> : vector<2xf32>
    %515 = vector.multi_reduction <add>, %514, %cst_191 [1] : vector<2x32xf32> to vector<2xf32>
    %516 = vector.shape_cast %515 : vector<2xf32> to vector<2x1xf32>
    %cst_192 = arith.constant 3.200000e+01 : f32
    %517 = vector.broadcast %cst_192 : f32 to vector<2x1xf32>
    %518 = arith.divf %516, %517 : vector<2x1xf32>
    %cst_193 = arith.constant 9.99999997E-7 : f32
    %519 = vector.broadcast %cst_193 : f32 to vector<2x1xf32>
    %520 = arith.addf %518, %519 : vector<2x1xf32>
    %521 = math.rsqrt %520 : vector<2x1xf32>
    %522 = vector.broadcast %521 : vector<2x1xf32> to vector<2x32xf32>
    %523 = arith.mulf %513, %522 : vector<2x32xf32>
    %524 = vector.broadcast %506 : vector<1x32xf32> to vector<2x32xf32>
    %525 = arith.mulf %523, %524 : vector<2x32xf32>
    %526 = vector.broadcast %507 : vector<1x32xf32> to vector<2x32xf32>
    %527 = arith.addf %525, %526 : vector<2x32xf32>
    %c0_194 = arith.constant 0 : index
    %c0_195 = arith.constant 0 : index
    %528 = vector.load %arg4[%c0_194, %c0_195] : memref<33x128xf32, #tpu.memory_space<vmem>>, vector<32x128xf32>
    %cst_196 = arith.constant dense<0.000000e+00> : vector<2x128xf32>
    %529 = tpu.matmul %527, %528, %cst_196 {dimension_numbers = #tpu.dot_dimension_numbers<[1], [0], [0], [1], [0, 0, 1, 1], [], []>} : vector<2x32xf32>, vector<32x128xf32>, vector<2x128xf32> -> vector<2x128xf32>
    %c32 = arith.constant 32 : index
    %c0_197 = arith.constant 0 : index
    %530 = vector.load %arg4[%c32, %c0_197] : memref<33x128xf32, #tpu.memory_space<vmem>>, vector<1x128xf32>
    %531 = vector.broadcast %530 : vector<1x128xf32> to vector<2x128xf32>
    %532 = arith.addf %529, %531 : vector<2x128xf32>
    %c0_198 = arith.constant 0 : index
    %c0_199 = arith.constant 0 : index
    %533 = vector.load %arg7[%c0_198, %c0_199] : memref<2x128xf32, #tpu.memory_space<vmem>>, vector<2x128xf32>
    tpu.vector_store %arg7[%c0_198, %c0_199], %532 {strides = array<i32>} : memref<2x128xf32, #tpu.memory_space<vmem>>, vector<2x128xf32>,
    return
  }
  func.func @transform_0(%arg0: i32) -> (i32, i32) {
    %c0_i32 = arith.constant 0 : i32
    %c0_i32_0 = arith.constant 0 : i32
    %c0_i32_1 = arith.constant 0 : i32
    return %c0_i32, %c0_i32_0 : i32, i32
  }
  func.func @transform_1(%arg0: i32) -> (i32, i32) {
    %c0_i32 = arith.constant 0 : i32
    %c0_i32_0 = arith.constant 0 : i32
    %c0_i32_1 = arith.constant 0 : i32
    return %c0_i32, %c0_i32_0 : i32, i32
  }
  func.func @transform_2(%arg0: i32) -> (i32, i32) {
    %c0_i32 = arith.constant 0 : i32
    %c0_i32_0 = arith.constant 0 : i32
    %c0_i32_1 = arith.constant 0 : i32
    return %c0_i32, %c0_i32_0 : i32, i32
  }
  func.func @transform_3(%arg0: i32) -> (i32, i32) {
    %c0_i32 = arith.constant 0 : i32
    %c0_i32_0 = arith.constant 0 : i32
    %c0_i32_1 = arith.constant 0 : i32
    return %c0_i32, %c0_i32_0 : i32, i32
  }
  func.func @transform_4(%arg0: i32) -> (i32, i32, i32) {
    %c0_i32 = arith.constant 0 : i32
    %c0_i32_0 = arith.constant 0 : i32
    %c0_i32_1 = arith.constant 0 : i32
    %c0_i32_2 = arith.constant 0 : i32
    return %c0_i32, %c0_i32_0, %c0_i32_1 : i32, i32, i32
  }
  func.func @transform_5(%arg0: i32) -> (i32, i32, i32) {
    %c0_i32 = arith.constant 0 : i32
    %c0_i32_0 = arith.constant 0 : i32
    %c0_i32_1 = arith.constant 0 : i32
    %c0_i32_2 = arith.constant 0 : i32
    return %c0_i32, %c0_i32_0, %c0_i32_1 : i32, i32, i32
  }
  func.func @transform_6(%arg0: i32) -> (i32, i32) {
    %c0_i32 = arith.constant 0 : i32
    %c0_i32_0 = arith.constant 0 : i32
    %c0_i32_1 = arith.constant 0 : i32
    return %c0_i32, %c0_i32_0 : i32, i32
  }
}

</mosaic_0001>

<llo_original>
// kernel: tpu_custom_call.1
$region0: #{tpu_custom_call.1}
  #allocation0 [shape = 'u32[]', space=smem, size = 0x4, offset = 0x4, fixed_abs, tag = 'smem constant byte address 0x4 - core index']
  #allocation1 [shape = 'u32[144,128]{1,0:T(1,128)}', space=vmem, size = 0x12000, scoped, tag = 'internal scratch']
  %s0 = inlined_call_operand.vmem [shape: f32[48,64], index: 0, kind: input, shape index: {}]
  %s1 = inlined_call_operand.vmem [shape: f32[48,32], index: 1, kind: input, shape index: {}]
  %s2 = inlined_call_operand.vmem [shape: f32[73,32], index: 2, kind: input, shape index: {}]
  %s3 = inlined_call_operand.vmem [shape: f32[33,128], index: 3, kind: input, shape index: {}]
  %s4 = inlined_call_operand.hbm [shape: f32[2,32,512], index: 4, kind: input, shape index: {}]
  %s5 = inlined_call_operand.vmem [shape: f32[2,1,1024], index: 5, kind: input, shape index: {}]
  %s6 = inlined_call_operand.hbm [shape: f32[2,128], index: 6, kind: output, shape index: {}]
  %s7 = sld [smem:[#allocation0]]
  $region38: #{tpu_custom_call.1} parent=0
    _
  %s9 = ssub.s32 1, %s7
  %s10 = scalar_select 0, %s9, %s7
  $region1: #{tpu_custom_call.1} parent=0
    #allocation2 [shape = 'u8[131072]{0}', space=vmem, size = 0x20000, scoped, tag = 'input window, operand 4, single buffered']
    #allocation3 [shape = 's32[1]{0}', space=sflag, size = 0x4, scoped, tag = 'scoped memory for tpu_custom_call.1']
    #allocation4 [shape = 's32[1]{0}', space=sflag, size = 0x4, scoped, tag = 'scoped memory for tpu_custom_call.1']
    #allocation5 [shape = 'u8[1024]{0}', space=vmem, size = 0x400, scoped, tag = 'output window, operand 0, single buffered']
    %11 = vsyncpa [#allocation3], 0
    %12 = vsyncpa [#allocation4], 0
    // Predicated region
    $region2: #{tpu_custom_call.1} parent=1 // pred_check
      _
    $region3: #{tpu_custom_call.1} parent=1 // pred_check_branch
      %14 = sbr.rel (0) target = $region5
    $region4: #{tpu_custom_call.1} parent=1 // pred_region
      _
    $region5: #{tpu_custom_call.1} parent=1 // pred_fallthru
      _
    // Predicated region
    $region6: #{tpu_custom_call.1} parent=1 // pred_check
      _
    $region7: #{tpu_custom_call.1} parent=1 // pred_check_branch
      %16 = sbr.rel (0) target = $region9
    $region8: #{tpu_custom_call.1} parent=1 // pred_region
      _
    $region9: #{tpu_custom_call.1} parent=1 // pred_fallthru
      _
    // Predicated region
    $region10: #{tpu_custom_call.1} parent=1 // pred_check
      _
    $region11: #{tpu_custom_call.1} parent=1 // pred_check_branch
      %18 = sbr.rel (0) target = $region13
    $region12: #{tpu_custom_call.1} parent=1 // pred_region
      _
    $region13: #{tpu_custom_call.1} parent=1 // pred_fallthru
      _
    // Predicated region
    $region14: #{tpu_custom_call.1} parent=1 // pred_check
      _
    $region15: #{tpu_custom_call.1} parent=1 // pred_check_branch
      %20 = sbr.rel (0) target = $region17
    $region16: #{tpu_custom_call.1} parent=1 // pred_region
      _
    $region17: #{tpu_custom_call.1} parent=1 // pred_fallthru
      _
    // Predicated region
    $region18: #{tpu_custom_call.1} parent=1 // pred_check
      _
    $region19: #{tpu_custom_call.1} parent=1 // pred_check_branch
      %22 = sbr.rel (0) target = $region21
    $region20: #{tpu_custom_call.1} parent=1 // pred_region
      %s24 = ssub.s32 4096, 4096
      %25 = vsyncadd [#allocation3], %s24
      %s26 = sshll.u32 [#allocation2], 4
      %s27 = int_to_ptr.vmem [resolvable:$true] %s26
      %32 = dma.hbm_to_vmem [thread:$0]  %s4, 4096, %s27, [#allocation3], 512, 512, 32
    $region21: #{tpu_custom_call.1} parent=1 // pred_fallthru
      _
    // Predicated region
    $region22: #{tpu_custom_call.1} parent=1 // pred_check
      _
    $region23: #{tpu_custom_call.1} parent=1 // pred_check_branch
      %34 = sbr.rel (0) target = $region25
    $region24: #{tpu_custom_call.1} parent=1 // pred_region
      _
    $region25: #{tpu_custom_call.1} parent=1 // pred_fallthru
      _
    // Predicated region
    $region26: #{tpu_custom_call.1} parent=1 // pred_check
      _
    $region27: #{tpu_custom_call.1} parent=1 // pred_check_branch
      %36 = sbr.rel (0) target = $region29
    $region28: #{tpu_custom_call.1} parent=1 // pred_region
      %37 = dma.done [#allocation3], 4096
    $region29: #{tpu_custom_call.1} parent=1 // pred_fallthru
      _
    %v38 = vlaneseq
    %v39 = vand.u32 %v38, 127
    %vm40 = vcmp.lt.s32.totalorder %v39, 17
    %v41 = vsel %vm40, 0.0, -1e+30
    %v42 = vld [vmem:[%s0] sm:$0xff]
    %v43 = vld [vmem:[%s0 + $0x8] sm:$0xff]
    %v44 = vld [vmem:[%s0 + $0x10] sm:$0xff]
    %v45 = vld [vmem:[%s0 + $0x18] sm:$0xff]
    %v46 = vld [vmem:[%s0 + $0x20] sm:$0xff]
    %v47 = vld [vmem:[%s0 + $0x28] sm:$0xff]
    %v48 = vld [vmem:[%s2] sm:$0xff]
    %v49 = vld [vmem:[%s2 + $0x8] sm:$0xff]
    %v50 = vld [vmem:[%s2 + $0x10] sm:$0xff]
    %v51 = vld [vmem:[%s2 + $0x18] sm:$0xff]
    %v52 = vld [vmem:[%s2 + $0x20] sm:$0xff]
    %v53 = vld [vmem:[%s2 + $0x28] sm:$0xff]
    %v54 = vld [vmem:[%s2 + $0x30] sm:$0xff]
    %v55 = vld [vmem:[%s2 + $0x38] sm:$0xff]
    %v56 = vld [vmem:[%s1] sm:$0xff]
    %v57 = vld [vmem:[%s1 + $0x8] sm:$0xff]
    %v58 = vld [vmem:[%s1 + $0x10] sm:$0xff]
    %v59 = vld [vmem:[%s1 + $0x18] sm:$0xff]
    %v60 = vld [vmem:[%s1 + $0x20] sm:$0xff]
    %v61 = vld [vmem:[%s1 + $0x28] sm:$0xff]
    %vm62 = vcmask 523264
    %v64 = vsel %vm62, %v42, 0
    %v67 = vsel %vm62, %v43, 0
    %v70 = vsel %vm62, %v44, 0
    %v73 = vsel %vm62, %v45, 0
    %v76 = vsel %vm62, %v46, 0
    %v79 = vsel %vm62, %v47, 0
    %81 = vmatprep.subr.mxu0 0.0
    %82 = vmatpush1.msra.mxu0 %v48
    %83 = vmatprep.subr.mxu0 0.0
    %84 = vmatpush1.msra.mxu0 %v49
    %85 = vmatprep.subr.mxu0 0.0
    %86 = vmatpush1.msra.mxu0 %v50
    %87 = vmatprep.subr.mxu0 0.0
    %88 = vmatpush1.msra.mxu0 %v51
    %89 = vmatprep.subr.mxu0 0.0
    %90 = vmatpush1.msra.mxu0 %v52
    %91 = vmatprep.subr.mxu0 0.0
    %92 = vmatpush1.msra.mxu0 %v53
    %93 = vmatprep.subr.mxu0 0.0
    %94 = vmatpush1.msra.mxu0 %v54
    %95 = vmatprep.subr.mxu0 0.0
    %96 = vmatpush1.msra.mxu0 %v55
    %97 = vmatprep.subr.mxu0 0.0
    %98 = vmatpush1.msra.mxu0 0.0
    %99 = vmatprep.subr.mxu0 0.0
    %100 = vmatpush1.msra.mxu0 0.0
    %101 = vmatprep.subr.mxu0 0.0
    %102 = vmatpush1.msra.mxu0 0.0
    %103 = vmatprep.subr.mxu0 0.0
    %104 = vmatpush1.msra.mxu0 0.0
    %105 = vmatprep.subr.mxu0 0.0
    %106 = vmatpush1.msra.mxu0 0.0
    %107 = vmatprep.subr.mxu0 0.0
    %108 = vmatpush1.msra.mxu0 0.0
    %109 = vmatprep.subr.mxu0 0.0
    %110 = vmatpush1.msra.mxu0 0.0
    %111 = vmatprep.subr.mxu0 0.0
    %112 = vmatpush1.msra.mxu0 0.0
    %113 = vmatprep.subr.mxu0 0.0
    %114 = vmatpush1.msra.mxu0 0.0
    %115 = vmatprep.subr.mxu0 0.0
    %116 = vmatpush1.msra.mxu0 0.0
    %117 = vmatprep.subr.mxu0 0.0
    %118 = vmatpush1.msra.mxu0 0.0
    %119 = vmatprep.subr.mxu0 0.0
    %120 = vmatpush1.msra.mxu0 0.0
    %121 = vmatprep.subr.mxu0 0.0
    %122 = vmatpush1.msra.mxu0 0.0
    %123 = vmatprep.subr.mxu0 0.0
    %124 = vmatpush1.msra.mxu0 0.0
    %125 = vmatprep.subr.mxu0 0.0
    %126 = vmatpush1.msra.mxu0 0.0
    %127 = vmatprep.subr.mxu0 0.0
    %128 = vmatpush1.msra.mxu0 0.0
    %129 = vmatprep.subr.mxu0 0.0
    %130 = vmatpush1.msra.mxu0 0.0
    %131 = vmatprep.subr.mxu0 0.0
    %132 = vmatpush1.msra.mxu0 0.0
    %133 = vmatprep.subr.mxu0 0.0
    %134 = vmatpush1.msra.mxu0 0.0
    %135 = vmatprep.subr.mxu0 0.0
    %136 = vmatpush1.msra.mxu0 0.0
    %137 = vmatprep.subr.mxu0 0.0
    %138 = vmatpush1.msra.mxu0 0.0
    %139 = vmatprep.subr.mxu0 0.0
    %140 = vmatpush1.msra.mxu0 0.0
    %141 = vmatprep.subr.mxu0 0.0
    %142 = vmatpush1.msra.mxu0 0.0
    %143 = vmatprep.subr.mxu0 0.0
    %144 = vmatpush1.msra.mxu0 0.0
    %145 = vmatprep.mubr.f32.mxu0 0.0
    %146 = vmatmul.mubr.f32.gmra.mrb[0].mxu0 %v64
    %v147 = vpop.f32.mrb[0].mxu0
    %v148 = vadd.f32 %v56, %v147
    %v149 = vpop.f32.mrb[0].mxu0
    %150 = vmatprep.mubr.f32.mxu0 0.0
    %151 = vmatmul.mubr.f32.gmra.mrb[0].mxu0 %v67
    %v152 = vpop.f32.mrb[0].mxu0
    %v153 = vadd.f32 %v57, %v152
    %v154 = vpop.f32.mrb[0].mxu0
    %155 = vmatprep.mubr.f32.mxu0 0.0
    %156 = vmatmul.mubr.f32.gmra.mrb[0].mxu0 %v70
    %v157 = vpop.f32.mrb[0].mxu0
    %v158 = vadd.f32 %v58, %v157
    %v159 = vpop.f32.mrb[0].mxu0
    %160 = vmatprep.mubr.f32.mxu0 0.0
    %161 = vmatmul.mubr.f32.gmra.mrb[0].mxu0 %v73
    %v162 = vpop.f32.mrb[0].mxu0
    %v163 = vadd.f32 %v59, %v162
    %v164 = vpop.f32.mrb[0].mxu0
    %165 = vmatprep.mubr.f32.mxu0 0.0
    %166 = vmatmul.mubr.f32.gmra.mrb[0].mxu0 %v76
    %v167 = vpop.f32.mrb[0].mxu0
    %v168 = vadd.f32 %v60, %v167
    %v169 = vpop.f32.mrb[0].mxu0
    %170 = vmatprep.mubr.f32.mxu0 0.0
    %171 = vmatmul.mubr.f32.gmra.mrb[0].mxu0 %v79
    %v172 = vpop.f32.mrb[0].mxu0
    %v173 = vadd.f32 %v61, %v172
    %v174 = vpop.f32.mrb[0].mxu0
    %175 = vdwg.mxu0
    %v176 = vld [vmem:[%s5] sm:$0x1]
    %v177 = vld [vmem:[%s5 + $0x1] sm:$0x1]
    %vm178 = vcmask 261120
    %v179 = vsel %vm178, %v148, 0.0
    %180 = vadd.xlane.f32.xlu0 %v179
    %v181 = vpop.xlane.xlu0 %180
    %v182 = vsel %vm178, %v153, 0.0
    %183 = vadd.xlane.f32.xlu0 %v182
    %v184 = vpop.xlane.xlu0 %183
    %v185 = vsel %vm178, %v158, 0.0
    %186 = vadd.xlane.f32.xlu0 %v185
    %v187 = vpop.xlane.xlu0 %186
    %v188 = vsel %vm178, %v163, 0.0
    %189 = vadd.xlane.f32.xlu0 %v188
    %v190 = vpop.xlane.xlu0 %189
    %v191 = vsel %vm178, %v168, 0.0
    %192 = vadd.xlane.f32.xlu0 %v191
    %v193 = vpop.xlane.xlu0 %192
    %v194 = vsel %vm178, %v173, 0.0
    %195 = vadd.xlane.f32.xlu0 %v194
    %v196 = vpop.xlane.xlu0 %195
    %v197 = vrcp.pop 32.0
    %v198 = vmul.f32 %v181, %v197
    %v199 = vmul.f32 %v184, %v197
    %v200 = vmul.f32 %v187, %v197
    %v201 = vmul.f32 %v190, %v197
    %v202 = vmul.f32 %v193, %v197
    %v203 = vmul.f32 %v196, %v197
    %v204 = vsub.f32 %v148, %v198
    %v205 = vsub.f32 %v153, %v199
    %v206 = vsub.f32 %v158, %v200
    %v207 = vsub.f32 %v163, %v201
    %v208 = vsub.f32 %v168, %v202
    %v209 = vsub.f32 %v173, %v203
    %v210 = vmul.f32 %v204, %v204
    %v211 = vmul.f32 %v205, %v205
    %v212 = vmul.f32 %v206, %v206
    %v213 = vmul.f32 %v207, %v207
    %v214 = vmul.f32 %v208, %v208
    %v215 = vmul.f32 %v209, %v209
    %v216 = vsel %vm178, %v210, 0.0
    %217 = vadd.xlane.f32.xlu0 %v216
    %v218 = vpop.xlane.xlu0 %217
    %v219 = vsel %vm178, %v211, 0.0
    %220 = vadd.xlane.f32.xlu0 %v219
    %v221 = vpop.xlane.xlu0 %220
    %v222 = vsel %vm178, %v212, 0.0
    %223 = vadd.xlane.f32.xlu0 %v222
    %v224 = vpop.xlane.xlu0 %223
    %v225 = vsel %vm178, %v213, 0.0
    %226 = vadd.xlane.f32.xlu0 %v225
    %v227 = vpop.xlane.xlu0 %226
    %v228 = vsel %vm178, %v214, 0.0
    %229 = vadd.xlane.f32.xlu0 %v228
    %v230 = vpop.xlane.xlu0 %229
    %v231 = vsel %vm178, %v215, 0.0
    %232 = vadd.xlane.f32.xlu0 %v231
    %v233 = vpop.xlane.xlu0 %232
    %v234 = vmul.f32 %v218, %v197
    %v235 = vmul.f32 %v221, %v197
    %v236 = vmul.f32 %v224, %v197
    %v237 = vmul.f32 %v227, %v197
    %v238 = vmul.f32 %v230, %v197
    %v239 = vmul.f32 %v233, %v197
    %v240 = vadd.f32 %v234, 1e-06
    %v241 = vadd.f32 %v235, 1e-06
    %v242 = vadd.f32 %v236, 1e-06
    %v243 = vadd.f32 %v237, 1e-06
    %v244 = vadd.f32 %v238, 1e-06
    %v245 = vadd.f32 %v239, 1e-06
    %v246 = vrsqrt.pop %v240
    %v247 = vrsqrt.pop %v241
    %v248 = vrsqrt.pop %v242
    %v249 = vrsqrt.pop %v243
    %v250 = vrsqrt.pop %v244
    %v251 = vrsqrt.pop %v245
    %v252 = vmul.f32 %v204, %v246
    %v253 = vmul.f32 %v205, %v247
    %v254 = vmul.f32 %v206, %v248
    %v255 = vmul.f32 %v207, %v249
    %v256 = vmul.f32 %v208, %v250
    %v257 = vmul.f32 %v209, %v251
    %v259 = vlaneseq
    %v260 = vshrl.u32 %v259, 7
    %v261 = vsub.s32 0, %v260
    %v262 = vrot.slane %v176, %v261
    %v264 = vmul.f32 %v252, %v262
    %v265 = vmul.f32 %v253, %v262
    %v266 = vmul.f32 %v254, %v262
    %v267 = vmul.f32 %v255, %v262
    %v268 = vmul.f32 %v256, %v262
    %v269 = vmul.f32 %v257, %v262
    %v271 = vlaneseq
    %v272 = vshrl.u32 %v271, 7
    %v273 = vsub.s32 0, %v272
    %v274 = vrot.slane %v177, %v273
    %v276 = vadd.f32 %v264, %v274
    %v277 = vadd.f32 %v265, %v274
    %v278 = vadd.f32 %v266, %v274
    %v279 = vadd.f32 %v267, %v274
    %v280 = vadd.f32 %v268, %v274
    %v281 = vadd.f32 %v269, %v274
    %v282 = vld [vmem:[#allocation2] sm:$0xff]
    %v283 = vld [vmem:[#allocation2 + $0x20] sm:$0xff]
    %v284 = vld [vmem:[#allocation2 + $0x40] sm:$0xff]
    %v285 = vld [vmem:[#allocation2 + $0x60] sm:$0xff]
    %v286 = vld [vmem:[%s5 + $0x4] sm:$0x1]
    %v288 = vlaneseq
    %v289 = vshrl.u32 %v288, 7
    %v290 = vsub.s32 0, %v289
    %v291 = vrot.slane %v286, %v290
    %v294 = vsel %vm178, %v276, 0
    %v297 = vsel %vm178, %v277, 0
    %v300 = vsel %vm178, %v278, 0
    %v303 = vsel %vm178, %v279, 0
    %v306 = vsel %vm178, %v280, 0
    %v309 = vsel %vm178, %v281, 0
    %311 = vmatprep.subr.mxu0 0.0
    %312 = vmatpush1.msra.mxu0 %v282
    %313 = vmatprep.subr.mxu0 0.0
    %314 = vmatpush1.msra.mxu0 %v283
    %315 = vmatprep.subr.mxu0 0.0
    %316 = vmatpush1.msra.mxu0 %v284
    %317 = vmatprep.subr.mxu0 0.0
    %318 = vmatpush1.msra.mxu0 %v285
    %319 = vmatprep.subr.mxu0 0.0
    %320 = vmatpush1.msra.mxu0 0.0
    %321 = vmatprep.subr.mxu0 0.0
    %322 = vmatpush1.msra.mxu0 0.0
    %323 = vmatprep.subr.mxu0 0.0
    %324 = vmatpush1.msra.mxu0 0.0
    %325 = vmatprep.subr.mxu0 0.0
    %326 = vmatpush1.msra.mxu0 0.0
    %327 = vmatprep.subr.mxu0 0.0
    %328 = vmatpush1.msra.mxu0 0.0
    %329 = vmatprep.subr.mxu0 0.0
    %330 = vmatpush1.msra.mxu0 0.0
    %331 = vmatprep.subr.mxu0 0.0
    %332 = vmatpush1.msra.mxu0 0.0
    %333 = vmatprep.subr.mxu0 0.0
    %334 = vmatpush1.msra.mxu0 0.0
    %335 = vmatprep.subr.mxu0 0.0
    %336 = vmatpush1.msra.mxu0 0.0
    %337 = vmatprep.subr.mxu0 0.0
    %338 = vmatpush1.msra.mxu0 0.0
    %339 = vmatprep.subr.mxu0 0.0
    %340 = vmatpush1.msra.mxu0 0.0
    %341 = vmatprep.subr.mxu0 0.0
    %342 = vmatpush1.msra.mxu0 0.0
    %343 = vmatprep.subr.mxu0 0.0
    %344 = vmatpush1.msra.mxu0 0.0
    %345 = vmatprep.subr.mxu0 0.0
    %346 = vmatpush1.msra.mxu0 0.0
    %347 = vmatprep.subr.mxu0 0.0
    %348 = vmatpush1.msra.mxu0 0.0
    %349 = vmatprep.subr.mxu0 0.0
    %350 = vmatpush1.msra.mxu0 0.0
    %351 = vmatprep.subr.mxu0 0.0
    %352 = vmatpush1.msra.mxu0 0.0
    %353 = vmatprep.subr.mxu0 0.0
    %354 = vmatpush1.msra.mxu0 0.0
    %355 = vmatprep.subr.mxu0 0.0
    %356 = vmatpush1.msra.mxu0 0.0
    %357 = vmatprep.subr.mxu0 0.0
    %358 = vmatpush1.msra.mxu0 0.0
    %359 = vmatprep.subr.mxu0 0.0
    %360 = vmatpush1.msra.mxu0 0.0
    %361 = vmatprep.subr.mxu0 0.0
    %362 = vmatpush1.msra.mxu0 0.0
    %363 = vmatprep.subr.mxu0 0.0
    %364 = vmatpush1.msra.mxu0 0.0
    %365 = vmatprep.subr.mxu0 0.0
    %366 = vmatpush1.msra.mxu0 0.0
    %367 = vmatprep.subr.mxu0 0.0
    %368 = vmatpush1.msra.mxu0 0.0
    %369 = vmatprep.subr.mxu0 0.0
    %370 = vmatpush1.msra.mxu0 0.0
    %371 = vmatprep.subr.mxu0 0.0
    %372 = vmatpush1.msra.mxu0 0.0
    %373 = vmatprep.subr.mxu0 0.0
    %374 = vmatpush1.msra.mxu0 0.0
    %375 = vmatprep.mubr.f32.mxu0 0.0
    %376 = vmatmul.mubr.f32.gmra.mrb[0].mxu0 %v294
    %v377 = vpop.f32.mrb[0].mxu0
    %v378 = vadd.f32 %v291, %v377
    %v379 = vpop.f32.mrb[0].mxu0
    %380 = vmatprep.mubr.f32.mxu0 0.0
    %381 = vmatmul.mubr.f32.gmra.mrb[0].mxu0 %v297
    %v382 = vpop.f32.mrb[0].mxu0
    %v383 = vadd.f32 %v291, %v382
    %v384 = vpop.f32.mrb[0].mxu0
    %385 = vmatprep.mubr.f32.mxu0 0.0
    %386 = vmatmul.mubr.f32.gmra.mrb[0].mxu0 %v300
    %v387 = vpop.f32.mrb[0].mxu0
    %v388 = vadd.f32 %v291, %v387
    %v389 = vpop.f32.mrb[0].mxu0
    %390 = vmatprep.mubr.f32.mxu0 0.0
    %391 = vmatmul.mubr.f32.gmra.mrb[0].mxu0 %v303
    %v392 = vpop.f32.mrb[0].mxu0
    %v393 = vadd.f32 %v291, %v392
    %v394 = vpop.f32.mrb[0].mxu0
    %395 = vmatprep.mubr.f32.mxu0 0.0
    %396 = vmatmul.mubr.f32.gmra.mrb[0].mxu0 %v306
    %v397 = vpop.f32.mrb[0].mxu0
    %v398 = vadd.f32 %v291, %v397
    %v399 = vpop.f32.mrb[0].mxu0
    %400 = vmatprep.mubr.f32.mxu0 0.0
    %401 = vmatmul.mubr.f32.gmra.mrb[0].mxu0 %v309
    %v402 = vpop.f32.mrb[0].mxu0
    %v403 = vadd.f32 %v291, %v402
    %v404 = vpop.f32.mrb[0].mxu0
    %405 = vdwg.mxu0
    %v406 = vld [vmem:[#allocation2 + $0x8] sm:$0xff]
    %v407 = vld [vmem:[#allocation2 + $0x28] sm:$0xff]
    %v408 = vld [vmem:[#allocation2 + $0x48] sm:$0xff]
    %v409 = vld [vmem:[#allocation2 + $0x68] sm:$0xff]
    %413 = vrot.lane.b32.xlu0 %v378, 96
    %v414 = vpop.permute.xlu0 %413
    %415 = vrot.lane.b32.xlu0 %v383, 96
    %v416 = vpop.permute.xlu0 %415
    %417 = vrot.lane.b32.xlu0 %v388, 96
    %v418 = vpop.permute.xlu0 %417
    %vm419 = vcmask 64512
    %v420 = vsel %vm419, %v378, 0
    %v422 = vsel %vm419, %v383, 0
    %v424 = vsel %vm419, %v388, 0
    %v426 = vsel %vm419, %v414, 0
    %v428 = vsel %vm419, %v416, 0
    %v430 = vsel %vm419, %v418, 0
    %432 = vmatprep.subr.mxu0 0.0
    %433 = vmatpush1.xpose.msra.mxu0 %v426
    %434 = vmatprep.subr.mxu0 0.0
    %435 = vmatpush1.xpose.msra.mxu0 %v428
    %436 = vmatprep.subr.mxu0 0.0
    %437 = vmatpush1.xpose.msra.mxu0 %v430
    %438 = vmatprep.subr.mxu0 0.0
    %439 = vmatpush1.xpose.msra.mxu0 0.0
    %440 = vmatprep.subr.mxu0 0.0
    %441 = vmatpush1.xpose.msra.mxu0 0.0
    %442 = vmatprep.subr.mxu0 0.0
    %443 = vmatpush1.xpose.msra.mxu0 0.0
    %444 = vmatprep.subr.mxu0 0.0
    %445 = vmatpush1.xpose.msra.mxu0 0.0
    %446 = vmatprep.subr.mxu0 0.0
    %447 = vmatpush1.xpose.msra.mxu0 0.0
    %448 = vmatprep.subr.mxu0 0.0
    %449 = vmatpush1.xpose.msra.mxu0 0.0
    %450 = vmatprep.subr.mxu0 0.0
    %451 = vmatpush1.xpose.msra.mxu0 0.0
    %452 = vmatprep.subr.mxu0 0.0
    %453 = vmatpush1.xpose.msra.mxu0 0.0
    %454 = vmatprep.subr.mxu0 0.0
    %455 = vmatpush1.xpose.msra.mxu0 0.0
    %456 = vmatprep.subr.mxu0 0.0
    %457 = vmatpush1.xpose.msra.mxu0 0.0
    %458 = vmatprep.subr.mxu0 0.0
    %459 = vmatpush1.xpose.msra.mxu0 0.0
    %460 = vmatprep.subr.mxu0 0.0
    %461 = vmatpush1.xpose.msra.mxu0 0.0
    %462 = vmatprep.subr.mxu0 0.0
    %463 = vmatpush1.xpose.msra.mxu0 0.0
    %464 = vmatprep.subr.mxu0 0.0
    %465 = vmatpush1.xpose.msra.mxu0 0.0
    %466 = vmatprep.subr.mxu0 0.0
    %467 = vmatpush1.xpose.msra.mxu0 0.0
    %468 = vmatprep.subr.mxu0 0.0
    %469 = vmatpush1.xpose.msra.mxu0 0.0
    %470 = vmatprep.subr.mxu0 0.0
    %471 = vmatpush1.xpose.msra.mxu0 0.0
    %472 = vmatprep.subr.mxu0 0.0
    %473 = vmatpush1.xpose.msra.mxu0 0.0
    %474 = vmatprep.subr.mxu0 0.0
    %475 = vmatpush1.xpose.msra.mxu0 0.0
    %476 = vmatprep.subr.mxu0 0.0
    %477 = vmatpush1.xpose.msra.mxu0 0.0
    %478 = vmatprep.subr.mxu0 0.0
    %479 = vmatpush1.xpose.msra.mxu0 0.0
    %480 = vmatprep.subr.mxu0 0.0
    %481 = vmatpush1.xpose.msra.mxu0 0.0
    %482 = vmatprep.subr.mxu0 0.0
    %483 = vmatpush1.xpose.msra.mxu0 0.0
    %484 = vmatprep.subr.mxu0 0.0
    %485 = vmatpush1.xpose.msra.mxu0 0.0
    %486 = vmatprep.subr.mxu0 0.0
    %487 = vmatpush1.xpose.msra.mxu0 0.0
    %488 = vmatprep.subr.mxu0 0.0
    %489 = vmatpush1.xpose.msra.mxu0 0.0
    %490 = vmatprep.subr.mxu0 0.0
    %491 = vmatpush1.xpose.msra.mxu0 0.0
    %492 = vmatprep.subr.mxu0 0.0
    %493 = vmatpush1.xpose.msra.mxu0 0.0
    %494 = vmatprep.subr.mxu0 0.0
    %495 = vmatpush1.xpose.msra.mxu0 0.0
    %496 = vmatprep.mubr.f32.mxu0 0.0
    %497 = vmatmul.mubr.f32.gmra.mrb[0].mxu0 %v420
    %v498 = vpop.f32.mrb[0].mxu0
    %v499 = vadd.f32 %v41, %v498
    %v500 = vpop.f32.mrb[0].mxu0
    %501 = vmatprep.mubr.f32.mxu0 0.0
    %502 = vmatmul.mubr.f32.gmra.mrb[0].mxu0 %v422
    %v503 = vpop.f32.mrb[0].mxu0
    %v504 = vadd.f32 %v41, %v503
    %v505 = vpop.f32.mrb[0].mxu0
    %506 = vmatprep.mubr.f32.mxu0 0.0
    %507 = vmatmul.mubr.f32.gmra.mrb[0].mxu0 %v424
    %v508 = vpop.f32.mrb[0].mxu0
    %v509 = vadd.f32 %v41, %v508
    %v510 = vpop.f32.mrb[0].mxu0
    %511 = vdwg.mxu0
    %vm512 = vcmask 195584
    %v513 = vsel %vm512, %v499, -inf
    %514 = vmax.xlane.f32.xlu0 %v513
    %v515 = vpop.xlane.xlu0 %514
    %v516 = vsel %vm512, %v504, -inf
    %517 = vmax.xlane.f32.xlu0 %v516
    %v518 = vpop.xlane.xlu0 %517
    %v519 = vsel %vm512, %v509, -inf
    %520 = vmax.xlane.f32.xlu0 %v519
    %v521 = vpop.xlane.xlu0 %520
    %v522 = vsub.f32 %v499, %v515
    %v523 = vsub.f32 %v504, %v518
    %v524 = vsub.f32 %v509, %v521
    %v525 = vmul.f32 %v522, 1.442695
    %v526 = vpow.pop %v525
    %v527 = vmul.f32 %v523, 1.442695
    %v528 = vpow.pop %v527
    %v529 = vmul.f32 %v524, 1.442695
    %v530 = vpow.pop %v529
    %v531 = vsel %vm512, %v526, 0.0
    %532 = vadd.xlane.f32.xlu0 %v531
    %v533 = vpop.xlane.xlu0 %532
    %v534 = vsel %vm512, %v528, 0.0
    %535 = vadd.xlane.f32.xlu0 %v534
    %v536 = vpop.xlane.xlu0 %535
    %v537 = vsel %vm512, %v530, 0.0
    %538 = vadd.xlane.f32.xlu0 %v537
    %v539 = vpop.xlane.xlu0 %538
    %v540 = vrcp.pop %v533
    %v541 = vrcp.pop %v536
    %v542 = vrcp.pop %v539
    %v543 = vmul.f32 %v526, %v540
    %v544 = vmul.f32 %v528, %v541
    %v545 = vmul.f32 %v530, %v542
    %546 = vrot.lane.b32.xlu0 %v378, 64
    %v547 = vpop.permute.xlu0 %546
    %548 = vrot.lane.b32.xlu0 %v383, 64
    %v549 = vpop.permute.xlu0 %548
    %550 = vrot.lane.b32.xlu0 %v388, 64
    %v551 = vpop.permute.xlu0 %550
    %v556 = vsel %vm512, %v543, 0
    %v559 = vsel %vm512, %v544, 0
    %v562 = vsel %vm512, %v545, 0
    %564 = vmatprep.subr.mxu0 0.0
    %565 = vmatpush1.msra.mxu0 %v547
    %566 = vmatprep.subr.mxu0 0.0
    %567 = vmatpush1.msra.mxu0 %v549
    %568 = vmatprep.subr.mxu0 0.0
    %569 = vmatpush1.msra.mxu0 %v551
    %570 = vmatprep.subr.mxu0 0.0
    %571 = vmatpush1.msra.mxu0 0.0
    %572 = vmatprep.subr.mxu0 0.0
    %573 = vmatpush1.msra.mxu0 0.0
    %574 = vmatprep.subr.mxu0 0.0
    %575 = vmatpush1.msra.mxu0 0.0
    %576 = vmatprep.subr.mxu0 0.0
    %577 = vmatpush1.msra.mxu0 0.0
    %578 = vmatprep.subr.mxu0 0.0
    %579 = vmatpush1.msra.mxu0 0.0
    %580 = vmatprep.subr.mxu0 0.0
    %581 = vmatpush1.msra.mxu0 0.0
    %582 = vmatprep.subr.mxu0 0.0
    %583 = vmatpush1.msra.mxu0 0.0
    %584 = vmatprep.subr.mxu0 0.0
    %585 = vmatpush1.msra.mxu0 0.0
    %586 = vmatprep.subr.mxu0 0.0
    %587 = vmatpush1.msra.mxu0 0.0
    %588 = vmatprep.subr.mxu0 0.0
    %589 = vmatpush1.msra.mxu0 0.0
    %590 = vmatprep.subr.mxu0 0.0
    %591 = vmatpush1.msra.mxu0 0.0
    %592 = vmatprep.subr.mxu0 0.0
    %593 = vmatpush1.msra.mxu0 0.0
    %594 = vmatprep.subr.mxu0 0.0
    %595 = vmatpush1.msra.mxu0 0.0
    %596 = vmatprep.subr.mxu0 0.0
    %597 = vmatpush1.msra.mxu0 0.0
    %598 = vmatprep.subr.mxu0 0.0
    %599 = vmatpush1.msra.mxu0 0.0
    %600 = vmatprep.subr.mxu0 0.0
    %601 = vmatpush1.msra.mxu0 0.0
    %602 = vmatprep.subr.mxu0 0.0
    %603 = vmatpush1.msra.mxu0 0.0
    %604 = vmatprep.subr.mxu0 0.0
    %605 = vmatpush1.msra.mxu0 0.0
    %606 = vmatprep.subr.mxu0 0.0
    %607 = vmatpush1.msra.mxu0 0.0
    %608 = vmatprep.subr.mxu0 0.0
    %609 = vmatpush1.msra.mxu0 0.0
    %610 = vmatprep.subr.mxu0 0.0
    %611 = vmatpush1.msra.mxu0 0.0
    %612 = vmatprep.subr.mxu0 0.0
    %613 = vmatpush1.msra.mxu0 0.0
    %614 = vmatprep.subr.mxu0 0.0
    %615 = vmatpush1.msra.mxu0 0.0
    %616 = vmatprep.subr.mxu0 0.0
    %617 = vmatpush1.msra.mxu0 0.0
    %618 = vmatprep.subr.mxu0 0.0
    %619 = vmatpush1.msra.mxu0 0.0
    %620 = vmatprep.subr.mxu0 0.0
    %621 = vmatpush1.msra.mxu0 0.0
    %622 = vmatprep.subr.mxu0 0.0
    %623 = vmatpush1.msra.mxu0 0.0
    %624 = vmatprep.subr.mxu0 0.0
    %625 = vmatpush1.msra.mxu0 0.0
    %626 = vmatprep.subr.mxu0 0.0
    %627 = vmatpush1.msra.mxu0 0.0
    %628 = vmatprep.mubr.f32.mxu0 0.0
    %629 = vmatmul.mubr.f32.gmra.mrb[0].mxu0 %v556
    %v630 = vpop.f32.mrb[0].mxu0
    %v631 = vadd.f32 0.0, %v630
    %v632 = vpop.f32.mrb[0].mxu0
    %633 = vmatprep.mubr.f32.mxu0 0.0
    %634 = vmatmul.mubr.f32.gmra.mrb[0].mxu0 %v559
    %v635 = vpop.f32.mrb[0].mxu0
    %v636 = vadd.f32 0.0, %v635
    %v637 = vpop.f32.mrb[0].mxu0
    %638 = vmatprep.mubr.f32.mxu0 0.0
    %639 = vmatmul.mubr.f32.gmra.mrb[0].mxu0 %v562
    %v640 = vpop.f32.mrb[0].mxu0
    %v641 = vadd.f32 0.0, %v640
    %v642 = vpop.f32.mrb[0].mxu0
    %643 = vdwg.mxu0
    %644 = vrot.lane.b32.xlu0 %v378, 120
    %v645 = vpop.permute.xlu0 %644
    %646 = vrot.lane.b32.xlu0 %v383, 120
    %v647 = vpop.permute.xlu0 %646
    %648 = vrot.lane.b32.xlu0 %v388, 120
    %v649 = vpop.permute.xlu0 %648
    %650 = vrot.lane.b32.xlu0 %v378, 88
    %v651 = vpop.permute.xlu0 %650
    %652 = vrot.lane.b32.xlu0 %v383, 88
    %v653 = vpop.permute.xlu0 %652
    %654 = vrot.lane.b32.xlu0 %v388, 88
    %v655 = vpop.permute.xlu0 %654
    %v656 = vsel %vm419, %v645, 0
    %v658 = vsel %vm419, %v647, 0
    %v660 = vsel %vm419, %v649, 0
    %v662 = vsel %vm419, %v651, 0
    %v664 = vsel %vm419, %v653, 0
    %v666 = vsel %vm419, %v655, 0
    %668 = vmatprep.subr.mxu0 0.0
    %669 = vmatpush1.xpose.msra.mxu0 %v662
    %670 = vmatprep.subr.mxu0 0.0
    %671 = vmatpush1.xpose.msra.mxu0 %v664
    %672 = vmatprep.subr.mxu0 0.0
    %673 = vmatpush1.xpose.msra.mxu0 %v666
    %674 = vmatprep.subr.mxu0 0.0
    %675 = vmatpush1.xpose.msra.mxu0 0.0
    %676 = vmatprep.subr.mxu0 0.0
    %677 = vmatpush1.xpose.msra.mxu0 0.0
    %678 = vmatprep.subr.mxu0 0.0
    %679 = vmatpush1.xpose.msra.mxu0 0.0
    %680 = vmatprep.subr.mxu0 0.0
    %681 = vmatpush1.xpose.msra.mxu0 0.0
    %682 = vmatprep.subr.mxu0 0.0
    %683 = vmatpush1.xpose.msra.mxu0 0.0
    %684 = vmatprep.subr.mxu0 0.0
    %685 = vmatpush1.xpose.msra.mxu0 0.0
    %686 = vmatprep.subr.mxu0 0.0
    %687 = vmatpush1.xpose.msra.mxu0 0.0
    %688 = vmatprep.subr.mxu0 0.0
    %689 = vmatpush1.xpose.msra.mxu0 0.0
    %690 = vmatprep.subr.mxu0 0.0
    %691 = vmatpush1.xpose.msra.mxu0 0.0
    %692 = vmatprep.subr.mxu0 0.0
    %693 = vmatpush1.xpose.msra.mxu0 0.0
    %694 = vmatprep.subr.mxu0 0.0
    %695 = vmatpush1.xpose.msra.mxu0 0.0
    %696 = vmatprep.subr.mxu0 0.0
    %697 = vmatpush1.xpose.msra.mxu0 0.0
    %698 = vmatprep.subr.mxu0 0.0
    %699 = vmatpush1.xpose.msra.mxu0 0.0
    %700 = vmatprep.subr.mxu0 0.0
    %701 = vmatpush1.xpose.msra.mxu0 0.0
    %702 = vmatprep.subr.mxu0 0.0
    %703 = vmatpush1.xpose.msra.mxu0 0.0
    %704 = vmatprep.subr.mxu0 0.0
    %705 = vmatpush1.xpose.msra.mxu0 0.0
    %706 = vmatprep.subr.mxu0 0.0
    %707 = vmatpush1.xpose.msra.mxu0 0.0
    %708 = vmatprep.subr.mxu0 0.0
    %709 = vmatpush1.xpose.msra.mxu0 0.0
    %710 = vmatprep.subr.mxu0 0.0
    %711 = vmatpush1.xpose.msra.mxu0 0.0
    %712 = vmatprep.subr.mxu0 0.0
    %713 = vmatpush1.xpose.msra.mxu0 0.0
    %714 = vmatprep.subr.mxu0 0.0
    %715 = vmatpush1.xpose.msra.mxu0 0.0
    %716 = vmatprep.subr.mxu0 0.0
    %717 = vmatpush1.xpose.msra.mxu0 0.0
    %718 = vmatprep.subr.mxu0 0.0
    %719 = vmatpush1.xpose.msra.mxu0 0.0
    %720 = vmatprep.subr.mxu0 0.0
    %721 = vmatpush1.xpose.msra.mxu0 0.0
    %722 = vmatprep.subr.mxu0 0.0
    %723 = vmatpush1.xpose.msra.mxu0 0.0
    %724 = vmatprep.subr.mxu0 0.0
    %725 = vmatpush1.xpose.msra.mxu0 0.0
    %726 = vmatprep.subr.mxu0 0.0
    %727 = vmatpush1.xpose.msra.mxu0 0.0
    %728 = vmatprep.subr.mxu0 0.0
    %729 = vmatpush1.xpose.msra.mxu0 0.0
    %730 = vmatprep.subr.mxu0 0.0
    %731 = vmatpush1.xpose.msra.mxu0 0.0
    %732 = vmatprep.mubr.f32.mxu0 0.0
    %733 = vmatmul.mubr.f32.gmra.mrb[0].mxu0 %v656
    %v734 = vpop.f32.mrb[0].mxu0
    %v735 = vadd.f32 %v41, %v734
    %v736 = vpop.f32.mrb[0].mxu0
    %737 = vmatprep.mubr.f32.mxu0 0.0
    %738 = vmatmul.mubr.f32.gmra.mrb[0].mxu0 %v658
    %v739 = vpop.f32.mrb[0].mxu0
    %v740 = vadd.f32 %v41, %v739
    %v741 = vpop.f32.mrb[0].mxu0
    %742 = vmatprep.mubr.f32.mxu0 0.0
    %743 = vmatmul.mubr.f32.gmra.mrb[0].mxu0 %v660
    %v744 = vpop.f32.mrb[0].mxu0
    %v745 = vadd.f32 %v41, %v744
    %v746 = vpop.f32.mrb[0].mxu0
    %747 = vdwg.mxu0
    %v748 = vsel %vm512, %v735, -inf
    %749 = vmax.xlane.f32.xlu0 %v748
    %v750 = vpop.xlane.xlu0 %749
    %v751 = vsel %vm512, %v740, -inf
    %752 = vmax.xlane.f32.xlu0 %v751
    %v753 = vpop.xlane.xlu0 %752
    %v754 = vsel %vm512, %v745, -inf
    %755 = vmax.xlane.f32.xlu0 %v754
    %v756 = vpop.xlane.xlu0 %755
    %v757 = vsub.f32 %v735, %v750
    %v758 = vsub.f32 %v740, %v753
    %v759 = vsub.f32 %v745, %v756
    %v760 = vmul.f32 %v757, 1.442695
    %v761 = vpow.pop %v760
    %v762 = vmul.f32 %v758, 1.442695
    %v763 = vpow.pop %v762
    %v764 = vmul.f32 %v759, 1.442695
    %v765 = vpow.pop %v764
    %v766 = vsel %vm512, %v761, 0.0
    %767 = vadd.xlane.f32.xlu0 %v766
    %v768 = vpop.xlane.xlu0 %767
    %v769 = vsel %vm512, %v763, 0.0
    %770 = vadd.xlane.f32.xlu0 %v769
    %v771 = vpop.xlane.xlu0 %770
    %v772 = vsel %vm512, %v765, 0.0
    %773 = vadd.xlane.f32.xlu0 %v772
    %v774 = vpop.xlane.xlu0 %773
    %v775 = vrcp.pop %v768
    %v776 = vrcp.pop %v771
    %v777 = vrcp.pop %v774
    %v778 = vmul.f32 %v761, %v775
    %v779 = vmul.f32 %v763, %v776
    %v780 = vmul.f32 %v765, %v777
    %781 = vrot.lane.b32.xlu0 %v378, 56
    %v782 = vpop.permute.xlu0 %781
    %783 = vrot.lane.b32.xlu0 %v383, 56
    %v784 = vpop.permute.xlu0 %783
    %785 = vrot.lane.b32.xlu0 %v388, 56
    %v786 = vpop.permute.xlu0 %785
    %v791 = vsel %vm512, %v778, 0
    %v794 = vsel %vm512, %v779, 0
    %v797 = vsel %vm512, %v780, 0
    %799 = vmatprep.subr.mxu0 0.0
    %800 = vmatpush1.msra.mxu0 %v782
    %801 = vmatprep.subr.mxu0 0.0
    %802 = vmatpush1.msra.mxu0 %v784
    %803 = vmatprep.subr.mxu0 0.0
    %804 = vmatpush1.msra.mxu0 %v786
    %805 = vmatprep.subr.mxu0 0.0
    %806 = vmatpush1.msra.mxu0 0.0
    %807 = vmatprep.subr.mxu0 0.0
    %808 = vmatpush1.msra.mxu0 0.0
    %809 = vmatprep.subr.mxu0 0.0
    %810 = vmatpush1.msra.mxu0 0.0
    %811 = vmatprep.subr.mxu0 0.0
    %812 = vmatpush1.msra.mxu0 0.0
    %813 = vmatprep.subr.mxu0 0.0
    %814 = vmatpush1.msra.mxu0 0.0
    %815 = vmatprep.subr.mxu0 0.0
    %816 = vmatpush1.msra.mxu0 0.0
    %817 = vmatprep.subr.mxu0 0.0
    %818 = vmatpush1.msra.mxu0 0.0
    %819 = vmatprep.subr.mxu0 0.0
    %820 = vmatpush1.msra.mxu0 0.0
    %821 = vmatprep.subr.mxu0 0.0
    %822 = vmatpush1.msra.mxu0 0.0
    %823 = vmatprep.subr.mxu0 0.0
    %824 = vmatpush1.msra.mxu0 0.0
    %825 = vmatprep.subr.mxu0 0.0
    %826 = vmatpush1.msra.mxu0 0.0
    %827 = vmatprep.subr.mxu0 0.0
    %828 = vmatpush1.msra.mxu0 0.0
    %829 = vmatprep.subr.mxu0 0.0
    %830 = vmatpush1.msra.mxu0 0.0
    %831 = vmatprep.subr.mxu0 0.0
    %832 = vmatpush1.msra.mxu0 0.0
    %833 = vmatprep.subr.mxu0 0.0
    %834 = vmatpush1.msra.mxu0 0.0
    %835 = vmatprep.subr.mxu0 0.0
    %836 = vmatpush1.msra.mxu0 0.0
    %837 = vmatprep.subr.mxu0 0.0
    %838 = vmatpush1.msra.mxu0 0.0
    %839 = vmatprep.subr.mxu0 0.0
    %840 = vmatpush1.msra.mxu0 0.0
    %841 = vmatprep.subr.mxu0 0.0
    %842 = vmatpush1.msra.mxu0 0.0
    %843 = vmatprep.subr.mxu0 0.0
    %844 = vmatpush1.msra.mxu0 0.0
    %845 = vmatprep.subr.mxu0 0.0
    %846 = vmatpush1.msra.mxu0 0.0
    %847 = vmatprep.subr.mxu0 0.0
    %848 = vmatpush1.msra.mxu0 0.0
    %849 = vmatprep.subr.mxu0 0.0
    %850 = vmatpush1.msra.mxu0 0.0
    %851 = vmatprep.subr.mxu0 0.0
    %852 = vmatpush1.msra.mxu0 0.0
    %853 = vmatprep.subr.mxu0 0.0
    %854 = vmatpush1.msra.mxu0 0.0
    %855 = vmatprep.subr.mxu0 0.0
    %856 = vmatpush1.msra.mxu0 0.0
    %857 = vmatprep.subr.mxu0 0.0
    %858 = vmatpush1.msra.mxu0 0.0
    %859 = vmatprep.subr.mxu0 0.0
    %860 = vmatpush1.msra.mxu0 0.0
    %861 = vmatprep.subr.mxu0 0.0
    %862 = vmatpush1.msra.mxu0 0.0
    %863 = vmatprep.mubr.f32.mxu0 0.0
    %864 = vmatmul.mubr.f32.gmra.mrb[0].mxu0 %v791
    %v865 = vpop.f32.mrb[0].mxu0
    %v866 = vadd.f32 0.0, %v865
    %v867 = vpop.f32.mrb[0].mxu0
    %868 = vmatprep.mubr.f32.mxu0 0.0
    %869 = vmatmul.mubr.f32.gmra.mrb[0].mxu0 %v794
    %v870 = vpop.f32.mrb[0].mxu0
    %v871 = vadd.f32 0.0, %v870
    %v872 = vpop.f32.mrb[0].mxu0
    %873 = vmatprep.mubr.f32.mxu0 0.0
    %874 = vmatmul.mubr.f32.gmra.mrb[0].mxu0 %v797
    %v875 = vpop.f32.mrb[0].mxu0
    %v876 = vadd.f32 0.0, %v875
    %v877 = vpop.f32.mrb[0].mxu0
    %878 = vdwg.mxu0
    %v880 = vsel %vm419, %v866, 0
    %v883 = vsel %vm419, %v871, 0
    %v886 = vsel %vm419, %v876, 0
    %888 = vmatprep.subr.mxu0 0.0
    %889 = vmatpush1.msra.mxu0 %v407
    %890 = vmatprep.subr.mxu0 0.0
    %891 = vmatpush1.msra.mxu0 0.0
    %892 = vmatprep.subr.mxu0 0.0
    %893 = vmatpush1.msra.mxu0 0.0
    %894 = vmatprep.subr.mxu0 0.0
    %895 = vmatpush1.msra.mxu0 0.0
    %896 = vmatprep.subr.mxu0 0.0
    %897 = vmatpush1.msra.mxu0 0.0
    %898 = vmatprep.subr.mxu0 0.0
    %899 = vmatpush1.msra.mxu0 0.0
    %900 = vmatprep.subr.mxu0 0.0
    %901 = vmatpush1.msra.mxu0 0.0
    %902 = vmatprep.subr.mxu0 0.0
    %903 = vmatpush1.msra.mxu0 0.0
    %904 = vmatprep.subr.mxu0 0.0
    %905 = vmatpush1.msra.mxu0 0.0
    %906 = vmatprep.subr.mxu0 0.0
    %907 = vmatpush1.msra.mxu0 0.0
    %908 = vmatprep.subr.mxu0 0.0
    %909 = vmatpush1.msra.mxu0 0.0
    %910 = vmatprep.subr.mxu0 0.0
    %911 = vmatpush1.msra.mxu0 0.0
    %912 = vmatprep.subr.mxu0 0.0
    %913 = vmatpush1.msra.mxu0 0.0
    %914 = vmatprep.subr.mxu0 0.0
    %915 = vmatpush1.msra.mxu0 0.0
    %916 = vmatprep.subr.mxu0 0.0
    %917 = vmatpush1.msra.mxu0 0.0
    %918 = vmatprep.subr.mxu0 0.0
    %919 = vmatpush1.msra.mxu0 0.0
    %920 = vmatprep.subr.mxu0 0.0
    %921 = vmatpush1.msra.mxu0 0.0
    %922 = vmatprep.subr.mxu0 0.0
    %923 = vmatpush1.msra.mxu0 0.0
    %924 = vmatprep.subr.mxu0 0.0
    %925 = vmatpush1.msra.mxu0 0.0
    %926 = vmatprep.subr.mxu0 0.0
    %927 = vmatpush1.msra.mxu0 0.0
    %928 = vmatprep.subr.mxu0 0.0
    %929 = vmatpush1.msra.mxu0 0.0
    %930 = vmatprep.subr.mxu0 0.0
    %931 = vmatpush1.msra.mxu0 0.0
    %932 = vmatprep.subr.mxu0 0.0
    %933 = vmatpush1.msra.mxu0 0.0
    %934 = vmatprep.subr.mxu0 0.0
    %935 = vmatpush1.msra.mxu0 0.0
    %936 = vmatprep.subr.mxu0 0.0
    %937 = vmatpush1.msra.mxu0 0.0
    %938 = vmatprep.subr.mxu0 0.0
    %939 = vmatpush1.msra.mxu0 0.0
    %940 = vmatprep.subr.mxu0 0.0
    %941 = vmatpush1.msra.mxu0 0.0
    %942 = vmatprep.subr.mxu0 0.0
    %943 = vmatpush1.msra.mxu0 0.0
    %944 = vmatprep.subr.mxu0 0.0
    %945 = vmatpush1.msra.mxu0 0.0
    %946 = vmatprep.subr.mxu0 0.0
    %947 = vmatpush1.msra.mxu0 0.0
    %948 = vmatprep.subr.mxu0 0.0
    %949 = vmatpush1.msra.mxu0 0.0
    %950 = vmatprep.subr.mxu0 0.0
    %951 = vmatpush1.msra.mxu0 0.0
    %952 = vmatprep.mubr.f32.mxu0 0.0
    %953 = vmatmul.mubr.f32.gmra.mrb[0].mxu0 %v880
    %v954 = vpop.f32.mrb[0].mxu0
    %v955 = vadd.f32 0.0, %v954
    %v956 = vpop.f32.mrb[0].mxu0
    %957 = vmatprep.mubr.f32.mxu0 0.0
    %958 = vmatmul.mubr.f32.gmra.mrb[0].mxu0 %v883
    %v959 = vpop.f32.mrb[0].mxu0
    %v960 = vadd.f32 0.0, %v959
    %v961 = vpop.f32.mrb[0].mxu0
    %962 = vmatprep.mubr.f32.mxu0 0.0
    %963 = vmatmul.mubr.f32.gmra.mrb[0].mxu0 %v886
    %v964 = vpop.f32.mrb[0].mxu0
    %v965 = vadd.f32 0.0, %v964
    %v966 = vpop.f32.mrb[0].mxu0
    %967 = vdwg.mxu0
    %v969 = vsel %vm419, %v631, 0
    %v972 = vsel %vm419, %v636, 0
    %v975 = vsel %vm419, %v641, 0
    %977 = vmatprep.subr.mxu0 0.0
    %978 = vmatpush1.msra.mxu0 %v406
    %979 = vmatprep.subr.mxu0 0.0
    %980 = vmatpush1.msra.mxu0 0.0
    %981 = vmatprep.subr.mxu0 0.0
    %982 = vmatpush1.msra.mxu0 0.0
    %983 = vmatprep.subr.mxu0 0.0
    %984 = vmatpush1.msra.mxu0 0.0
    %985 = vmatprep.subr.mxu0 0.0
    %986 = vmatpush1.msra.mxu0 0.0
    %987 = vmatprep.subr.mxu0 0.0
    %988 = vmatpush1.msra.mxu0 0.0
    %989 = vmatprep.subr.mxu0 0.0
    %990 = vmatpush1.msra.mxu0 0.0
    %991 = vmatprep.subr.mxu0 0.0
    %992 = vmatpush1.msra.mxu0 0.0
    %993 = vmatprep.subr.mxu0 0.0
    %994 = vmatpush1.msra.mxu0 0.0
    %995 = vmatprep.subr.mxu0 0.0
    %996 = vmatpush1.msra.mxu0 0.0
    %997 = vmatprep.subr.mxu0 0.0
    %998 = vmatpush1.msra.mxu0 0.0
    %999 = vmatprep.subr.mxu0 0.0
    %1000 = vmatpush1.msra.mxu0 0.0
    %1001 = vmatprep.subr.mxu0 0.0
    %1002 = vmatpush1.msra.mxu0 0.0
    %1003 = vmatprep.subr.mxu0 0.0
    %1004 = vmatpush1.msra.mxu0 0.0
    %1005 = vmatprep.subr.mxu0 0.0
    %1006 = vmatpush1.msra.mxu0 0.0
    %1007 = vmatprep.subr.mxu0 0.0
    %1008 = vmatpush1.msra.mxu0 0.0
    %1009 = vmatprep.subr.mxu0 0.0
    %1010 = vmatpush1.msra.mxu0 0.0
    %1011 = vmatprep.subr.mxu0 0.0
    %1012 = vmatpush1.msra.mxu0 0.0
    %1013 = vmatprep.subr.mxu0 0.0
    %1014 = vmatpush1.msra.mxu0 0.0
    %1015 = vmatprep.subr.mxu0 0.0
    %1016 = vmatpush1.msra.mxu0 0.0
    %1017 = vmatprep.subr.mxu0 0.0
    %1018 = vmatpush1.msra.mxu0 0.0
    %1019 = vmatprep.subr.mxu0 0.0
    %1020 = vmatpush1.msra.mxu0 0.0
    %1021 = vmatprep.subr.mxu0 0.0
    %1022 = vmatpush1.msra.mxu0 0.0
    %1023 = vmatprep.subr.mxu0 0.0
    %1024 = vmatpush1.msra.mxu0 0.0
    %1025 = vmatprep.subr.mxu0 0.0
    %1026 = vmatpush1.msra.mxu0 0.0
    %1027 = vmatprep.subr.mxu0 0.0
    %1028 = vmatpush1.msra.mxu0 0.0
    %1029 = vmatprep.subr.mxu0 0.0
    %1030 = vmatpush1.msra.mxu0 0.0
    %1031 = vmatprep.subr.mxu0 0.0
    %1032 = vmatpush1.msra.mxu0 0.0
    %1033 = vmatprep.subr.mxu0 0.0
    %1034 = vmatpush1.msra.mxu0 0.0
    %1035 = vmatprep.subr.mxu0 0.0
    %1036 = vmatpush1.msra.mxu0 0.0
    %1037 = vmatprep.subr.mxu0 0.0
    %1038 = vmatpush1.msra.mxu0 0.0
    %1039 = vmatprep.subr.mxu0 0.0
    %1040 = vmatpush1.msra.mxu0 0.0
    %1041 = vmatprep.mubr.f32.mxu0 0.0
    %1042 = vmatmul.mubr.f32.gmra.mrb[0].mxu0 %v969
    %v1043 = vpop.f32.mrb[0].mxu0
    %v1044 = vadd.f32 %v955, %v1043
    %v1045 = vpop.f32.mrb[0].mxu0
    %1046 = vmatprep.mubr.f32.mxu0 0.0
    %1047 = vmatmul.mubr.f32.gmra.mrb[0].mxu0 %v972
    %v1048 = vpop.f32.mrb[0].mxu0
    %v1049 = vadd.f32 %v960, %v1048
    %v1050 = vpop.f32.mrb[0].mxu0
    %1051 = vmatprep.mubr.f32.mxu0 0.0
    %1052 = vmatmul.mubr.f32.gmra.mrb[0].mxu0 %v975
    %v1053 = vpop.f32.mrb[0].mxu0
    %v1054 = vadd.f32 %v965, %v1053
    %v1055 = vpop.f32.mrb[0].mxu0
    %1056 = vdwg.mxu0
    %1057 = vrot.lane.b32.xlu0 %v378, 112
    %v1058 = vpop.permute.xlu0 %1057
    %1059 = vrot.lane.b32.xlu0 %v383, 112
    %v1060 = vpop.permute.xlu0 %1059
    %1061 = vrot.lane.b32.xlu0 %v388, 112
    %v1062 = vpop.permute.xlu0 %1061
    %1063 = vrot.lane.b32.xlu0 %v378, 80
    %v1064 = vpop.permute.xlu0 %1063
    %1065 = vrot.lane.b32.xlu0 %v383, 80
    %v1066 = vpop.permute.xlu0 %1065
    %1067 = vrot.lane.b32.xlu0 %v388, 80
    %v1068 = vpop.permute.xlu0 %1067
    %v1069 = vsel %vm419, %v1058, 0
    %v1071 = vsel %vm419, %v1060, 0
    %v1073 = vsel %vm419, %v1062, 0
    %v1075 = vsel %vm419, %v1064, 0
    %v1077 = vsel %vm419, %v1066, 0
    %v1079 = vsel %vm419, %v1068, 0
    %1081 = vmatprep.subr.mxu0 0.0
    %1082 = vmatpush1.xpose.msra.mxu0 %v1075
    %1083 = vmatprep.subr.mxu0 0.0
    %1084 = vmatpush1.xpose.msra.mxu0 %v1077
    %1085 = vmatprep.subr.mxu0 0.0
    %1086 = vmatpush1.xpose.msra.mxu0 %v1079
    %1087 = vmatprep.subr.mxu0 0.0
    %1088 = vmatpush1.xpose.msra.mxu0 0.0
    %1089 = vmatprep.subr.mxu0 0.0
    %1090 = vmatpush1.xpose.msra.mxu0 0.0
    %1091 = vmatprep.subr.mxu0 0.0
    %1092 = vmatpush1.xpose.msra.mxu0 0.0
    %1093 = vmatprep.subr.mxu0 0.0
    %1094 = vmatpush1.xpose.msra.mxu0 0.0
    %1095 = vmatprep.subr.mxu0 0.0
    %1096 = vmatpush1.xpose.msra.mxu0 0.0
    %1097 = vmatprep.subr.mxu0 0.0
    %1098 = vmatpush1.xpose.msra.mxu0 0.0
    %1099 = vmatprep.subr.mxu0 0.0
    %1100 = vmatpush1.xpose.msra.mxu0 0.0
    %1101 = vmatprep.subr.mxu0 0.0
    %1102 = vmatpush1.xpose.msra.mxu0 0.0
    %1103 = vmatprep.subr.mxu0 0.0
    %1104 = vmatpush1.xpose.msra.mxu0 0.0
    %1105 = vmatprep.subr.mxu0 0.0
    %1106 = vmatpush1.xpose.msra.mxu0 0.0
    %1107 = vmatprep.subr.mxu0 0.0
    %1108 = vmatpush1.xpose.msra.mxu0 0.0
    %1109 = vmatprep.subr.mxu0 0.0
    %1110 = vmatpush1.xpose.msra.mxu0 0.0
    %1111 = vmatprep.subr.mxu0 0.0
    %1112 = vmatpush1.xpose.msra.mxu0 0.0
    %1113 = vmatprep.subr.mxu0 0.0
    %1114 = vmatpush1.xpose.msra.mxu0 0.0
    %1115 = vmatprep.subr.mxu0 0.0
    %1116 = vmatpush1.xpose.msra.mxu0 0.0
    %1117 = vmatprep.subr.mxu0 0.0
    %1118 = vmatpush1.xpose.msra.mxu0 0.0
    %1119 = vmatprep.subr.mxu0 0.0
    %1120 = vmatpush1.xpose.msra.mxu0 0.0
    %1121 = vmatprep.subr.mxu0 0.0
    %1122 = vmatpush1.xpose.msra.mxu0 0.0
    %1123 = vmatprep.subr.mxu0 0.0
    %1124 = vmatpush1.xpose.msra.mxu0 0.0
    %1125 = vmatprep.subr.mxu0 0.0
    %1126 = vmatpush1.xpose.msra.mxu0 0.0
    %1127 = vmatprep.subr.mxu0 0.0
    %1128 = vmatpush1.xpose.msra.mxu0 0.0
    %1129 = vmatprep.subr.mxu0 0.0
    %1130 = vmatpush1.xpose.msra.mxu0 0.0
    %1131 = vmatprep.subr.mxu0 0.0
    %1132 = vmatpush1.xpose.msra.mxu0 0.0
    %1133 = vmatprep.subr.mxu0 0.0
    %1134 = vmatpush1.xpose.msra.mxu0 0.0
    %1135 = vmatprep.subr.mxu0 0.0
    %1136 = vmatpush1.xpose.msra.mxu0 0.0
    %1137 = vmatprep.subr.mxu0 0.0
    %1138 = vmatpush1.xpose.msra.mxu0 0.0
    %1139 = vmatprep.subr.mxu0 0.0
    %1140 = vmatpush1.xpose.msra.mxu0 0.0
    %1141 = vmatprep.subr.mxu0 0.0
    %1142 = vmatpush1.xpose.msra.mxu0 0.0
    %1143 = vmatprep.subr.mxu0 0.0
    %1144 = vmatpush1.xpose.msra.mxu0 0.0
    %1145 = vmatprep.mubr.f32.mxu0 0.0
    %1146 = vmatmul.mubr.f32.gmra.mrb[0].mxu0 %v1069
    %v1147 = vpop.f32.mrb[0].mxu0
    %v1148 = vadd.f32 %v41, %v1147
    %v1149 = vpop.f32.mrb[0].mxu0
    %1150 = vmatprep.mubr.f32.mxu0 0.0
    %1151 = vmatmul.mubr.f32.gmra.mrb[0].mxu0 %v1071
    %v1152 = vpop.f32.mrb[0].mxu0
    %v1153 = vadd.f32 %v41, %v1152
    %v1154 = vpop.f32.mrb[0].mxu0
    %1155 = vmatprep.mubr.f32.mxu0 0.0
    %1156 = vmatmul.mubr.f32.gmra.mrb[0].mxu0 %v1073
    %v1157 = vpop.f32.mrb[0].mxu0
    %v1158 = vadd.f32 %v41, %v1157
    %v1159 = vpop.f32.mrb[0].mxu0
    %1160 = vdwg.mxu0
    %v1161 = vsel %vm512, %v1148, -inf
    %1162 = vmax.xlane.f32.xlu0 %v1161
    %v1163 = vpop.xlane.xlu0 %1162
    %v1164 = vsel %vm512, %v1153, -inf
    %1165 = vmax.xlane.f32.xlu0 %v1164
    %v1166 = vpop.xlane.xlu0 %1165
    %v1167 = vsel %vm512, %v1158, -inf
    %1168 = vmax.xlane.f32.xlu0 %v1167
    %v1169 = vpop.xlane.xlu0 %1168
    %v1170 = vsub.f32 %v1148, %v1163
    %v1171 = vsub.f32 %v1153, %v1166
    %v1172 = vsub.f32 %v1158, %v1169
    %v1173 = vmul.f32 %v1170, 1.442695
    %v1174 = vpow.pop %v1173
    %v1175 = vmul.f32 %v1171, 1.442695
    %v1176 = vpow.pop %v1175
    %v1177 = vmul.f32 %v1172, 1.442695
    %v1178 = vpow.pop %v1177
    %v1179 = vsel %vm512, %v1174, 0.0
    %1180 = vadd.xlane.f32.xlu0 %v1179
    %v1181 = vpop.xlane.xlu0 %1180
    %v1182 = vsel %vm512, %v1176, 0.0
    %1183 = vadd.xlane.f32.xlu0 %v1182
    %v1184 = vpop.xlane.xlu0 %1183
    %v1185 = vsel %vm512, %v1178, 0.0
    %1186 = vadd.xlane.f32.xlu0 %v1185
    %v1187 = vpop.xlane.xlu0 %1186
    %v1188 = vrcp.pop %v1181
    %v1189 = vrcp.pop %v1184
    %v1190 = vrcp.pop %v1187
    %v1191 = vmul.f32 %v1174, %v1188
    %v1192 = vmul.f32 %v1176, %v1189
    %v1193 = vmul.f32 %v1178, %v1190
    %1194 = vrot.lane.b32.xlu0 %v378, 48
    %v1195 = vpop.permute.xlu0 %1194
    %1196 = vrot.lane.b32.xlu0 %v383, 48
    %v1197 = vpop.permute.xlu0 %1196
    %1198 = vrot.lane.b32.xlu0 %v388, 48
    %v1199 = vpop.permute.xlu0 %1198
    %v1204 = vsel %vm512, %v1191, 0
    %v1207 = vsel %vm512, %v1192, 0
    %v1210 = vsel %vm512, %v1193, 0
    %1212 = vmatprep.subr.mxu0 0.0
    %1213 = vmatpush1.msra.mxu0 %v1195
    %1214 = vmatprep.subr.mxu0 0.0
    %1215 = vmatpush1.msra.mxu0 %v1197
    %1216 = vmatprep.subr.mxu0 0.0
    %1217 = vmatpush1.msra.mxu0 %v1199
    %1218 = vmatprep.subr.mxu0 0.0
    %1219 = vmatpush1.msra.mxu0 0.0
    %1220 = vmatprep.subr.mxu0 0.0
    %1221 = vmatpush1.msra.mxu0 0.0
    %1222 = vmatprep.subr.mxu0 0.0
    %1223 = vmatpush1.msra.mxu0 0.0
    %1224 = vmatprep.subr.mxu0 0.0
    %1225 = vmatpush1.msra.mxu0 0.0
    %1226 = vmatprep.subr.mxu0 0.0
    %1227 = vmatpush1.msra.mxu0 0.0
    %1228 = vmatprep.subr.mxu0 0.0
    %1229 = vmatpush1.msra.mxu0 0.0
    %1230 = vmatprep.subr.mxu0 0.0
    %1231 = vmatpush1.msra.mxu0 0.0
    %1232 = vmatprep.subr.mxu0 0.0
    %1233 = vmatpush1.msra.mxu0 0.0
    %1234 = vmatprep.subr.mxu0 0.0
    %1235 = vmatpush1.msra.mxu0 0.0
    %1236 = vmatprep.subr.mxu0 0.0
    %1237 = vmatpush1.msra.mxu0 0.0
    %1238 = vmatprep.subr.mxu0 0.0
    %1239 = vmatpush1.msra.mxu0 0.0
    %1240 = vmatprep.subr.mxu0 0.0
    %1241 = vmatpush1.msra.mxu0 0.0
    %1242 = vmatprep.subr.mxu0 0.0
    %1243 = vmatpush1.msra.mxu0 0.0
    %1244 = vmatprep.subr.mxu0 0.0
    %1245 = vmatpush1.msra.mxu0 0.0
    %1246 = vmatprep.subr.mxu0 0.0
    %1247 = vmatpush1.msra.mxu0 0.0
    %1248 = vmatprep.subr.mxu0 0.0
    %1249 = vmatpush1.msra.mxu0 0.0
    %1250 = vmatprep.subr.mxu0 0.0
    %1251 = vmatpush1.msra.mxu0 0.0
    %1252 = vmatprep.subr.mxu0 0.0
    %1253 = vmatpush1.msra.mxu0 0.0
    %1254 = vmatprep.subr.mxu0 0.0
    %1255 = vmatpush1.msra.mxu0 0.0
    %1256 = vmatprep.subr.mxu0 0.0
    %1257 = vmatpush1.msra.mxu0 0.0
    %1258 = vmatprep.subr.mxu0 0.0
    %1259 = vmatpush1.msra.mxu0 0.0
    %1260 = vmatprep.subr.mxu0 0.0
    %1261 = vmatpush1.msra.mxu0 0.0
    %1262 = vmatprep.subr.mxu0 0.0
    %1263 = vmatpush1.msra.mxu0 0.0
    %1264 = vmatprep.subr.mxu0 0.0
    %1265 = vmatpush1.msra.mxu0 0.0
    %1266 = vmatprep.subr.mxu0 0.0
    %1267 = vmatpush1.msra.mxu0 0.0
    %1268 = vmatprep.subr.mxu0 0.0
    %1269 = vmatpush1.msra.mxu0 0.0
    %1270 = vmatprep.subr.mxu0 0.0
    %1271 = vmatpush1.msra.mxu0 0.0
    %1272 = vmatprep.subr.mxu0 0.0
    %1273 = vmatpush1.msra.mxu0 0.0
    %1274 = vmatprep.subr.mxu0 0.0
    %1275 = vmatpush1.msra.mxu0 0.0
    %1276 = vmatprep.mubr.f32.mxu0 0.0
    %1277 = vmatmul.mubr.f32.gmra.mrb[0].mxu0 %v1204
    %v1278 = vpop.f32.mrb[0].mxu0
    %v1279 = vadd.f32 0.0, %v1278
    %v1280 = vpop.f32.mrb[0].mxu0
    %1281 = vmatprep.mubr.f32.mxu0 0.0
    %1282 = vmatmul.mubr.f32.gmra.mrb[0].mxu0 %v1207
    %v1283 = vpop.f32.mrb[0].mxu0
    %v1284 = vadd.f32 0.0, %v1283
    %v1285 = vpop.f32.mrb[0].mxu0
    %1286 = vmatprep.mubr.f32.mxu0 0.0
    %1287 = vmatmul.mubr.f32.gmra.mrb[0].mxu0 %v1210
    %v1288 = vpop.f32.mrb[0].mxu0
    %v1289 = vadd.f32 0.0, %v1288
    %v1290 = vpop.f32.mrb[0].mxu0
    %1291 = vdwg.mxu0
    %v1293 = vsel %vm419, %v1279, 0
    %v1296 = vsel %vm419, %v1284, 0
    %v1299 = vsel %vm419, %v1289, 0
    %1301 = vmatprep.subr.mxu0 0.0
    %1302 = vmatpush1.msra.mxu0 %v408
    %1303 = vmatprep.subr.mxu0 0.0
    %1304 = vmatpush1.msra.mxu0 0.0
    %1305 = vmatprep.subr.mxu0 0.0
    %1306 = vmatpush1.msra.mxu0 0.0
    %1307 = vmatprep.subr.mxu0 0.0
    %1308 = vmatpush1.msra.mxu0 0.0
    %1309 = vmatprep.subr.mxu0 0.0
    %1310 = vmatpush1.msra.mxu0 0.0
    %1311 = vmatprep.subr.mxu0 0.0
    %1312 = vmatpush1.msra.mxu0 0.0
    %1313 = vmatprep.subr.mxu0 0.0
    %1314 = vmatpush1.msra.mxu0 0.0
    %1315 = vmatprep.subr.mxu0 0.0
    %1316 = vmatpush1.msra.mxu0 0.0
    %1317 = vmatprep.subr.mxu0 0.0
    %1318 = vmatpush1.msra.mxu0 0.0
    %1319 = vmatprep.subr.mxu0 0.0
    %1320 = vmatpush1.msra.mxu0 0.0
    %1321 = vmatprep.subr.mxu0 0.0
    %1322 = vmatpush1.msra.mxu0 0.0
    %1323 = vmatprep.subr.mxu0 0.0
    %1324 = vmatpush1.msra.mxu0 0.0
    %1325 = vmatprep.subr.mxu0 0.0
    %1326 = vmatpush1.msra.mxu0 0.0
    %1327 = vmatprep.subr.mxu0 0.0
    %1328 = vmatpush1.msra.mxu0 0.0
    %1329 = vmatprep.subr.mxu0 0.0
    %1330 = vmatpush1.msra.mxu0 0.0
    %1331 = vmatprep.subr.mxu0 0.0
    %1332 = vmatpush1.msra.mxu0 0.0
    %1333 = vmatprep.subr.mxu0 0.0
    %1334 = vmatpush1.msra.mxu0 0.0
    %1335 = vmatprep.subr.mxu0 0.0
    %1336 = vmatpush1.msra.mxu0 0.0
    %1337 = vmatprep.subr.mxu0 0.0
    %1338 = vmatpush1.msra.mxu0 0.0
    %1339 = vmatprep.subr.mxu0 0.0
    %1340 = vmatpush1.msra.mxu0 0.0
    %1341 = vmatprep.subr.mxu0 0.0
    %1342 = vmatpush1.msra.mxu0 0.0
    %1343 = vmatprep.subr.mxu0 0.0
    %1344 = vmatpush1.msra.mxu0 0.0
    %1345 = vmatprep.subr.mxu0 0.0
    %1346 = vmatpush1.msra.mxu0 0.0
    %1347 = vmatprep.subr.mxu0 0.0
    %1348 = vmatpush1.msra.mxu0 0.0
    %1349 = vmatprep.subr.mxu0 0.0
    %1350 = vmatpush1.msra.mxu0 0.0
    %1351 = vmatprep.subr.mxu0 0.0
    %1352 = vmatpush1.msra.mxu0 0.0
    %1353 = vmatprep.subr.mxu0 0.0
    %1354 = vmatpush1.msra.mxu0 0.0
    %1355 = vmatprep.subr.mxu0 0.0
    %1356 = vmatpush1.msra.mxu0 0.0
    %1357 = vmatprep.subr.mxu0 0.0
    %1358 = vmatpush1.msra.mxu0 0.0
    %1359 = vmatprep.subr.mxu0 0.0
    %1360 = vmatpush1.msra.mxu0 0.0
    %1361 = vmatprep.subr.mxu0 0.0
    %1362 = vmatpush1.msra.mxu0 0.0
    %1363 = vmatprep.subr.mxu0 0.0
    %1364 = vmatpush1.msra.mxu0 0.0
    %1365 = vmatprep.mubr.f32.mxu0 0.0
    %1366 = vmatmul.mubr.f32.gmra.mrb[0].mxu0 %v1293
    %v1367 = vpop.f32.mrb[0].mxu0
    %v1368 = vadd.f32 0.0, %v1367
    %v1369 = vpop.f32.mrb[0].mxu0
    %1370 = vmatprep.mubr.f32.mxu0 0.0
    %1371 = vmatmul.mubr.f32.gmra.mrb[0].mxu0 %v1296
    %v1372 = vpop.f32.mrb[0].mxu0
    %v1373 = vadd.f32 0.0, %v1372
    %v1374 = vpop.f32.mrb[0].mxu0
    %1375 = vmatprep.mubr.f32.mxu0 0.0
    %1376 = vmatmul.mubr.f32.gmra.mrb[0].mxu0 %v1299
    %v1377 = vpop.f32.mrb[0].mxu0
    %v1378 = vadd.f32 0.0, %v1377
    %v1379 = vpop.f32.mrb[0].mxu0
    %1380 = vdwg.mxu0
    %v1381 = vadd.f32 %v1044, %v1368
    %v1382 = vadd.f32 %v1049, %v1373
    %v1383 = vadd.f32 %v1054, %v1378
    %1384 = vrot.lane.b32.xlu0 %v378, 104
    %v1385 = vpop.permute.xlu0 %1384
    %1386 = vrot.lane.b32.xlu0 %v383, 104
    %v1387 = vpop.permute.xlu0 %1386
    %1388 = vrot.lane.b32.xlu0 %v388, 104
    %v1389 = vpop.permute.xlu0 %1388
    %1390 = vrot.lane.b32.xlu0 %v378, 72
    %v1391 = vpop.permute.xlu0 %1390
    %1392 = vrot.lane.b32.xlu0 %v383, 72
    %v1393 = vpop.permute.xlu0 %1392
    %1394 = vrot.lane.b32.xlu0 %v388, 72
    %v1395 = vpop.permute.xlu0 %1394
    %v1396 = vsel %vm419, %v1385, 0
    %v1398 = vsel %vm419, %v1387, 0
    %v1400 = vsel %vm419, %v1389, 0
    %v1402 = vsel %vm419, %v1391, 0
    %v1404 = vsel %vm419, %v1393, 0
    %v1406 = vsel %vm419, %v1395, 0
    %1408 = vmatprep.subr.mxu0 0.0
    %1409 = vmatpush1.xpose.msra.mxu0 %v1402
    %1410 = vmatprep.subr.mxu0 0.0
    %1411 = vmatpush1.xpose.msra.mxu0 %v1404
    %1412 = vmatprep.subr.mxu0 0.0
    %1413 = vmatpush1.xpose.msra.mxu0 %v1406
    %1414 = vmatprep.subr.mxu0 0.0
    %1415 = vmatpush1.xpose.msra.mxu0 0.0
    %1416 = vmatprep.subr.mxu0 0.0
    %1417 = vmatpush1.xpose.msra.mxu0 0.0
    %1418 = vmatprep.subr.mxu0 0.0
    %1419 = vmatpush1.xpose.msra.mxu0 0.0
    %1420 = vmatprep.subr.mxu0 0.0
    %1421 = vmatpush1.xpose.msra.mxu0 0.0
    %1422 = vmatprep.subr.mxu0 0.0
    %1423 = vmatpush1.xpose.msra.mxu0 0.0
    %1424 = vmatprep.subr.mxu0 0.0
    %1425 = vmatpush1.xpose.msra.mxu0 0.0
    %1426 = vmatprep.subr.mxu0 0.0
    %1427 = vmatpush1.xpose.msra.mxu0 0.0
    %1428 = vmatprep.subr.mxu0 0.0
    %1429 = vmatpush1.xpose.msra.mxu0 0.0
    %1430 = vmatprep.subr.mxu0 0.0
    %1431 = vmatpush1.xpose.msra.mxu0 0.0
    %1432 = vmatprep.subr.mxu0 0.0
    %1433 = vmatpush1.xpose.msra.mxu0 0.0
    %1434 = vmatprep.subr.mxu0 0.0
    %1435 = vmatpush1.xpose.msra.mxu0 0.0
    %1436 = vmatprep.subr.mxu0 0.0
    %1437 = vmatpush1.xpose.msra.mxu0 0.0
    %1438 = vmatprep.subr.mxu0 0.0
    %1439 = vmatpush1.xpose.msra.mxu0 0.0
    %1440 = vmatprep.subr.mxu0 0.0
    %1441 = vmatpush1.xpose.msra.mxu0 0.0
    %1442 = vmatprep.subr.mxu0 0.0
    %1443 = vmatpush1.xpose.msra.mxu0 0.0
    %1444 = vmatprep.subr.mxu0 0.0
    %1445 = vmatpush1.xpose.msra.mxu0 0.0
    %1446 = vmatprep.subr.mxu0 0.0
    %1447 = vmatpush1.xpose.msra.mxu0 0.0
    %1448 = vmatprep.subr.mxu0 0.0
    %1449 = vmatpush1.xpose.msra.mxu0 0.0
    %1450 = vmatprep.subr.mxu0 0.0
    %1451 = vmatpush1.xpose.msra.mxu0 0.0
    %1452 = vmatprep.subr.mxu0 0.0
    %1453 = vmatpush1.xpose.msra.mxu0 0.0
    %1454 = vmatprep.subr.mxu0 0.0
    %1455 = vmatpush1.xpose.msra.mxu0 0.0
    %1456 = vmatprep.subr.mxu0 0.0
    %1457 = vmatpush1.xpose.msra.mxu0 0.0
    %1458 = vmatprep.subr.mxu0 0.0
    %1459 = vmatpush1.xpose.msra.mxu0 0.0
    %1460 = vmatprep.subr.mxu0 0.0
    %1461 = vmatpush1.xpose.msra.mxu0 0.0
    %1462 = vmatprep.subr.mxu0 0.0
    %1463 = vmatpush1.xpose.msra.mxu0 0.0
    %1464 = vmatprep.subr.mxu0 0.0
    %1465 = vmatpush1.xpose.msra.mxu0 0.0
    %1466 = vmatprep.subr.mxu0 0.0
    %1467 = vmatpush1.xpose.msra.mxu0 0.0
    %1468 = vmatprep.subr.mxu0 0.0
    %1469 = vmatpush1.xpose.msra.mxu0 0.0
    %1470 = vmatprep.subr.mxu0 0.0
    %1471 = vmatpush1.xpose.msra.mxu0 0.0
    %1472 = vmatprep.mubr.f32.mxu0 0.0
    %1473 = vmatmul.mubr.f32.gmra.mrb[0].mxu0 %v1396
    %v1474 = vpop.f32.mrb[0].mxu0
    %v1475 = vadd.f32 %v41, %v1474
    %v1476 = vpop.f32.mrb[0].mxu0
    %1477 = vmatprep.mubr.f32.mxu0 0.0
    %1478 = vmatmul.mubr.f32.gmra.mrb[0].mxu0 %v1398
    %v1479 = vpop.f32.mrb[0].mxu0
    %v1480 = vadd.f32 %v41, %v1479
    %v1481 = vpop.f32.mrb[0].mxu0
    %1482 = vmatprep.mubr.f32.mxu0 0.0
    %1483 = vmatmul.mubr.f32.gmra.mrb[0].mxu0 %v1400
    %v1484 = vpop.f32.mrb[0].mxu0
    %v1485 = vadd.f32 %v41, %v1484
    %v1486 = vpop.f32.mrb[0].mxu0
    %1487 = vdwg.mxu0
    %v1488 = vsel %vm512, %v1475, -inf
    %1489 = vmax.xlane.f32.xlu0 %v1488
    %v1490 = vpop.xlane.xlu0 %1489
    %v1491 = vsel %vm512, %v1480, -inf
    %1492 = vmax.xlane.f32.xlu0 %v1491
    %v1493 = vpop.xlane.xlu0 %1492
    %v1494 = vsel %vm512, %v1485, -inf
    %1495 = vmax.xlane.f32.xlu0 %v1494
    %v1496 = vpop.xlane.xlu0 %1495
    %v1497 = vsub.f32 %v1475, %v1490
    %v1498 = vsub.f32 %v1480, %v1493
    %v1499 = vsub.f32 %v1485, %v1496
    %v1500 = vmul.f32 %v1497, 1.442695
    %v1501 = vpow.pop %v1500
    %v1502 = vmul.f32 %v1498, 1.442695
    %v1503 = vpow.pop %v1502
    %v1504 = vmul.f32 %v1499, 1.442695
    %v1505 = vpow.pop %v1504
    %v1506 = vsel %vm512, %v1501, 0.0
    %1507 = vadd.xlane.f32.xlu0 %v1506
    %v1508 = vpop.xlane.xlu0 %1507
    %v1509 = vsel %vm512, %v1503, 0.0
    %1510 = vadd.xlane.f32.xlu0 %v1509
    %v1511 = vpop.xlane.xlu0 %1510
    %v1512 = vsel %vm512, %v1505, 0.0
    %1513 = vadd.xlane.f32.xlu0 %v1512
    %v1514 = vpop.xlane.xlu0 %1513
    %v1515 = vrcp.pop %v1508
    %v1516 = vrcp.pop %v1511
    %v1517 = vrcp.pop %v1514
    %v1518 = vmul.f32 %v1501, %v1515
    %v1519 = vmul.f32 %v1503, %v1516
    %v1520 = vmul.f32 %v1505, %v1517
    %1521 = vrot.lane.b32.xlu0 %v378, 40
    %v1522 = vpop.permute.xlu0 %1521
    %1523 = vrot.lane.b32.xlu0 %v383, 40
    %v1524 = vpop.permute.xlu0 %1523
    %1525 = vrot.lane.b32.xlu0 %v388, 40
    %v1526 = vpop.permute.xlu0 %1525
    %v1531 = vsel %vm512, %v1518, 0
    %v1534 = vsel %vm512, %v1519, 0
    %v1537 = vsel %vm512, %v1520, 0
    %1539 = vmatprep.subr.mxu0 0.0
    %1540 = vmatpush1.msra.mxu0 %v1522
    %1541 = vmatprep.subr.mxu0 0.0
    %1542 = vmatpush1.msra.mxu0 %v1524
    %1543 = vmatprep.subr.mxu0 0.0
    %1544 = vmatpush1.msra.mxu0 %v1526
    %1545 = vmatprep.subr.mxu0 0.0
    %1546 = vmatpush1.msra.mxu0 0.0
    %1547 = vmatprep.subr.mxu0 0.0
    %1548 = vmatpush1.msra.mxu0 0.0
    %1549 = vmatprep.subr.mxu0 0.0
    %1550 = vmatpush1.msra.mxu0 0.0
    %1551 = vmatprep.subr.mxu0 0.0
    %1552 = vmatpush1.msra.mxu0 0.0
    %1553 = vmatprep.subr.mxu0 0.0
    %1554 = vmatpush1.msra.mxu0 0.0
    %1555 = vmatprep.subr.mxu0 0.0
    %1556 = vmatpush1.msra.mxu0 0.0
    %1557 = vmatprep.subr.mxu0 0.0
    %1558 = vmatpush1.msra.mxu0 0.0
    %1559 = vmatprep.subr.mxu0 0.0
    %1560 = vmatpush1.msra.mxu0 0.0
    %1561 = vmatprep.subr.mxu0 0.0
    %1562 = vmatpush1.msra.mxu0 0.0
    %1563 = vmatprep.subr.mxu0 0.0
    %1564 = vmatpush1.msra.mxu0 0.0
    %1565 = vmatprep.subr.mxu0 0.0
    %1566 = vmatpush1.msra.mxu0 0.0
    %1567 = vmatprep.subr.mxu0 0.0
    %1568 = vmatpush1.msra.mxu0 0.0
    %1569 = vmatprep.subr.mxu0 0.0
    %1570 = vmatpush1.msra.mxu0 0.0
    %1571 = vmatprep.subr.mxu0 0.0
    %1572 = vmatpush1.msra.mxu0 0.0
    %1573 = vmatprep.subr.mxu0 0.0
    %1574 = vmatpush1.msra.mxu0 0.0
    %1575 = vmatprep.subr.mxu0 0.0
    %1576 = vmatpush1.msra.mxu0 0.0
    %1577 = vmatprep.subr.mxu0 0.0
    %1578 = vmatpush1.msra.mxu0 0.0
    %1579 = vmatprep.subr.mxu0 0.0
    %1580 = vmatpush1.msra.mxu0 0.0
    %1581 = vmatprep.subr.mxu0 0.0
    %1582 = vmatpush1.msra.mxu0 0.0
    %1583 = vmatprep.subr.mxu0 0.0
    %1584 = vmatpush1.msra.mxu0 0.0
    %1585 = vmatprep.subr.mxu0 0.0
    %1586 = vmatpush1.msra.mxu0 0.0
    %1587 = vmatprep.subr.mxu0 0.0
    %1588 = vmatpush1.msra.mxu0 0.0
    %1589 = vmatprep.subr.mxu0 0.0
    %1590 = vmatpush1.msra.mxu0 0.0
    %1591 = vmatprep.subr.mxu0 0.0
    %1592 = vmatpush1.msra.mxu0 0.0
    %1593 = vmatprep.subr.mxu0 0.0
    %1594 = vmatpush1.msra.mxu0 0.0
    %1595 = vmatprep.subr.mxu0 0.0
    %1596 = vmatpush1.msra.mxu0 0.0
    %1597 = vmatprep.subr.mxu0 0.0
    %1598 = vmatpush1.msra.mxu0 0.0
    %1599 = vmatprep.subr.mxu0 0.0
    %1600 = vmatpush1.msra.mxu0 0.0
    %1601 = vmatprep.subr.mxu0 0.0
    %1602 = vmatpush1.msra.mxu0 0.0
    %1603 = vmatprep.mubr.f32.mxu0 0.0
    %1604 = vmatmul.mubr.f32.gmra.mrb[0].mxu0 %v1531
    %v1605 = vpop.f32.mrb[0].mxu0
    %v1606 = vadd.f32 0.0, %v1605
    %v1607 = vpop.f32.mrb[0].mxu0
    %1608 = vmatprep.mubr.f32.mxu0 0.0
    %1609 = vmatmul.mubr.f32.gmra.mrb[0].mxu0 %v1534
    %v1610 = vpop.f32.mrb[0].mxu0
    %v1611 = vadd.f32 0.0, %v1610
    %v1612 = vpop.f32.mrb[0].mxu0
    %1613 = vmatprep.mubr.f32.mxu0 0.0
    %1614 = vmatmul.mubr.f32.gmra.mrb[0].mxu0 %v1537
    %v1615 = vpop.f32.mrb[0].mxu0
    %v1616 = vadd.f32 0.0, %v1615
    %v1617 = vpop.f32.mrb[0].mxu0
    %1618 = vdwg.mxu0
    %v1620 = vsel %vm419, %v1606, 0
    %v1623 = vsel %vm419, %v1611, 0
    %v1626 = vsel %vm419, %v1616, 0
    %1628 = vmatprep.subr.mxu0 0.0
    %1629 = vmatpush1.msra.mxu0 %v409
    %1630 = vmatprep.subr.mxu0 0.0
    %1631 = vmatpush1.msra.mxu0 0.0
    %1632 = vmatprep.subr.mxu0 0.0
    %1633 = vmatpush1.msra.mxu0 0.0
    %1634 = vmatprep.subr.mxu0 0.0
    %1635 = vmatpush1.msra.mxu0 0.0
    %1636 = vmatprep.subr.mxu0 0.0
    %1637 = vmatpush1.msra.mxu0 0.0
    %1638 = vmatprep.subr.mxu0 0.0
    %1639 = vmatpush1.msra.mxu0 0.0
    %1640 = vmatprep.subr.mxu0 0.0
    %1641 = vmatpush1.msra.mxu0 0.0
    %1642 = vmatprep.subr.mxu0 0.0
    %1643 = vmatpush1.msra.mxu0 0.0
    %1644 = vmatprep.subr.mxu0 0.0
    %1645 = vmatpush1.msra.mxu0 0.0
    %1646 = vmatprep.subr.mxu0 0.0
    %1647 = vmatpush1.msra.mxu0 0.0
    %1648 = vmatprep.subr.mxu0 0.0
    %1649 = vmatpush1.msra.mxu0 0.0
    %1650 = vmatprep.subr.mxu0 0.0
    %1651 = vmatpush1.msra.mxu0 0.0
    %1652 = vmatprep.subr.mxu0 0.0
    %1653 = vmatpush1.msra.mxu0 0.0
    %1654 = vmatprep.subr.mxu0 0.0
    %1655 = vmatpush1.msra.mxu0 0.0
    %1656 = vmatprep.subr.mxu0 0.0
    %1657 = vmatpush1.msra.mxu0 0.0
    %1658 = vmatprep.subr.mxu0 0.0
    %1659 = vmatpush1.msra.mxu0 0.0
    %1660 = vmatprep.subr.mxu0 0.0
    %1661 = vmatpush1.msra.mxu0 0.0
    %1662 = vmatprep.subr.mxu0 0.0
    %1663 = vmatpush1.msra.mxu0 0.0
    %1664 = vmatprep.subr.mxu0 0.0
    %1665 = vmatpush1.msra.mxu0 0.0
    %1666 = vmatprep.subr.mxu0 0.0
    %1667 = vmatpush1.msra.mxu0 0.0
    %1668 = vmatprep.subr.mxu0 0.0
    %1669 = vmatpush1.msra.mxu0 0.0
    %1670 = vmatprep.subr.mxu0 0.0
    %1671 = vmatpush1.msra.mxu0 0.0
    %1672 = vmatprep.subr.mxu0 0.0
    %1673 = vmatpush1.msra.mxu0 0.0
    %1674 = vmatprep.subr.mxu0 0.0
    %1675 = vmatpush1.msra.mxu0 0.0
    %1676 = vmatprep.subr.mxu0 0.0
    %1677 = vmatpush1.msra.mxu0 0.0
    %1678 = vmatprep.subr.mxu0 0.0
    %1679 = vmatpush1.msra.mxu0 0.0
    %1680 = vmatprep.subr.mxu0 0.0
    %1681 = vmatpush1.msra.mxu0 0.0
    %1682 = vmatprep.subr.mxu0 0.0
    %1683 = vmatpush1.msra.mxu0 0.0
    %1684 = vmatprep.subr.mxu0 0.0
    %1685 = vmatpush1.msra.mxu0 0.0
    %1686 = vmatprep.subr.mxu0 0.0
    %1687 = vmatpush1.msra.mxu0 0.0
    %1688 = vmatprep.subr.mxu0 0.0
    %1689 = vmatpush1.msra.mxu0 0.0
    %1690 = vmatprep.subr.mxu0 0.0
    %1691 = vmatpush1.msra.mxu0 0.0
    %1692 = vmatprep.mubr.f32.mxu0 0.0
    %1693 = vmatmul.mubr.f32.gmra.mrb[0].mxu0 %v1620
    %v1694 = vpop.f32.mrb[0].mxu0
    %v1695 = vadd.f32 0.0, %v1694
    %v1696 = vpop.f32.mrb[0].mxu0
    %1697 = vmatprep.mubr.f32.mxu0 0.0
    %1698 = vmatmul.mubr.f32.gmra.mrb[0].mxu0 %v1623
    %v1699 = vpop.f32.mrb[0].mxu0
    %v1700 = vadd.f32 0.0, %v1699
    %v1701 = vpop.f32.mrb[0].mxu0
    %1702 = vmatprep.mubr.f32.mxu0 0.0
    %1703 = vmatmul.mubr.f32.gmra.mrb[0].mxu0 %v1626
    %v1704 = vpop.f32.mrb[0].mxu0
    %v1705 = vadd.f32 0.0, %v1704
    %v1706 = vpop.f32.mrb[0].mxu0
    %1707 = vdwg.mxu0
    %v1708 = vadd.f32 %v1381, %v1695
    %v1709 = vadd.f32 %v1382, %v1700
    %v1710 = vadd.f32 %v1383, %v1705
    %1714 = vrot.lane.b32.xlu0 %v393, 96
    %v1715 = vpop.permute.xlu0 %1714
    %1716 = vrot.lane.b32.xlu0 %v398, 96
    %v1717 = vpop.permute.xlu0 %1716
    %1718 = vrot.lane.b32.xlu0 %v403, 96
    %v1719 = vpop.permute.xlu0 %1718
    %v1720 = vsel %vm419, %v393, 0
    %v1722 = vsel %vm419, %v398, 0
    %v1724 = vsel %vm419, %v403, 0
    %v1726 = vsel %vm419, %v1715, 0
    %v1728 = vsel %vm419, %v1717, 0
    %v1730 = vsel %vm419, %v1719, 0
    %1732 = vmatprep.subr.mxu0 0.0
    %1733 = vmatpush1.xpose.msra.mxu0 %v1726
    %1734 = vmatprep.subr.mxu0 0.0
    %1735 = vmatpush1.xpose.msra.mxu0 %v1728
    %1736 = vmatprep.subr.mxu0 0.0
    %1737 = vmatpush1.xpose.msra.mxu0 %v1730
    %1738 = vmatprep.subr.mxu0 0.0
    %1739 = vmatpush1.xpose.msra.mxu0 0.0
    %1740 = vmatprep.subr.mxu0 0.0
    %1741 = vmatpush1.xpose.msra.mxu0 0.0
    %1742 = vmatprep.subr.mxu0 0.0
    %1743 = vmatpush1.xpose.msra.mxu0 0.0
    %1744 = vmatprep.subr.mxu0 0.0
    %1745 = vmatpush1.xpose.msra.mxu0 0.0
    %1746 = vmatprep.subr.mxu0 0.0
    %1747 = vmatpush1.xpose.msra.mxu0 0.0
    %1748 = vmatprep.subr.mxu0 0.0
    %1749 = vmatpush1.xpose.msra.mxu0 0.0
    %1750 = vmatprep.subr.mxu0 0.0
    %1751 = vmatpush1.xpose.msra.mxu0 0.0
    %1752 = vmatprep.subr.mxu0 0.0
    %1753 = vmatpush1.xpose.msra.mxu0 0.0
    %1754 = vmatprep.subr.mxu0 0.0
    %1755 = vmatpush1.xpose.msra.mxu0 0.0
    %1756 = vmatprep.subr.mxu0 0.0
    %1757 = vmatpush1.xpose.msra.mxu0 0.0
    %1758 = vmatprep.subr.mxu0 0.0
    %1759 = vmatpush1.xpose.msra.mxu0 0.0
    %1760 = vmatprep.subr.mxu0 0.0
    %1761 = vmatpush1.xpose.msra.mxu0 0.0
    %1762 = vmatprep.subr.mxu0 0.0
    %1763 = vmatpush1.xpose.msra.mxu0 0.0
    %1764 = vmatprep.subr.mxu0 0.0
    %1765 = vmatpush1.xpose.msra.mxu0 0.0
    %1766 = vmatprep.subr.mxu0 0.0
    %1767 = vmatpush1.xpose.msra.mxu0 0.0
    %1768 = vmatprep.subr.mxu0 0.0
    %1769 = vmatpush1.xpose.msra.mxu0 0.0
    %1770 = vmatprep.subr.mxu0 0.0
    %1771 = vmatpush1.xpose.msra.mxu0 0.0
    %1772 = vmatprep.subr.mxu0 0.0
    %1773 = vmatpush1.xpose.msra.mxu0 0.0
    %1774 = vmatprep.subr.mxu0 0.0
    %1775 = vmatpush1.xpose.msra.mxu0 0.0
    %1776 = vmatprep.subr.mxu0 0.0
    %1777 = vmatpush1.xpose.msra.mxu0 0.0
    %1778 = vmatprep.subr.mxu0 0.0
    %1779 = vmatpush1.xpose.msra.mxu0 0.0
    %1780 = vmatprep.subr.mxu0 0.0
    %1781 = vmatpush1.xpose.msra.mxu0 0.0
    %1782 = vmatprep.subr.mxu0 0.0
    %1783 = vmatpush1.xpose.msra.mxu0 0.0
    %1784 = vmatprep.subr.mxu0 0.0
    %1785 = vmatpush1.xpose.msra.mxu0 0.0
    %1786 = vmatprep.subr.mxu0 0.0
    %1787 = vmatpush1.xpose.msra.mxu0 0.0
    %1788 = vmatprep.subr.mxu0 0.0
    %1789 = vmatpush1.xpose.msra.mxu0 0.0
    %1790 = vmatprep.subr.mxu0 0.0
    %1791 = vmatpush1.xpose.msra.mxu0 0.0
    %1792 = vmatprep.subr.mxu0 0.0
    %1793 = vmatpush1.xpose.msra.mxu0 0.0
    %1794 = vmatprep.subr.mxu0 0.0
    %1795 = vmatpush1.xpose.msra.mxu0 0.0
    %1796 = vmatprep.mubr.f32.mxu0 0.0
    %1797 = vmatmul.mubr.f32.gmra.mrb[0].mxu0 %v1720
    %v1798 = vpop.f32.mrb[0].mxu0
    %v1799 = vadd.f32 %v41, %v1798
    %v1800 = vpop.f32.mrb[0].mxu0
    %1801 = vmatprep.mubr.f32.mxu0 0.0
    %1802 = vmatmul.mubr.f32.gmra.mrb[0].mxu0 %v1722
    %v1803 = vpop.f32.mrb[0].mxu0
    %v1804 = vadd.f32 %v41, %v1803
    %v1805 = vpop.f32.mrb[0].mxu0
    %1806 = vmatprep.mubr.f32.mxu0 0.0
    %1807 = vmatmul.mubr.f32.gmra.mrb[0].mxu0 %v1724
    %v1808 = vpop.f32.mrb[0].mxu0
    %v1809 = vadd.f32 %v41, %v1808
    %v1810 = vpop.f32.mrb[0].mxu0
    %1811 = vdwg.mxu0
    %v1812 = vsel %vm512, %v1799, -inf
    %1813 = vmax.xlane.f32.xlu0 %v1812
    %v1814 = vpop.xlane.xlu0 %1813
    %v1815 = vsel %vm512, %v1804, -inf
    %1816 = vmax.xlane.f32.xlu0 %v1815
    %v1817 = vpop.xlane.xlu0 %1816
    %v1818 = vsel %vm512, %v1809, -inf
    %1819 = vmax.xlane.f32.xlu0 %v1818
    %v1820 = vpop.xlane.xlu0 %1819
    %v1821 = vsub.f32 %v1799, %v1814
    %v1822 = vsub.f32 %v1804, %v1817
    %v1823 = vsub.f32 %v1809, %v1820
    %v1824 = vmul.f32 %v1821, 1.442695
    %v1825 = vpow.pop %v1824
    %v1826 = vmul.f32 %v1822, 1.442695
    %v1827 = vpow.pop %v1826
    %v1828 = vmul.f32 %v1823, 1.442695
    %v1829 = vpow.pop %v1828
    %v1830 = vsel %vm512, %v1825, 0.0
    %1831 = vadd.xlane.f32.xlu0 %v1830
    %v1832 = vpop.xlane.xlu0 %1831
    %v1833 = vsel %vm512, %v1827, 0.0
    %1834 = vadd.xlane.f32.xlu0 %v1833
    %v1835 = vpop.xlane.xlu0 %1834
    %v1836 = vsel %vm512, %v1829, 0.0
    %1837 = vadd.xlane.f32.xlu0 %v1836
    %v1838 = vpop.xlane.xlu0 %1837
    %v1839 = vrcp.pop %v1832
    %v1840 = vrcp.pop %v1835
    %v1841 = vrcp.pop %v1838
    %v1842 = vmul.f32 %v1825, %v1839
    %v1843 = vmul.f32 %v1827, %v1840
    %v1844 = vmul.f32 %v1829, %v1841
    %1845 = vrot.lane.b32.xlu0 %v393, 64
    %v1846 = vpop.permute.xlu0 %1845
    %1847 = vrot.lane.b32.xlu0 %v398, 64
    %v1848 = vpop.permute.xlu0 %1847
    %1849 = vrot.lane.b32.xlu0 %v403, 64
    %v1850 = vpop.permute.xlu0 %1849
    %v1855 = vsel %vm512, %v1842, 0
    %v1858 = vsel %vm512, %v1843, 0
    %v1861 = vsel %vm512, %v1844, 0
    %1863 = vmatprep.subr.mxu0 0.0
    %1864 = vmatpush1.msra.mxu0 %v1846
    %1865 = vmatprep.subr.mxu0 0.0
    %1866 = vmatpush1.msra.mxu0 %v1848
    %1867 = vmatprep.subr.mxu0 0.0
    %1868 = vmatpush1.msra.mxu0 %v1850
    %1869 = vmatprep.subr.mxu0 0.0
    %1870 = vmatpush1.msra.mxu0 0.0
    %1871 = vmatprep.subr.mxu0 0.0
    %1872 = vmatpush1.msra.mxu0 0.0
    %1873 = vmatprep.subr.mxu0 0.0
    %1874 = vmatpush1.msra.mxu0 0.0
    %1875 = vmatprep.subr.mxu0 0.0
    %1876 = vmatpush1.msra.mxu0 0.0
    %1877 = vmatprep.subr.mxu0 0.0
    %1878 = vmatpush1.msra.mxu0 0.0
    %1879 = vmatprep.subr.mxu0 0.0
    %1880 = vmatpush1.msra.mxu0 0.0
    %1881 = vmatprep.subr.mxu0 0.0
    %1882 = vmatpush1.msra.mxu0 0.0
    %1883 = vmatprep.subr.mxu0 0.0
    %1884 = vmatpush1.msra.mxu0 0.0
    %1885 = vmatprep.subr.mxu0 0.0
    %1886 = vmatpush1.msra.mxu0 0.0
    %1887 = vmatprep.subr.mxu0 0.0
    %1888 = vmatpush1.msra.mxu0 0.0
    %1889 = vmatprep.subr.mxu0 0.0
    %1890 = vmatpush1.msra.mxu0 0.0
    %1891 = vmatprep.subr.mxu0 0.0
    %1892 = vmatpush1.msra.mxu0 0.0
    %1893 = vmatprep.subr.mxu0 0.0
    %1894 = vmatpush1.msra.mxu0 0.0
    %1895 = vmatprep.subr.mxu0 0.0
    %1896 = vmatpush1.msra.mxu0 0.0
    %1897 = vmatprep.subr.mxu0 0.0
    %1898 = vmatpush1.msra.mxu0 0.0
    %1899 = vmatprep.subr.mxu0 0.0
    %1900 = vmatpush1.msra.mxu0 0.0
    %1901 = vmatprep.subr.mxu0 0.0
    %1902 = vmatpush1.msra.mxu0 0.0
    %1903 = vmatprep.subr.mxu0 0.0
    %1904 = vmatpush1.msra.mxu0 0.0
    %1905 = vmatprep.subr.mxu0 0.0
    %1906 = vmatpush1.msra.mxu0 0.0
    %1907 = vmatprep.subr.mxu0 0.0
    %1908 = vmatpush1.msra.mxu0 0.0
    %1909 = vmatprep.subr.mxu0 0.0
    %1910 = vmatpush1.msra.mxu0 0.0
    %1911 = vmatprep.subr.mxu0 0.0
    %1912 = vmatpush1.msra.mxu0 0.0
    %1913 = vmatprep.subr.mxu0 0.0
    %1914 = vmatpush1.msra.mxu0 0.0
    %1915 = vmatprep.subr.mxu0 0.0
    %1916 = vmatpush1.msra.mxu0 0.0
    %1917 = vmatprep.subr.mxu0 0.0
    %1918 = vmatpush1.msra.mxu0 0.0
    %1919 = vmatprep.subr.mxu0 0.0
    %1920 = vmatpush1.msra.mxu0 0.0
    %1921 = vmatprep.subr.mxu0 0.0
    %1922 = vmatpush1.msra.mxu0 0.0
    %1923 = vmatprep.subr.mxu0 0.0
    %1924 = vmatpush1.msra.mxu0 0.0
    %1925 = vmatprep.subr.mxu0 0.0
    %1926 = vmatpush1.msra.mxu0 0.0
    %1927 = vmatprep.mubr.f32.mxu0 0.0
    %1928 = vmatmul.mubr.f32.gmra.mrb[0].mxu0 %v1855
    %v1929 = vpop.f32.mrb[0].mxu0
    %v1930 = vadd.f32 0.0, %v1929
    %v1931 = vpop.f32.mrb[0].mxu0
    %1932 = vmatprep.mubr.f32.mxu0 0.0
    %1933 = vmatmul.mubr.f32.gmra.mrb[0].mxu0 %v1858
    %v1934 = vpop.f32.mrb[0].mxu0
    %v1935 = vadd.f32 0.0, %v1934
    %v1936 = vpop.f32.mrb[0].mxu0
    %1937 = vmatprep.mubr.f32.mxu0 0.0
    %1938 = vmatmul.mubr.f32.gmra.mrb[0].mxu0 %v1861
    %v1939 = vpop.f32.mrb[0].mxu0
    %v1940 = vadd.f32 0.0, %v1939
    %v1941 = vpop.f32.mrb[0].mxu0
    %1942 = vdwg.mxu0
    %1943 = vrot.lane.b32.xlu0 %v393, 120
    %v1944 = vpop.permute.xlu0 %1943
    %1945 = vrot.lane.b32.xlu0 %v398, 120
    %v1946 = vpop.permute.xlu0 %1945
    %1947 = vrot.lane.b32.xlu0 %v403, 120
    %v1948 = vpop.permute.xlu0 %1947
    %1949 = vrot.lane.b32.xlu0 %v393, 88
    %v1950 = vpop.permute.xlu0 %1949
    %1951 = vrot.lane.b32.xlu0 %v398, 88
    %v1952 = vpop.permute.xlu0 %1951
    %1953 = vrot.lane.b32.xlu0 %v403, 88
    %v1954 = vpop.permute.xlu0 %1953
    %v1955 = vsel %vm419, %v1944, 0
    %v1957 = vsel %vm419, %v1946, 0
    %v1959 = vsel %vm419, %v1948, 0
    %v1961 = vsel %vm419, %v1950, 0
    %v1963 = vsel %vm419, %v1952, 0
    %v1965 = vsel %vm419, %v1954, 0
    %1967 = vmatprep.subr.mxu0 0.0
    %1968 = vmatpush1.xpose.msra.mxu0 %v1961
    %1969 = vmatprep.subr.mxu0 0.0
    %1970 = vmatpush1.xpose.msra.mxu0 %v1963
    %1971 = vmatprep.subr.mxu0 0.0
    %1972 = vmatpush1.xpose.msra.mxu0 %v1965
    %1973 = vmatprep.subr.mxu0 0.0
    %1974 = vmatpush1.xpose.msra.mxu0 0.0
    %1975 = vmatprep.subr.mxu0 0.0
    %1976 = vmatpush1.xpose.msra.mxu0 0.0
    %1977 = vmatprep.subr.mxu0 0.0
    %1978 = vmatpush1.xpose.msra.mxu0 0.0
    %1979 = vmatprep.subr.mxu0 0.0
    %1980 = vmatpush1.xpose.msra.mxu0 0.0
    %1981 = vmatprep.subr.mxu0 0.0
    %1982 = vmatpush1.xpose.msra.mxu0 0.0
    %1983 = vmatprep.subr.mxu0 0.0
    %1984 = vmatpush1.xpose.msra.mxu0 0.0
    %1985 = vmatprep.subr.mxu0 0.0
    %1986 = vmatpush1.xpose.msra.mxu0 0.0
    %1987 = vmatprep.subr.mxu0 0.0
    %1988 = vmatpush1.xpose.msra.mxu0 0.0
    %1989 = vmatprep.subr.mxu0 0.0
    %1990 = vmatpush1.xpose.msra.mxu0 0.0
    %1991 = vmatprep.subr.mxu0 0.0
    %1992 = vmatpush1.xpose.msra.mxu0 0.0
    %1993 = vmatprep.subr.mxu0 0.0
    %1994 = vmatpush1.xpose.msra.mxu0 0.0
    %1995 = vmatprep.subr.mxu0 0.0
    %1996 = vmatpush1.xpose.msra.mxu0 0.0
    %1997 = vmatprep.subr.mxu0 0.0
    %1998 = vmatpush1.xpose.msra.mxu0 0.0
    %1999 = vmatprep.subr.mxu0 0.0
    %2000 = vmatpush1.xpose.msra.mxu0 0.0
    %2001 = vmatprep.subr.mxu0 0.0
    %2002 = vmatpush1.xpose.msra.mxu0 0.0
    %2003 = vmatprep.subr.mxu0 0.0
    %2004 = vmatpush1.xpose.msra.mxu0 0.0
    %2005 = vmatprep.subr.mxu0 0.0
    %2006 = vmatpush1.xpose.msra.mxu0 0.0
    %2007 = vmatprep.subr.mxu0 0.0
    %2008 = vmatpush1.xpose.msra.mxu0 0.0
    %2009 = vmatprep.subr.mxu0 0.0
    %2010 = vmatpush1.xpose.msra.mxu0 0.0
    %2011 = vmatprep.subr.mxu0 0.0
    %2012 = vmatpush1.xpose.msra.mxu0 0.0
    %2013 = vmatprep.subr.mxu0 0.0
    %2014 = vmatpush1.xpose.msra.mxu0 0.0
    %2015 = vmatprep.subr.mxu0 0.0
    %2016 = vmatpush1.xpose.msra.mxu0 0.0
    %2017 = vmatprep.subr.mxu0 0.0
    %2018 = vmatpush1.xpose.msra.mxu0 0.0
    %2019 = vmatprep.subr.mxu0 0.0
    %2020 = vmatpush1.xpose.msra.mxu0 0.0
    %2021 = vmatprep.subr.mxu0 0.0
    %2022 = vmatpush1.xpose.msra.mxu0 0.0
    %2023 = vmatprep.subr.mxu0 0.0
    %2024 = vmatpush1.xpose.msra.mxu0 0.0
    %2025 = vmatprep.subr.mxu0 0.0
    %2026 = vmatpush1.xpose.msra.mxu0 0.0
    %2027 = vmatprep.subr.mxu0 0.0
    %2028 = vmatpush1.xpose.msra.mxu0 0.0
    %2029 = vmatprep.subr.mxu0 0.0
    %2030 = vmatpush1.xpose.msra.mxu0 0.0
    %2031 = vmatprep.mubr.f32.mxu0 0.0
    %2032 = vmatmul.mubr.f32.gmra.mrb[0].mxu0 %v1955
    %v2033 = vpop.f32.mrb[0].mxu0
    %v2034 = vadd.f32 %v41, %v2033
    %v2035 = vpop.f32.mrb[0].mxu0
    %2036 = vmatprep.mubr.f32.mxu0 0.0
    %2037 = vmatmul.mubr.f32.gmra.mrb[0].mxu0 %v1957
    %v2038 = vpop.f32.mrb[0].mxu0
    %v2039 = vadd.f32 %v41, %v2038
    %v2040 = vpop.f32.mrb[0].mxu0
    %2041 = vmatprep.mubr.f32.mxu0 0.0
    %2042 = vmatmul.mubr.f32.gmra.mrb[0].mxu0 %v1959
    %v2043 = vpop.f32.mrb[0].mxu0
    %v2044 = vadd.f32 %v41, %v2043
    %v2045 = vpop.f32.mrb[0].mxu0
    %2046 = vdwg.mxu0
    %v2047 = vsel %vm512, %v2034, -inf
    %2048 = vmax.xlane.f32.xlu0 %v2047
    %v2049 = vpop.xlane.xlu0 %2048
    %v2050 = vsel %vm512, %v2039, -inf
    %2051 = vmax.xlane.f32.xlu0 %v2050
    %v2052 = vpop.xlane.xlu0 %2051
    %v2053 = vsel %vm512, %v2044, -inf
    %2054 = vmax.xlane.f32.xlu0 %v2053
    %v2055 = vpop.xlane.xlu0 %2054
    %v2056 = vsub.f32 %v2034, %v2049
    %v2057 = vsub.f32 %v2039, %v2052
    %v2058 = vsub.f32 %v2044, %v2055
    %v2059 = vmul.f32 %v2056, 1.442695
    %v2060 = vpow.pop %v2059
    %v2061 = vmul.f32 %v2057, 1.442695
    %v2062 = vpow.pop %v2061
    %v2063 = vmul.f32 %v2058, 1.442695
    %v2064 = vpow.pop %v2063
    %v2065 = vsel %vm512, %v2060, 0.0
    %2066 = vadd.xlane.f32.xlu0 %v2065
    %v2067 = vpop.xlane.xlu0 %2066
    %v2068 = vsel %vm512, %v2062, 0.0
    %2069 = vadd.xlane.f32.xlu0 %v2068
    %v2070 = vpop.xlane.xlu0 %2069
    %v2071 = vsel %vm512, %v2064, 0.0
    %2072 = vadd.xlane.f32.xlu0 %v2071
    %v2073 = vpop.xlane.xlu0 %2072
    %v2074 = vrcp.pop %v2067
    %v2075 = vrcp.pop %v2070
    %v2076 = vrcp.pop %v2073
    %v2077 = vmul.f32 %v2060, %v2074
    %v2078 = vmul.f32 %v2062, %v2075
    %v2079 = vmul.f32 %v2064, %v2076
    %2080 = vrot.lane.b32.xlu0 %v393, 56
    %v2081 = vpop.permute.xlu0 %2080
    %2082 = vrot.lane.b32.xlu0 %v398, 56
    %v2083 = vpop.permute.xlu0 %2082
    %2084 = vrot.lane.b32.xlu0 %v403, 56
    %v2085 = vpop.permute.xlu0 %2084
    %v2090 = vsel %vm512, %v2077, 0
    %v2093 = vsel %vm512, %v2078, 0
    %v2096 = vsel %vm512, %v2079, 0
    %2098 = vmatprep.subr.mxu0 0.0
    %2099 = vmatpush1.msra.mxu0 %v2081
    %2100 = vmatprep.subr.mxu0 0.0
    %2101 = vmatpush1.msra.mxu0 %v2083
    %2102 = vmatprep.subr.mxu0 0.0
    %2103 = vmatpush1.msra.mxu0 %v2085
    %2104 = vmatprep.subr.mxu0 0.0
    %2105 = vmatpush1.msra.mxu0 0.0
    %2106 = vmatprep.subr.mxu0 0.0
    %2107 = vmatpush1.msra.mxu0 0.0
    %2108 = vmatprep.subr.mxu0 0.0
    %2109 = vmatpush1.msra.mxu0 0.0
    %2110 = vmatprep.subr.mxu0 0.0
    %2111 = vmatpush1.msra.mxu0 0.0
    %2112 = vmatprep.subr.mxu0 0.0
    %2113 = vmatpush1.msra.mxu0 0.0
    %2114 = vmatprep.subr.mxu0 0.0
    %2115 = vmatpush1.msra.mxu0 0.0
    %2116 = vmatprep.subr.mxu0 0.0
    %2117 = vmatpush1.msra.mxu0 0.0
    %2118 = vmatprep.subr.mxu0 0.0
    %2119 = vmatpush1.msra.mxu0 0.0
    %2120 = vmatprep.subr.mxu0 0.0
    %2121 = vmatpush1.msra.mxu0 0.0
    %2122 = vmatprep.subr.mxu0 0.0
    %2123 = vmatpush1.msra.mxu0 0.0
    %2124 = vmatprep.subr.mxu0 0.0
    %2125 = vmatpush1.msra.mxu0 0.0
    %2126 = vmatprep.subr.mxu0 0.0
    %2127 = vmatpush1.msra.mxu0 0.0
    %2128 = vmatprep.subr.mxu0 0.0
    %2129 = vmatpush1.msra.mxu0 0.0
    %2130 = vmatprep.subr.mxu0 0.0
    %2131 = vmatpush1.msra.mxu0 0.0
    %2132 = vmatprep.subr.mxu0 0.0
    %2133 = vmatpush1.msra.mxu0 0.0
    %2134 = vmatprep.subr.mxu0 0.0
    %2135 = vmatpush1.msra.mxu0 0.0
    %2136 = vmatprep.subr.mxu0 0.0
    %2137 = vmatpush1.msra.mxu0 0.0
    %2138 = vmatprep.subr.mxu0 0.0
    %2139 = vmatpush1.msra.mxu0 0.0
    %2140 = vmatprep.subr.mxu0 0.0
    %2141 = vmatpush1.msra.mxu0 0.0
    %2142 = vmatprep.subr.mxu0 0.0
    %2143 = vmatpush1.msra.mxu0 0.0
    %2144 = vmatprep.subr.mxu0 0.0
    %2145 = vmatpush1.msra.mxu0 0.0
    %2146 = vmatprep.subr.mxu0 0.0
    %2147 = vmatpush1.msra.mxu0 0.0
    %2148 = vmatprep.subr.mxu0 0.0
    %2149 = vmatpush1.msra.mxu0 0.0
    %2150 = vmatprep.subr.mxu0 0.0
    %2151 = vmatpush1.msra.mxu0 0.0
    %2152 = vmatprep.subr.mxu0 0.0
    %2153 = vmatpush1.msra.mxu0 0.0
    %2154 = vmatprep.subr.mxu0 0.0
    %2155 = vmatpush1.msra.mxu0 0.0
    %2156 = vmatprep.subr.mxu0 0.0
    %2157 = vmatpush1.msra.mxu0 0.0
    %2158 = vmatprep.subr.mxu0 0.0
    %2159 = vmatpush1.msra.mxu0 0.0
    %2160 = vmatprep.subr.mxu0 0.0
    %2161 = vmatpush1.msra.mxu0 0.0
    %2162 = vmatprep.mubr.f32.mxu0 0.0
    %2163 = vmatmul.mubr.f32.gmra.mrb[0].mxu0 %v2090
    %v2164 = vpop.f32.mrb[0].mxu0
    %v2165 = vadd.f32 0.0, %v2164
    %v2166 = vpop.f32.mrb[0].mxu0
    %2167 = vmatprep.mubr.f32.mxu0 0.0
    %2168 = vmatmul.mubr.f32.gmra.mrb[0].mxu0 %v2093
    %v2169 = vpop.f32.mrb[0].mxu0
    %v2170 = vadd.f32 0.0, %v2169
    %v2171 = vpop.f32.mrb[0].mxu0
    %2172 = vmatprep.mubr.f32.mxu0 0.0
    %2173 = vmatmul.mubr.f32.gmra.mrb[0].mxu0 %v2096
    %v2174 = vpop.f32.mrb[0].mxu0
    %v2175 = vadd.f32 0.0, %v2174
    %v2176 = vpop.f32.mrb[0].mxu0
    %2177 = vdwg.mxu0
    %v2179 = vsel %vm419, %v2165, 0
    %v2182 = vsel %vm419, %v2170, 0
    %v2185 = vsel %vm419, %v2175, 0
    %2187 = vmatprep.subr.mxu0 0.0
    %2188 = vmatpush1.msra.mxu0 %v407
    %2189 = vmatprep.subr.mxu0 0.0
    %2190 = vmatpush1.msra.mxu0 0.0
    %2191 = vmatprep.subr.mxu0 0.0
    %2192 = vmatpush1.msra.mxu0 0.0
    %2193 = vmatprep.subr.mxu0 0.0
    %2194 = vmatpush1.msra.mxu0 0.0
    %2195 = vmatprep.subr.mxu0 0.0
    %2196 = vmatpush1.msra.mxu0 0.0
    %2197 = vmatprep.subr.mxu0 0.0
    %2198 = vmatpush1.msra.mxu0 0.0
    %2199 = vmatprep.subr.mxu0 0.0
    %2200 = vmatpush1.msra.mxu0 0.0
    %2201 = vmatprep.subr.mxu0 0.0
    %2202 = vmatpush1.msra.mxu0 0.0
    %2203 = vmatprep.subr.mxu0 0.0
    %2204 = vmatpush1.msra.mxu0 0.0
    %2205 = vmatprep.subr.mxu0 0.0
    %2206 = vmatpush1.msra.mxu0 0.0
    %2207 = vmatprep.subr.mxu0 0.0
    %2208 = vmatpush1.msra.mxu0 0.0
    %2209 = vmatprep.subr.mxu0 0.0
    %2210 = vmatpush1.msra.mxu0 0.0
    %2211 = vmatprep.subr.mxu0 0.0
    %2212 = vmatpush1.msra.mxu0 0.0
    %2213 = vmatprep.subr.mxu0 0.0
    %2214 = vmatpush1.msra.mxu0 0.0
    %2215 = vmatprep.subr.mxu0 0.0
    %2216 = vmatpush1.msra.mxu0 0.0
    %2217 = vmatprep.subr.mxu0 0.0
    %2218 = vmatpush1.msra.mxu0 0.0
    %2219 = vmatprep.subr.mxu0 0.0
    %2220 = vmatpush1.msra.mxu0 0.0
    %2221 = vmatprep.subr.mxu0 0.0
    %2222 = vmatpush1.msra.mxu0 0.0
    %2223 = vmatprep.subr.mxu0 0.0
    %2224 = vmatpush1.msra.mxu0 0.0
    %2225 = vmatprep.subr.mxu0 0.0
    %2226 = vmatpush1.msra.mxu0 0.0
    %2227 = vmatprep.subr.mxu0 0.0
    %2228 = vmatpush1.msra.mxu0 0.0
    %2229 = vmatprep.subr.mxu0 0.0
    %2230 = vmatpush1.msra.mxu0 0.0
    %2231 = vmatprep.subr.mxu0 0.0
    %2232 = vmatpush1.msra.mxu0 0.0
    %2233 = vmatprep.subr.mxu0 0.0
    %2234 = vmatpush1.msra.mxu0 0.0
    %2235 = vmatprep.subr.mxu0 0.0
    %2236 = vmatpush1.msra.mxu0 0.0
    %2237 = vmatprep.subr.mxu0 0.0
    %2238 = vmatpush1.msra.mxu0 0.0
    %2239 = vmatprep.subr.mxu0 0.0
    %2240 = vmatpush1.msra.mxu0 0.0
    %2241 = vmatprep.subr.mxu0 0.0
    %2242 = vmatpush1.msra.mxu0 0.0
    %2243 = vmatprep.subr.mxu0 0.0
    %2244 = vmatpush1.msra.mxu0 0.0
    %2245 = vmatprep.subr.mxu0 0.0
    %2246 = vmatpush1.msra.mxu0 0.0
    %2247 = vmatprep.subr.mxu0 0.0
    %2248 = vmatpush1.msra.mxu0 0.0
    %2249 = vmatprep.subr.mxu0 0.0
    %2250 = vmatpush1.msra.mxu0 0.0
    %2251 = vmatprep.mubr.f32.mxu0 0.0
    %2252 = vmatmul.mubr.f32.gmra.mrb[0].mxu0 %v2179
    %v2253 = vpop.f32.mrb[0].mxu0
    %v2254 = vadd.f32 0.0, %v2253
    %v2255 = vpop.f32.mrb[0].mxu0
    %2256 = vmatprep.mubr.f32.mxu0 0.0
    %2257 = vmatmul.mubr.f32.gmra.mrb[0].mxu0 %v2182
    %v2258 = vpop.f32.mrb[0].mxu0
    %v2259 = vadd.f32 0.0, %v2258
    %v2260 = vpop.f32.mrb[0].mxu0
    %2261 = vmatprep.mubr.f32.mxu0 0.0
    %2262 = vmatmul.mubr.f32.gmra.mrb[0].mxu0 %v2185
    %v2263 = vpop.f32.mrb[0].mxu0
    %v2264 = vadd.f32 0.0, %v2263
    %v2265 = vpop.f32.mrb[0].mxu0
    %2266 = vdwg.mxu0
    %v2268 = vsel %vm419, %v1930, 0
    %v2271 = vsel %vm419, %v1935, 0
    %v2274 = vsel %vm419, %v1940, 0
    %2276 = vmatprep.subr.mxu0 0.0
    %2277 = vmatpush1.msra.mxu0 %v406
    %2278 = vmatprep.subr.mxu0 0.0
    %2279 = vmatpush1.msra.mxu0 0.0
    %2280 = vmatprep.subr.mxu0 0.0
    %2281 = vmatpush1.msra.mxu0 0.0
    %2282 = vmatprep.subr.mxu0 0.0
    %2283 = vmatpush1.msra.mxu0 0.0
    %2284 = vmatprep.subr.mxu0 0.0
    %2285 = vmatpush1.msra.mxu0 0.0
    %2286 = vmatprep.subr.mxu0 0.0
    %2287 = vmatpush1.msra.mxu0 0.0
    %2288 = vmatprep.subr.mxu0 0.0
    %2289 = vmatpush1.msra.mxu0 0.0
    %2290 = vmatprep.subr.mxu0 0.0
    %2291 = vmatpush1.msra.mxu0 0.0
    %2292 = vmatprep.subr.mxu0 0.0
    %2293 = vmatpush1.msra.mxu0 0.0
    %2294 = vmatprep.subr.mxu0 0.0
    %2295 = vmatpush1.msra.mxu0 0.0
    %2296 = vmatprep.subr.mxu0 0.0
    %2297 = vmatpush1.msra.mxu0 0.0
    %2298 = vmatprep.subr.mxu0 0.0
    %2299 = vmatpush1.msra.mxu0 0.0
    %2300 = vmatprep.subr.mxu0 0.0
    %2301 = vmatpush1.msra.mxu0 0.0
    %2302 = vmatprep.subr.mxu0 0.0
    %2303 = vmatpush1.msra.mxu0 0.0
    %2304 = vmatprep.subr.mxu0 0.0
    %2305 = vmatpush1.msra.mxu0 0.0
    %2306 = vmatprep.subr.mxu0 0.0
    %2307 = vmatpush1.msra.mxu0 0.0
    %2308 = vmatprep.subr.mxu0 0.0
    %2309 = vmatpush1.msra.mxu0 0.0
    %2310 = vmatprep.subr.mxu0 0.0
    %2311 = vmatpush1.msra.mxu0 0.0
    %2312 = vmatprep.subr.mxu0 0.0
    %2313 = vmatpush1.msra.mxu0 0.0
    %2314 = vmatprep.subr.mxu0 0.0
    %2315 = vmatpush1.msra.mxu0 0.0
    %2316 = vmatprep.subr.mxu0 0.0
    %2317 = vmatpush1.msra.mxu0 0.0
    %2318 = vmatprep.subr.mxu0 0.0
    %2319 = vmatpush1.msra.mxu0 0.0
    %2320 = vmatprep.subr.mxu0 0.0
    %2321 = vmatpush1.msra.mxu0 0.0
    %2322 = vmatprep.subr.mxu0 0.0
    %2323 = vmatpush1.msra.mxu0 0.0
    %2324 = vmatprep.subr.mxu0 0.0
    %2325 = vmatpush1.msra.mxu0 0.0
    %2326 = vmatprep.subr.mxu0 0.0
    %2327 = vmatpush1.msra.mxu0 0.0
    %2328 = vmatprep.subr.mxu0 0.0
    %2329 = vmatpush1.msra.mxu0 0.0
    %2330 = vmatprep.subr.mxu0 0.0
    %2331 = vmatpush1.msra.mxu0 0.0
    %2332 = vmatprep.subr.mxu0 0.0
    %2333 = vmatpush1.msra.mxu0 0.0
    %2334 = vmatprep.subr.mxu0 0.0
    %2335 = vmatpush1.msra.mxu0 0.0
    %2336 = vmatprep.subr.mxu0 0.0
    %2337 = vmatpush1.msra.mxu0 0.0
    %2338 = vmatprep.subr.mxu0 0.0
    %2339 = vmatpush1.msra.mxu0 0.0
    %2340 = vmatprep.mubr.f32.mxu0 0.0
    %2341 = vmatmul.mubr.f32.gmra.mrb[0].mxu0 %v2268
    %v2342 = vpop.f32.mrb[0].mxu0
    %v2343 = vadd.f32 %v2254, %v2342
    %v2344 = vpop.f32.mrb[0].mxu0
    %2345 = vmatprep.mubr.f32.mxu0 0.0
    %2346 = vmatmul.mubr.f32.gmra.mrb[0].mxu0 %v2271
    %v2347 = vpop.f32.mrb[0].mxu0
    %v2348 = vadd.f32 %v2259, %v2347
    %v2349 = vpop.f32.mrb[0].mxu0
    %2350 = vmatprep.mubr.f32.mxu0 0.0
    %2351 = vmatmul.mubr.f32.gmra.mrb[0].mxu0 %v2274
    %v2352 = vpop.f32.mrb[0].mxu0
    %v2353 = vadd.f32 %v2264, %v2352
    %v2354 = vpop.f32.mrb[0].mxu0
    %2355 = vdwg.mxu0
    %2356 = vrot.lane.b32.xlu0 %v393, 112
    %v2357 = vpop.permute.xlu0 %2356
    %2358 = vrot.lane.b32.xlu0 %v398, 112
    %v2359 = vpop.permute.xlu0 %2358
    %2360 = vrot.lane.b32.xlu0 %v403, 112
    %v2361 = vpop.permute.xlu0 %2360
    %2362 = vrot.lane.b32.xlu0 %v393, 80
    %v2363 = vpop.permute.xlu0 %2362
    %2364 = vrot.lane.b32.xlu0 %v398, 80
    %v2365 = vpop.permute.xlu0 %2364
    %2366 = vrot.lane.b32.xlu0 %v403, 80
    %v2367 = vpop.permute.xlu0 %2366
    %v2368 = vsel %vm419, %v2357, 0
    %v2370 = vsel %vm419, %v2359, 0
    %v2372 = vsel %vm419, %v2361, 0
    %v2374 = vsel %vm419, %v2363, 0
    %v2376 = vsel %vm419, %v2365, 0
    %v2378 = vsel %vm419, %v2367, 0
    %2380 = vmatprep.subr.mxu0 0.0
    %2381 = vmatpush1.xpose.msra.mxu0 %v2374
    %2382 = vmatprep.subr.mxu0 0.0
    %2383 = vmatpush1.xpose.msra.mxu0 %v2376
    %2384 = vmatprep.subr.mxu0 0.0
    %2385 = vmatpush1.xpose.msra.mxu0 %v2378
    %2386 = vmatprep.subr.mxu0 0.0
    %2387 = vmatpush1.xpose.msra.mxu0 0.0
    %2388 = vmatprep.subr.mxu0 0.0
    %2389 = vmatpush1.xpose.msra.mxu0 0.0
    %2390 = vmatprep.subr.mxu0 0.0
    %2391 = vmatpush1.xpose.msra.mxu0 0.0
    %2392 = vmatprep.subr.mxu0 0.0
    %2393 = vmatpush1.xpose.msra.mxu0 0.0
    %2394 = vmatprep.subr.mxu0 0.0
    %2395 = vmatpush1.xpose.msra.mxu0 0.0
    %2396 = vmatprep.subr.mxu0 0.0
    %2397 = vmatpush1.xpose.msra.mxu0 0.0
    %2398 = vmatprep.subr.mxu0 0.0
    %2399 = vmatpush1.xpose.msra.mxu0 0.0
    %2400 = vmatprep.subr.mxu0 0.0
    %2401 = vmatpush1.xpose.msra.mxu0 0.0
    %2402 = vmatprep.subr.mxu0 0.0
    %2403 = vmatpush1.xpose.msra.mxu0 0.0
    %2404 = vmatprep.subr.mxu0 0.0
    %2405 = vmatpush1.xpose.msra.mxu0 0.0
    %2406 = vmatprep.subr.mxu0 0.0
    %2407 = vmatpush1.xpose.msra.mxu0 0.0
    %2408 = vmatprep.subr.mxu0 0.0
    %2409 = vmatpush1.xpose.msra.mxu0 0.0
    %2410 = vmatprep.subr.mxu0 0.0
    %2411 = vmatpush1.xpose.msra.mxu0 0.0
    %2412 = vmatprep.subr.mxu0 0.0
    %2413 = vmatpush1.xpose.msra.mxu0 0.0
    %2414 = vmatprep.subr.mxu0 0.0
    %2415 = vmatpush1.xpose.msra.mxu0 0.0
    %2416 = vmatprep.subr.mxu0 0.0
    %2417 = vmatpush1.xpose.msra.mxu0 0.0
    %2418 = vmatprep.subr.mxu0 0.0
    %2419 = vmatpush1.xpose.msra.mxu0 0.0
    %2420 = vmatprep.subr.mxu0 0.0
    %2421 = vmatpush1.xpose.msra.mxu0 0.0
    %2422 = vmatprep.subr.mxu0 0.0
    %2423 = vmatpush1.xpose.msra.mxu0 0.0
    %2424 = vmatprep.subr.mxu0 0.0
    %2425 = vmatpush1.xpose.msra.mxu0 0.0
    %2426 = vmatprep.subr.mxu0 0.0
    %2427 = vmatpush1.xpose.msra.mxu0 0.0
    %2428 = vmatprep.subr.mxu0 0.0
    %2429 = vmatpush1.xpose.msra.mxu0 0.0
    %2430 = vmatprep.subr.mxu0 0.0
    %2431 = vmatpush1.xpose.msra.mxu0 0.0
    %2432 = vmatprep.subr.mxu0 0.0
    %2433 = vmatpush1.xpose.msra.mxu0 0.0
    %2434 = vmatprep.subr.mxu0 0.0
    %2435 = vmatpush1.xpose.msra.mxu0 0.0
    %2436 = vmatprep.subr.mxu0 0.0
    %2437 = vmatpush1.xpose.msra.mxu0 0.0
    %2438 = vmatprep.subr.mxu0 0.0
    %2439 = vmatpush1.xpose.msra.mxu0 0.0
    %2440 = vmatprep.subr.mxu0 0.0
    %2441 = vmatpush1.xpose.msra.mxu0 0.0
    %2442 = vmatprep.subr.mxu0 0.0
    %2443 = vmatpush1.xpose.msra.mxu0 0.0
    %2444 = vmatprep.mubr.f32.mxu0 0.0
    %2445 = vmatmul.mubr.f32.gmra.mrb[0].mxu0 %v2368
    %v2446 = vpop.f32.mrb[0].mxu0
    %v2447 = vadd.f32 %v41, %v2446
    %v2448 = vpop.f32.mrb[0].mxu0
    %2449 = vmatprep.mubr.f32.mxu0 0.0
    %2450 = vmatmul.mubr.f32.gmra.mrb[0].mxu0 %v2370
    %v2451 = vpop.f32.mrb[0].mxu0
    %v2452 = vadd.f32 %v41, %v2451
    %v2453 = vpop.f32.mrb[0].mxu0
    %2454 = vmatprep.mubr.f32.mxu0 0.0
    %2455 = vmatmul.mubr.f32.gmra.mrb[0].mxu0 %v2372
    %v2456 = vpop.f32.mrb[0].mxu0
    %v2457 = vadd.f32 %v41, %v2456
    %v2458 = vpop.f32.mrb[0].mxu0
    %2459 = vdwg.mxu0
    %v2460 = vsel %vm512, %v2447, -inf
    %2461 = vmax.xlane.f32.xlu0 %v2460
    %v2462 = vpop.xlane.xlu0 %2461
    %v2463 = vsel %vm512, %v2452, -inf
    %2464 = vmax.xlane.f32.xlu0 %v2463
    %v2465 = vpop.xlane.xlu0 %2464
    %v2466 = vsel %vm512, %v2457, -inf
    %2467 = vmax.xlane.f32.xlu0 %v2466
    %v2468 = vpop.xlane.xlu0 %2467
    %v2469 = vsub.f32 %v2447, %v2462
    %v2470 = vsub.f32 %v2452, %v2465
    %v2471 = vsub.f32 %v2457, %v2468
    %v2472 = vmul.f32 %v2469, 1.442695
    %v2473 = vpow.pop %v2472
    %v2474 = vmul.f32 %v2470, 1.442695
    %v2475 = vpow.pop %v2474
    %v2476 = vmul.f32 %v2471, 1.442695
    %v2477 = vpow.pop %v2476
    %v2478 = vsel %vm512, %v2473, 0.0
    %2479 = vadd.xlane.f32.xlu0 %v2478
    %v2480 = vpop.xlane.xlu0 %2479
    %v2481 = vsel %vm512, %v2475, 0.0
    %2482 = vadd.xlane.f32.xlu0 %v2481
    %v2483 = vpop.xlane.xlu0 %2482
    %v2484 = vsel %vm512, %v2477, 0.0
    %2485 = vadd.xlane.f32.xlu0 %v2484
    %v2486 = vpop.xlane.xlu0 %2485
    %v2487 = vrcp.pop %v2480
    %v2488 = vrcp.pop %v2483
    %v2489 = vrcp.pop %v2486
    %v2490 = vmul.f32 %v2473, %v2487
    %v2491 = vmul.f32 %v2475, %v2488
    %v2492 = vmul.f32 %v2477, %v2489
    %2493 = vrot.lane.b32.xlu0 %v393, 48
    %v2494 = vpop.permute.xlu0 %2493
    %2495 = vrot.lane.b32.xlu0 %v398, 48
    %v2496 = vpop.permute.xlu0 %2495
    %2497 = vrot.lane.b32.xlu0 %v403, 48
    %v2498 = vpop.permute.xlu0 %2497
    %v2503 = vsel %vm512, %v2490, 0
    %v2506 = vsel %vm512, %v2491, 0
    %v2509 = vsel %vm512, %v2492, 0
    %2511 = vmatprep.subr.mxu0 0.0
    %2512 = vmatpush1.msra.mxu0 %v2494
    %2513 = vmatprep.subr.mxu0 0.0
    %2514 = vmatpush1.msra.mxu0 %v2496
    %2515 = vmatprep.subr.mxu0 0.0
    %2516 = vmatpush1.msra.mxu0 %v2498
    %2517 = vmatprep.subr.mxu0 0.0
    %2518 = vmatpush1.msra.mxu0 0.0
    %2519 = vmatprep.subr.mxu0 0.0
    %2520 = vmatpush1.msra.mxu0 0.0
    %2521 = vmatprep.subr.mxu0 0.0
    %2522 = vmatpush1.msra.mxu0 0.0
    %2523 = vmatprep.subr.mxu0 0.0
    %2524 = vmatpush1.msra.mxu0 0.0
    %2525 = vmatprep.subr.mxu0 0.0
    %2526 = vmatpush1.msra.mxu0 0.0
    %2527 = vmatprep.subr.mxu0 0.0
    %2528 = vmatpush1.msra.mxu0 0.0
    %2529 = vmatprep.subr.mxu0 0.0
    %2530 = vmatpush1.msra.mxu0 0.0
    %2531 = vmatprep.subr.mxu0 0.0
    %2532 = vmatpush1.msra.mxu0 0.0
    %2533 = vmatprep.subr.mxu0 0.0
    %2534 = vmatpush1.msra.mxu0 0.0
    %2535 = vmatprep.subr.mxu0 0.0
    %2536 = vmatpush1.msra.mxu0 0.0
    %2537 = vmatprep.subr.mxu0 0.0
    %2538 = vmatpush1.msra.mxu0 0.0
    %2539 = vmatprep.subr.mxu0 0.0
    %2540 = vmatpush1.msra.mxu0 0.0
    %2541 = vmatprep.subr.mxu0 0.0
    %2542 = vmatpush1.msra.mxu0 0.0
    %2543 = vmatprep.subr.mxu0 0.0
    %2544 = vmatpush1.msra.mxu0 0.0
    %2545 = vmatprep.subr.mxu0 0.0
    %2546 = vmatpush1.msra.mxu0 0.0
    %2547 = vmatprep.subr.mxu0 0.0
    %2548 = vmatpush1.msra.mxu0 0.0
    %2549 = vmatprep.subr.mxu0 0.0
    %2550 = vmatpush1.msra.mxu0 0.0
    %2551 = vmatprep.subr.mxu0 0.0
    %2552 = vmatpush1.msra.mxu0 0.0
    %2553 = vmatprep.subr.mxu0 0.0
    %2554 = vmatpush1.msra.mxu0 0.0
    %2555 = vmatprep.subr.mxu0 0.0
    %2556 = vmatpush1.msra.mxu0 0.0
    %2557 = vmatprep.subr.mxu0 0.0
    %2558 = vmatpush1.msra.mxu0 0.0
    %2559 = vmatprep.subr.mxu0 0.0
    %2560 = vmatpush1.msra.mxu0 0.0
    %2561 = vmatprep.subr.mxu0 0.0
    %2562 = vmatpush1.msra.mxu0 0.0
    %2563 = vmatprep.subr.mxu0 0.0
    %2564 = vmatpush1.msra.mxu0 0.0
    %2565 = vmatprep.subr.mxu0 0.0
    %2566 = vmatpush1.msra.mxu0 0.0
    %2567 = vmatprep.subr.mxu0 0.0
    %2568 = vmatpush1.msra.mxu0 0.0
    %2569 = vmatprep.subr.mxu0 0.0
    %2570 = vmatpush1.msra.mxu0 0.0
    %2571 = vmatprep.subr.mxu0 0.0
    %2572 = vmatpush1.msra.mxu0 0.0
    %2573 = vmatprep.subr.mxu0 0.0
    %2574 = vmatpush1.msra.mxu0 0.0
    %2575 = vmatprep.mubr.f32.mxu0 0.0
    %2576 = vmatmul.mubr.f32.gmra.mrb[0].mxu0 %v2503
    %v2577 = vpop.f32.mrb[0].mxu0
    %v2578 = vadd.f32 0.0, %v2577
    %v2579 = vpop.f32.mrb[0].mxu0
    %2580 = vmatprep.mubr.f32.mxu0 0.0
    %2581 = vmatmul.mubr.f32.gmra.mrb[0].mxu0 %v2506
    %v2582 = vpop.f32.mrb[0].mxu0
    %v2583 = vadd.f32 0.0, %v2582
    %v2584 = vpop.f32.mrb[0].mxu0
    %2585 = vmatprep.mubr.f32.mxu0 0.0
    %2586 = vmatmul.mubr.f32.gmra.mrb[0].mxu0 %v2509
    %v2587 = vpop.f32.mrb[0].mxu0
    %v2588 = vadd.f32 0.0, %v2587
    %v2589 = vpop.f32.mrb[0].mxu0
    %2590 = vdwg.mxu0
    %v2592 = vsel %vm419, %v2578, 0
    %v2595 = vsel %vm419, %v2583, 0
    %v2598 = vsel %vm419, %v2588, 0
    %2600 = vmatprep.subr.mxu0 0.0
    %2601 = vmatpush1.msra.mxu0 %v408
    %2602 = vmatprep.subr.mxu0 0.0
    %2603 = vmatpush1.msra.mxu0 0.0
    %2604 = vmatprep.subr.mxu0 0.0
    %2605 = vmatpush1.msra.mxu0 0.0
    %2606 = vmatprep.subr.mxu0 0.0
    %2607 = vmatpush1.msra.mxu0 0.0
    %2608 = vmatprep.subr.mxu0 0.0
    %2609 = vmatpush1.msra.mxu0 0.0
    %2610 = vmatprep.subr.mxu0 0.0
    %2611 = vmatpush1.msra.mxu0 0.0
    %2612 = vmatprep.subr.mxu0 0.0
    %2613 = vmatpush1.msra.mxu0 0.0
    %2614 = vmatprep.subr.mxu0 0.0
    %2615 = vmatpush1.msra.mxu0 0.0
    %2616 = vmatprep.subr.mxu0 0.0
    %2617 = vmatpush1.msra.mxu0 0.0
    %2618 = vmatprep.subr.mxu0 0.0
    %2619 = vmatpush1.msra.mxu0 0.0
    %2620 = vmatprep.subr.mxu0 0.0
    %2621 = vmatpush1.msra.mxu0 0.0
    %2622 = vmatprep.subr.mxu0 0.0
    %2623 = vmatpush1.msra.mxu0 0.0
    %2624 = vmatprep.subr.mxu0 0.0
    %2625 = vmatpush1.msra.mxu0 0.0
    %2626 = vmatprep.subr.mxu0 0.0
    %2627 = vmatpush1.msra.mxu0 0.0
    %2628 = vmatprep.subr.mxu0 0.0
    %2629 = vmatpush1.msra.mxu0 0.0
    %2630 = vmatprep.subr.mxu0 0.0
    %2631 = vmatpush1.msra.mxu0 0.0
    %2632 = vmatprep.subr.mxu0 0.0
    %2633 = vmatpush1.msra.mxu0 0.0
    %2634 = vmatprep.subr.mxu0 0.0
    %2635 = vmatpush1.msra.mxu0 0.0
    %2636 = vmatprep.subr.mxu0 0.0
    %2637 = vmatpush1.msra.mxu0 0.0
    %2638 = vmatprep.subr.mxu0 0.0
    %2639 = vmatpush1.msra.mxu0 0.0
    %2640 = vmatprep.subr.mxu0 0.0
    %2641 = vmatpush1.msra.mxu0 0.0
    %2642 = vmatprep.subr.mxu0 0.0
    %2643 = vmatpush1.msra.mxu0 0.0
    %2644 = vmatprep.subr.mxu0 0.0
    %2645 = vmatpush1.msra.mxu0 0.0
    %2646 = vmatprep.subr.mxu0 0.0
    %2647 = vmatpush1.msra.mxu0 0.0
    %2648 = vmatprep.subr.mxu0 0.0
    %2649 = vmatpush1.msra.mxu0 0.0
    %2650 = vmatprep.subr.mxu0 0.0
    %2651 = vmatpush1.msra.mxu0 0.0
    %2652 = vmatprep.subr.mxu0 0.0
    %2653 = vmatpush1.msra.mxu0 0.0
    %2654 = vmatprep.subr.mxu0 0.0
    %2655 = vmatpush1.msra.mxu0 0.0
    %2656 = vmatprep.subr.mxu0 0.0
    %2657 = vmatpush1.msra.mxu0 0.0
    %2658 = vmatprep.subr.mxu0 0.0
    %2659 = vmatpush1.msra.mxu0 0.0
    %2660 = vmatprep.subr.mxu0 0.0
    %2661 = vmatpush1.msra.mxu0 0.0
    %2662 = vmatprep.subr.mxu0 0.0
    %2663 = vmatpush1.msra.mxu0 0.0
    %2664 = vmatprep.mubr.f32.mxu0 0.0
    %2665 = vmatmul.mubr.f32.gmra.mrb[0].mxu0 %v2592
    %v2666 = vpop.f32.mrb[0].mxu0
    %v2667 = vadd.f32 0.0, %v2666
    %v2668 = vpop.f32.mrb[0].mxu0
    %2669 = vmatprep.mubr.f32.mxu0 0.0
    %2670 = vmatmul.mubr.f32.gmra.mrb[0].mxu0 %v2595
    %v2671 = vpop.f32.mrb[0].mxu0
    %v2672 = vadd.f32 0.0, %v2671
    %v2673 = vpop.f32.mrb[0].mxu0
    %2674 = vmatprep.mubr.f32.mxu0 0.0
    %2675 = vmatmul.mubr.f32.gmra.mrb[0].mxu0 %v2598
    %v2676 = vpop.f32.mrb[0].mxu0
    %v2677 = vadd.f32 0.0, %v2676
    %v2678 = vpop.f32.mrb[0].mxu0
    %2679 = vdwg.mxu0
    %v2680 = vadd.f32 %v2343, %v2667
    %v2681 = vadd.f32 %v2348, %v2672
    %v2682 = vadd.f32 %v2353, %v2677
    %2683 = vrot.lane.b32.xlu0 %v393, 104
    %v2684 = vpop.permute.xlu0 %2683
    %2685 = vrot.lane.b32.xlu0 %v398, 104
    %v2686 = vpop.permute.xlu0 %2685
    %2687 = vrot.lane.b32.xlu0 %v403, 104
    %v2688 = vpop.permute.xlu0 %2687
    %2689 = vrot.lane.b32.xlu0 %v393, 72
    %v2690 = vpop.permute.xlu0 %2689
    %2691 = vrot.lane.b32.xlu0 %v398, 72
    %v2692 = vpop.permute.xlu0 %2691
    %2693 = vrot.lane.b32.xlu0 %v403, 72
    %v2694 = vpop.permute.xlu0 %2693
    %v2695 = vsel %vm419, %v2684, 0
    %v2697 = vsel %vm419, %v2686, 0
    %v2699 = vsel %vm419, %v2688, 0
    %v2701 = vsel %vm419, %v2690, 0
    %v2703 = vsel %vm419, %v2692, 0
    %v2705 = vsel %vm419, %v2694, 0
    %2707 = vmatprep.subr.mxu0 0.0
    %2708 = vmatpush1.xpose.msra.mxu0 %v2701
    %2709 = vmatprep.subr.mxu0 0.0
    %2710 = vmatpush1.xpose.msra.mxu0 %v2703
    %2711 = vmatprep.subr.mxu0 0.0
    %2712 = vmatpush1.xpose.msra.mxu0 %v2705
    %2713 = vmatprep.subr.mxu0 0.0
    %2714 = vmatpush1.xpose.msra.mxu0 0.0
    %2715 = vmatprep.subr.mxu0 0.0
    %2716 = vmatpush1.xpose.msra.mxu0 0.0
    %2717 = vmatprep.subr.mxu0 0.0
    %2718 = vmatpush1.xpose.msra.mxu0 0.0
    %2719 = vmatprep.subr.mxu0 0.0
    %2720 = vmatpush1.xpose.msra.mxu0 0.0
    %2721 = vmatprep.subr.mxu0 0.0
    %2722 = vmatpush1.xpose.msra.mxu0 0.0
    %2723 = vmatprep.subr.mxu0 0.0
    %2724 = vmatpush1.xpose.msra.mxu0 0.0
    %2725 = vmatprep.subr.mxu0 0.0
    %2726 = vmatpush1.xpose.msra.mxu0 0.0
    %2727 = vmatprep.subr.mxu0 0.0
    %2728 = vmatpush1.xpose.msra.mxu0 0.0
    %2729 = vmatprep.subr.mxu0 0.0
    %2730 = vmatpush1.xpose.msra.mxu0 0.0
    %2731 = vmatprep.subr.mxu0 0.0
    %2732 = vmatpush1.xpose.msra.mxu0 0.0
    %2733 = vmatprep.subr.mxu0 0.0
    %2734 = vmatpush1.xpose.msra.mxu0 0.0
    %2735 = vmatprep.subr.mxu0 0.0
    %2736 = vmatpush1.xpose.msra.mxu0 0.0
    %2737 = vmatprep.subr.mxu0 0.0
    %2738 = vmatpush1.xpose.msra.mxu0 0.0
    %2739 = vmatprep.subr.mxu0 0.0
    %2740 = vmatpush1.xpose.msra.mxu0 0.0
    %2741 = vmatprep.subr.mxu0 0.0
    %2742 = vmatpush1.xpose.msra.mxu0 0.0
    %2743 = vmatprep.subr.mxu0 0.0
    %2744 = vmatpush1.xpose.msra.mxu0 0.0
    %2745 = vmatprep.subr.mxu0 0.0
    %2746 = vmatpush1.xpose.msra.mxu0 0.0
    %2747 = vmatprep.subr.mxu0 0.0
    %2748 = vmatpush1.xpose.msra.mxu0 0.0
    %2749 = vmatprep.subr.mxu0 0.0
    %2750 = vmatpush1.xpose.msra.mxu0 0.0
    %2751 = vmatprep.subr.mxu0 0.0
    %2752 = vmatpush1.xpose.msra.mxu0 0.0
    %2753 = vmatprep.subr.mxu0 0.0
    %2754 = vmatpush1.xpose.msra.mxu0 0.0
    %2755 = vmatprep.subr.mxu0 0.0
    %2756 = vmatpush1.xpose.msra.mxu0 0.0
    %2757 = vmatprep.subr.mxu0 0.0
    %2758 = vmatpush1.xpose.msra.mxu0 0.0
    %2759 = vmatprep.subr.mxu0 0.0
    %2760 = vmatpush1.xpose.msra.mxu0 0.0
    %2761 = vmatprep.subr.mxu0 0.0
    %2762 = vmatpush1.xpose.msra.mxu0 0.0
    %2763 = vmatprep.subr.mxu0 0.0
    %2764 = vmatpush1.xpose.msra.mxu0 0.0
    %2765 = vmatprep.subr.mxu0 0.0
    %2766 = vmatpush1.xpose.msra.mxu0 0.0
    %2767 = vmatprep.subr.mxu0 0.0
    %2768 = vmatpush1.xpose.msra.mxu0 0.0
    %2769 = vmatprep.subr.mxu0 0.0
    %2770 = vmatpush1.xpose.msra.mxu0 0.0
    %2771 = vmatprep.mubr.f32.mxu0 0.0
    %2772 = vmatmul.mubr.f32.gmra.mrb[0].mxu0 %v2695
    %v2773 = vpop.f32.mrb[0].mxu0
    %v2774 = vadd.f32 %v41, %v2773
    %v2775 = vpop.f32.mrb[0].mxu0
    %2776 = vmatprep.mubr.f32.mxu0 0.0
    %2777 = vmatmul.mubr.f32.gmra.mrb[0].mxu0 %v2697
    %v2778 = vpop.f32.mrb[0].mxu0
    %v2779 = vadd.f32 %v41, %v2778
    %v2780 = vpop.f32.mrb[0].mxu0
    %2781 = vmatprep.mubr.f32.mxu0 0.0
    %2782 = vmatmul.mubr.f32.gmra.mrb[0].mxu0 %v2699
    %v2783 = vpop.f32.mrb[0].mxu0
    %v2784 = vadd.f32 %v41, %v2783
    %v2785 = vpop.f32.mrb[0].mxu0
    %2786 = vdwg.mxu0
    %v2787 = vsel %vm512, %v2774, -inf
    %2788 = vmax.xlane.f32.xlu0 %v2787
    %v2789 = vpop.xlane.xlu0 %2788
    %v2790 = vsel %vm512, %v2779, -inf
    %2791 = vmax.xlane.f32.xlu0 %v2790
    %v2792 = vpop.xlane.xlu0 %2791
    %v2793 = vsel %vm512, %v2784, -inf
    %2794 = vmax.xlane.f32.xlu0 %v2793
    %v2795 = vpop.xlane.xlu0 %2794
    %v2796 = vsub.f32 %v2774, %v2789
    %v2797 = vsub.f32 %v2779, %v2792
    %v2798 = vsub.f32 %v2784, %v2795
    %v2799 = vmul.f32 %v2796, 1.442695
    %v2800 = vpow.pop %v2799
    %v2801 = vmul.f32 %v2797, 1.442695
    %v2802 = vpow.pop %v2801
    %v2803 = vmul.f32 %v2798, 1.442695
    %v2804 = vpow.pop %v2803
    %v2805 = vsel %vm512, %v2800, 0.0
    %2806 = vadd.xlane.f32.xlu0 %v2805
    %v2807 = vpop.xlane.xlu0 %2806
    %v2808 = vsel %vm512, %v2802, 0.0
    %2809 = vadd.xlane.f32.xlu0 %v2808
    %v2810 = vpop.xlane.xlu0 %2809
    %v2811 = vsel %vm512, %v2804, 0.0
    %2812 = vadd.xlane.f32.xlu0 %v2811
    %v2813 = vpop.xlane.xlu0 %2812
    %v2814 = vrcp.pop %v2807
    %v2815 = vrcp.pop %v2810
    %v2816 = vrcp.pop %v2813
    %v2817 = vmul.f32 %v2800, %v2814
    %v2818 = vmul.f32 %v2802, %v2815
    %v2819 = vmul.f32 %v2804, %v2816
    %2820 = vrot.lane.b32.xlu0 %v393, 40
    %v2821 = vpop.permute.xlu0 %2820
    %2822 = vrot.lane.b32.xlu0 %v398, 40
    %v2823 = vpop.permute.xlu0 %2822
    %2824 = vrot.lane.b32.xlu0 %v403, 40
    %v2825 = vpop.permute.xlu0 %2824
    %v2830 = vsel %vm512, %v2817, 0
    %v2833 = vsel %vm512, %v2818, 0
    %v2836 = vsel %vm512, %v2819, 0
    %2838 = vmatprep.subr.mxu0 0.0
    %2839 = vmatpush1.msra.mxu0 %v2821
    %2840 = vmatprep.subr.mxu0 0.0
    %2841 = vmatpush1.msra.mxu0 %v2823
    %2842 = vmatprep.subr.mxu0 0.0
    %2843 = vmatpush1.msra.mxu0 %v2825
    %2844 = vmatprep.subr.mxu0 0.0
    %2845 = vmatpush1.msra.mxu0 0.0
    %2846 = vmatprep.subr.mxu0 0.0
    %2847 = vmatpush1.msra.mxu0 0.0
    %2848 = vmatprep.subr.mxu0 0.0
    %2849 = vmatpush1.msra.mxu0 0.0
    %2850 = vmatprep.subr.mxu0 0.0
    %2851 = vmatpush1.msra.mxu0 0.0
    %2852 = vmatprep.subr.mxu0 0.0
    %2853 = vmatpush1.msra.mxu0 0.0
    %2854 = vmatprep.subr.mxu0 0.0
    %2855 = vmatpush1.msra.mxu0 0.0
    %2856 = vmatprep.subr.mxu0 0.0
    %2857 = vmatpush1.msra.mxu0 0.0
    %2858 = vmatprep.subr.mxu0 0.0
    %2859 = vmatpush1.msra.mxu0 0.0
    %2860 = vmatprep.subr.mxu0 0.0
    %2861 = vmatpush1.msra.mxu0 0.0
    %2862 = vmatprep.subr.mxu0 0.0
    %2863 = vmatpush1.msra.mxu0 0.0
    %2864 = vmatprep.subr.mxu0 0.0
    %2865 = vmatpush1.msra.mxu0 0.0
    %2866 = vmatprep.subr.mxu0 0.0
    %2867 = vmatpush1.msra.mxu0 0.0
    %2868 = vmatprep.subr.mxu0 0.0
    %2869 = vmatpush1.msra.mxu0 0.0
    %2870 = vmatprep.subr.mxu0 0.0
    %2871 = vmatpush1.msra.mxu0 0.0
    %2872 = vmatprep.subr.mxu0 0.0
    %2873 = vmatpush1.msra.mxu0 0.0
    %2874 = vmatprep.subr.mxu0 0.0
    %2875 = vmatpush1.msra.mxu0 0.0
    %2876 = vmatprep.subr.mxu0 0.0
    %2877 = vmatpush1.msra.mxu0 0.0
    %2878 = vmatprep.subr.mxu0 0.0
    %2879 = vmatpush1.msra.mxu0 0.0
    %2880 = vmatprep.subr.mxu0 0.0
    %2881 = vmatpush1.msra.mxu0 0.0
    %2882 = vmatprep.subr.mxu0 0.0
    %2883 = vmatpush1.msra.mxu0 0.0
    %2884 = vmatprep.subr.mxu0 0.0
    %2885 = vmatpush1.msra.mxu0 0.0
    %2886 = vmatprep.subr.mxu0 0.0
    %2887 = vmatpush1.msra.mxu0 0.0
    %2888 = vmatprep.subr.mxu0 0.0
    %2889 = vmatpush1.msra.mxu0 0.0
    %2890 = vmatprep.subr.mxu0 0.0
    %2891 = vmatpush1.msra.mxu0 0.0
    %2892 = vmatprep.subr.mxu0 0.0
    %2893 = vmatpush1.msra.mxu0 0.0
    %2894 = vmatprep.subr.mxu0 0.0
    %2895 = vmatpush1.msra.mxu0 0.0
    %2896 = vmatprep.subr.mxu0 0.0
    %2897 = vmatpush1.msra.mxu0 0.0
    %2898 = vmatprep.subr.mxu0 0.0
    %2899 = vmatpush1.msra.mxu0 0.0
    %2900 = vmatprep.subr.mxu0 0.0
    %2901 = vmatpush1.msra.mxu0 0.0
    %2902 = vmatprep.mubr.f32.mxu0 0.0
    %2903 = vmatmul.mubr.f32.gmra.mrb[0].mxu0 %v2830
    %v2904 = vpop.f32.mrb[0].mxu0
    %v2905 = vadd.f32 0.0, %v2904
    %v2906 = vpop.f32.mrb[0].mxu0
    %2907 = vmatprep.mubr.f32.mxu0 0.0
    %2908 = vmatmul.mubr.f32.gmra.mrb[0].mxu0 %v2833
    %v2909 = vpop.f32.mrb[0].mxu0
    %v2910 = vadd.f32 0.0, %v2909
    %v2911 = vpop.f32.mrb[0].mxu0
    %2912 = vmatprep.mubr.f32.mxu0 0.0
    %2913 = vmatmul.mubr.f32.gmra.mrb[0].mxu0 %v2836
    %v2914 = vpop.f32.mrb[0].mxu0
    %v2915 = vadd.f32 0.0, %v2914
    %v2916 = vpop.f32.mrb[0].mxu0
    %2917 = vdwg.mxu0
    %v2919 = vsel %vm419, %v2905, 0
    %v2922 = vsel %vm419, %v2910, 0
    %v2925 = vsel %vm419, %v2915, 0
    %2927 = vmatprep.subr.mxu0 0.0
    %2928 = vmatpush1.msra.mxu0 %v409
    %2929 = vmatprep.subr.mxu0 0.0
    %2930 = vmatpush1.msra.mxu0 0.0
    %2931 = vmatprep.subr.mxu0 0.0
    %2932 = vmatpush1.msra.mxu0 0.0
    %2933 = vmatprep.subr.mxu0 0.0
    %2934 = vmatpush1.msra.mxu0 0.0
    %2935 = vmatprep.subr.mxu0 0.0
    %2936 = vmatpush1.msra.mxu0 0.0
    %2937 = vmatprep.subr.mxu0 0.0
    %2938 = vmatpush1.msra.mxu0 0.0
    %2939 = vmatprep.subr.mxu0 0.0
    %2940 = vmatpush1.msra.mxu0 0.0
    %2941 = vmatprep.subr.mxu0 0.0
    %2942 = vmatpush1.msra.mxu0 0.0
    %2943 = vmatprep.subr.mxu0 0.0
    %2944 = vmatpush1.msra.mxu0 0.0
    %2945 = vmatprep.subr.mxu0 0.0
    %2946 = vmatpush1.msra.mxu0 0.0
    %2947 = vmatprep.subr.mxu0 0.0
    %2948 = vmatpush1.msra.mxu0 0.0
    %2949 = vmatprep.subr.mxu0 0.0
    %2950 = vmatpush1.msra.mxu0 0.0
    %2951 = vmatprep.subr.mxu0 0.0
    %2952 = vmatpush1.msra.mxu0 0.0
    %2953 = vmatprep.subr.mxu0 0.0
    %2954 = vmatpush1.msra.mxu0 0.0
    %2955 = vmatprep.subr.mxu0 0.0
    %2956 = vmatpush1.msra.mxu0 0.0
    %2957 = vmatprep.subr.mxu0 0.0
    %2958 = vmatpush1.msra.mxu0 0.0
    %2959 = vmatprep.subr.mxu0 0.0
    %2960 = vmatpush1.msra.mxu0 0.0
    %2961 = vmatprep.subr.mxu0 0.0
    %2962 = vmatpush1.msra.mxu0 0.0
    %2963 = vmatprep.subr.mxu0 0.0
    %2964 = vmatpush1.msra.mxu0 0.0
    %2965 = vmatprep.subr.mxu0 0.0
    %2966 = vmatpush1.msra.mxu0 0.0
    %2967 = vmatprep.subr.mxu0 0.0
    %2968 = vmatpush1.msra.mxu0 0.0
    %2969 = vmatprep.subr.mxu0 0.0
    %2970 = vmatpush1.msra.mxu0 0.0
    %2971 = vmatprep.subr.mxu0 0.0
    %2972 = vmatpush1.msra.mxu0 0.0
    %2973 = vmatprep.subr.mxu0 0.0
    %2974 = vmatpush1.msra.mxu0 0.0
    %2975 = vmatprep.subr.mxu0 0.0
    %2976 = vmatpush1.msra.mxu0 0.0
    %2977 = vmatprep.subr.mxu0 0.0
    %2978 = vmatpush1.msra.mxu0 0.0
    %2979 = vmatprep.subr.mxu0 0.0
    %2980 = vmatpush1.msra.mxu0 0.0
    %2981 = vmatprep.subr.mxu0 0.0
    %2982 = vmatpush1.msra.mxu0 0.0
    %2983 = vmatprep.subr.mxu0 0.0
    %2984 = vmatpush1.msra.mxu0 0.0
    %2985 = vmatprep.subr.mxu0 0.0
    %2986 = vmatpush1.msra.mxu0 0.0
    %2987 = vmatprep.subr.mxu0 0.0
    %2988 = vmatpush1.msra.mxu0 0.0
    %2989 = vmatprep.subr.mxu0 0.0
    %2990 = vmatpush1.msra.mxu0 0.0
    %2991 = vmatprep.mubr.f32.mxu0 0.0
    %2992 = vmatmul.mubr.f32.gmra.mrb[0].mxu0 %v2919
    %v2993 = vpop.f32.mrb[0].mxu0
    %v2994 = vadd.f32 0.0, %v2993
    %v2995 = vpop.f32.mrb[0].mxu0
    %2996 = vmatprep.mubr.f32.mxu0 0.0
    %2997 = vmatmul.mubr.f32.gmra.mrb[0].mxu0 %v2922
    %v2998 = vpop.f32.mrb[0].mxu0
    %v2999 = vadd.f32 0.0, %v2998
    %v3000 = vpop.f32.mrb[0].mxu0
    %3001 = vmatprep.mubr.f32.mxu0 0.0
    %3002 = vmatmul.mubr.f32.gmra.mrb[0].mxu0 %v2925
    %v3003 = vpop.f32.mrb[0].mxu0
    %v3004 = vadd.f32 0.0, %v3003
    %v3005 = vpop.f32.mrb[0].mxu0
    %3006 = vdwg.mxu0
    %v3007 = vadd.f32 %v2680, %v2994
    %v3008 = vadd.f32 %v2681, %v2999
    %v3009 = vadd.f32 %v2682, %v3004
    %v3010 = vadd.f32 %v148, %v1708
    %v3011 = vadd.f32 %v153, %v1709
    %v3012 = vadd.f32 %v158, %v1710
    %v3013 = vadd.f32 %v163, %v3007
    %v3014 = vadd.f32 %v168, %v3008
    %v3015 = vadd.f32 %v173, %v3009
    %v3016 = vld [vmem:[%s5 + $0x5] sm:$0x1]
    %v3018 = vlaneseq
    %v3019 = vshrl.u32 %v3018, 7
    %v3020 = vsub.s32 0, %v3019
    %v3021 = vrot.slane %v3016, %v3020
    %v3023 = vadd.f32 %v3010, %v3021
    %v3024 = vadd.f32 %v3011, %v3021
    %v3025 = vadd.f32 %v3012, %v3021
    %v3026 = vadd.f32 %v3013, %v3021
    %v3027 = vadd.f32 %v3014, %v3021
    %v3028 = vadd.f32 %v3015, %v3021
    %v3029 = vld [vmem:[%s5 + $0x2] sm:$0x1]
    %v3030 = vld [vmem:[%s5 + $0x3] sm:$0x1]
    %v3031 = vsel %vm178, %v3023, 0.0
    %3032 = vadd.xlane.f32.xlu0 %v3031
    %v3033 = vpop.xlane.xlu0 %3032
    %v3034 = vsel %vm178, %v3024, 0.0
    %3035 = vadd.xlane.f32.xlu0 %v3034
    %v3036 = vpop.xlane.xlu0 %3035
    %v3037 = vsel %vm178, %v3025, 0.0
    %3038 = vadd.xlane.f32.xlu0 %v3037
    %v3039 = vpop.xlane.xlu0 %3038
    %v3040 = vsel %vm178, %v3026, 0.0
    %3041 = vadd.xlane.f32.xlu0 %v3040
    %v3042 = vpop.xlane.xlu0 %3041
    %v3043 = vsel %vm178, %v3027, 0.0
    %3044 = vadd.xlane.f32.xlu0 %v3043
    %v3045 = vpop.xlane.xlu0 %3044
    %v3046 = vsel %vm178, %v3028, 0.0
    %3047 = vadd.xlane.f32.xlu0 %v3046
    %v3048 = vpop.xlane.xlu0 %3047
    %v3049 = vmul.f32 %v3033, %v197
    %v3050 = vmul.f32 %v3036, %v197
    %v3051 = vmul.f32 %v3039, %v197
    %v3052 = vmul.f32 %v3042, %v197
    %v3053 = vmul.f32 %v3045, %v197
    %v3054 = vmul.f32 %v3048, %v197
    %v3055 = vsub.f32 %v3023, %v3049
    %v3056 = vsub.f32 %v3024, %v3050
    %v3057 = vsub.f32 %v3025, %v3051
    %v3058 = vsub.f32 %v3026, %v3052
    %v3059 = vsub.f32 %v3027, %v3053
    %v3060 = vsub.f32 %v3028, %v3054
    %v3061 = vmul.f32 %v3055, %v3055
    %v3062 = vmul.f32 %v3056, %v3056
    %v3063 = vmul.f32 %v3057, %v3057
    %v3064 = vmul.f32 %v3058, %v3058
    %v3065 = vmul.f32 %v3059, %v3059
    %v3066 = vmul.f32 %v3060, %v3060
    %v3067 = vsel %vm178, %v3061, 0.0
    %3068 = vadd.xlane.f32.xlu0 %v3067
    %v3069 = vpop.xlane.xlu0 %3068
    %v3070 = vsel %vm178, %v3062, 0.0
    %3071 = vadd.xlane.f32.xlu0 %v3070
    %v3072 = vpop.xlane.xlu0 %3071
    %v3073 = vsel %vm178, %v3063, 0.0
    %3074 = vadd.xlane.f32.xlu0 %v3073
    %v3075 = vpop.xlane.xlu0 %3074
    %v3076 = vsel %vm178, %v3064, 0.0
    %3077 = vadd.xlane.f32.xlu0 %v3076
    %v3078 = vpop.xlane.xlu0 %3077
    %v3079 = vsel %vm178, %v3065, 0.0
    %3080 = vadd.xlane.f32.xlu0 %v3079
    %v3081 = vpop.xlane.xlu0 %3080
    %v3082 = vsel %vm178, %v3066, 0.0
    %3083 = vadd.xlane.f32.xlu0 %v3082
    %v3084 = vpop.xlane.xlu0 %3083
    %v3085 = vmul.f32 %v3069, %v197
    %v3086 = vmul.f32 %v3072, %v197
    %v3087 = vmul.f32 %v3075, %v197
    %v3088 = vmul.f32 %v3078, %v197
    %v3089 = vmul.f32 %v3081, %v197
    %v3090 = vmul.f32 %v3084, %v197
    %v3091 = vadd.f32 %v3085, 1e-06
    %v3092 = vadd.f32 %v3086, 1e-06
    %v3093 = vadd.f32 %v3087, 1e-06
    %v3094 = vadd.f32 %v3088, 1e-06
    %v3095 = vadd.f32 %v3089, 1e-06
    %v3096 = vadd.f32 %v3090, 1e-06
    %v3097 = vrsqrt.pop %v3091
    %v3098 = vrsqrt.pop %v3092
    %v3099 = vrsqrt.pop %v3093
    %v3100 = vrsqrt.pop %v3094
    %v3101 = vrsqrt.pop %v3095
    %v3102 = vrsqrt.pop %v3096
    %v3103 = vmul.f32 %v3055, %v3097
    %v3104 = vmul.f32 %v3056, %v3098
    %v3105 = vmul.f32 %v3057, %v3099
    %v3106 = vmul.f32 %v3058, %v3100
    %v3107 = vmul.f32 %v3059, %v3101
    %v3108 = vmul.f32 %v3060, %v3102
    %v3110 = vlaneseq
    %v3111 = vshrl.u32 %v3110, 7
    %v3112 = vsub.s32 0, %v3111
    %v3113 = vrot.slane %v3029, %v3112
    %v3115 = vmul.f32 %v3103, %v3113
    %v3116 = vmul.f32 %v3104, %v3113
    %v3117 = vmul.f32 %v3105, %v3113
    %v3118 = vmul.f32 %v3106, %v3113
    %v3119 = vmul.f32 %v3107, %v3113
    %v3120 = vmul.f32 %v3108, %v3113
    %v3122 = vlaneseq
    %v3123 = vshrl.u32 %v3122, 7
    %v3124 = vsub.s32 0, %v3123
    %v3125 = vrot.slane %v3030, %v3124
    %v3127 = vadd.f32 %v3115, %v3125
    %v3128 = vadd.f32 %v3116, %v3125
    %v3129 = vadd.f32 %v3117, %v3125
    %v3130 = vadd.f32 %v3118, %v3125
    %v3131 = vadd.f32 %v3119, %v3125
    %v3132 = vadd.f32 %v3120, %v3125
    %v3133 = vld [vmem:[#allocation2 + $0x10] sm:$0xff]
    %v3134 = vld [vmem:[#allocation2 + $0x30] sm:$0xff]
    %v3135 = vld [vmem:[#allocation2 + $0x50] sm:$0xff]
    %v3136 = vld [vmem:[#allocation2 + $0x70] sm:$0xff]
    %v3137 = vld [vmem:[%s5 + $0x6] sm:$0x1]
    %v3139 = vlaneseq
    %v3140 = vshrl.u32 %v3139, 7
    %v3141 = vsub.s32 0, %v3140
    %v3142 = vrot.slane %v3137, %v3141
    %v3145 = vsel %vm178, %v3127, 0
    %v3148 = vsel %vm178, %v3128, 0
    %v3151 = vsel %vm178, %v3129, 0
    %v3154 = vsel %vm178, %v3130, 0
    %v3157 = vsel %vm178, %v3131, 0
    %v3160 = vsel %vm178, %v3132, 0
    %3162 = vmatprep.subr.mxu0 0.0
    %3163 = vmatpush1.msra.mxu0 %v3133
    %3164 = vmatprep.subr.mxu0 0.0
    %3165 = vmatpush1.msra.mxu0 %v3134
    %3166 = vmatprep.subr.mxu0 0.0
    %3167 = vmatpush1.msra.mxu0 %v3135
    %3168 = vmatprep.subr.mxu0 0.0
    %3169 = vmatpush1.msra.mxu0 %v3136
    %3170 = vmatprep.subr.mxu0 0.0
    %3171 = vmatpush1.msra.mxu0 0.0
    %3172 = vmatprep.subr.mxu0 0.0
    %3173 = vmatpush1.msra.mxu0 0.0
    %3174 = vmatprep.subr.mxu0 0.0
    %3175 = vmatpush1.msra.mxu0 0.0
    %3176 = vmatprep.subr.mxu0 0.0
    %3177 = vmatpush1.msra.mxu0 0.0
    %3178 = vmatprep.subr.mxu0 0.0
    %3179 = vmatpush1.msra.mxu0 0.0
    %3180 = vmatprep.subr.mxu0 0.0
    %3181 = vmatpush1.msra.mxu0 0.0
    %3182 = vmatprep.subr.mxu0 0.0
    %3183 = vmatpush1.msra.mxu0 0.0
    %3184 = vmatprep.subr.mxu0 0.0
    %3185 = vmatpush1.msra.mxu0 0.0
    %3186 = vmatprep.subr.mxu0 0.0
    %3187 = vmatpush1.msra.mxu0 0.0
    %3188 = vmatprep.subr.mxu0 0.0
    %3189 = vmatpush1.msra.mxu0 0.0
    %3190 = vmatprep.subr.mxu0 0.0
    %3191 = vmatpush1.msra.mxu0 0.0
    %3192 = vmatprep.subr.mxu0 0.0
    %3193 = vmatpush1.msra.mxu0 0.0
    %3194 = vmatprep.subr.mxu0 0.0
    %3195 = vmatpush1.msra.mxu0 0.0
    %3196 = vmatprep.subr.mxu0 0.0
    %3197 = vmatpush1.msra.mxu0 0.0
    %3198 = vmatprep.subr.mxu0 0.0
    %3199 = vmatpush1.msra.mxu0 0.0
    %3200 = vmatprep.subr.mxu0 0.0
    %3201 = vmatpush1.msra.mxu0 0.0
    %3202 = vmatprep.subr.mxu0 0.0
    %3203 = vmatpush1.msra.mxu0 0.0
    %3204 = vmatprep.subr.mxu0 0.0
    %3205 = vmatpush1.msra.mxu0 0.0
    %3206 = vmatprep.subr.mxu0 0.0
    %3207 = vmatpush1.msra.mxu0 0.0
    %3208 = vmatprep.subr.mxu0 0.0
    %3209 = vmatpush1.msra.mxu0 0.0
    %3210 = vmatprep.subr.mxu0 0.0
    %3211 = vmatpush1.msra.mxu0 0.0
    %3212 = vmatprep.subr.mxu0 0.0
    %3213 = vmatpush1.msra.mxu0 0.0
    %3214 = vmatprep.subr.mxu0 0.0
    %3215 = vmatpush1.msra.mxu0 0.0
    %3216 = vmatprep.subr.mxu0 0.0
    %3217 = vmatpush1.msra.mxu0 0.0
    %3218 = vmatprep.subr.mxu0 0.0
    %3219 = vmatpush1.msra.mxu0 0.0
    %3220 = vmatprep.subr.mxu0 0.0
    %3221 = vmatpush1.msra.mxu0 0.0
    %3222 = vmatprep.subr.mxu0 0.0
    %3223 = vmatpush1.msra.mxu0 0.0
    %3224 = vmatprep.subr.mxu0 0.0
    %3225 = vmatpush1.msra.mxu0 0.0
    %3226 = vmatprep.mubr.f32.mxu0 0.0
    %3227 = vmatmul.mubr.f32.gmra.mrb[0].mxu0 %v3145
    %v3228 = vpop.f32.mrb[0].mxu0
    %v3229 = vadd.f32 %v3142, %v3228
    %v3230 = vpop.f32.mrb[0].mxu0
    %3231 = vmatprep.mubr.f32.mxu0 0.0
    %3232 = vmatmul.mubr.f32.gmra.mrb[0].mxu0 %v3148
    %v3233 = vpop.f32.mrb[0].mxu0
    %v3234 = vadd.f32 %v3142, %v3233
    %v3235 = vpop.f32.mrb[0].mxu0
    %3236 = vmatprep.mubr.f32.mxu0 0.0
    %3237 = vmatmul.mubr.f32.gmra.mrb[0].mxu0 %v3151
    %v3238 = vpop.f32.mrb[0].mxu0
    %v3239 = vadd.f32 %v3142, %v3238
    %v3240 = vpop.f32.mrb[0].mxu0
    %3241 = vmatprep.mubr.f32.mxu0 0.0
    %3242 = vmatmul.mubr.f32.gmra.mrb[0].mxu0 %v3154
    %v3243 = vpop.f32.mrb[0].mxu0
    %v3244 = vadd.f32 %v3142, %v3243
    %v3245 = vpop.f32.mrb[0].mxu0
    %3246 = vmatprep.mubr.f32.mxu0 0.0
    %3247 = vmatmul.mubr.f32.gmra.mrb[0].mxu0 %v3157
    %v3248 = vpop.f32.mrb[0].mxu0
    %v3249 = vadd.f32 %v3142, %v3248
    %v3250 = vpop.f32.mrb[0].mxu0
    %3251 = vmatprep.mubr.f32.mxu0 0.0
    %3252 = vmatmul.mubr.f32.gmra.mrb[0].mxu0 %v3160
    %v3253 = vpop.f32.mrb[0].mxu0
    %v3254 = vadd.f32 %v3142, %v3253
    %v3255 = vpop.f32.mrb[0].mxu0
    %3256 = vdwg.mxu0
    %v3257 = vmul.f32 %v3229, 0.5
    %v3258 = vmul.f32 %v3234, 0.5
    %v3259 = vmul.f32 %v3239, 0.5
    %v3260 = vmul.f32 %v3244, 0.5
    %v3261 = vmul.f32 %v3249, 0.5
    %v3262 = vmul.f32 %v3254, 0.5
    %v3263 = vmul.f32 %v3229, 0.70710677
    %v3264 = vmul.f32 %v3234, 0.70710677
    %v3265 = vmul.f32 %v3239, 0.70710677
    %v3266 = vmul.f32 %v3244, 0.70710677
    %v3267 = vmul.f32 %v3249, 0.70710677
    %v3268 = vmul.f32 %v3254, 0.70710677
    %v3269 = verf.f32.pop %v3263
    %v3270 = verf.f32.pop %v3264
    %v3271 = verf.f32.pop %v3265
    %v3272 = verf.f32.pop %v3266
    %v3273 = verf.f32.pop %v3267
    %v3274 = verf.f32.pop %v3268
    %v3275 = vadd.f32 %v3269, 1.0
    %v3276 = vadd.f32 %v3270, 1.0
    %v3277 = vadd.f32 %v3271, 1.0
    %v3278 = vadd.f32 %v3272, 1.0
    %v3279 = vadd.f32 %v3273, 1.0
    %v3280 = vadd.f32 %v3274, 1.0
    %v3281 = vmul.f32 %v3257, %v3275
    %v3282 = vmul.f32 %v3258, %v3276
    %v3283 = vmul.f32 %v3259, %v3277
    %v3284 = vmul.f32 %v3260, %v3278
    %v3285 = vmul.f32 %v3261, %v3279
    %v3286 = vmul.f32 %v3262, %v3280
    %v3287 = vld [vmem:[#allocation2 + $0x18] sm:$0xff]
    %v3288 = vld [vmem:[#allocation2 + $0x38] sm:$0xff]
    %v3289 = vld [vmem:[#allocation2 + $0x58] sm:$0xff]
    %v3290 = vld [vmem:[#allocation2 + $0x78] sm:$0xff]
    %v3291 = vld [vmem:[%s5 + $0x7] sm:$0x1]
    %v3293 = vlaneseq
    %v3294 = vshrl.u32 %v3293, 7
    %v3295 = vsub.s32 0, %v3294
    %v3296 = vrot.slane %v3291, %v3295
    %3298 = vmatprep.subr.mxu0 0.0
    %3299 = vmatpush1.xpose.msra.mxu0 %v3287
    %3300 = vmatprep.subr.mxu0 0.0
    %3301 = vmatpush1.xpose.msra.mxu0 %v3288
    %3302 = vmatprep.subr.mxu0 0.0
    %3303 = vmatpush1.xpose.msra.mxu0 %v3289
    %3304 = vmatprep.subr.mxu0 0.0
    %3305 = vmatpush1.xpose.msra.mxu0 %v3290
    %3306 = vmatprep.subr.mxu0 0.0
    %3307 = vmatpush1.xpose.msra.mxu0 0.0
    %3308 = vmatprep.subr.mxu0 0.0
    %3309 = vmatpush1.xpose.msra.mxu0 0.0
    %3310 = vmatprep.subr.mxu0 0.0
    %3311 = vmatpush1.xpose.msra.mxu0 0.0
    %3312 = vmatprep.subr.mxu0 0.0
    %3313 = vmatpush1.xpose.msra.mxu0 0.0
    %3314 = vmatprep.subr.mxu0 0.0
    %3315 = vmatpush1.xpose.msra.mxu0 0.0
    %3316 = vmatprep.subr.mxu0 0.0
    %3317 = vmatpush1.xpose.msra.mxu0 0.0
    %3318 = vmatprep.subr.mxu0 0.0
    %3319 = vmatpush1.xpose.msra.mxu0 0.0
    %3320 = vmatprep.subr.mxu0 0.0
    %3321 = vmatpush1.xpose.msra.mxu0 0.0
    %3322 = vmatprep.subr.mxu0 0.0
    %3323 = vmatpush1.xpose.msra.mxu0 0.0
    %3324 = vmatprep.subr.mxu0 0.0
    %3325 = vmatpush1.xpose.msra.mxu0 0.0
    %3326 = vmatprep.subr.mxu0 0.0
    %3327 = vmatpush1.xpose.msra.mxu0 0.0
    %3328 = vmatprep.subr.mxu0 0.0
    %3329 = vmatpush1.xpose.msra.mxu0 0.0
    %3330 = vmatprep.subr.mxu0 0.0
    %3331 = vmatpush1.xpose.msra.mxu0 0.0
    %3332 = vmatprep.subr.mxu0 0.0
    %3333 = vmatpush1.xpose.msra.mxu0 0.0
    %3334 = vmatprep.subr.mxu0 0.0
    %3335 = vmatpush1.xpose.msra.mxu0 0.0
    %3336 = vmatprep.subr.mxu0 0.0
    %3337 = vmatpush1.xpose.msra.mxu0 0.0
    %3338 = vmatprep.subr.mxu0 0.0
    %3339 = vmatpush1.xpose.msra.mxu0 0.0
    %3340 = vmatprep.subr.mxu0 0.0
    %3341 = vmatpush1.xpose.msra.mxu0 0.0
    %3342 = vmatprep.subr.mxu0 0.0
    %3343 = vmatpush1.xpose.msra.mxu0 0.0
    %3344 = vmatprep.subr.mxu0 0.0
    %3345 = vmatpush1.xpose.msra.mxu0 0.0
    %3346 = vmatprep.subr.mxu0 0.0
    %3347 = vmatpush1.xpose.msra.mxu0 0.0
    %3348 = vmatprep.subr.mxu0 0.0
    %3349 = vmatpush1.xpose.msra.mxu0 0.0
    %3350 = vmatprep.subr.mxu0 0.0
    %3351 = vmatpush1.xpose.msra.mxu0 0.0
    %3352 = vmatprep.subr.mxu0 0.0
    %3353 = vmatpush1.xpose.msra.mxu0 0.0
    %3354 = vmatprep.subr.mxu0 0.0
    %3355 = vmatpush1.xpose.msra.mxu0 0.0
    %3356 = vmatprep.subr.mxu0 0.0
    %3357 = vmatpush1.xpose.msra.mxu0 0.0
    %3358 = vmatprep.subr.mxu0 0.0
    %3359 = vmatpush1.xpose.msra.mxu0 0.0
    %3360 = vmatprep.subr.mxu0 0.0
    %3361 = vmatpush1.xpose.msra.mxu0 0.0
    %3362 = vmatprep.mubr.f32.mxu0 0.0
    %3363 = vmatmul.mubr.f32.gmra.mrb[0].mxu0 %v3281
    %v3364 = vpop.f32.mrb[0].mxu0
    %v3365 = vadd.f32 %v3296, %v3364
    %v3366 = vpop.f32.mrb[0].mxu0
    %3367 = vmatprep.mubr.f32.mxu0 0.0
    %3368 = vmatmul.mubr.f32.gmra.mrb[0].mxu0 %v3282
    %v3369 = vpop.f32.mrb[0].mxu0
    %v3370 = vadd.f32 %v3296, %v3369
    %v3371 = vpop.f32.mrb[0].mxu0
    %3372 = vmatprep.mubr.f32.mxu0 0.0
    %3373 = vmatmul.mubr.f32.gmra.mrb[0].mxu0 %v3283
    %v3374 = vpop.f32.mrb[0].mxu0
    %v3375 = vadd.f32 %v3296, %v3374
    %v3376 = vpop.f32.mrb[0].mxu0
    %3377 = vmatprep.mubr.f32.mxu0 0.0
    %3378 = vmatmul.mubr.f32.gmra.mrb[0].mxu0 %v3284
    %v3379 = vpop.f32.mrb[0].mxu0
    %v3380 = vadd.f32 %v3296, %v3379
    %v3381 = vpop.f32.mrb[0].mxu0
    %3382 = vmatprep.mubr.f32.mxu0 0.0
    %3383 = vmatmul.mubr.f32.gmra.mrb[0].mxu0 %v3285
    %v3384 = vpop.f32.mrb[0].mxu0
    %v3385 = vadd.f32 %v3296, %v3384
    %v3386 = vpop.f32.mrb[0].mxu0
    %3387 = vmatprep.mubr.f32.mxu0 0.0
    %3388 = vmatmul.mubr.f32.gmra.mrb[0].mxu0 %v3286
    %v3389 = vpop.f32.mrb[0].mxu0
    %v3390 = vadd.f32 %v3296, %v3389
    %v3391 = vpop.f32.mrb[0].mxu0
    %3392 = vdwg.mxu0
    %v3393 = vadd.f32 %v3023, %v3365
    %v3394 = vadd.f32 %v3024, %v3370
    %v3395 = vadd.f32 %v3025, %v3375
    %v3396 = vadd.f32 %v3026, %v3380
    %v3397 = vadd.f32 %v3027, %v3385
    %v3398 = vadd.f32 %v3028, %v3390
    %s3399 = scalar_lea.vmem %s5, 8
    %v3400 = vld [vmem:[%s3399] sm:$0x1]
    %v3401 = vld [vmem:[%s3399 + $0x1] sm:$0x1]
    %v3402 = vsel %vm178, %v3393, 0.0
    %3403 = vadd.xlane.f32.xlu0 %v3402
    %v3404 = vpop.xlane.xlu0 %3403
    %v3405 = vsel %vm178, %v3394, 0.0
    %3406 = vadd.xlane.f32.xlu0 %v3405
    %v3407 = vpop.xlane.xlu0 %3406
    %v3408 = vsel %vm178, %v3395, 0.0
    %3409 = vadd.xlane.f32.xlu0 %v3408
    %v3410 = vpop.xlane.xlu0 %3409
    %v3411 = vsel %vm178, %v3396, 0.0
    %3412 = vadd.xlane.f32.xlu0 %v3411
    %v3413 = vpop.xlane.xlu0 %3412
    %v3414 = vsel %vm178, %v3397, 0.0
    %3415 = vadd.xlane.f32.xlu0 %v3414
    %v3416 = vpop.xlane.xlu0 %3415
    %v3417 = vsel %vm178, %v3398, 0.0
    %3418 = vadd.xlane.f32.xlu0 %v3417
    %v3419 = vpop.xlane.xlu0 %3418
    %v3420 = vmul.f32 %v3404, %v197
    %v3421 = vmul.f32 %v3407, %v197
    %v3422 = vmul.f32 %v3410, %v197
    %v3423 = vmul.f32 %v3413, %v197
    %v3424 = vmul.f32 %v3416, %v197
    %v3425 = vmul.f32 %v3419, %v197
    %v3426 = vsub.f32 %v3393, %v3420
    %v3427 = vsub.f32 %v3394, %v3421
    %v3428 = vsub.f32 %v3395, %v3422
    %v3429 = vsub.f32 %v3396, %v3423
    %v3430 = vsub.f32 %v3397, %v3424
    %v3431 = vsub.f32 %v3398, %v3425
    %v3432 = vmul.f32 %v3426, %v3426
    %v3433 = vmul.f32 %v3427, %v3427
    %v3434 = vmul.f32 %v3428, %v3428
    %v3435 = vmul.f32 %v3429, %v3429
    %v3436 = vmul.f32 %v3430, %v3430
    %v3437 = vmul.f32 %v3431, %v3431
    %v3438 = vsel %vm178, %v3432, 0.0
    %3439 = vadd.xlane.f32.xlu0 %v3438
    %v3440 = vpop.xlane.xlu0 %3439
    %v3441 = vsel %vm178, %v3433, 0.0
    %3442 = vadd.xlane.f32.xlu0 %v3441
    %v3443 = vpop.xlane.xlu0 %3442
    %v3444 = vsel %vm178, %v3434, 0.0
    %3445 = vadd.xlane.f32.xlu0 %v3444
    %v3446 = vpop.xlane.xlu0 %3445
    %v3447 = vsel %vm178, %v3435, 0.0
    %3448 = vadd.xlane.f32.xlu0 %v3447
    %v3449 = vpop.xlane.xlu0 %3448
    %v3450 = vsel %vm178, %v3436, 0.0
    %3451 = vadd.xlane.f32.xlu0 %v3450
    %v3452 = vpop.xlane.xlu0 %3451
    %v3453 = vsel %vm178, %v3437, 0.0
    %3454 = vadd.xlane.f32.xlu0 %v3453
    %v3455 = vpop.xlane.xlu0 %3454
    %v3456 = vmul.f32 %v3440, %v197
    %v3457 = vmul.f32 %v3443, %v197
    %v3458 = vmul.f32 %v3446, %v197
    %v3459 = vmul.f32 %v3449, %v197
    %v3460 = vmul.f32 %v3452, %v197
    %v3461 = vmul.f32 %v3455, %v197
    %v3462 = vadd.f32 %v3456, 1e-06
    %v3463 = vadd.f32 %v3457, 1e-06
    %v3464 = vadd.f32 %v3458, 1e-06
    %v3465 = vadd.f32 %v3459, 1e-06
    %v3466 = vadd.f32 %v3460, 1e-06
    %v3467 = vadd.f32 %v3461, 1e-06
    %v3468 = vrsqrt.pop %v3462
    %v3469 = vrsqrt.pop %v3463
    %v3470 = vrsqrt.pop %v3464
    %v3471 = vrsqrt.pop %v3465
    %v3472 = vrsqrt.pop %v3466
    %v3473 = vrsqrt.pop %v3467
    %v3474 = vmul.f32 %v3426, %v3468
    %v3475 = vmul.f32 %v3427, %v3469
    %v3476 = vmul.f32 %v3428, %v3470
    %v3477 = vmul.f32 %v3429, %v3471
    %v3478 = vmul.f32 %v3430, %v3472
    %v3479 = vmul.f32 %v3431, %v3473
    %v3481 = vlaneseq
    %v3482 = vshrl.u32 %v3481, 7
    %v3483 = vsub.s32 0, %v3482
    %v3484 = vrot.slane %v3400, %v3483
    %v3486 = vmul.f32 %v3474, %v3484
    %v3487 = vmul.f32 %v3475, %v3484
    %v3488 = vmul.f32 %v3476, %v3484
    %v3489 = vmul.f32 %v3477, %v3484
    %v3490 = vmul.f32 %v3478, %v3484
    %v3491 = vmul.f32 %v3479, %v3484
    %v3493 = vlaneseq
    %v3494 = vshrl.u32 %v3493, 7
    %v3495 = vsub.s32 0, %v3494
    %v3496 = vrot.slane %v3401, %v3495
    %v3498 = vadd.f32 %v3486, %v3496
    %v3499 = vadd.f32 %v3487, %v3496
    %v3500 = vadd.f32 %v3488, %v3496
    %v3501 = vadd.f32 %v3489, %v3496
    %v3502 = vadd.f32 %v3490, %v3496
    %v3503 = vadd.f32 %v3491, %v3496
    %s3504 = scalar_lea.vmem [#allocation2], 128
    %v3505 = vld [vmem:[%s3504] sm:$0xff]
    %v3506 = vld [vmem:[%s3504 + $0x20] sm:$0xff]
    %v3507 = vld [vmem:[%s3504 + $0x40] sm:$0xff]
    %v3508 = vld [vmem:[%s3504 + $0x60] sm:$0xff]
    %v3509 = vld [vmem:[%s3399 + $0x4] sm:$0x1]
    %v3511 = vlaneseq
    %v3512 = vshrl.u32 %v3511, 7
    %v3513 = vsub.s32 0, %v3512
    %v3514 = vrot.slane %v3509, %v3513
    %v3517 = vsel %vm178, %v3498, 0
    %v3520 = vsel %vm178, %v3499, 0
    %v3523 = vsel %vm178, %v3500, 0
    %v3526 = vsel %vm178, %v3501, 0
    %v3529 = vsel %vm178, %v3502, 0
    %v3532 = vsel %vm178, %v3503, 0
    %3534 = vmatprep.subr.mxu0 0.0
    %3535 = vmatpush1.msra.mxu0 %v3505
    %3536 = vmatprep.subr.mxu0 0.0
    %3537 = vmatpush1.msra.mxu0 %v3506
    %3538 = vmatprep.subr.mxu0 0.0
    %3539 = vmatpush1.msra.mxu0 %v3507
    %3540 = vmatprep.subr.mxu0 0.0
    %3541 = vmatpush1.msra.mxu0 %v3508
    %3542 = vmatprep.subr.mxu0 0.0
    %3543 = vmatpush1.msra.mxu0 0.0
    %3544 = vmatprep.subr.mxu0 0.0
    %3545 = vmatpush1.msra.mxu0 0.0
    %3546 = vmatprep.subr.mxu0 0.0
    %3547 = vmatpush1.msra.mxu0 0.0
    %3548 = vmatprep.subr.mxu0 0.0
    %3549 = vmatpush1.msra.mxu0 0.0
    %3550 = vmatprep.subr.mxu0 0.0
    %3551 = vmatpush1.msra.mxu0 0.0
    %3552 = vmatprep.subr.mxu0 0.0
    %3553 = vmatpush1.msra.mxu0 0.0
    %3554 = vmatprep.subr.mxu0 0.0
    %3555 = vmatpush1.msra.mxu0 0.0
    %3556 = vmatprep.subr.mxu0 0.0
    %3557 = vmatpush1.msra.mxu0 0.0
    %3558 = vmatprep.subr.mxu0 0.0
    %3559 = vmatpush1.msra.mxu0 0.0
    %3560 = vmatprep.subr.mxu0 0.0
    %3561 = vmatpush1.msra.mxu0 0.0
    %3562 = vmatprep.subr.mxu0 0.0
    %3563 = vmatpush1.msra.mxu0 0.0
    %3564 = vmatprep.subr.mxu0 0.0
    %3565 = vmatpush1.msra.mxu0 0.0
    %3566 = vmatprep.subr.mxu0 0.0
    %3567 = vmatpush1.msra.mxu0 0.0
    %3568 = vmatprep.subr.mxu0 0.0
    %3569 = vmatpush1.msra.mxu0 0.0
    %3570 = vmatprep.subr.mxu0 0.0
    %3571 = vmatpush1.msra.mxu0 0.0
    %3572 = vmatprep.subr.mxu0 0.0
    %3573 = vmatpush1.msra.mxu0 0.0
    %3574 = vmatprep.subr.mxu0 0.0
    %3575 = vmatpush1.msra.mxu0 0.0
    %3576 = vmatprep.subr.mxu0 0.0
    %3577 = vmatpush1.msra.mxu0 0.0
    %3578 = vmatprep.subr.mxu0 0.0
    %3579 = vmatpush1.msra.mxu0 0.0
    %3580 = vmatprep.subr.mxu0 0.0
    %3581 = vmatpush1.msra.mxu0 0.0
    %3582 = vmatprep.subr.mxu0 0.0
    %3583 = vmatpush1.msra.mxu0 0.0
    %3584 = vmatprep.subr.mxu0 0.0
    %3585 = vmatpush1.msra.mxu0 0.0
    %3586 = vmatprep.subr.mxu0 0.0
    %3587 = vmatpush1.msra.mxu0 0.0
    %3588 = vmatprep.subr.mxu0 0.0
    %3589 = vmatpush1.msra.mxu0 0.0
    %3590 = vmatprep.subr.mxu0 0.0
    %3591 = vmatpush1.msra.mxu0 0.0
    %3592 = vmatprep.subr.mxu0 0.0
    %3593 = vmatpush1.msra.mxu0 0.0
    %3594 = vmatprep.subr.mxu0 0.0
    %3595 = vmatpush1.msra.mxu0 0.0
    %3596 = vmatprep.subr.mxu0 0.0
    %3597 = vmatpush1.msra.mxu0 0.0
    %3598 = vmatprep.mubr.f32.mxu0 0.0
    %3599 = vmatmul.mubr.f32.gmra.mrb[0].mxu0 %v3517
    %v3600 = vpop.f32.mrb[0].mxu0
    %v3601 = vadd.f32 %v3514, %v3600
    %v3602 = vpop.f32.mrb[0].mxu0
    %3603 = vmatprep.mubr.f32.mxu0 0.0
    %3604 = vmatmul.mubr.f32.gmra.mrb[0].mxu0 %v3520
    %v3605 = vpop.f32.mrb[0].mxu0
    %v3606 = vadd.f32 %v3514, %v3605
    %v3607 = vpop.f32.mrb[0].mxu0
    %3608 = vmatprep.mubr.f32.mxu0 0.0
    %3609 = vmatmul.mubr.f32.gmra.mrb[0].mxu0 %v3523
    %v3610 = vpop.f32.mrb[0].mxu0
    %v3611 = vadd.f32 %v3514, %v3610
    %v3612 = vpop.f32.mrb[0].mxu0
    %3613 = vmatprep.mubr.f32.mxu0 0.0
    %3614 = vmatmul.mubr.f32.gmra.mrb[0].mxu0 %v3526
    %v3615 = vpop.f32.mrb[0].mxu0
    %v3616 = vadd.f32 %v3514, %v3615
    %v3617 = vpop.f32.mrb[0].mxu0
    %3618 = vmatprep.mubr.f32.mxu0 0.0
    %3619 = vmatmul.mubr.f32.gmra.mrb[0].mxu0 %v3529
    %v3620 = vpop.f32.mrb[0].mxu0
    %v3621 = vadd.f32 %v3514, %v3620
    %v3622 = vpop.f32.mrb[0].mxu0
    %3623 = vmatprep.mubr.f32.mxu0 0.0
    %3624 = vmatmul.mubr.f32.gmra.mrb[0].mxu0 %v3532
    %v3625 = vpop.f32.mrb[0].mxu0
    %v3626 = vadd.f32 %v3514, %v3625
    %v3627 = vpop.f32.mrb[0].mxu0
    %3628 = vdwg.mxu0
    %v3629 = vld [vmem:[%s3504 + $0x8] sm:$0xff]
    %v3630 = vld [vmem:[%s3504 + $0x28] sm:$0xff]
    %v3631 = vld [vmem:[%s3504 + $0x48] sm:$0xff]
    %v3632 = vld [vmem:[%s3504 + $0x68] sm:$0xff]
    %3636 = vrot.lane.b32.xlu0 %v3601, 96
    %v3637 = vpop.permute.xlu0 %3636
    %3638 = vrot.lane.b32.xlu0 %v3606, 96
    %v3639 = vpop.permute.xlu0 %3638
    %3640 = vrot.lane.b32.xlu0 %v3611, 96
    %v3641 = vpop.permute.xlu0 %3640
    %v3642 = vsel %vm419, %v3601, 0
    %v3644 = vsel %vm419, %v3606, 0
    %v3646 = vsel %vm419, %v3611, 0
    %v3648 = vsel %vm419, %v3637, 0
    %v3650 = vsel %vm419, %v3639, 0
    %v3652 = vsel %vm419, %v3641, 0
    %3654 = vmatprep.subr.mxu0 0.0
    %3655 = vmatpush1.xpose.msra.mxu0 %v3648
    %3656 = vmatprep.subr.mxu0 0.0
    %3657 = vmatpush1.xpose.msra.mxu0 %v3650
    %3658 = vmatprep.subr.mxu0 0.0
    %3659 = vmatpush1.xpose.msra.mxu0 %v3652
    %3660 = vmatprep.subr.mxu0 0.0
    %3661 = vmatpush1.xpose.msra.mxu0 0.0
    %3662 = vmatprep.subr.mxu0 0.0
    %3663 = vmatpush1.xpose.msra.mxu0 0.0
    %3664 = vmatprep.subr.mxu0 0.0
    %3665 = vmatpush1.xpose.msra.mxu0 0.0
    %3666 = vmatprep.subr.mxu0 0.0
    %3667 = vmatpush1.xpose.msra.mxu0 0.0
    %3668 = vmatprep.subr.mxu0 0.0
    %3669 = vmatpush1.xpose.msra.mxu0 0.0
    %3670 = vmatprep.subr.mxu0 0.0
    %3671 = vmatpush1.xpose.msra.mxu0 0.0
    %3672 = vmatprep.subr.mxu0 0.0
    %3673 = vmatpush1.xpose.msra.mxu0 0.0
    %3674 = vmatprep.subr.mxu0 0.0
    %3675 = vmatpush1.xpose.msra.mxu0 0.0
    %3676 = vmatprep.subr.mxu0 0.0
    %3677 = vmatpush1.xpose.msra.mxu0 0.0
    %3678 = vmatprep.subr.mxu0 0.0
    %3679 = vmatpush1.xpose.msra.mxu0 0.0
    %3680 = vmatprep.subr.mxu0 0.0
    %3681 = vmatpush1.xpose.msra.mxu0 0.0
    %3682 = vmatprep.subr.mxu0 0.0
    %3683 = vmatpush1.xpose.msra.mxu0 0.0
    %3684 = vmatprep.subr.mxu0 0.0
    %3685 = vmatpush1.xpose.msra.mxu0 0.0
    %3686 = vmatprep.subr.mxu0 0.0
    %3687 = vmatpush1.xpose.msra.mxu0 0.0
    %3688 = vmatprep.subr.mxu0 0.0
    %3689 = vmatpush1.xpose.msra.mxu0 0.0
    %3690 = vmatprep.subr.mxu0 0.0
    %3691 = vmatpush1.xpose.msra.mxu0 0.0
    %3692 = vmatprep.subr.mxu0 0.0
    %3693 = vmatpush1.xpose.msra.mxu0 0.0
    %3694 = vmatprep.subr.mxu0 0.0
    %3695 = vmatpush1.xpose.msra.mxu0 0.0
    %3696 = vmatprep.subr.mxu0 0.0
    %3697 = vmatpush1.xpose.msra.mxu0 0.0
    %3698 = vmatprep.subr.mxu0 0.0
    %3699 = vmatpush1.xpose.msra.mxu0 0.0
    %3700 = vmatprep.subr.mxu0 0.0
    %3701 = vmatpush1.xpose.msra.mxu0 0.0
    %3702 = vmatprep.subr.mxu0 0.0
    %3703 = vmatpush1.xpose.msra.mxu0 0.0
    %3704 = vmatprep.subr.mxu0 0.0
    %3705 = vmatpush1.xpose.msra.mxu0 0.0
    %3706 = vmatprep.subr.mxu0 0.0
    %3707 = vmatpush1.xpose.msra.mxu0 0.0
    %3708 = vmatprep.subr.mxu0 0.0
    %3709 = vmatpush1.xpose.msra.mxu0 0.0
    %3710 = vmatprep.subr.mxu0 0.0
    %3711 = vmatpush1.xpose.msra.mxu0 0.0
    %3712 = vmatprep.subr.mxu0 0.0
    %3713 = vmatpush1.xpose.msra.mxu0 0.0
    %3714 = vmatprep.subr.mxu0 0.0
    %3715 = vmatpush1.xpose.msra.mxu0 0.0
    %3716 = vmatprep.subr.mxu0 0.0
    %3717 = vmatpush1.xpose.msra.mxu0 0.0
    %3718 = vmatprep.mubr.f32.mxu0 0.0
    %3719 = vmatmul.mubr.f32.gmra.mrb[0].mxu0 %v3642
    %v3720 = vpop.f32.mrb[0].mxu0
    %v3721 = vadd.f32 %v41, %v3720
    %v3722 = vpop.f32.mrb[0].mxu0
    %3723 = vmatprep.mubr.f32.mxu0 0.0
    %3724 = vmatmul.mubr.f32.gmra.mrb[0].mxu0 %v3644
    %v3725 = vpop.f32.mrb[0].mxu0
    %v3726 = vadd.f32 %v41, %v3725
    %v3727 = vpop.f32.mrb[0].mxu0
    %3728 = vmatprep.mubr.f32.mxu0 0.0
    %3729 = vmatmul.mubr.f32.gmra.mrb[0].mxu0 %v3646
    %v3730 = vpop.f32.mrb[0].mxu0
    %v3731 = vadd.f32 %v41, %v3730
    %v3732 = vpop.f32.mrb[0].mxu0
    %3733 = vdwg.mxu0
    %v3734 = vsel %vm512, %v3721, -inf
    %3735 = vmax.xlane.f32.xlu0 %v3734
    %v3736 = vpop.xlane.xlu0 %3735
    %v3737 = vsel %vm512, %v3726, -inf
    %3738 = vmax.xlane.f32.xlu0 %v3737
    %v3739 = vpop.xlane.xlu0 %3738
    %v3740 = vsel %vm512, %v3731, -inf
    %3741 = vmax.xlane.f32.xlu0 %v3740
    %v3742 = vpop.xlane.xlu0 %3741
    %v3743 = vsub.f32 %v3721, %v3736
    %v3744 = vsub.f32 %v3726, %v3739
    %v3745 = vsub.f32 %v3731, %v3742
    %v3746 = vmul.f32 %v3743, 1.442695
    %v3747 = vpow.pop %v3746
    %v3748 = vmul.f32 %v3744, 1.442695
    %v3749 = vpow.pop %v3748
    %v3750 = vmul.f32 %v3745, 1.442695
    %v3751 = vpow.pop %v3750
    %v3752 = vsel %vm512, %v3747, 0.0
    %3753 = vadd.xlane.f32.xlu0 %v3752
    %v3754 = vpop.xlane.xlu0 %3753
    %v3755 = vsel %vm512, %v3749, 0.0
    %3756 = vadd.xlane.f32.xlu0 %v3755
    %v3757 = vpop.xlane.xlu0 %3756
    %v3758 = vsel %vm512, %v3751, 0.0
    %3759 = vadd.xlane.f32.xlu0 %v3758
    %v3760 = vpop.xlane.xlu0 %3759
    %v3761 = vrcp.pop %v3754
    %v3762 = vrcp.pop %v3757
    %v3763 = vrcp.pop %v3760
    %v3764 = vmul.f32 %v3747, %v3761
    %v3765 = vmul.f32 %v3749, %v3762
    %v3766 = vmul.f32 %v3751, %v3763
    %3767 = vrot.lane.b32.xlu0 %v3601, 64
    %v3768 = vpop.permute.xlu0 %3767
    %3769 = vrot.lane.b32.xlu0 %v3606, 64
    %v3770 = vpop.permute.xlu0 %3769
    %3771 = vrot.lane.b32.xlu0 %v3611, 64
    %v3772 = vpop.permute.xlu0 %3771
    %v3777 = vsel %vm512, %v3764, 0
    %v3780 = vsel %vm512, %v3765, 0
    %v3783 = vsel %vm512, %v3766, 0
    %3785 = vmatprep.subr.mxu0 0.0
    %3786 = vmatpush1.msra.mxu0 %v3768
    %3787 = vmatprep.subr.mxu0 0.0
    %3788 = vmatpush1.msra.mxu0 %v3770
    %3789 = vmatprep.subr.mxu0 0.0
    %3790 = vmatpush1.msra.mxu0 %v3772
    %3791 = vmatprep.subr.mxu0 0.0
    %3792 = vmatpush1.msra.mxu0 0.0
    %3793 = vmatprep.subr.mxu0 0.0
    %3794 = vmatpush1.msra.mxu0 0.0
    %3795 = vmatprep.subr.mxu0 0.0
    %3796 = vmatpush1.msra.mxu0 0.0
    %3797 = vmatprep.subr.mxu0 0.0
    %3798 = vmatpush1.msra.mxu0 0.0
    %3799 = vmatprep.subr.mxu0 0.0
    %3800 = vmatpush1.msra.mxu0 0.0
    %3801 = vmatprep.subr.mxu0 0.0
    %3802 = vmatpush1.msra.mxu0 0.0
    %3803 = vmatprep.subr.mxu0 0.0
    %3804 = vmatpush1.msra.mxu0 0.0
    %3805 = vmatprep.subr.mxu0 0.0
    %3806 = vmatpush1.msra.mxu0 0.0
    %3807 = vmatprep.subr.mxu0 0.0
    %3808 = vmatpush1.msra.mxu0 0.0
    %3809 = vmatprep.subr.mxu0 0.0
    %3810 = vmatpush1.msra.mxu0 0.0
    %3811 = vmatprep.subr.mxu0 0.0
    %3812 = vmatpush1.msra.mxu0 0.0
    %3813 = vmatprep.subr.mxu0 0.0
    %3814 = vmatpush1.msra.mxu0 0.0
    %3815 = vmatprep.subr.mxu0 0.0
    %3816 = vmatpush1.msra.mxu0 0.0
    %3817 = vmatprep.subr.mxu0 0.0
    %3818 = vmatpush1.msra.mxu0 0.0
    %3819 = vmatprep.subr.mxu0 0.0
    %3820 = vmatpush1.msra.mxu0 0.0
    %3821 = vmatprep.subr.mxu0 0.0
    %3822 = vmatpush1.msra.mxu0 0.0
    %3823 = vmatprep.subr.mxu0 0.0
    %3824 = vmatpush1.msra.mxu0 0.0
    %3825 = vmatprep.subr.mxu0 0.0
    %3826 = vmatpush1.msra.mxu0 0.0
    %3827 = vmatprep.subr.mxu0 0.0
    %3828 = vmatpush1.msra.mxu0 0.0
    %3829 = vmatprep.subr.mxu0 0.0
    %3830 = vmatpush1.msra.mxu0 0.0
    %3831 = vmatprep.subr.mxu0 0.0
    %3832 = vmatpush1.msra.mxu0 0.0
    %3833 = vmatprep.subr.mxu0 0.0
    %3834 = vmatpush1.msra.mxu0 0.0
    %3835 = vmatprep.subr.mxu0 0.0
    %3836 = vmatpush1.msra.mxu0 0.0
    %3837 = vmatprep.subr.mxu0 0.0
    %3838 = vmatpush1.msra.mxu0 0.0
    %3839 = vmatprep.subr.mxu0 0.0
    %3840 = vmatpush1.msra.mxu0 0.0
    %3841 = vmatprep.subr.mxu0 0.0
    %3842 = vmatpush1.msra.mxu0 0.0
    %3843 = vmatprep.subr.mxu0 0.0
    %3844 = vmatpush1.msra.mxu0 0.0
    %3845 = vmatprep.subr.mxu0 0.0
    %3846 = vmatpush1.msra.mxu0 0.0
    %3847 = vmatprep.subr.mxu0 0.0
    %3848 = vmatpush1.msra.mxu0 0.0
    %3849 = vmatprep.mubr.f32.mxu0 0.0
    %3850 = vmatmul.mubr.f32.gmra.mrb[0].mxu0 %v3777
    %v3851 = vpop.f32.mrb[0].mxu0
    %v3852 = vadd.f32 0.0, %v3851
    %v3853 = vpop.f32.mrb[0].mxu0
    %3854 = vmatprep.mubr.f32.mxu0 0.0
    %3855 = vmatmul.mubr.f32.gmra.mrb[0].mxu0 %v3780
    %v3856 = vpop.f32.mrb[0].mxu0
    %v3857 = vadd.f32 0.0, %v3856
    %v3858 = vpop.f32.mrb[0].mxu0
    %3859 = vmatprep.mubr.f32.mxu0 0.0
    %3860 = vmatmul.mubr.f32.gmra.mrb[0].mxu0 %v3783
    %v3861 = vpop.f32.mrb[0].mxu0
    %v3862 = vadd.f32 0.0, %v3861
    %v3863 = vpop.f32.mrb[0].mxu0
    %3864 = vdwg.mxu0
    %3865 = vrot.lane.b32.xlu0 %v3601, 120
    %v3866 = vpop.permute.xlu0 %3865
    %3867 = vrot.lane.b32.xlu0 %v3606, 120
    %v3868 = vpop.permute.xlu0 %3867
    %3869 = vrot.lane.b32.xlu0 %v3611, 120
    %v3870 = vpop.permute.xlu0 %3869
    %3871 = vrot.lane.b32.xlu0 %v3601, 88
    %v3872 = vpop.permute.xlu0 %3871
    %3873 = vrot.lane.b32.xlu0 %v3606, 88
    %v3874 = vpop.permute.xlu0 %3873
    %3875 = vrot.lane.b32.xlu0 %v3611, 88
    %v3876 = vpop.permute.xlu0 %3875
    %v3877 = vsel %vm419, %v3866, 0
    %v3879 = vsel %vm419, %v3868, 0
    %v3881 = vsel %vm419, %v3870, 0
    %v3883 = vsel %vm419, %v3872, 0
    %v3885 = vsel %vm419, %v3874, 0
    %v3887 = vsel %vm419, %v3876, 0
    %3889 = vmatprep.subr.mxu0 0.0
    %3890 = vmatpush1.xpose.msra.mxu0 %v3883
    %3891 = vmatprep.subr.mxu0 0.0
    %3892 = vmatpush1.xpose.msra.mxu0 %v3885
    %3893 = vmatprep.subr.mxu0 0.0
    %3894 = vmatpush1.xpose.msra.mxu0 %v3887
    %3895 = vmatprep.subr.mxu0 0.0
    %3896 = vmatpush1.xpose.msra.mxu0 0.0
    %3897 = vmatprep.subr.mxu0 0.0
    %3898 = vmatpush1.xpose.msra.mxu0 0.0
    %3899 = vmatprep.subr.mxu0 0.0
    %3900 = vmatpush1.xpose.msra.mxu0 0.0
    %3901 = vmatprep.subr.mxu0 0.0
    %3902 = vmatpush1.xpose.msra.mxu0 0.0
    %3903 = vmatprep.subr.mxu0 0.0
    %3904 = vmatpush1.xpose.msra.mxu0 0.0
    %3905 = vmatprep.subr.mxu0 0.0
    %3906 = vmatpush1.xpose.msra.mxu0 0.0
    %3907 = vmatprep.subr.mxu0 0.0
    %3908 = vmatpush1.xpose.msra.mxu0 0.0
    %3909 = vmatprep.subr.mxu0 0.0
    %3910 = vmatpush1.xpose.msra.mxu0 0.0
    %3911 = vmatprep.subr.mxu0 0.0
    %3912 = vmatpush1.xpose.msra.mxu0 0.0
    %3913 = vmatprep.subr.mxu0 0.0
    %3914 = vmatpush1.xpose.msra.mxu0 0.0
    %3915 = vmatprep.subr.mxu0 0.0
    %3916 = vmatpush1.xpose.msra.mxu0 0.0
    %3917 = vmatprep.subr.mxu0 0.0
    %3918 = vmatpush1.xpose.msra.mxu0 0.0
    %3919 = vmatprep.subr.mxu0 0.0
    %3920 = vmatpush1.xpose.msra.mxu0 0.0
    %3921 = vmatprep.subr.mxu0 0.0
    %3922 = vmatpush1.xpose.msra.mxu0 0.0
    %3923 = vmatprep.subr.mxu0 0.0
    %3924 = vmatpush1.xpose.msra.mxu0 0.0
    %3925 = vmatprep.subr.mxu0 0.0
    %3926 = vmatpush1.xpose.msra.mxu0 0.0
    %3927 = vmatprep.subr.mxu0 0.0
    %3928 = vmatpush1.xpose.msra.mxu0 0.0
    %3929 = vmatprep.subr.mxu0 0.0
    %3930 = vmatpush1.xpose.msra.mxu0 0.0
    %3931 = vmatprep.subr.mxu0 0.0
    %3932 = vmatpush1.xpose.msra.mxu0 0.0
    %3933 = vmatprep.subr.mxu0 0.0
    %3934 = vmatpush1.xpose.msra.mxu0 0.0
    %3935 = vmatprep.subr.mxu0 0.0
    %3936 = vmatpush1.xpose.msra.mxu0 0.0
    %3937 = vmatprep.subr.mxu0 0.0
    %3938 = vmatpush1.xpose.msra.mxu0 0.0
    %3939 = vmatprep.subr.mxu0 0.0
    %3940 = vmatpush1.xpose.msra.mxu0 0.0
    %3941 = vmatprep.subr.mxu0 0.0
    %3942 = vmatpush1.xpose.msra.mxu0 0.0
    %3943 = vmatprep.subr.mxu0 0.0
    %3944 = vmatpush1.xpose.msra.mxu0 0.0
    %3945 = vmatprep.subr.mxu0 0.0
    %3946 = vmatpush1.xpose.msra.mxu0 0.0
    %3947 = vmatprep.subr.mxu0 0.0
    %3948 = vmatpush1.xpose.msra.mxu0 0.0
    %3949 = vmatprep.subr.mxu0 0.0
    %3950 = vmatpush1.xpose.msra.mxu0 0.0
    %3951 = vmatprep.subr.mxu0 0.0
    %3952 = vmatpush1.xpose.msra.mxu0 0.0
    %3953 = vmatprep.mubr.f32.mxu0 0.0
    %3954 = vmatmul.mubr.f32.gmra.mrb[0].mxu0 %v3877
    %v3955 = vpop.f32.mrb[0].mxu0
    %v3956 = vadd.f32 %v41, %v3955
    %v3957 = vpop.f32.mrb[0].mxu0
    %3958 = vmatprep.mubr.f32.mxu0 0.0
    %3959 = vmatmul.mubr.f32.gmra.mrb[0].mxu0 %v3879
    %v3960 = vpop.f32.mrb[0].mxu0
    %v3961 = vadd.f32 %v41, %v3960
    %v3962 = vpop.f32.mrb[0].mxu0
    %3963 = vmatprep.mubr.f32.mxu0 0.0
    %3964 = vmatmul.mubr.f32.gmra.mrb[0].mxu0 %v3881
    %v3965 = vpop.f32.mrb[0].mxu0
    %v3966 = vadd.f32 %v41, %v3965
    %v3967 = vpop.f32.mrb[0].mxu0
    %3968 = vdwg.mxu0
    %v3969 = vsel %vm512, %v3956, -inf
    %3970 = vmax.xlane.f32.xlu0 %v3969
    %v3971 = vpop.xlane.xlu0 %3970
    %v3972 = vsel %vm512, %v3961, -inf
    %3973 = vmax.xlane.f32.xlu0 %v3972
    %v3974 = vpop.xlane.xlu0 %3973
    %v3975 = vsel %vm512, %v3966, -inf
    %3976 = vmax.xlane.f32.xlu0 %v3975
    %v3977 = vpop.xlane.xlu0 %3976
    %v3978 = vsub.f32 %v3956, %v3971
    %v3979 = vsub.f32 %v3961, %v3974
    %v3980 = vsub.f32 %v3966, %v3977
    %v3981 = vmul.f32 %v3978, 1.442695
    %v3982 = vpow.pop %v3981
    %v3983 = vmul.f32 %v3979, 1.442695
    %v3984 = vpow.pop %v3983
    %v3985 = vmul.f32 %v3980, 1.442695
    %v3986 = vpow.pop %v3985
    %v3987 = vsel %vm512, %v3982, 0.0
    %3988 = vadd.xlane.f32.xlu0 %v3987
    %v3989 = vpop.xlane.xlu0 %3988
    %v3990 = vsel %vm512, %v3984, 0.0
    %3991 = vadd.xlane.f32.xlu0 %v3990
    %v3992 = vpop.xlane.xlu0 %3991
    %v3993 = vsel %vm512, %v3986, 0.0
    %3994 = vadd.xlane.f32.xlu0 %v3993
    %v3995 = vpop.xlane.xlu0 %3994
    %v3996 = vrcp.pop %v3989
    %v3997 = vrcp.pop %v3992
    %v3998 = vrcp.pop %v3995
    %v3999 = vmul.f32 %v3982, %v3996
    %v4000 = vmul.f32 %v3984, %v3997
    %v4001 = vmul.f32 %v3986, %v3998
    %4002 = vrot.lane.b32.xlu0 %v3601, 56
    %v4003 = vpop.permute.xlu0 %4002
    %4004 = vrot.lane.b32.xlu0 %v3606, 56
    %v4005 = vpop.permute.xlu0 %4004
    %4006 = vrot.lane.b32.xlu0 %v3611, 56
    %v4007 = vpop.permute.xlu0 %4006
    %v4012 = vsel %vm512, %v3999, 0
    %v4015 = vsel %vm512, %v4000, 0
    %v4018 = vsel %vm512, %v4001, 0
    %4020 = vmatprep.subr.mxu0 0.0
    %4021 = vmatpush1.msra.mxu0 %v4003
    %4022 = vmatprep.subr.mxu0 0.0
    %4023 = vmatpush1.msra.mxu0 %v4005
    %4024 = vmatprep.subr.mxu0 0.0
    %4025 = vmatpush1.msra.mxu0 %v4007
    %4026 = vmatprep.subr.mxu0 0.0
    %4027 = vmatpush1.msra.mxu0 0.0
    %4028 = vmatprep.subr.mxu0 0.0
    %4029 = vmatpush1.msra.mxu0 0.0
    %4030 = vmatprep.subr.mxu0 0.0
    %4031 = vmatpush1.msra.mxu0 0.0
    %4032 = vmatprep.subr.mxu0 0.0
    %4033 = vmatpush1.msra.mxu0 0.0
    %4034 = vmatprep.subr.mxu0 0.0
    %4035 = vmatpush1.msra.mxu0 0.0
    %4036 = vmatprep.subr.mxu0 0.0
    %4037 = vmatpush1.msra.mxu0 0.0
    %4038 = vmatprep.subr.mxu0 0.0
    %4039 = vmatpush1.msra.mxu0 0.0
    %4040 = vmatprep.subr.mxu0 0.0
    %4041 = vmatpush1.msra.mxu0 0.0
    %4042 = vmatprep.subr.mxu0 0.0
    %4043 = vmatpush1.msra.mxu0 0.0
    %4044 = vmatprep.subr.mxu0 0.0
    %4045 = vmatpush1.msra.mxu0 0.0
    %4046 = vmatprep.subr.mxu0 0.0
    %4047 = vmatpush1.msra.mxu0 0.0
    %4048 = vmatprep.subr.mxu0 0.0
    %4049 = vmatpush1.msra.mxu0 0.0
    %4050 = vmatprep.subr.mxu0 0.0
    %4051 = vmatpush1.msra.mxu0 0.0
    %4052 = vmatprep.subr.mxu0 0.0
    %4053 = vmatpush1.msra.mxu0 0.0
    %4054 = vmatprep.subr.mxu0 0.0
    %4055 = vmatpush1.msra.mxu0 0.0
    %4056 = vmatprep.subr.mxu0 0.0
    %4057 = vmatpush1.msra.mxu0 0.0
    %4058 = vmatprep.subr.mxu0 0.0
    %4059 = vmatpush1.msra.mxu0 0.0
    %4060 = vmatprep.subr.mxu0 0.0
    %4061 = vmatpush1.msra.mxu0 0.0
    %4062 = vmatprep.subr.mxu0 0.0
    %4063 = vmatpush1.msra.mxu0 0.0
    %4064 = vmatprep.subr.mxu0 0.0
    %4065 = vmatpush1.msra.mxu0 0.0
    %4066 = vmatprep.subr.mxu0 0.0
    %4067 = vmatpush1.msra.mxu0 0.0
    %4068 = vmatprep.subr.mxu0 0.0
    %4069 = vmatpush1.msra.mxu0 0.0
    %4070 = vmatprep.subr.mxu0 0.0
    %4071 = vmatpush1.msra.mxu0 0.0
    %4072 = vmatprep.subr.mxu0 0.0
    %4073 = vmatpush1.msra.mxu0 0.0
    %4074 = vmatprep.subr.mxu0 0.0
    %4075 = vmatpush1.msra.mxu0 0.0
    %4076 = vmatprep.subr.mxu0 0.0
    %4077 = vmatpush1.msra.mxu0 0.0
    %4078 = vmatprep.subr.mxu0 0.0
    %4079 = vmatpush1.msra.mxu0 0.0
    %4080 = vmatprep.subr.mxu0 0.0
    %4081 = vmatpush1.msra.mxu0 0.0
    %4082 = vmatprep.subr.mxu0 0.0
    %4083 = vmatpush1.msra.mxu0 0.0
    %4084 = vmatprep.mubr.f32.mxu0 0.0
    %4085 = vmatmul.mubr.f32.gmra.mrb[0].mxu0 %v4012
    %v4086 = vpop.f32.mrb[0].mxu0
    %v4087 = vadd.f32 0.0, %v4086
    %v4088 = vpop.f32.mrb[0].mxu0
    %4089 = vmatprep.mubr.f32.mxu0 0.0
    %4090 = vmatmul.mubr.f32.gmra.mrb[0].mxu0 %v4015
    %v4091 = vpop.f32.mrb[0].mxu0
    %v4092 = vadd.f32 0.0, %v4091
    %v4093 = vpop.f32.mrb[0].mxu0
    %4094 = vmatprep.mubr.f32.mxu0 0.0
    %4095 = vmatmul.mubr.f32.gmra.mrb[0].mxu0 %v4018
    %v4096 = vpop.f32.mrb[0].mxu0
    %v4097 = vadd.f32 0.0, %v4096
    %v4098 = vpop.f32.mrb[0].mxu0
    %4099 = vdwg.mxu0
    %v4101 = vsel %vm419, %v4087, 0
    %v4104 = vsel %vm419, %v4092, 0
    %v4107 = vsel %vm419, %v4097, 0
    %4109 = vmatprep.subr.mxu0 0.0
    %4110 = vmatpush1.msra.mxu0 %v3630
    %4111 = vmatprep.subr.mxu0 0.0
    %4112 = vmatpush1.msra.mxu0 0.0
    %4113 = vmatprep.subr.mxu0 0.0
    %4114 = vmatpush1.msra.mxu0 0.0
    %4115 = vmatprep.subr.mxu0 0.0
    %4116 = vmatpush1.msra.mxu0 0.0
    %4117 = vmatprep.subr.mxu0 0.0
    %4118 = vmatpush1.msra.mxu0 0.0
    %4119 = vmatprep.subr.mxu0 0.0
    %4120 = vmatpush1.msra.mxu0 0.0
    %4121 = vmatprep.subr.mxu0 0.0
    %4122 = vmatpush1.msra.mxu0 0.0
    %4123 = vmatprep.subr.mxu0 0.0
    %4124 = vmatpush1.msra.mxu0 0.0
    %4125 = vmatprep.subr.mxu0 0.0
    %4126 = vmatpush1.msra.mxu0 0.0
    %4127 = vmatprep.subr.mxu0 0.0
    %4128 = vmatpush1.msra.mxu0 0.0
    %4129 = vmatprep.subr.mxu0 0.0
    %4130 = vmatpush1.msra.mxu0 0.0
    %4131 = vmatprep.subr.mxu0 0.0
    %4132 = vmatpush1.msra.mxu0 0.0
    %4133 = vmatprep.subr.mxu0 0.0
    %4134 = vmatpush1.msra.mxu0 0.0
    %4135 = vmatprep.subr.mxu0 0.0
    %4136 = vmatpush1.msra.mxu0 0.0
    %4137 = vmatprep.subr.mxu0 0.0
    %4138 = vmatpush1.msra.mxu0 0.0
    %4139 = vmatprep.subr.mxu0 0.0
    %4140 = vmatpush1.msra.mxu0 0.0
    %4141 = vmatprep.subr.mxu0 0.0
    %4142 = vmatpush1.msra.mxu0 0.0
    %4143 = vmatprep.subr.mxu0 0.0
    %4144 = vmatpush1.msra.mxu0 0.0
    %4145 = vmatprep.subr.mxu0 0.0
    %4146 = vmatpush1.msra.mxu0 0.0
    %4147 = vmatprep.subr.mxu0 0.0
    %4148 = vmatpush1.msra.mxu0 0.0
    %4149 = vmatprep.subr.mxu0 0.0
    %4150 = vmatpush1.msra.mxu0 0.0
    %4151 = vmatprep.subr.mxu0 0.0
    %4152 = vmatpush1.msra.mxu0 0.0
    %4153 = vmatprep.subr.mxu0 0.0
    %4154 = vmatpush1.msra.mxu0 0.0
    %4155 = vmatprep.subr.mxu0 0.0
    %4156 = vmatpush1.msra.mxu0 0.0
    %4157 = vmatprep.subr.mxu0 0.0
    %4158 = vmatpush1.msra.mxu0 0.0
    %4159 = vmatprep.subr.mxu0 0.0
    %4160 = vmatpush1.msra.mxu0 0.0
    %4161 = vmatprep.subr.mxu0 0.0
    %4162 = vmatpush1.msra.mxu0 0.0
    %4163 = vmatprep.subr.mxu0 0.0
    %4164 = vmatpush1.msra.mxu0 0.0
    %4165 = vmatprep.subr.mxu0 0.0
    %4166 = vmatpush1.msra.mxu0 0.0
    %4167 = vmatprep.subr.mxu0 0.0
    %4168 = vmatpush1.msra.mxu0 0.0
    %4169 = vmatprep.subr.mxu0 0.0
    %4170 = vmatpush1.msra.mxu0 0.0
    %4171 = vmatprep.subr.mxu0 0.0
    %4172 = vmatpush1.msra.mxu0 0.0
    %4173 = vmatprep.mubr.f32.mxu0 0.0
    %4174 = vmatmul.mubr.f32.gmra.mrb[0].mxu0 %v4101
    %v4175 = vpop.f32.mrb[0].mxu0
    %v4176 = vadd.f32 0.0, %v4175
    %v4177 = vpop.f32.mrb[0].mxu0
    %4178 = vmatprep.mubr.f32.mxu0 0.0
    %4179 = vmatmul.mubr.f32.gmra.mrb[0].mxu0 %v4104
    %v4180 = vpop.f32.mrb[0].mxu0
    %v4181 = vadd.f32 0.0, %v4180
    %v4182 = vpop.f32.mrb[0].mxu0
    %4183 = vmatprep.mubr.f32.mxu0 0.0
    %4184 = vmatmul.mubr.f32.gmra.mrb[0].mxu0 %v4107
    %v4185 = vpop.f32.mrb[0].mxu0
    %v4186 = vadd.f32 0.0, %v4185
    %v4187 = vpop.f32.mrb[0].mxu0
    %4188 = vdwg.mxu0
    %v4190 = vsel %vm419, %v3852, 0
    %v4193 = vsel %vm419, %v3857, 0
    %v4196 = vsel %vm419, %v3862, 0
    %4198 = vmatprep.subr.mxu0 0.0
    %4199 = vmatpush1.msra.mxu0 %v3629
    %4200 = vmatprep.subr.mxu0 0.0
    %4201 = vmatpush1.msra.mxu0 0.0
    %4202 = vmatprep.subr.mxu0 0.0
    %4203 = vmatpush1.msra.mxu0 0.0
    %4204 = vmatprep.subr.mxu0 0.0
    %4205 = vmatpush1.msra.mxu0 0.0
    %4206 = vmatprep.subr.mxu0 0.0
    %4207 = vmatpush1.msra.mxu0 0.0
    %4208 = vmatprep.subr.mxu0 0.0
    %4209 = vmatpush1.msra.mxu0 0.0
    %4210 = vmatprep.subr.mxu0 0.0
    %4211 = vmatpush1.msra.mxu0 0.0
    %4212 = vmatprep.subr.mxu0 0.0
    %4213 = vmatpush1.msra.mxu0 0.0
    %4214 = vmatprep.subr.mxu0 0.0
    %4215 = vmatpush1.msra.mxu0 0.0
    %4216 = vmatprep.subr.mxu0 0.0
    %4217 = vmatpush1.msra.mxu0 0.0
    %4218 = vmatprep.subr.mxu0 0.0
    %4219 = vmatpush1.msra.mxu0 0.0
    %4220 = vmatprep.subr.mxu0 0.0
    %4221 = vmatpush1.msra.mxu0 0.0
    %4222 = vmatprep.subr.mxu0 0.0
    %4223 = vmatpush1.msra.mxu0 0.0
    %4224 = vmatprep.subr.mxu0 0.0
    %4225 = vmatpush1.msra.mxu0 0.0
    %4226 = vmatprep.subr.mxu0 0.0
    %4227 = vmatpush1.msra.mxu0 0.0
    %4228 = vmatprep.subr.mxu0 0.0
    %4229 = vmatpush1.msra.mxu0 0.0
    %4230 = vmatprep.subr.mxu0 0.0
    %4231 = vmatpush1.msra.mxu0 0.0
    %4232 = vmatprep.subr.mxu0 0.0
    %4233 = vmatpush1.msra.mxu0 0.0
    %4234 = vmatprep.subr.mxu0 0.0
    %4235 = vmatpush1.msra.mxu0 0.0
    %4236 = vmatprep.subr.mxu0 0.0
    %4237 = vmatpush1.msra.mxu0 0.0
    %4238 = vmatprep.subr.mxu0 0.0
    %4239 = vmatpush1.msra.mxu0 0.0
    %4240 = vmatprep.subr.mxu0 0.0
    %4241 = vmatpush1.msra.mxu0 0.0
    %4242 = vmatprep.subr.mxu0 0.0
    %4243 = vmatpush1.msra.mxu0 0.0
    %4244 = vmatprep.subr.mxu0 0.0
    %4245 = vmatpush1.msra.mxu0 0.0
    %4246 = vmatprep.subr.mxu0 0.0
    %4247 = vmatpush1.msra.mxu0 0.0
    %4248 = vmatprep.subr.mxu0 0.0
    %4249 = vmatpush1.msra.mxu0 0.0
    %4250 = vmatprep.subr.mxu0 0.0
    %4251 = vmatpush1.msra.mxu0 0.0
    %4252 = vmatprep.subr.mxu0 0.0
    %4253 = vmatpush1.msra.mxu0 0.0
    %4254 = vmatprep.subr.mxu0 0.0
    %4255 = vmatpush1.msra.mxu0 0.0
    %4256 = vmatprep.subr.mxu0 0.0
    %4257 = vmatpush1.msra.mxu0 0.0
    %4258 = vmatprep.subr.mxu0 0.0
    %4259 = vmatpush1.msra.mxu0 0.0
    %4260 = vmatprep.subr.mxu0 0.0
    %4261 = vmatpush1.msra.mxu0 0.0
    %4262 = vmatprep.mubr.f32.mxu0 0.0
    %4263 = vmatmul.mubr.f32.gmra.mrb[0].mxu0 %v4190
    %v4264 = vpop.f32.mrb[0].mxu0
    %v4265 = vadd.f32 %v4176, %v4264
    %v4266 = vpop.f32.mrb[0].mxu0
    %4267 = vmatprep.mubr.f32.mxu0 0.0
    %4268 = vmatmul.mubr.f32.gmra.mrb[0].mxu0 %v4193
    %v4269 = vpop.f32.mrb[0].mxu0
    %v4270 = vadd.f32 %v4181, %v4269
    %v4271 = vpop.f32.mrb[0].mxu0
    %4272 = vmatprep.mubr.f32.mxu0 0.0
    %4273 = vmatmul.mubr.f32.gmra.mrb[0].mxu0 %v4196
    %v4274 = vpop.f32.mrb[0].mxu0
    %v4275 = vadd.f32 %v4186, %v4274
    %v4276 = vpop.f32.mrb[0].mxu0
    %4277 = vdwg.mxu0
    %4278 = vrot.lane.b32.xlu0 %v3601, 112
    %v4279 = vpop.permute.xlu0 %4278
    %4280 = vrot.lane.b32.xlu0 %v3606, 112
    %v4281 = vpop.permute.xlu0 %4280
    %4282 = vrot.lane.b32.xlu0 %v3611, 112
    %v4283 = vpop.permute.xlu0 %4282
    %4284 = vrot.lane.b32.xlu0 %v3601, 80
    %v4285 = vpop.permute.xlu0 %4284
    %4286 = vrot.lane.b32.xlu0 %v3606, 80
    %v4287 = vpop.permute.xlu0 %4286
    %4288 = vrot.lane.b32.xlu0 %v3611, 80
    %v4289 = vpop.permute.xlu0 %4288
    %v4290 = vsel %vm419, %v4279, 0
    %v4292 = vsel %vm419, %v4281, 0
    %v4294 = vsel %vm419, %v4283, 0
    %v4296 = vsel %vm419, %v4285, 0
    %v4298 = vsel %vm419, %v4287, 0
    %v4300 = vsel %vm419, %v4289, 0
    %4302 = vmatprep.subr.mxu0 0.0
    %4303 = vmatpush1.xpose.msra.mxu0 %v4296
    %4304 = vmatprep.subr.mxu0 0.0
    %4305 = vmatpush1.xpose.msra.mxu0 %v4298
    %4306 = vmatprep.subr.mxu0 0.0
    %4307 = vmatpush1.xpose.msra.mxu0 %v4300
    %4308 = vmatprep.subr.mxu0 0.0
    %4309 = vmatpush1.xpose.msra.mxu0 0.0
    %4310 = vmatprep.subr.mxu0 0.0
    %4311 = vmatpush1.xpose.msra.mxu0 0.0
    %4312 = vmatprep.subr.mxu0 0.0
    %4313 = vmatpush1.xpose.msra.mxu0 0.0
    %4314 = vmatprep.subr.mxu0 0.0
    %4315 = vmatpush1.xpose.msra.mxu0 0.0
    %4316 = vmatprep.subr.mxu0 0.0
    %4317 = vmatpush1.xpose.msra.mxu0 0.0
    %4318 = vmatprep.subr.mxu0 0.0
    %4319 = vmatpush1.xpose.msra.mxu0 0.0
    %4320 = vmatprep.subr.mxu0 0.0
    %4321 = vmatpush1.xpose.msra.mxu0 0.0
    %4322 = vmatprep.subr.mxu0 0.0
    %4323 = vmatpush1.xpose.msra.mxu0 0.0
    %4324 = vmatprep.subr.mxu0 0.0
    %4325 = vmatpush1.xpose.msra.mxu0 0.0
    %4326 = vmatprep.subr.mxu0 0.0
    %4327 = vmatpush1.xpose.msra.mxu0 0.0
    %4328 = vmatprep.subr.mxu0 0.0
    %4329 = vmatpush1.xpose.msra.mxu0 0.0
    %4330 = vmatprep.subr.mxu0 0.0
    %4331 = vmatpush1.xpose.msra.mxu0 0.0
    %4332 = vmatprep.subr.mxu0 0.0
    %4333 = vmatpush1.xpose.msra.mxu0 0.0
    %4334 = vmatprep.subr.mxu0 0.0
    %4335 = vmatpush1.xpose.msra.mxu0 0.0
    %4336 = vmatprep.subr.mxu0 0.0
    %4337 = vmatpush1.xpose.msra.mxu0 0.0
    %4338 = vmatprep.subr.mxu0 0.0
    %4339 = vmatpush1.xpose.msra.mxu0 0.0
    %4340 = vmatprep.subr.mxu0 0.0
    %4341 = vmatpush1.xpose.msra.mxu0 0.0
    %4342 = vmatprep.subr.mxu0 0.0
    %4343 = vmatpush1.xpose.msra.mxu0 0.0
    %4344 = vmatprep.subr.mxu0 0.0
    %4345 = vmatpush1.xpose.msra.mxu0 0.0
    %4346 = vmatprep.subr.mxu0 0.0
    %4347 = vmatpush1.xpose.msra.mxu0 0.0
    %4348 = vmatprep.subr.mxu0 0.0
    %4349 = vmatpush1.xpose.msra.mxu0 0.0
    %4350 = vmatprep.subr.mxu0 0.0
    %4351 = vmatpush1.xpose.msra.mxu0 0.0
    %4352 = vmatprep.subr.mxu0 0.0
    %4353 = vmatpush1.xpose.msra.mxu0 0.0
    %4354 = vmatprep.subr.mxu0 0.0
    %4355 = vmatpush1.xpose.msra.mxu0 0.0
    %4356 = vmatprep.subr.mxu0 0.0
    %4357 = vmatpush1.xpose.msra.mxu0 0.0
    %4358 = vmatprep.subr.mxu0 0.0
    %4359 = vmatpush1.xpose.msra.mxu0 0.0
    %4360 = vmatprep.subr.mxu0 0.0
    %4361 = vmatpush1.xpose.msra.mxu0 0.0
    %4362 = vmatprep.subr.mxu0 0.0
    %4363 = vmatpush1.xpose.msra.mxu0 0.0
    %4364 = vmatprep.subr.mxu0 0.0
    %4365 = vmatpush1.xpose.msra.mxu0 0.0
    %4366 = vmatprep.mubr.f32.mxu0 0.0
    %4367 = vmatmul.mubr.f32.gmra.mrb[0].mxu0 %v4290
    %v4368 = vpop.f32.mrb[0].mxu0
    %v4369 = vadd.f32 %v41, %v4368
    %v4370 = vpop.f32.mrb[0].mxu0
    %4371 = vmatprep.mubr.f32.mxu0 0.0
    %4372 = vmatmul.mubr.f32.gmra.mrb[0].mxu0 %v4292
    %v4373 = vpop.f32.mrb[0].mxu0
    %v4374 = vadd.f32 %v41, %v4373
    %v4375 = vpop.f32.mrb[0].mxu0
    %4376 = vmatprep.mubr.f32.mxu0 0.0
    %4377 = vmatmul.mubr.f32.gmra.mrb[0].mxu0 %v4294
    %v4378 = vpop.f32.mrb[0].mxu0
    %v4379 = vadd.f32 %v41, %v4378
    %v4380 = vpop.f32.mrb[0].mxu0
    %4381 = vdwg.mxu0
    %v4382 = vsel %vm512, %v4369, -inf
    %4383 = vmax.xlane.f32.xlu0 %v4382
    %v4384 = vpop.xlane.xlu0 %4383
    %v4385 = vsel %vm512, %v4374, -inf
    %4386 = vmax.xlane.f32.xlu0 %v4385
    %v4387 = vpop.xlane.xlu0 %4386
    %v4388 = vsel %vm512, %v4379, -inf
    %4389 = vmax.xlane.f32.xlu0 %v4388
    %v4390 = vpop.xlane.xlu0 %4389
    %v4391 = vsub.f32 %v4369, %v4384
    %v4392 = vsub.f32 %v4374, %v4387
    %v4393 = vsub.f32 %v4379, %v4390
    %v4394 = vmul.f32 %v4391, 1.442695
    %v4395 = vpow.pop %v4394
    %v4396 = vmul.f32 %v4392, 1.442695
    %v4397 = vpow.pop %v4396
    %v4398 = vmul.f32 %v4393, 1.442695
    %v4399 = vpow.pop %v4398
    %v4400 = vsel %vm512, %v4395, 0.0
    %4401 = vadd.xlane.f32.xlu0 %v4400
    %v4402 = vpop.xlane.xlu0 %4401
    %v4403 = vsel %vm512, %v4397, 0.0
    %4404 = vadd.xlane.f32.xlu0 %v4403
    %v4405 = vpop.xlane.xlu0 %4404
    %v4406 = vsel %vm512, %v4399, 0.0
    %4407 = vadd.xlane.f32.xlu0 %v4406
    %v4408 = vpop.xlane.xlu0 %4407
    %v4409 = vrcp.pop %v4402
    %v4410 = vrcp.pop %v4405
    %v4411 = vrcp.pop %v4408
    %v4412 = vmul.f32 %v4395, %v4409
    %v4413 = vmul.f32 %v4397, %v4410
    %v4414 = vmul.f32 %v4399, %v4411
    %4415 = vrot.lane.b32.xlu0 %v3601, 48
    %v4416 = vpop.permute.xlu0 %4415
    %4417 = vrot.lane.b32.xlu0 %v3606, 48
    %v4418 = vpop.permute.xlu0 %4417
    %4419 = vrot.lane.b32.xlu0 %v3611, 48
    %v4420 = vpop.permute.xlu0 %4419
    %v4425 = vsel %vm512, %v4412, 0
    %v4428 = vsel %vm512, %v4413, 0
    %v4431 = vsel %vm512, %v4414, 0
    %4433 = vmatprep.subr.mxu0 0.0
    %4434 = vmatpush1.msra.mxu0 %v4416
    %4435 = vmatprep.subr.mxu0 0.0
    %4436 = vmatpush1.msra.mxu0 %v4418
    %4437 = vmatprep.subr.mxu0 0.0
    %4438 = vmatpush1.msra.mxu0 %v4420
    %4439 = vmatprep.subr.mxu0 0.0
    %4440 = vmatpush1.msra.mxu0 0.0
    %4441 = vmatprep.subr.mxu0 0.0
    %4442 = vmatpush1.msra.mxu0 0.0
    %4443 = vmatprep.subr.mxu0 0.0
    %4444 = vmatpush1.msra.mxu0 0.0
    %4445 = vmatprep.subr.mxu0 0.0
    %4446 = vmatpush1.msra.mxu0 0.0
    %4447 = vmatprep.subr.mxu0 0.0
    %4448 = vmatpush1.msra.mxu0 0.0
    %4449 = vmatprep.subr.mxu0 0.0
    %4450 = vmatpush1.msra.mxu0 0.0
    %4451 = vmatprep.subr.mxu0 0.0
    %4452 = vmatpush1.msra.mxu0 0.0
    %4453 = vmatprep.subr.mxu0 0.0
    %4454 = vmatpush1.msra.mxu0 0.0
    %4455 = vmatprep.subr.mxu0 0.0
    %4456 = vmatpush1.msra.mxu0 0.0
    %4457 = vmatprep.subr.mxu0 0.0
    %4458 = vmatpush1.msra.mxu0 0.0
    %4459 = vmatprep.subr.mxu0 0.0
    %4460 = vmatpush1.msra.mxu0 0.0
    %4461 = vmatprep.subr.mxu0 0.0
    %4462 = vmatpush1.msra.mxu0 0.0
    %4463 = vmatprep.subr.mxu0 0.0
    %4464 = vmatpush1.msra.mxu0 0.0
    %4465 = vmatprep.subr.mxu0 0.0
    %4466 = vmatpush1.msra.mxu0 0.0
    %4467 = vmatprep.subr.mxu0 0.0
    %4468 = vmatpush1.msra.mxu0 0.0
    %4469 = vmatprep.subr.mxu0 0.0
    %4470 = vmatpush1.msra.mxu0 0.0
    %4471 = vmatprep.subr.mxu0 0.0
    %4472 = vmatpush1.msra.mxu0 0.0
    %4473 = vmatprep.subr.mxu0 0.0
    %4474 = vmatpush1.msra.mxu0 0.0
    %4475 = vmatprep.subr.mxu0 0.0
    %4476 = vmatpush1.msra.mxu0 0.0
    %4477 = vmatprep.subr.mxu0 0.0
    %4478 = vmatpush1.msra.mxu0 0.0
    %4479 = vmatprep.subr.mxu0 0.0
    %4480 = vmatpush1.msra.mxu0 0.0
    %4481 = vmatprep.subr.mxu0 0.0
    %4482 = vmatpush1.msra.mxu0 0.0
    %4483 = vmatprep.subr.mxu0 0.0
    %4484 = vmatpush1.msra.mxu0 0.0
    %4485 = vmatprep.subr.mxu0 0.0
    %4486 = vmatpush1.msra.mxu0 0.0
    %4487 = vmatprep.subr.mxu0 0.0
    %4488 = vmatpush1.msra.mxu0 0.0
    %4489 = vmatprep.subr.mxu0 0.0
    %4490 = vmatpush1.msra.mxu0 0.0
    %4491 = vmatprep.subr.mxu0 0.0
    %4492 = vmatpush1.msra.mxu0 0.0
    %4493 = vmatprep.subr.mxu0 0.0
    %4494 = vmatpush1.msra.mxu0 0.0
    %4495 = vmatprep.subr.mxu0 0.0
    %4496 = vmatpush1.msra.mxu0 0.0
    %4497 = vmatprep.mubr.f32.mxu0 0.0
    %4498 = vmatmul.mubr.f32.gmra.mrb[0].mxu0 %v4425
    %v4499 = vpop.f32.mrb[0].mxu0
    %v4500 = vadd.f32 0.0, %v4499
    %v4501 = vpop.f32.mrb[0].mxu0
    %4502 = vmatprep.mubr.f32.mxu0 0.0
    %4503 = vmatmul.mubr.f32.gmra.mrb[0].mxu0 %v4428
    %v4504 = vpop.f32.mrb[0].mxu0
    %v4505 = vadd.f32 0.0, %v4504
    %v4506 = vpop.f32.mrb[0].mxu0
    %4507 = vmatprep.mubr.f32.mxu0 0.0
    %4508 = vmatmul.mubr.f32.gmra.mrb[0].mxu0 %v4431
    %v4509 = vpop.f32.mrb[0].mxu0
    %v4510 = vadd.f32 0.0, %v4509
    %v4511 = vpop.f32.mrb[0].mxu0
    %4512 = vdwg.mxu0
    %v4514 = vsel %vm419, %v4500, 0
    %v4517 = vsel %vm419, %v4505, 0
    %v4520 = vsel %vm419, %v4510, 0
    %4522 = vmatprep.subr.mxu0 0.0
    %4523 = vmatpush1.msra.mxu0 %v3631
    %4524 = vmatprep.subr.mxu0 0.0
    %4525 = vmatpush1.msra.mxu0 0.0
    %4526 = vmatprep.subr.mxu0 0.0
    %4527 = vmatpush1.msra.mxu0 0.0
    %4528 = vmatprep.subr.mxu0 0.0
    %4529 = vmatpush1.msra.mxu0 0.0
    %4530 = vmatprep.subr.mxu0 0.0
    %4531 = vmatpush1.msra.mxu0 0.0
    %4532 = vmatprep.subr.mxu0 0.0
    %4533 = vmatpush1.msra.mxu0 0.0
    %4534 = vmatprep.subr.mxu0 0.0
    %4535 = vmatpush1.msra.mxu0 0.0
    %4536 = vmatprep.subr.mxu0 0.0
    %4537 = vmatpush1.msra.mxu0 0.0
    %4538 = vmatprep.subr.mxu0 0.0
    %4539 = vmatpush1.msra.mxu0 0.0
    %4540 = vmatprep.subr.mxu0 0.0
    %4541 = vmatpush1.msra.mxu0 0.0
    %4542 = vmatprep.subr.mxu0 0.0
    %4543 = vmatpush1.msra.mxu0 0.0
    %4544 = vmatprep.subr.mxu0 0.0
    %4545 = vmatpush1.msra.mxu0 0.0
    %4546 = vmatprep.subr.mxu0 0.0
    %4547 = vmatpush1.msra.mxu0 0.0
    %4548 = vmatprep.subr.mxu0 0.0
    %4549 = vmatpush1.msra.mxu0 0.0
    %4550 = vmatprep.subr.mxu0 0.0
    %4551 = vmatpush1.msra.mxu0 0.0
    %4552 = vmatprep.subr.mxu0 0.0
    %4553 = vmatpush1.msra.mxu0 0.0
    %4554 = vmatprep.subr.mxu0 0.0
    %4555 = vmatpush1.msra.mxu0 0.0
    %4556 = vmatprep.subr.mxu0 0.0
    %4557 = vmatpush1.msra.mxu0 0.0
    %4558 = vmatprep.subr.mxu0 0.0
    %4559 = vmatpush1.msra.mxu0 0.0
    %4560 = vmatprep.subr.mxu0 0.0
    %4561 = vmatpush1.msra.mxu0 0.0
    %4562 = vmatprep.subr.mxu0 0.0
    %4563 = vmatpush1.msra.mxu0 0.0
    %4564 = vmatprep.subr.mxu0 0.0
    %4565 = vmatpush1.msra.mxu0 0.0
    %4566 = vmatprep.subr.mxu0 0.0
    %4567 = vmatpush1.msra.mxu0 0.0
    %4568 = vmatprep.subr.mxu0 0.0
    %4569 = vmatpush1.msra.mxu0 0.0
    %4570 = vmatprep.subr.mxu0 0.0
    %4571 = vmatpush1.msra.mxu0 0.0
    %4572 = vmatprep.subr.mxu0 0.0
    %4573 = vmatpush1.msra.mxu0 0.0
    %4574 = vmatprep.subr.mxu0 0.0
    %4575 = vmatpush1.msra.mxu0 0.0
    %4576 = vmatprep.subr.mxu0 0.0
    %4577 = vmatpush1.msra.mxu0 0.0
    %4578 = vmatprep.subr.mxu0 0.0
    %4579 = vmatpush1.msra.mxu0 0.0
    %4580 = vmatprep.subr.mxu0 0.0
    %4581 = vmatpush1.msra.mxu0 0.0
    %4582 = vmatprep.subr.mxu0 0.0
    %4583 = vmatpush1.msra.mxu0 0.0
    %4584 = vmatprep.subr.mxu0 0.0
    %4585 = vmatpush1.msra.mxu0 0.0
    %4586 = vmatprep.mubr.f32.mxu0 0.0
    %4587 = vmatmul.mubr.f32.gmra.mrb[0].mxu0 %v4514
    %v4588 = vpop.f32.mrb[0].mxu0
    %v4589 = vadd.f32 0.0, %v4588
    %v4590 = vpop.f32.mrb[0].mxu0
    %4591 = vmatprep.mubr.f32.mxu0 0.0
    %4592 = vmatmul.mubr.f32.gmra.mrb[0].mxu0 %v4517
    %v4593 = vpop.f32.mrb[0].mxu0
    %v4594 = vadd.f32 0.0, %v4593
    %v4595 = vpop.f32.mrb[0].mxu0
    %4596 = vmatprep.mubr.f32.mxu0 0.0
    %4597 = vmatmul.mubr.f32.gmra.mrb[0].mxu0 %v4520
    %v4598 = vpop.f32.mrb[0].mxu0
    %v4599 = vadd.f32 0.0, %v4598
    %v4600 = vpop.f32.mrb[0].mxu0
    %4601 = vdwg.mxu0
    %v4602 = vadd.f32 %v4265, %v4589
    %v4603 = vadd.f32 %v4270, %v4594
    %v4604 = vadd.f32 %v4275, %v4599
    %4605 = vrot.lane.b32.xlu0 %v3601, 104
    %v4606 = vpop.permute.xlu0 %4605
    %4607 = vrot.lane.b32.xlu0 %v3606, 104
    %v4608 = vpop.permute.xlu0 %4607
    %4609 = vrot.lane.b32.xlu0 %v3611, 104
    %v4610 = vpop.permute.xlu0 %4609
    %4611 = vrot.lane.b32.xlu0 %v3601, 72
    %v4612 = vpop.permute.xlu0 %4611
    %4613 = vrot.lane.b32.xlu0 %v3606, 72
    %v4614 = vpop.permute.xlu0 %4613
    %4615 = vrot.lane.b32.xlu0 %v3611, 72
    %v4616 = vpop.permute.xlu0 %4615
    %v4617 = vsel %vm419, %v4606, 0
    %v4619 = vsel %vm419, %v4608, 0
    %v4621 = vsel %vm419, %v4610, 0
    %v4623 = vsel %vm419, %v4612, 0
    %v4625 = vsel %vm419, %v4614, 0
    %v4627 = vsel %vm419, %v4616, 0
    %4629 = vmatprep.subr.mxu0 0.0
    %4630 = vmatpush1.xpose.msra.mxu0 %v4623
    %4631 = vmatprep.subr.mxu0 0.0
    %4632 = vmatpush1.xpose.msra.mxu0 %v4625
    %4633 = vmatprep.subr.mxu0 0.0
    %4634 = vmatpush1.xpose.msra.mxu0 %v4627
    %4635 = vmatprep.subr.mxu0 0.0
    %4636 = vmatpush1.xpose.msra.mxu0 0.0
    %4637 = vmatprep.subr.mxu0 0.0
    %4638 = vmatpush1.xpose.msra.mxu0 0.0
    %4639 = vmatprep.subr.mxu0 0.0
    %4640 = vmatpush1.xpose.msra.mxu0 0.0
    %4641 = vmatprep.subr.mxu0 0.0
    %4642 = vmatpush1.xpose.msra.mxu0 0.0
    %4643 = vmatprep.subr.mxu0 0.0
    %4644 = vmatpush1.xpose.msra.mxu0 0.0
    %4645 = vmatprep.subr.mxu0 0.0
    %4646 = vmatpush1.xpose.msra.mxu0 0.0
    %4647 = vmatprep.subr.mxu0 0.0
    %4648 = vmatpush1.xpose.msra.mxu0 0.0
    %4649 = vmatprep.subr.mxu0 0.0
    %4650 = vmatpush1.xpose.msra.mxu0 0.0
    %4651 = vmatprep.subr.mxu0 0.0
    %4652 = vmatpush1.xpose.msra.mxu0 0.0
    %4653 = vmatprep.subr.mxu0 0.0
    %4654 = vmatpush1.xpose.msra.mxu0 0.0
    %4655 = vmatprep.subr.mxu0 0.0
    %4656 = vmatpush1.xpose.msra.mxu0 0.0
    %4657 = vmatprep.subr.mxu0 0.0
    %4658 = vmatpush1.xpose.msra.mxu0 0.0
    %4659 = vmatprep.subr.mxu0 0.0
    %4660 = vmatpush1.xpose.msra.mxu0 0.0
    %4661 = vmatprep.subr.mxu0 0.0
    %4662 = vmatpush1.xpose.msra.mxu0 0.0
    %4663 = vmatprep.subr.mxu0 0.0
    %4664 = vmatpush1.xpose.msra.mxu0 0.0
    %4665 = vmatprep.subr.mxu0 0.0
    %4666 = vmatpush1.xpose.msra.mxu0 0.0
    %4667 = vmatprep.subr.mxu0 0.0
    %4668 = vmatpush1.xpose.msra.mxu0 0.0
    %4669 = vmatprep.subr.mxu0 0.0
    %4670 = vmatpush1.xpose.msra.mxu0 0.0
    %4671 = vmatprep.subr.mxu0 0.0
    %4672 = vmatpush1.xpose.msra.mxu0 0.0
    %4673 = vmatprep.subr.mxu0 0.0
    %4674 = vmatpush1.xpose.msra.mxu0 0.0
    %4675 = vmatprep.subr.mxu0 0.0
    %4676 = vmatpush1.xpose.msra.mxu0 0.0
    %4677 = vmatprep.subr.mxu0 0.0
    %4678 = vmatpush1.xpose.msra.mxu0 0.0
    %4679 = vmatprep.subr.mxu0 0.0
    %4680 = vmatpush1.xpose.msra.mxu0 0.0
    %4681 = vmatprep.subr.mxu0 0.0
    %4682 = vmatpush1.xpose.msra.mxu0 0.0
    %4683 = vmatprep.subr.mxu0 0.0
    %4684 = vmatpush1.xpose.msra.mxu0 0.0
    %4685 = vmatprep.subr.mxu0 0.0
    %4686 = vmatpush1.xpose.msra.mxu0 0.0
    %4687 = vmatprep.subr.mxu0 0.0
    %4688 = vmatpush1.xpose.msra.mxu0 0.0
    %4689 = vmatprep.subr.mxu0 0.0
    %4690 = vmatpush1.xpose.msra.mxu0 0.0
    %4691 = vmatprep.subr.mxu0 0.0
    %4692 = vmatpush1.xpose.msra.mxu0 0.0
    %4693 = vmatprep.mubr.f32.mxu0 0.0
    %4694 = vmatmul.mubr.f32.gmra.mrb[0].mxu0 %v4617
    %v4695 = vpop.f32.mrb[0].mxu0
    %v4696 = vadd.f32 %v41, %v4695
    %v4697 = vpop.f32.mrb[0].mxu0
    %4698 = vmatprep.mubr.f32.mxu0 0.0
    %4699 = vmatmul.mubr.f32.gmra.mrb[0].mxu0 %v4619
    %v4700 = vpop.f32.mrb[0].mxu0
    %v4701 = vadd.f32 %v41, %v4700
    %v4702 = vpop.f32.mrb[0].mxu0
    %4703 = vmatprep.mubr.f32.mxu0 0.0
    %4704 = vmatmul.mubr.f32.gmra.mrb[0].mxu0 %v4621
    %v4705 = vpop.f32.mrb[0].mxu0
    %v4706 = vadd.f32 %v41, %v4705
    %v4707 = vpop.f32.mrb[0].mxu0
    %4708 = vdwg.mxu0
    %v4709 = vsel %vm512, %v4696, -inf
    %4710 = vmax.xlane.f32.xlu0 %v4709
    %v4711 = vpop.xlane.xlu0 %4710
    %v4712 = vsel %vm512, %v4701, -inf
    %4713 = vmax.xlane.f32.xlu0 %v4712
    %v4714 = vpop.xlane.xlu0 %4713
    %v4715 = vsel %vm512, %v4706, -inf
    %4716 = vmax.xlane.f32.xlu0 %v4715
    %v4717 = vpop.xlane.xlu0 %4716
    %v4718 = vsub.f32 %v4696, %v4711
    %v4719 = vsub.f32 %v4701, %v4714
    %v4720 = vsub.f32 %v4706, %v4717
    %v4721 = vmul.f32 %v4718, 1.442695
    %v4722 = vpow.pop %v4721
    %v4723 = vmul.f32 %v4719, 1.442695
    %v4724 = vpow.pop %v4723
    %v4725 = vmul.f32 %v4720, 1.442695
    %v4726 = vpow.pop %v4725
    %v4727 = vsel %vm512, %v4722, 0.0
    %4728 = vadd.xlane.f32.xlu0 %v4727
    %v4729 = vpop.xlane.xlu0 %4728
    %v4730 = vsel %vm512, %v4724, 0.0
    %4731 = vadd.xlane.f32.xlu0 %v4730
    %v4732 = vpop.xlane.xlu0 %4731
    %v4733 = vsel %vm512, %v4726, 0.0
    %4734 = vadd.xlane.f32.xlu0 %v4733
    %v4735 = vpop.xlane.xlu0 %4734
    %v4736 = vrcp.pop %v4729
    %v4737 = vrcp.pop %v4732
    %v4738 = vrcp.pop %v4735
    %v4739 = vmul.f32 %v4722, %v4736
    %v4740 = vmul.f32 %v4724, %v4737
    %v4741 = vmul.f32 %v4726, %v4738
    %4742 = vrot.lane.b32.xlu0 %v3601, 40
    %v4743 = vpop.permute.xlu0 %4742
    %4744 = vrot.lane.b32.xlu0 %v3606, 40
    %v4745 = vpop.permute.xlu0 %4744
    %4746 = vrot.lane.b32.xlu0 %v3611, 40
    %v4747 = vpop.permute.xlu0 %4746
    %v4752 = vsel %vm512, %v4739, 0
    %v4755 = vsel %vm512, %v4740, 0
    %v4758 = vsel %vm512, %v4741, 0
    %4760 = vmatprep.subr.mxu0 0.0
    %4761 = vmatpush1.msra.mxu0 %v4743
    %4762 = vmatprep.subr.mxu0 0.0
    %4763 = vmatpush1.msra.mxu0 %v4745
    %4764 = vmatprep.subr.mxu0 0.0
    %4765 = vmatpush1.msra.mxu0 %v4747
    %4766 = vmatprep.subr.mxu0 0.0
    %4767 = vmatpush1.msra.mxu0 0.0
    %4768 = vmatprep.subr.mxu0 0.0
    %4769 = vmatpush1.msra.mxu0 0.0
    %4770 = vmatprep.subr.mxu0 0.0
    %4771 = vmatpush1.msra.mxu0 0.0
    %4772 = vmatprep.subr.mxu0 0.0
    %4773 = vmatpush1.msra.mxu0 0.0
    %4774 = vmatprep.subr.mxu0 0.0
    %4775 = vmatpush1.msra.mxu0 0.0
    %4776 = vmatprep.subr.mxu0 0.0
    %4777 = vmatpush1.msra.mxu0 0.0
    %4778 = vmatprep.subr.mxu0 0.0
    %4779 = vmatpush1.msra.mxu0 0.0
    %4780 = vmatprep.subr.mxu0 0.0
    %4781 = vmatpush1.msra.mxu0 0.0
    %4782 = vmatprep.subr.mxu0 0.0
    %4783 = vmatpush1.msra.mxu0 0.0
    %4784 = vmatprep.subr.mxu0 0.0
    %4785 = vmatpush1.msra.mxu0 0.0
    %4786 = vmatprep.subr.mxu0 0.0
    %4787 = vmatpush1.msra.mxu0 0.0
    %4788 = vmatprep.subr.mxu0 0.0
    %4789 = vmatpush1.msra.mxu0 0.0
    %4790 = vmatprep.subr.mxu0 0.0
    %4791 = vmatpush1.msra.mxu0 0.0
    %4792 = vmatprep.subr.mxu0 0.0
    %4793 = vmatpush1.msra.mxu0 0.0
    %4794 = vmatprep.subr.mxu0 0.0
    %4795 = vmatpush1.msra.mxu0 0.0
    %4796 = vmatprep.subr.mxu0 0.0
    %4797 = vmatpush1.msra.mxu0 0.0
    %4798 = vmatprep.subr.mxu0 0.0
    %4799 = vmatpush1.msra.mxu0 0.0
    %4800 = vmatprep.subr.mxu0 0.0
    %4801 = vmatpush1.msra.mxu0 0.0
    %4802 = vmatprep.subr.mxu0 0.0
    %4803 = vmatpush1.msra.mxu0 0.0
    %4804 = vmatprep.subr.mxu0 0.0
    %4805 = vmatpush1.msra.mxu0 0.0
    %4806 = vmatprep.subr.mxu0 0.0
    %4807 = vmatpush1.msra.mxu0 0.0
    %4808 = vmatprep.subr.mxu0 0.0
    %4809 = vmatpush1.msra.mxu0 0.0
    %4810 = vmatprep.subr.mxu0 0.0
    %4811 = vmatpush1.msra.mxu0 0.0
    %4812 = vmatprep.subr.mxu0 0.0
    %4813 = vmatpush1.msra.mxu0 0.0
    %4814 = vmatprep.subr.mxu0 0.0
    %4815 = vmatpush1.msra.mxu0 0.0
    %4816 = vmatprep.subr.mxu0 0.0
    %4817 = vmatpush1.msra.mxu0 0.0
    %4818 = vmatprep.subr.mxu0 0.0
    %4819 = vmatpush1.msra.mxu0 0.0
    %4820 = vmatprep.subr.mxu0 0.0
    %4821 = vmatpush1.msra.mxu0 0.0
    %4822 = vmatprep.subr.mxu0 0.0
    %4823 = vmatpush1.msra.mxu0 0.0
    %4824 = vmatprep.mubr.f32.mxu0 0.0
    %4825 = vmatmul.mubr.f32.gmra.mrb[0].mxu0 %v4752
    %v4826 = vpop.f32.mrb[0].mxu0
    %v4827 = vadd.f32 0.0, %v4826
    %v4828 = vpop.f32.mrb[0].mxu0
    %4829 = vmatprep.mubr.f32.mxu0 0.0
    %4830 = vmatmul.mubr.f32.gmra.mrb[0].mxu0 %v4755
    %v4831 = vpop.f32.mrb[0].mxu0
    %v4832 = vadd.f32 0.0, %v4831
    %v4833 = vpop.f32.mrb[0].mxu0
    %4834 = vmatprep.mubr.f32.mxu0 0.0
    %4835 = vmatmul.mubr.f32.gmra.mrb[0].mxu0 %v4758
    %v4836 = vpop.f32.mrb[0].mxu0
    %v4837 = vadd.f32 0.0, %v4836
    %v4838 = vpop.f32.mrb[0].mxu0
    %4839 = vdwg.mxu0
    %v4841 = vsel %vm419, %v4827, 0
    %v4844 = vsel %vm419, %v4832, 0
    %v4847 = vsel %vm419, %v4837, 0
    %4849 = vmatprep.subr.mxu0 0.0
    %4850 = vmatpush1.msra.mxu0 %v3632
    %4851 = vmatprep.subr.mxu0 0.0
    %4852 = vmatpush1.msra.mxu0 0.0
    %4853 = vmatprep.subr.mxu0 0.0
    %4854 = vmatpush1.msra.mxu0 0.0
    %4855 = vmatprep.subr.mxu0 0.0
    %4856 = vmatpush1.msra.mxu0 0.0
    %4857 = vmatprep.subr.mxu0 0.0
    %4858 = vmatpush1.msra.mxu0 0.0
    %4859 = vmatprep.subr.mxu0 0.0
    %4860 = vmatpush1.msra.mxu0 0.0
    %4861 = vmatprep.subr.mxu0 0.0
    %4862 = vmatpush1.msra.mxu0 0.0
    %4863 = vmatprep.subr.mxu0 0.0
    %4864 = vmatpush1.msra.mxu0 0.0
    %4865 = vmatprep.subr.mxu0 0.0
    %4866 = vmatpush1.msra.mxu0 0.0
    %4867 = vmatprep.subr.mxu0 0.0
    %4868 = vmatpush1.msra.mxu0 0.0
    %4869 = vmatprep.subr.mxu0 0.0
    %4870 = vmatpush1.msra.mxu0 0.0
    %4871 = vmatprep.subr.mxu0 0.0
    %4872 = vmatpush1.msra.mxu0 0.0
    %4873 = vmatprep.subr.mxu0 0.0
    %4874 = vmatpush1.msra.mxu0 0.0
    %4875 = vmatprep.subr.mxu0 0.0
    %4876 = vmatpush1.msra.mxu0 0.0
    %4877 = vmatprep.subr.mxu0 0.0
    %4878 = vmatpush1.msra.mxu0 0.0
    %4879 = vmatprep.subr.mxu0 0.0
    %4880 = vmatpush1.msra.mxu0 0.0
    %4881 = vmatprep.subr.mxu0 0.0
    %4882 = vmatpush1.msra.mxu0 0.0
    %4883 = vmatprep.subr.mxu0 0.0
    %4884 = vmatpush1.msra.mxu0 0.0
    %4885 = vmatprep.subr.mxu0 0.0
    %4886 = vmatpush1.msra.mxu0 0.0
    %4887 = vmatprep.subr.mxu0 0.0
    %4888 = vmatpush1.msra.mxu0 0.0
    %4889 = vmatprep.subr.mxu0 0.0
    %4890 = vmatpush1.msra.mxu0 0.0
    %4891 = vmatprep.subr.mxu0 0.0
    %4892 = vmatpush1.msra.mxu0 0.0
    %4893 = vmatprep.subr.mxu0 0.0
    %4894 = vmatpush1.msra.mxu0 0.0
    %4895 = vmatprep.subr.mxu0 0.0
    %4896 = vmatpush1.msra.mxu0 0.0
    %4897 = vmatprep.subr.mxu0 0.0
    %4898 = vmatpush1.msra.mxu0 0.0
    %4899 = vmatprep.subr.mxu0 0.0
    %4900 = vmatpush1.msra.mxu0 0.0
    %4901 = vmatprep.subr.mxu0 0.0
    %4902 = vmatpush1.msra.mxu0 0.0
    %4903 = vmatprep.subr.mxu0 0.0
    %4904 = vmatpush1.msra.mxu0 0.0
    %4905 = vmatprep.subr.mxu0 0.0
    %4906 = vmatpush1.msra.mxu0 0.0
    %4907 = vmatprep.subr.mxu0 0.0
    %4908 = vmatpush1.msra.mxu0 0.0
    %4909 = vmatprep.subr.mxu0 0.0
    %4910 = vmatpush1.msra.mxu0 0.0
    %4911 = vmatprep.subr.mxu0 0.0
    %4912 = vmatpush1.msra.mxu0 0.0
    %4913 = vmatprep.mubr.f32.mxu0 0.0
    %4914 = vmatmul.mubr.f32.gmra.mrb[0].mxu0 %v4841
    %v4915 = vpop.f32.mrb[0].mxu0
    %v4916 = vadd.f32 0.0, %v4915
    %v4917 = vpop.f32.mrb[0].mxu0
    %4918 = vmatprep.mubr.f32.mxu0 0.0
    %4919 = vmatmul.mubr.f32.gmra.mrb[0].mxu0 %v4844
    %v4920 = vpop.f32.mrb[0].mxu0
    %v4921 = vadd.f32 0.0, %v4920
    %v4922 = vpop.f32.mrb[0].mxu0
    %4923 = vmatprep.mubr.f32.mxu0 0.0
    %4924 = vmatmul.mubr.f32.gmra.mrb[0].mxu0 %v4847
    %v4925 = vpop.f32.mrb[0].mxu0
    %v4926 = vadd.f32 0.0, %v4925
    %v4927 = vpop.f32.mrb[0].mxu0
    %4928 = vdwg.mxu0
    %v4929 = vadd.f32 %v4602, %v4916
    %v4930 = vadd.f32 %v4603, %v4921
    %v4931 = vadd.f32 %v4604, %v4926
    %4935 = vrot.lane.b32.xlu0 %v3616, 96
    %v4936 = vpop.permute.xlu0 %4935
    %4937 = vrot.lane.b32.xlu0 %v3621, 96
    %v4938 = vpop.permute.xlu0 %4937
    %4939 = vrot.lane.b32.xlu0 %v3626, 96
    %v4940 = vpop.permute.xlu0 %4939
    %v4941 = vsel %vm419, %v3616, 0
    %v4943 = vsel %vm419, %v3621, 0
    %v4945 = vsel %vm419, %v3626, 0
    %v4947 = vsel %vm419, %v4936, 0
    %v4949 = vsel %vm419, %v4938, 0
    %v4951 = vsel %vm419, %v4940, 0
    %4953 = vmatprep.subr.mxu0 0.0
    %4954 = vmatpush1.xpose.msra.mxu0 %v4947
    %4955 = vmatprep.subr.mxu0 0.0
    %4956 = vmatpush1.xpose.msra.mxu0 %v4949
    %4957 = vmatprep.subr.mxu0 0.0
    %4958 = vmatpush1.xpose.msra.mxu0 %v4951
    %4959 = vmatprep.subr.mxu0 0.0
    %4960 = vmatpush1.xpose.msra.mxu0 0.0
    %4961 = vmatprep.subr.mxu0 0.0
    %4962 = vmatpush1.xpose.msra.mxu0 0.0
    %4963 = vmatprep.subr.mxu0 0.0
    %4964 = vmatpush1.xpose.msra.mxu0 0.0
    %4965 = vmatprep.subr.mxu0 0.0
    %4966 = vmatpush1.xpose.msra.mxu0 0.0
    %4967 = vmatprep.subr.mxu0 0.0
    %4968 = vmatpush1.xpose.msra.mxu0 0.0
    %4969 = vmatprep.subr.mxu0 0.0
    %4970 = vmatpush1.xpose.msra.mxu0 0.0
    %4971 = vmatprep.subr.mxu0 0.0
    %4972 = vmatpush1.xpose.msra.mxu0 0.0
    %4973 = vmatprep.subr.mxu0 0.0
    %4974 = vmatpush1.xpose.msra.mxu0 0.0
    %4975 = vmatprep.subr.mxu0 0.0
    %4976 = vmatpush1.xpose.msra.mxu0 0.0
    %4977 = vmatprep.subr.mxu0 0.0
    %4978 = vmatpush1.xpose.msra.mxu0 0.0
    %4979 = vmatprep.subr.mxu0 0.0
    %4980 = vmatpush1.xpose.msra.mxu0 0.0
    %4981 = vmatprep.subr.mxu0 0.0
    %4982 = vmatpush1.xpose.msra.mxu0 0.0
    %4983 = vmatprep.subr.mxu0 0.0
    %4984 = vmatpush1.xpose.msra.mxu0 0.0
    %4985 = vmatprep.subr.mxu0 0.0
    %4986 = vmatpush1.xpose.msra.mxu0 0.0
    %4987 = vmatprep.subr.mxu0 0.0
    %4988 = vmatpush1.xpose.msra.mxu0 0.0
    %4989 = vmatprep.subr.mxu0 0.0
    %4990 = vmatpush1.xpose.msra.mxu0 0.0
    %4991 = vmatprep.subr.mxu0 0.0
    %4992 = vmatpush1.xpose.msra.mxu0 0.0
    %4993 = vmatprep.subr.mxu0 0.0
    %4994 = vmatpush1.xpose.msra.mxu0 0.0
    %4995 = vmatprep.subr.mxu0 0.0
    %4996 = vmatpush1.xpose.msra.mxu0 0.0
    %4997 = vmatprep.subr.mxu0 0.0
    %4998 = vmatpush1.xpose.msra.mxu0 0.0
    %4999 = vmatprep.subr.mxu0 0.0
    %5000 = vmatpush1.xpose.msra.mxu0 0.0
    %5001 = vmatprep.subr.mxu0 0.0
    %5002 = vmatpush1.xpose.msra.mxu0 0.0
    %5003 = vmatprep.subr.mxu0 0.0
    %5004 = vmatpush1.xpose.msra.mxu0 0.0
    %5005 = vmatprep.subr.mxu0 0.0
    %5006 = vmatpush1.xpose.msra.mxu0 0.0
    %5007 = vmatprep.subr.mxu0 0.0
    %5008 = vmatpush1.xpose.msra.mxu0 0.0
    %5009 = vmatprep.subr.mxu0 0.0
    %5010 = vmatpush1.xpose.msra.mxu0 0.0
    %5011 = vmatprep.subr.mxu0 0.0
    %5012 = vmatpush1.xpose.msra.mxu0 0.0
    %5013 = vmatprep.subr.mxu0 0.0
    %5014 = vmatpush1.xpose.msra.mxu0 0.0
    %5015 = vmatprep.subr.mxu0 0.0
    %5016 = vmatpush1.xpose.msra.mxu0 0.0
    %5017 = vmatprep.mubr.f32.mxu0 0.0
    %5018 = vmatmul.mubr.f32.gmra.mrb[0].mxu0 %v4941
    %v5019 = vpop.f32.mrb[0].mxu0
    %v5020 = vadd.f32 %v41, %v5019
    %v5021 = vpop.f32.mrb[0].mxu0
    %5022 = vmatprep.mubr.f32.mxu0 0.0
    %5023 = vmatmul.mubr.f32.gmra.mrb[0].mxu0 %v4943
    %v5024 = vpop.f32.mrb[0].mxu0
    %v5025 = vadd.f32 %v41, %v5024
    %v5026 = vpop.f32.mrb[0].mxu0
    %5027 = vmatprep.mubr.f32.mxu0 0.0
    %5028 = vmatmul.mubr.f32.gmra.mrb[0].mxu0 %v4945
    %v5029 = vpop.f32.mrb[0].mxu0
    %v5030 = vadd.f32 %v41, %v5029
    %v5031 = vpop.f32.mrb[0].mxu0
    %5032 = vdwg.mxu0
    %v5033 = vsel %vm512, %v5020, -inf
    %5034 = vmax.xlane.f32.xlu0 %v5033
    %v5035 = vpop.xlane.xlu0 %5034
    %v5036 = vsel %vm512, %v5025, -inf
    %5037 = vmax.xlane.f32.xlu0 %v5036
    %v5038 = vpop.xlane.xlu0 %5037
    %v5039 = vsel %vm512, %v5030, -inf
    %5040 = vmax.xlane.f32.xlu0 %v5039
    %v5041 = vpop.xlane.xlu0 %5040
    %v5042 = vsub.f32 %v5020, %v5035
    %v5043 = vsub.f32 %v5025, %v5038
    %v5044 = vsub.f32 %v5030, %v5041
    %v5045 = vmul.f32 %v5042, 1.442695
    %v5046 = vpow.pop %v5045
    %v5047 = vmul.f32 %v5043, 1.442695
    %v5048 = vpow.pop %v5047
    %v5049 = vmul.f32 %v5044, 1.442695
    %v5050 = vpow.pop %v5049
    %v5051 = vsel %vm512, %v5046, 0.0
    %5052 = vadd.xlane.f32.xlu0 %v5051
    %v5053 = vpop.xlane.xlu0 %5052
    %v5054 = vsel %vm512, %v5048, 0.0
    %5055 = vadd.xlane.f32.xlu0 %v5054
    %v5056 = vpop.xlane.xlu0 %5055
    %v5057 = vsel %vm512, %v5050, 0.0
    %5058 = vadd.xlane.f32.xlu0 %v5057
    %v5059 = vpop.xlane.xlu0 %5058
    %v5060 = vrcp.pop %v5053
    %v5061 = vrcp.pop %v5056
    %v5062 = vrcp.pop %v5059
    %v5063 = vmul.f32 %v5046, %v5060
    %v5064 = vmul.f32 %v5048, %v5061
    %v5065 = vmul.f32 %v5050, %v5062
    %5066 = vrot.lane.b32.xlu0 %v3616, 64
    %v5067 = vpop.permute.xlu0 %5066
    %5068 = vrot.lane.b32.xlu0 %v3621, 64
    %v5069 = vpop.permute.xlu0 %5068
    %5070 = vrot.lane.b32.xlu0 %v3626, 64
    %v5071 = vpop.permute.xlu0 %5070
    %v5076 = vsel %vm512, %v5063, 0
    %v5079 = vsel %vm512, %v5064, 0
    %v5082 = vsel %vm512, %v5065, 0
    %5084 = vmatprep.subr.mxu0 0.0
    %5085 = vmatpush1.msra.mxu0 %v5067
    %5086 = vmatprep.subr.mxu0 0.0
    %5087 = vmatpush1.msra.mxu0 %v5069
    %5088 = vmatprep.subr.mxu0 0.0
    %5089 = vmatpush1.msra.mxu0 %v5071
    %5090 = vmatprep.subr.mxu0 0.0
    %5091 = vmatpush1.msra.mxu0 0.0
    %5092 = vmatprep.subr.mxu0 0.0
    %5093 = vmatpush1.msra.mxu0 0.0
    %5094 = vmatprep.subr.mxu0 0.0
    %5095 = vmatpush1.msra.mxu0 0.0
    %5096 = vmatprep.subr.mxu0 0.0
    %5097 = vmatpush1.msra.mxu0 0.0
    %5098 = vmatprep.subr.mxu0 0.0
    %5099 = vmatpush1.msra.mxu0 0.0
    %5100 = vmatprep.subr.mxu0 0.0
    %5101 = vmatpush1.msra.mxu0 0.0
    %5102 = vmatprep.subr.mxu0 0.0
    %5103 = vmatpush1.msra.mxu0 0.0
    %5104 = vmatprep.subr.mxu0 0.0
    %5105 = vmatpush1.msra.mxu0 0.0
    %5106 = vmatprep.subr.mxu0 0.0
    %5107 = vmatpush1.msra.mxu0 0.0
    %5108 = vmatprep.subr.mxu0 0.0
    %5109 = vmatpush1.msra.mxu0 0.0
    %5110 = vmatprep.subr.mxu0 0.0
    %5111 = vmatpush1.msra.mxu0 0.0
    %5112 = vmatprep.subr.mxu0 0.0
    %5113 = vmatpush1.msra.mxu0 0.0
    %5114 = vmatprep.subr.mxu0 0.0
    %5115 = vmatpush1.msra.mxu0 0.0
    %5116 = vmatprep.subr.mxu0 0.0
    %5117 = vmatpush1.msra.mxu0 0.0
    %5118 = vmatprep.subr.mxu0 0.0
    %5119 = vmatpush1.msra.mxu0 0.0
    %5120 = vmatprep.subr.mxu0 0.0
    %5121 = vmatpush1.msra.mxu0 0.0
    %5122 = vmatprep.subr.mxu0 0.0
    %5123 = vmatpush1.msra.mxu0 0.0
    %5124 = vmatprep.subr.mxu0 0.0
    %5125 = vmatpush1.msra.mxu0 0.0
    %5126 = vmatprep.subr.mxu0 0.0
    %5127 = vmatpush1.msra.mxu0 0.0
    %5128 = vmatprep.subr.mxu0 0.0
    %5129 = vmatpush1.msra.mxu0 0.0
    %5130 = vmatprep.subr.mxu0 0.0
    %5131 = vmatpush1.msra.mxu0 0.0
    %5132 = vmatprep.subr.mxu0 0.0
    %5133 = vmatpush1.msra.mxu0 0.0
    %5134 = vmatprep.subr.mxu0 0.0
    %5135 = vmatpush1.msra.mxu0 0.0
    %5136 = vmatprep.subr.mxu0 0.0
    %5137 = vmatpush1.msra.mxu0 0.0
    %5138 = vmatprep.subr.mxu0 0.0
    %5139 = vmatpush1.msra.mxu0 0.0
    %5140 = vmatprep.subr.mxu0 0.0
    %5141 = vmatpush1.msra.mxu0 0.0
    %5142 = vmatprep.subr.mxu0 0.0
    %5143 = vmatpush1.msra.mxu0 0.0
    %5144 = vmatprep.subr.mxu0 0.0
    %5145 = vmatpush1.msra.mxu0 0.0
    %5146 = vmatprep.subr.mxu0 0.0
    %5147 = vmatpush1.msra.mxu0 0.0
    %5148 = vmatprep.mubr.f32.mxu0 0.0
    %5149 = vmatmul.mubr.f32.gmra.mrb[0].mxu0 %v5076
    %v5150 = vpop.f32.mrb[0].mxu0
    %v5151 = vadd.f32 0.0, %v5150
    %v5152 = vpop.f32.mrb[0].mxu0
    %5153 = vmatprep.mubr.f32.mxu0 0.0
    %5154 = vmatmul.mubr.f32.gmra.mrb[0].mxu0 %v5079
    %v5155 = vpop.f32.mrb[0].mxu0
    %v5156 = vadd.f32 0.0, %v5155
    %v5157 = vpop.f32.mrb[0].mxu0
    %5158 = vmatprep.mubr.f32.mxu0 0.0
    %5159 = vmatmul.mubr.f32.gmra.mrb[0].mxu0 %v5082
    %v5160 = vpop.f32.mrb[0].mxu0
    %v5161 = vadd.f32 0.0, %v5160
    %v5162 = vpop.f32.mrb[0].mxu0
    %5163 = vdwg.mxu0
    %5164 = vrot.lane.b32.xlu0 %v3616, 120
    %v5165 = vpop.permute.xlu0 %5164
    %5166 = vrot.lane.b32.xlu0 %v3621, 120
    %v5167 = vpop.permute.xlu0 %5166
    %5168 = vrot.lane.b32.xlu0 %v3626, 120
    %v5169 = vpop.permute.xlu0 %5168
    %5170 = vrot.lane.b32.xlu0 %v3616, 88
    %v5171 = vpop.permute.xlu0 %5170
    %5172 = vrot.lane.b32.xlu0 %v3621, 88
    %v5173 = vpop.permute.xlu0 %5172
    %5174 = vrot.lane.b32.xlu0 %v3626, 88
    %v5175 = vpop.permute.xlu0 %5174
    %v5176 = vsel %vm419, %v5165, 0
    %v5178 = vsel %vm419, %v5167, 0
    %v5180 = vsel %vm419, %v5169, 0
    %v5182 = vsel %vm419, %v5171, 0
    %v5184 = vsel %vm419, %v5173, 0
    %v5186 = vsel %vm419, %v5175, 0
    %5188 = vmatprep.subr.mxu0 0.0
    %5189 = vmatpush1.xpose.msra.mxu0 %v5182
    %5190 = vmatprep.subr.mxu0 0.0
    %5191 = vmatpush1.xpose.msra.mxu0 %v5184
    %5192 = vmatprep.subr.mxu0 0.0
    %5193 = vmatpush1.xpose.msra.mxu0 %v5186
    %5194 = vmatprep.subr.mxu0 0.0
    %5195 = vmatpush1.xpose.msra.mxu0 0.0
    %5196 = vmatprep.subr.mxu0 0.0
    %5197 = vmatpush1.xpose.msra.mxu0 0.0
    %5198 = vmatprep.subr.mxu0 0.0
    %5199 = vmatpush1.xpose.msra.mxu0 0.0
    %5200 = vmatprep.subr.mxu0 0.0
    %5201 = vmatpush1.xpose.msra.mxu0 0.0
    %5202 = vmatprep.subr.mxu0 0.0
    %5203 = vmatpush1.xpose.msra.mxu0 0.0
    %5204 = vmatprep.subr.mxu0 0.0
    %5205 = vmatpush1.xpose.msra.mxu0 0.0
    %5206 = vmatprep.subr.mxu0 0.0
    %5207 = vmatpush1.xpose.msra.mxu0 0.0
    %5208 = vmatprep.subr.mxu0 0.0
    %5209 = vmatpush1.xpose.msra.mxu0 0.0
    %5210 = vmatprep.subr.mxu0 0.0
    %5211 = vmatpush1.xpose.msra.mxu0 0.0
    %5212 = vmatprep.subr.mxu0 0.0
    %5213 = vmatpush1.xpose.msra.mxu0 0.0
    %5214 = vmatprep.subr.mxu0 0.0
    %5215 = vmatpush1.xpose.msra.mxu0 0.0
    %5216 = vmatprep.subr.mxu0 0.0
    %5217 = vmatpush1.xpose.msra.mxu0 0.0
    %5218 = vmatprep.subr.mxu0 0.0
    %5219 = vmatpush1.xpose.msra.mxu0 0.0
    %5220 = vmatprep.subr.mxu0 0.0
    %5221 = vmatpush1.xpose.msra.mxu0 0.0
    %5222 = vmatprep.subr.mxu0 0.0
    %5223 = vmatpush1.xpose.msra.mxu0 0.0
    %5224 = vmatprep.subr.mxu0 0.0
    %5225 = vmatpush1.xpose.msra.mxu0 0.0
    %5226 = vmatprep.subr.mxu0 0.0
    %5227 = vmatpush1.xpose.msra.mxu0 0.0
    %5228 = vmatprep.subr.mxu0 0.0
    %5229 = vmatpush1.xpose.msra.mxu0 0.0
    %5230 = vmatprep.subr.mxu0 0.0
    %5231 = vmatpush1.xpose.msra.mxu0 0.0
    %5232 = vmatprep.subr.mxu0 0.0
    %5233 = vmatpush1.xpose.msra.mxu0 0.0
    %5234 = vmatprep.subr.mxu0 0.0
    %5235 = vmatpush1.xpose.msra.mxu0 0.0
    %5236 = vmatprep.subr.mxu0 0.0
    %5237 = vmatpush1.xpose.msra.mxu0 0.0
    %5238 = vmatprep.subr.mxu0 0.0
    %5239 = vmatpush1.xpose.msra.mxu0 0.0
    %5240 = vmatprep.subr.mxu0 0.0
    %5241 = vmatpush1.xpose.msra.mxu0 0.0
    %5242 = vmatprep.subr.mxu0 0.0
    %5243 = vmatpush1.xpose.msra.mxu0 0.0
    %5244 = vmatprep.subr.mxu0 0.0
    %5245 = vmatpush1.xpose.msra.mxu0 0.0
    %5246 = vmatprep.subr.mxu0 0.0
    %5247 = vmatpush1.xpose.msra.mxu0 0.0
    %5248 = vmatprep.subr.mxu0 0.0
    %5249 = vmatpush1.xpose.msra.mxu0 0.0
    %5250 = vmatprep.subr.mxu0 0.0
    %5251 = vmatpush1.xpose.msra.mxu0 0.0
    %5252 = vmatprep.mubr.f32.mxu0 0.0
    %5253 = vmatmul.mubr.f32.gmra.mrb[0].mxu0 %v5176
    %v5254 = vpop.f32.mrb[0].mxu0
    %v5255 = vadd.f32 %v41, %v5254
    %v5256 = vpop.f32.mrb[0].mxu0
    %5257 = vmatprep.mubr.f32.mxu0 0.0
    %5258 = vmatmul.mubr.f32.gmra.mrb[0].mxu0 %v5178
    %v5259 = vpop.f32.mrb[0].mxu0
    %v5260 = vadd.f32 %v41, %v5259
    %v5261 = vpop.f32.mrb[0].mxu0
    %5262 = vmatprep.mubr.f32.mxu0 0.0
    %5263 = vmatmul.mubr.f32.gmra.mrb[0].mxu0 %v5180
    %v5264 = vpop.f32.mrb[0].mxu0
    %v5265 = vadd.f32 %v41, %v5264
    %v5266 = vpop.f32.mrb[0].mxu0
    %5267 = vdwg.mxu0
    %v5268 = vsel %vm512, %v5255, -inf
    %5269 = vmax.xlane.f32.xlu0 %v5268
    %v5270 = vpop.xlane.xlu0 %5269
    %v5271 = vsel %vm512, %v5260, -inf
    %5272 = vmax.xlane.f32.xlu0 %v5271
    %v5273 = vpop.xlane.xlu0 %5272
    %v5274 = vsel %vm512, %v5265, -inf
    %5275 = vmax.xlane.f32.xlu0 %v5274
    %v5276 = vpop.xlane.xlu0 %5275
    %v5277 = vsub.f32 %v5255, %v5270
    %v5278 = vsub.f32 %v5260, %v5273
    %v5279 = vsub.f32 %v5265, %v5276
    %v5280 = vmul.f32 %v5277, 1.442695
    %v5281 = vpow.pop %v5280
    %v5282 = vmul.f32 %v5278, 1.442695
    %v5283 = vpow.pop %v5282
    %v5284 = vmul.f32 %v5279, 1.442695
    %v5285 = vpow.pop %v5284
    %v5286 = vsel %vm512, %v5281, 0.0
    %5287 = vadd.xlane.f32.xlu0 %v5286
    %v5288 = vpop.xlane.xlu0 %5287
    %v5289 = vsel %vm512, %v5283, 0.0
    %5290 = vadd.xlane.f32.xlu0 %v5289
    %v5291 = vpop.xlane.xlu0 %5290
    %v5292 = vsel %vm512, %v5285, 0.0
    %5293 = vadd.xlane.f32.xlu0 %v5292
    %v5294 = vpop.xlane.xlu0 %5293
    %v5295 = vrcp.pop %v5288
    %v5296 = vrcp.pop %v5291
    %v5297 = vrcp.pop %v5294
    %v5298 = vmul.f32 %v5281, %v5295
    %v5299 = vmul.f32 %v5283, %v5296
    %v5300 = vmul.f32 %v5285, %v5297
    %5301 = vrot.lane.b32.xlu0 %v3616, 56
    %v5302 = vpop.permute.xlu0 %5301
    %5303 = vrot.lane.b32.xlu0 %v3621, 56
    %v5304 = vpop.permute.xlu0 %5303
    %5305 = vrot.lane.b32.xlu0 %v3626, 56
    %v5306 = vpop.permute.xlu0 %5305
    %v5311 = vsel %vm512, %v5298, 0
    %v5314 = vsel %vm512, %v5299, 0
    %v5317 = vsel %vm512, %v5300, 0
    %5319 = vmatprep.subr.mxu0 0.0
    %5320 = vmatpush1.msra.mxu0 %v5302
    %5321 = vmatprep.subr.mxu0 0.0
    %5322 = vmatpush1.msra.mxu0 %v5304
    %5323 = vmatprep.subr.mxu0 0.0
    %5324 = vmatpush1.msra.mxu0 %v5306
    %5325 = vmatprep.subr.mxu0 0.0
    %5326 = vmatpush1.msra.mxu0 0.0
    %5327 = vmatprep.subr.mxu0 0.0
    %5328 = vmatpush1.msra.mxu0 0.0
    %5329 = vmatprep.subr.mxu0 0.0
    %5330 = vmatpush1.msra.mxu0 0.0
    %5331 = vmatprep.subr.mxu0 0.0
    %5332 = vmatpush1.msra.mxu0 0.0
    %5333 = vmatprep.subr.mxu0 0.0
    %5334 = vmatpush1.msra.mxu0 0.0
    %5335 = vmatprep.subr.mxu0 0.0
    %5336 = vmatpush1.msra.mxu0 0.0
    %5337 = vmatprep.subr.mxu0 0.0
    %5338 = vmatpush1.msra.mxu0 0.0
    %5339 = vmatprep.subr.mxu0 0.0
    %5340 = vmatpush1.msra.mxu0 0.0
    %5341 = vmatprep.subr.mxu0 0.0
    %5342 = vmatpush1.msra.mxu0 0.0
    %5343 = vmatprep.subr.mxu0 0.0
    %5344 = vmatpush1.msra.mxu0 0.0
    %5345 = vmatprep.subr.mxu0 0.0
    %5346 = vmatpush1.msra.mxu0 0.0
    %5347 = vmatprep.subr.mxu0 0.0
    %5348 = vmatpush1.msra.mxu0 0.0
    %5349 = vmatprep.subr.mxu0 0.0
    %5350 = vmatpush1.msra.mxu0 0.0
    %5351 = vmatprep.subr.mxu0 0.0
    %5352 = vmatpush1.msra.mxu0 0.0
    %5353 = vmatprep.subr.mxu0 0.0
    %5354 = vmatpush1.msra.mxu0 0.0
    %5355 = vmatprep.subr.mxu0 0.0
    %5356 = vmatpush1.msra.mxu0 0.0
    %5357 = vmatprep.subr.mxu0 0.0
    %5358 = vmatpush1.msra.mxu0 0.0
    %5359 = vmatprep.subr.mxu0 0.0
    %5360 = vmatpush1.msra.mxu0 0.0
    %5361 = vmatprep.subr.mxu0 0.0
    %5362 = vmatpush1.msra.mxu0 0.0
    %5363 = vmatprep.subr.mxu0 0.0
    %5364 = vmatpush1.msra.mxu0 0.0
    %5365 = vmatprep.subr.mxu0 0.0
    %5366 = vmatpush1.msra.mxu0 0.0
    %5367 = vmatprep.subr.mxu0 0.0
    %5368 = vmatpush1.msra.mxu0 0.0
    %5369 = vmatprep.subr.mxu0 0.0
    %5370 = vmatpush1.msra.mxu0 0.0
    %5371 = vmatprep.subr.mxu0 0.0
    %5372 = vmatpush1.msra.mxu0 0.0
    %5373 = vmatprep.subr.mxu0 0.0
    %5374 = vmatpush1.msra.mxu0 0.0
    %5375 = vmatprep.subr.mxu0 0.0
    %5376 = vmatpush1.msra.mxu0 0.0
    %5377 = vmatprep.subr.mxu0 0.0
    %5378 = vmatpush1.msra.mxu0 0.0
    %5379 = vmatprep.subr.mxu0 0.0
    %5380 = vmatpush1.msra.mxu0 0.0
    %5381 = vmatprep.subr.mxu0 0.0
    %5382 = vmatpush1.msra.mxu0 0.0
    %5383 = vmatprep.mubr.f32.mxu0 0.0
    %5384 = vmatmul.mubr.f32.gmra.mrb[0].mxu0 %v5311
    %v5385 = vpop.f32.mrb[0].mxu0
    %v5386 = vadd.f32 0.0, %v5385
    %v5387 = vpop.f32.mrb[0].mxu0
    %5388 = vmatprep.mubr.f32.mxu0 0.0
    %5389 = vmatmul.mubr.f32.gmra.mrb[0].mxu0 %v5314
    %v5390 = vpop.f32.mrb[0].mxu0
    %v5391 = vadd.f32 0.0, %v5390
    %v5392 = vpop.f32.mrb[0].mxu0
    %5393 = vmatprep.mubr.f32.mxu0 0.0
    %5394 = vmatmul.mubr.f32.gmra.mrb[0].mxu0 %v5317
    %v5395 = vpop.f32.mrb[0].mxu0
    %v5396 = vadd.f32 0.0, %v5395
    %v5397 = vpop.f32.mrb[0].mxu0
    %5398 = vdwg.mxu0
    %v5400 = vsel %vm419, %v5386, 0
    %v5403 = vsel %vm419, %v5391, 0
    %v5406 = vsel %vm419, %v5396, 0
    %5408 = vmatprep.subr.mxu0 0.0
    %5409 = vmatpush1.msra.mxu0 %v3630
    %5410 = vmatprep.subr.mxu0 0.0
    %5411 = vmatpush1.msra.mxu0 0.0
    %5412 = vmatprep.subr.mxu0 0.0
    %5413 = vmatpush1.msra.mxu0 0.0
    %5414 = vmatprep.subr.mxu0 0.0
    %5415 = vmatpush1.msra.mxu0 0.0
    %5416 = vmatprep.subr.mxu0 0.0
    %5417 = vmatpush1.msra.mxu0 0.0
    %5418 = vmatprep.subr.mxu0 0.0
    %5419 = vmatpush1.msra.mxu0 0.0
    %5420 = vmatprep.subr.mxu0 0.0
    %5421 = vmatpush1.msra.mxu0 0.0
    %5422 = vmatprep.subr.mxu0 0.0
    %5423 = vmatpush1.msra.mxu0 0.0
    %5424 = vmatprep.subr.mxu0 0.0
    %5425 = vmatpush1.msra.mxu0 0.0
    %5426 = vmatprep.subr.mxu0 0.0
    %5427 = vmatpush1.msra.mxu0 0.0
    %5428 = vmatprep.subr.mxu0 0.0
    %5429 = vmatpush1.msra.mxu0 0.0
    %5430 = vmatprep.subr.mxu0 0.0
    %5431 = vmatpush1.msra.mxu0 0.0
    %5432 = vmatprep.subr.mxu0 0.0
    %5433 = vmatpush1.msra.mxu0 0.0
    %5434 = vmatprep.subr.mxu0 0.0
    %5435 = vmatpush1.msra.mxu0 0.0
    %5436 = vmatprep.subr.mxu0 0.0
    %5437 = vmatpush1.msra.mxu0 0.0
    %5438 = vmatprep.subr.mxu0 0.0
    %5439 = vmatpush1.msra.mxu0 0.0
    %5440 = vmatprep.subr.mxu0 0.0
    %5441 = vmatpush1.msra.mxu0 0.0
    %5442 = vmatprep.subr.mxu0 0.0
    %5443 = vmatpush1.msra.mxu0 0.0
    %5444 = vmatprep.subr.mxu0 0.0
    %5445 = vmatpush1.msra.mxu0 0.0
    %5446 = vmatprep.subr.mxu0 0.0
    %5447 = vmatpush1.msra.mxu0 0.0
    %5448 = vmatprep.subr.mxu0 0.0
    %5449 = vmatpush1.msra.mxu0 0.0
    %5450 = vmatprep.subr.mxu0 0.0
    %5451 = vmatpush1.msra.mxu0 0.0
    %5452 = vmatprep.subr.mxu0 0.0
    %5453 = vmatpush1.msra.mxu0 0.0
    %5454 = vmatprep.subr.mxu0 0.0
    %5455 = vmatpush1.msra.mxu0 0.0
    %5456 = vmatprep.subr.mxu0 0.0
    %5457 = vmatpush1.msra.mxu0 0.0
    %5458 = vmatprep.subr.mxu0 0.0
    %5459 = vmatpush1.msra.mxu0 0.0
    %5460 = vmatprep.subr.mxu0 0.0
    %5461 = vmatpush1.msra.mxu0 0.0
    %5462 = vmatprep.subr.mxu0 0.0
    %5463 = vmatpush1.msra.mxu0 0.0
    %5464 = vmatprep.subr.mxu0 0.0
    %5465 = vmatpush1.msra.mxu0 0.0
    %5466 = vmatprep.subr.mxu0 0.0
    %5467 = vmatpush1.msra.mxu0 0.0
    %5468 = vmatprep.subr.mxu0 0.0
    %5469 = vmatpush1.msra.mxu0 0.0
    %5470 = vmatprep.subr.mxu0 0.0
    %5471 = vmatpush1.msra.mxu0 0.0
    %5472 = vmatprep.mubr.f32.mxu0 0.0
    %5473 = vmatmul.mubr.f32.gmra.mrb[0].mxu0 %v5400
    %v5474 = vpop.f32.mrb[0].mxu0
    %v5475 = vadd.f32 0.0, %v5474
    %v5476 = vpop.f32.mrb[0].mxu0
    %5477 = vmatprep.mubr.f32.mxu0 0.0
    %5478 = vmatmul.mubr.f32.gmra.mrb[0].mxu0 %v5403
    %v5479 = vpop.f32.mrb[0].mxu0
    %v5480 = vadd.f32 0.0, %v5479
    %v5481 = vpop.f32.mrb[0].mxu0
    %5482 = vmatprep.mubr.f32.mxu0 0.0
    %5483 = vmatmul.mubr.f32.gmra.mrb[0].mxu0 %v5406
    %v5484 = vpop.f32.mrb[0].mxu0
    %v5485 = vadd.f32 0.0, %v5484
    %v5486 = vpop.f32.mrb[0].mxu0
    %5487 = vdwg.mxu0
    %v5489 = vsel %vm419, %v5151, 0
    %v5492 = vsel %vm419, %v5156, 0
    %v5495 = vsel %vm419, %v5161, 0
    %5497 = vmatprep.subr.mxu0 0.0
    %5498 = vmatpush1.msra.mxu0 %v3629
    %5499 = vmatprep.subr.mxu0 0.0
    %5500 = vmatpush1.msra.mxu0 0.0
    %5501 = vmatprep.subr.mxu0 0.0
    %5502 = vmatpush1.msra.mxu0 0.0
    %5503 = vmatprep.subr.mxu0 0.0
    %5504 = vmatpush1.msra.mxu0 0.0
    %5505 = vmatprep.subr.mxu0 0.0
    %5506 = vmatpush1.msra.mxu0 0.0
    %5507 = vmatprep.subr.mxu0 0.0
    %5508 = vmatpush1.msra.mxu0 0.0
    %5509 = vmatprep.subr.mxu0 0.0
    %5510 = vmatpush1.msra.mxu0 0.0
    %5511 = vmatprep.subr.mxu0 0.0
    %5512 = vmatpush1.msra.mxu0 0.0
    %5513 = vmatprep.subr.mxu0 0.0
    %5514 = vmatpush1.msra.mxu0 0.0
    %5515 = vmatprep.subr.mxu0 0.0
    %5516 = vmatpush1.msra.mxu0 0.0
    %5517 = vmatprep.subr.mxu0 0.0
    %5518 = vmatpush1.msra.mxu0 0.0
    %5519 = vmatprep.subr.mxu0 0.0
    %5520 = vmatpush1.msra.mxu0 0.0
    %5521 = vmatprep.subr.mxu0 0.0
    %5522 = vmatpush1.msra.mxu0 0.0
    %5523 = vmatprep.subr.mxu0 0.0
    %5524 = vmatpush1.msra.mxu0 0.0
    %5525 = vmatprep.subr.mxu0 0.0
    %5526 = vmatpush1.msra.mxu0 0.0
    %5527 = vmatprep.subr.mxu0 0.0
    %5528 = vmatpush1.msra.mxu0 0.0
    %5529 = vmatprep.subr.mxu0 0.0
    %5530 = vmatpush1.msra.mxu0 0.0
    %5531 = vmatprep.subr.mxu0 0.0
    %5532 = vmatpush1.msra.mxu0 0.0
    %5533 = vmatprep.subr.mxu0 0.0
    %5534 = vmatpush1.msra.mxu0 0.0
    %5535 = vmatprep.subr.mxu0 0.0
    %5536 = vmatpush1.msra.mxu0 0.0
    %5537 = vmatprep.subr.mxu0 0.0
    %5538 = vmatpush1.msra.mxu0 0.0
    %5539 = vmatprep.subr.mxu0 0.0
    %5540 = vmatpush1.msra.mxu0 0.0
    %5541 = vmatprep.subr.mxu0 0.0
    %5542 = vmatpush1.msra.mxu0 0.0
    %5543 = vmatprep.subr.mxu0 0.0
    %5544 = vmatpush1.msra.mxu0 0.0
    %5545 = vmatprep.subr.mxu0 0.0
    %5546 = vmatpush1.msra.mxu0 0.0
    %5547 = vmatprep.subr.mxu0 0.0
    %5548 = vmatpush1.msra.mxu0 0.0
    %5549 = vmatprep.subr.mxu0 0.0
    %5550 = vmatpush1.msra.mxu0 0.0
    %5551 = vmatprep.subr.mxu0 0.0
    %5552 = vmatpush1.msra.mxu0 0.0
    %5553 = vmatprep.subr.mxu0 0.0
    %5554 = vmatpush1.msra.mxu0 0.0
    %5555 = vmatprep.subr.mxu0 0.0
    %5556 = vmatpush1.msra.mxu0 0.0
    %5557 = vmatprep.subr.mxu0 0.0
    %5558 = vmatpush1.msra.mxu0 0.0
    %5559 = vmatprep.subr.mxu0 0.0
    %5560 = vmatpush1.msra.mxu0 0.0
    %5561 = vmatprep.mubr.f32.mxu0 0.0
    %5562 = vmatmul.mubr.f32.gmra.mrb[0].mxu0 %v5489
    %v5563 = vpop.f32.mrb[0].mxu0
    %v5564 = vadd.f32 %v5475, %v5563
    %v5565 = vpop.f32.mrb[0].mxu0
    %5566 = vmatprep.mubr.f32.mxu0 0.0
    %5567 = vmatmul.mubr.f32.gmra.mrb[0].mxu0 %v5492
    %v5568 = vpop.f32.mrb[0].mxu0
    %v5569 = vadd.f32 %v5480, %v5568
    %v5570 = vpop.f32.mrb[0].mxu0
    %5571 = vmatprep.mubr.f32.mxu0 0.0
    %5572 = vmatmul.mubr.f32.gmra.mrb[0].mxu0 %v5495
    %v5573 = vpop.f32.mrb[0].mxu0
    %v5574 = vadd.f32 %v5485, %v5573
    %v5575 = vpop.f32.mrb[0].mxu0
    %5576 = vdwg.mxu0
    %5577 = vrot.lane.b32.xlu0 %v3616, 112
    %v5578 = vpop.permute.xlu0 %5577
    %5579 = vrot.lane.b32.xlu0 %v3621, 112
    %v5580 = vpop.permute.xlu0 %5579
    %5581 = vrot.lane.b32.xlu0 %v3626, 112
    %v5582 = vpop.permute.xlu0 %5581
    %5583 = vrot.lane.b32.xlu0 %v3616, 80
    %v5584 = vpop.permute.xlu0 %5583
    %5585 = vrot.lane.b32.xlu0 %v3621, 80
    %v5586 = vpop.permute.xlu0 %5585
    %5587 = vrot.lane.b32.xlu0 %v3626, 80
    %v5588 = vpop.permute.xlu0 %5587
    %v5589 = vsel %vm419, %v5578, 0
    %v5591 = vsel %vm419, %v5580, 0
    %v5593 = vsel %vm419, %v5582, 0
    %v5595 = vsel %vm419, %v5584, 0
    %v5597 = vsel %vm419, %v5586, 0
    %v5599 = vsel %vm419, %v5588, 0
    %5601 = vmatprep.subr.mxu0 0.0
    %5602 = vmatpush1.xpose.msra.mxu0 %v5595
    %5603 = vmatprep.subr.mxu0 0.0
    %5604 = vmatpush1.xpose.msra.mxu0 %v5597
    %5605 = vmatprep.subr.mxu0 0.0
    %5606 = vmatpush1.xpose.msra.mxu0 %v5599
    %5607 = vmatprep.subr.mxu0 0.0
    %5608 = vmatpush1.xpose.msra.mxu0 0.0
    %5609 = vmatprep.subr.mxu0 0.0
    %5610 = vmatpush1.xpose.msra.mxu0 0.0
    %5611 = vmatprep.subr.mxu0 0.0
    %5612 = vmatpush1.xpose.msra.mxu0 0.0
    %5613 = vmatprep.subr.mxu0 0.0
    %5614 = vmatpush1.xpose.msra.mxu0 0.0
    %5615 = vmatprep.subr.mxu0 0.0
    %5616 = vmatpush1.xpose.msra.mxu0 0.0
    %5617 = vmatprep.subr.mxu0 0.0
    %5618 = vmatpush1.xpose.msra.mxu0 0.0
    %5619 = vmatprep.subr.mxu0 0.0
    %5620 = vmatpush1.xpose.msra.mxu0 0.0
    %5621 = vmatprep.subr.mxu0 0.0
    %5622 = vmatpush1.xpose.msra.mxu0 0.0
    %5623 = vmatprep.subr.mxu0 0.0
    %5624 = vmatpush1.xpose.msra.mxu0 0.0
    %5625 = vmatprep.subr.mxu0 0.0
    %5626 = vmatpush1.xpose.msra.mxu0 0.0
    %5627 = vmatprep.subr.mxu0 0.0
    %5628 = vmatpush1.xpose.msra.mxu0 0.0
    %5629 = vmatprep.subr.mxu0 0.0
    %5630 = vmatpush1.xpose.msra.mxu0 0.0
    %5631 = vmatprep.subr.mxu0 0.0
    %5632 = vmatpush1.xpose.msra.mxu0 0.0
    %5633 = vmatprep.subr.mxu0 0.0
    %5634 = vmatpush1.xpose.msra.mxu0 0.0
    %5635 = vmatprep.subr.mxu0 0.0
    %5636 = vmatpush1.xpose.msra.mxu0 0.0
    %5637 = vmatprep.subr.mxu0 0.0
    %5638 = vmatpush1.xpose.msra.mxu0 0.0
    %5639 = vmatprep.subr.mxu0 0.0
    %5640 = vmatpush1.xpose.msra.mxu0 0.0
    %5641 = vmatprep.subr.mxu0 0.0
    %5642 = vmatpush1.xpose.msra.mxu0 0.0
    %5643 = vmatprep.subr.mxu0 0.0
    %5644 = vmatpush1.xpose.msra.mxu0 0.0
    %5645 = vmatprep.subr.mxu0 0.0
    %5646 = vmatpush1.xpose.msra.mxu0 0.0
    %5647 = vmatprep.subr.mxu0 0.0
    %5648 = vmatpush1.xpose.msra.mxu0 0.0
    %5649 = vmatprep.subr.mxu0 0.0
    %5650 = vmatpush1.xpose.msra.mxu0 0.0
    %5651 = vmatprep.subr.mxu0 0.0
    %5652 = vmatpush1.xpose.msra.mxu0 0.0
    %5653 = vmatprep.subr.mxu0 0.0
    %5654 = vmatpush1.xpose.msra.mxu0 0.0
    %5655 = vmatprep.subr.mxu0 0.0
    %5656 = vmatpush1.xpose.msra.mxu0 0.0
    %5657 = vmatprep.subr.mxu0 0.0
    %5658 = vmatpush1.xpose.msra.mxu0 0.0
    %5659 = vmatprep.subr.mxu0 0.0
    %5660 = vmatpush1.xpose.msra.mxu0 0.0
    %5661 = vmatprep.subr.mxu0 0.0
    %5662 = vmatpush1.xpose.msra.mxu0 0.0
    %5663 = vmatprep.subr.mxu0 0.0
    %5664 = vmatpush1.xpose.msra.mxu0 0.0
    %5665 = vmatprep.mubr.f32.mxu0 0.0
    %5666 = vmatmul.mubr.f32.gmra.mrb[0].mxu0 %v5589
    %v5667 = vpop.f32.mrb[0].mxu0
    %v5668 = vadd.f32 %v41, %v5667
    %v5669 = vpop.f32.mrb[0].mxu0
    %5670 = vmatprep.mubr.f32.mxu0 0.0
    %5671 = vmatmul.mubr.f32.gmra.mrb[0].mxu0 %v5591
    %v5672 = vpop.f32.mrb[0].mxu0
    %v5673 = vadd.f32 %v41, %v5672
    %v5674 = vpop.f32.mrb[0].mxu0
    %5675 = vmatprep.mubr.f32.mxu0 0.0
    %5676 = vmatmul.mubr.f32.gmra.mrb[0].mxu0 %v5593
    %v5677 = vpop.f32.mrb[0].mxu0
    %v5678 = vadd.f32 %v41, %v5677
    %v5679 = vpop.f32.mrb[0].mxu0
    %5680 = vdwg.mxu0
    %v5681 = vsel %vm512, %v5668, -inf
    %5682 = vmax.xlane.f32.xlu0 %v5681
    %v5683 = vpop.xlane.xlu0 %5682
    %v5684 = vsel %vm512, %v5673, -inf
    %5685 = vmax.xlane.f32.xlu0 %v5684
    %v5686 = vpop.xlane.xlu0 %5685
    %v5687 = vsel %vm512, %v5678, -inf
    %5688 = vmax.xlane.f32.xlu0 %v5687
    %v5689 = vpop.xlane.xlu0 %5688
    %v5690 = vsub.f32 %v5668, %v5683
    %v5691 = vsub.f32 %v5673, %v5686
    %v5692 = vsub.f32 %v5678, %v5689
    %v5693 = vmul.f32 %v5690, 1.442695
    %v5694 = vpow.pop %v5693
    %v5695 = vmul.f32 %v5691, 1.442695
    %v5696 = vpow.pop %v5695
    %v5697 = vmul.f32 %v5692, 1.442695
    %v5698 = vpow.pop %v5697
    %v5699 = vsel %vm512, %v5694, 0.0
    %5700 = vadd.xlane.f32.xlu0 %v5699
    %v5701 = vpop.xlane.xlu0 %5700
    %v5702 = vsel %vm512, %v5696, 0.0
    %5703 = vadd.xlane.f32.xlu0 %v5702
    %v5704 = vpop.xlane.xlu0 %5703
    %v5705 = vsel %vm512, %v5698, 0.0
    %5706 = vadd.xlane.f32.xlu0 %v5705
    %v5707 = vpop.xlane.xlu0 %5706
    %v5708 = vrcp.pop %v5701
    %v5709 = vrcp.pop %v5704
    %v5710 = vrcp.pop %v5707
    %v5711 = vmul.f32 %v5694, %v5708
    %v5712 = vmul.f32 %v5696, %v5709
    %v5713 = vmul.f32 %v5698, %v5710
    %5714 = vrot.lane.b32.xlu0 %v3616, 48
    %v5715 = vpop.permute.xlu0 %5714
    %5716 = vrot.lane.b32.xlu0 %v3621, 48
    %v5717 = vpop.permute.xlu0 %5716
    %5718 = vrot.lane.b32.xlu0 %v3626, 48
    %v5719 = vpop.permute.xlu0 %5718
    %v5724 = vsel %vm512, %v5711, 0
    %v5727 = vsel %vm512, %v5712, 0
    %v5730 = vsel %vm512, %v5713, 0
    %5732 = vmatprep.subr.mxu0 0.0
    %5733 = vmatpush1.msra.mxu0 %v5715
    %5734 = vmatprep.subr.mxu0 0.0
    %5735 = vmatpush1.msra.mxu0 %v5717
    %5736 = vmatprep.subr.mxu0 0.0
    %5737 = vmatpush1.msra.mxu0 %v5719
    %5738 = vmatprep.subr.mxu0 0.0
    %5739 = vmatpush1.msra.mxu0 0.0
    %5740 = vmatprep.subr.mxu0 0.0
    %5741 = vmatpush1.msra.mxu0 0.0
    %5742 = vmatprep.subr.mxu0 0.0
    %5743 = vmatpush1.msra.mxu0 0.0
    %5744 = vmatprep.subr.mxu0 0.0
    %5745 = vmatpush1.msra.mxu0 0.0
    %5746 = vmatprep.subr.mxu0 0.0
    %5747 = vmatpush1.msra.mxu0 0.0
    %5748 = vmatprep.subr.mxu0 0.0
    %5749 = vmatpush1.msra.mxu0 0.0
    %5750 = vmatprep.subr.mxu0 0.0
    %5751 = vmatpush1.msra.mxu0 0.0
    %5752 = vmatprep.subr.mxu0 0.0
    %5753 = vmatpush1.msra.mxu0 0.0
    %5754 = vmatprep.subr.mxu0 0.0
    %5755 = vmatpush1.msra.mxu0 0.0
    %5756 = vmatprep.subr.mxu0 0.0
    %5757 = vmatpush1.msra.mxu0 0.0
    %5758 = vmatprep.subr.mxu0 0.0
    %5759 = vmatpush1.msra.mxu0 0.0
    %5760 = vmatprep.subr.mxu0 0.0
    %5761 = vmatpush1.msra.mxu0 0.0
    %5762 = vmatprep.subr.mxu0 0.0
    %5763 = vmatpush1.msra.mxu0 0.0
    %5764 = vmatprep.subr.mxu0 0.0
    %5765 = vmatpush1.msra.mxu0 0.0
    %5766 = vmatprep.subr.mxu0 0.0
    %5767 = vmatpush1.msra.mxu0 0.0
    %5768 = vmatprep.subr.mxu0 0.0
    %5769 = vmatpush1.msra.mxu0 0.0
    %5770 = vmatprep.subr.mxu0 0.0
    %5771 = vmatpush1.msra.mxu0 0.0
    %5772 = vmatprep.subr.mxu0 0.0
    %5773 = vmatpush1.msra.mxu0 0.0
    %5774 = vmatprep.subr.mxu0 0.0
    %5775 = vmatpush1.msra.mxu0 0.0
    %5776 = vmatprep.subr.mxu0 0.0
    %5777 = vmatpush1.msra.mxu0 0.0
    %5778 = vmatprep.subr.mxu0 0.0
    %5779 = vmatpush1.msra.mxu0 0.0
    %5780 = vmatprep.subr.mxu0 0.0
    %5781 = vmatpush1.msra.mxu0 0.0
    %5782 = vmatprep.subr.mxu0 0.0
    %5783 = vmatpush1.msra.mxu0 0.0
    %5784 = vmatprep.subr.mxu0 0.0
    %5785 = vmatpush1.msra.mxu0 0.0
    %5786 = vmatprep.subr.mxu0 0.0
    %5787 = vmatpush1.msra.mxu0 0.0
    %5788 = vmatprep.subr.mxu0 0.0
    %5789 = vmatpush1.msra.mxu0 0.0
    %5790 = vmatprep.subr.mxu0 0.0
    %5791 = vmatpush1.msra.mxu0 0.0
    %5792 = vmatprep.subr.mxu0 0.0
    %5793 = vmatpush1.msra.mxu0 0.0
    %5794 = vmatprep.subr.mxu0 0.0
    %5795 = vmatpush1.msra.mxu0 0.0
    %5796 = vmatprep.mubr.f32.mxu0 0.0
    %5797 = vmatmul.mubr.f32.gmra.mrb[0].mxu0 %v5724
    %v5798 = vpop.f32.mrb[0].mxu0
    %v5799 = vadd.f32 0.0, %v5798
    %v5800 = vpop.f32.mrb[0].mxu0
    %5801 = vmatprep.mubr.f32.mxu0 0.0
    %5802 = vmatmul.mubr.f32.gmra.mrb[0].mxu0 %v5727
    %v5803 = vpop.f32.mrb[0].mxu0
    %v5804 = vadd.f32 0.0, %v5803
    %v5805 = vpop.f32.mrb[0].mxu0
    %5806 = vmatprep.mubr.f32.mxu0 0.0
    %5807 = vmatmul.mubr.f32.gmra.mrb[0].mxu0 %v5730
    %v5808 = vpop.f32.mrb[0].mxu0
    %v5809 = vadd.f32 0.0, %v5808
    %v5810 = vpop.f32.mrb[0].mxu0
    %5811 = vdwg.mxu0
    %v5813 = vsel %vm419, %v5799, 0
    %v5816 = vsel %vm419, %v5804, 0
    %v5819 = vsel %vm419, %v5809, 0
    %5821 = vmatprep.subr.mxu0 0.0
    %5822 = vmatpush1.msra.mxu0 %v3631
    %5823 = vmatprep.subr.mxu0 0.0
    %5824 = vmatpush1.msra.mxu0 0.0
    %5825 = vmatprep.subr.mxu0 0.0
    %5826 = vmatpush1.msra.mxu0 0.0
    %5827 = vmatprep.subr.mxu0 0.0
    %5828 = vmatpush1.msra.mxu0 0.0
    %5829 = vmatprep.subr.mxu0 0.0
    %5830 = vmatpush1.msra.mxu0 0.0
    %5831 = vmatprep.subr.mxu0 0.0
    %5832 = vmatpush1.msra.mxu0 0.0
    %5833 = vmatprep.subr.mxu0 0.0
    %5834 = vmatpush1.msra.mxu0 0.0
    %5835 = vmatprep.subr.mxu0 0.0
    %5836 = vmatpush1.msra.mxu0 0.0
    %5837 = vmatprep.subr.mxu0 0.0
    %5838 = vmatpush1.msra.mxu0 0.0
    %5839 = vmatprep.subr.mxu0 0.0
    %5840 = vmatpush1.msra.mxu0 0.0
    %5841 = vmatprep.subr.mxu0 0.0
    %5842 = vmatpush1.msra.mxu0 0.0
    %5843 = vmatprep.subr.mxu0 0.0
    %5844 = vmatpush1.msra.mxu0 0.0
    %5845 = vmatprep.subr.mxu0 0.0
    %5846 = vmatpush1.msra.mxu0 0.0
    %5847 = vmatprep.subr.mxu0 0.0
    %5848 = vmatpush1.msra.mxu0 0.0
    %5849 = vmatprep.subr.mxu0 0.0
    %5850 = vmatpush1.msra.mxu0 0.0
    %5851 = vmatprep.subr.mxu0 0.0
    %5852 = vmatpush1.msra.mxu0 0.0
    %5853 = vmatprep.subr.mxu0 0.0
    %5854 = vmatpush1.msra.mxu0 0.0
    %5855 = vmatprep.subr.mxu0 0.0
    %5856 = vmatpush1.msra.mxu0 0.0
    %5857 = vmatprep.subr.mxu0 0.0
    %5858 = vmatpush1.msra.mxu0 0.0
    %5859 = vmatprep.subr.mxu0 0.0
    %5860 = vmatpush1.msra.mxu0 0.0
    %5861 = vmatprep.subr.mxu0 0.0
    %5862 = vmatpush1.msra.mxu0 0.0
    %5863 = vmatprep.subr.mxu0 0.0
    %5864 = vmatpush1.msra.mxu0 0.0
    %5865 = vmatprep.subr.mxu0 0.0
    %5866 = vmatpush1.msra.mxu0 0.0
    %5867 = vmatprep.subr.mxu0 0.0
    %5868 = vmatpush1.msra.mxu0 0.0
    %5869 = vmatprep.subr.mxu0 0.0
    %5870 = vmatpush1.msra.mxu0 0.0
    %5871 = vmatprep.subr.mxu0 0.0
    %5872 = vmatpush1.msra.mxu0 0.0
    %5873 = vmatprep.subr.mxu0 0.0
    %5874 = vmatpush1.msra.mxu0 0.0
    %5875 = vmatprep.subr.mxu0 0.0
    %5876 = vmatpush1.msra.mxu0 0.0
    %5877 = vmatprep.subr.mxu0 0.0
    %5878 = vmatpush1.msra.mxu0 0.0
    %5879 = vmatprep.subr.mxu0 0.0
    %5880 = vmatpush1.msra.mxu0 0.0
    %5881 = vmatprep.subr.mxu0 0.0
    %5882 = vmatpush1.msra.mxu0 0.0
    %5883 = vmatprep.subr.mxu0 0.0
    %5884 = vmatpush1.msra.mxu0 0.0
    %5885 = vmatprep.mubr.f32.mxu0 0.0
    %5886 = vmatmul.mubr.f32.gmra.mrb[0].mxu0 %v5813
    %v5887 = vpop.f32.mrb[0].mxu0
    %v5888 = vadd.f32 0.0, %v5887
    %v5889 = vpop.f32.mrb[0].mxu0
    %5890 = vmatprep.mubr.f32.mxu0 0.0
    %5891 = vmatmul.mubr.f32.gmra.mrb[0].mxu0 %v5816
    %v5892 = vpop.f32.mrb[0].mxu0
    %v5893 = vadd.f32 0.0, %v5892
    %v5894 = vpop.f32.mrb[0].mxu0
    %5895 = vmatprep.mubr.f32.mxu0 0.0
    %5896 = vmatmul.mubr.f32.gmra.mrb[0].mxu0 %v5819
    %v5897 = vpop.f32.mrb[0].mxu0
    %v5898 = vadd.f32 0.0, %v5897
    %v5899 = vpop.f32.mrb[0].mxu0
    %5900 = vdwg.mxu0
    %v5901 = vadd.f32 %v5564, %v5888
    %v5902 = vadd.f32 %v5569, %v5893
    %v5903 = vadd.f32 %v5574, %v5898
    %5904 = vrot.lane.b32.xlu0 %v3616, 104
    %v5905 = vpop.permute.xlu0 %5904
    %5906 = vrot.lane.b32.xlu0 %v3621, 104
    %v5907 = vpop.permute.xlu0 %5906
    %5908 = vrot.lane.b32.xlu0 %v3626, 104
    %v5909 = vpop.permute.xlu0 %5908
    %5910 = vrot.lane.b32.xlu0 %v3616, 72
    %v5911 = vpop.permute.xlu0 %5910
    %5912 = vrot.lane.b32.xlu0 %v3621, 72
    %v5913 = vpop.permute.xlu0 %5912
    %5914 = vrot.lane.b32.xlu0 %v3626, 72
    %v5915 = vpop.permute.xlu0 %5914
    %v5916 = vsel %vm419, %v5905, 0
    %v5918 = vsel %vm419, %v5907, 0
    %v5920 = vsel %vm419, %v5909, 0
    %v5922 = vsel %vm419, %v5911, 0
    %v5924 = vsel %vm419, %v5913, 0
    %v5926 = vsel %vm419, %v5915, 0
    %5928 = vmatprep.subr.mxu0 0.0
    %5929 = vmatpush1.xpose.msra.mxu0 %v5922
    %5930 = vmatprep.subr.mxu0 0.0
    %5931 = vmatpush1.xpose.msra.mxu0 %v5924
    %5932 = vmatprep.subr.mxu0 0.0
    %5933 = vmatpush1.xpose.msra.mxu0 %v5926
    %5934 = vmatprep.subr.mxu0 0.0
    %5935 = vmatpush1.xpose.msra.mxu0 0.0
    %5936 = vmatprep.subr.mxu0 0.0
    %5937 = vmatpush1.xpose.msra.mxu0 0.0
    %5938 = vmatprep.subr.mxu0 0.0
    %5939 = vmatpush1.xpose.msra.mxu0 0.0
    %5940 = vmatprep.subr.mxu0 0.0
    %5941 = vmatpush1.xpose.msra.mxu0 0.0
    %5942 = vmatprep.subr.mxu0 0.0
    %5943 = vmatpush1.xpose.msra.mxu0 0.0
    %5944 = vmatprep.subr.mxu0 0.0
    %5945 = vmatpush1.xpose.msra.mxu0 0.0
    %5946 = vmatprep.subr.mxu0 0.0
    %5947 = vmatpush1.xpose.msra.mxu0 0.0
    %5948 = vmatprep.subr.mxu0 0.0
    %5949 = vmatpush1.xpose.msra.mxu0 0.0
    %5950 = vmatprep.subr.mxu0 0.0
    %5951 = vmatpush1.xpose.msra.mxu0 0.0
    %5952 = vmatprep.subr.mxu0 0.0
    %5953 = vmatpush1.xpose.msra.mxu0 0.0
    %5954 = vmatprep.subr.mxu0 0.0
    %5955 = vmatpush1.xpose.msra.mxu0 0.0
    %5956 = vmatprep.subr.mxu0 0.0
    %5957 = vmatpush1.xpose.msra.mxu0 0.0
    %5958 = vmatprep.subr.mxu0 0.0
    %5959 = vmatpush1.xpose.msra.mxu0 0.0
    %5960 = vmatprep.subr.mxu0 0.0
    %5961 = vmatpush1.xpose.msra.mxu0 0.0
    %5962 = vmatprep.subr.mxu0 0.0
    %5963 = vmatpush1.xpose.msra.mxu0 0.0
    %5964 = vmatprep.subr.mxu0 0.0
    %5965 = vmatpush1.xpose.msra.mxu0 0.0
    %5966 = vmatprep.subr.mxu0 0.0
    %5967 = vmatpush1.xpose.msra.mxu0 0.0
    %5968 = vmatprep.subr.mxu0 0.0
    %5969 = vmatpush1.xpose.msra.mxu0 0.0
    %5970 = vmatprep.subr.mxu0 0.0
    %5971 = vmatpush1.xpose.msra.mxu0 0.0
    %5972 = vmatprep.subr.mxu0 0.0
    %5973 = vmatpush1.xpose.msra.mxu0 0.0
    %5974 = vmatprep.subr.mxu0 0.0
    %5975 = vmatpush1.xpose.msra.mxu0 0.0
    %5976 = vmatprep.subr.mxu0 0.0
    %5977 = vmatpush1.xpose.msra.mxu0 0.0
    %5978 = vmatprep.subr.mxu0 0.0
    %5979 = vmatpush1.xpose.msra.mxu0 0.0
    %5980 = vmatprep.subr.mxu0 0.0
    %5981 = vmatpush1.xpose.msra.mxu0 0.0
    %5982 = vmatprep.subr.mxu0 0.0
    %5983 = vmatpush1.xpose.msra.mxu0 0.0
    %5984 = vmatprep.subr.mxu0 0.0
    %5985 = vmatpush1.xpose.msra.mxu0 0.0
    %5986 = vmatprep.subr.mxu0 0.0
    %5987 = vmatpush1.xpose.msra.mxu0 0.0
    %5988 = vmatprep.subr.mxu0 0.0
    %5989 = vmatpush1.xpose.msra.mxu0 0.0
    %5990 = vmatprep.subr.mxu0 0.0
    %5991 = vmatpush1.xpose.msra.mxu0 0.0
    %5992 = vmatprep.mubr.f32.mxu0 0.0
    %5993 = vmatmul.mubr.f32.gmra.mrb[0].mxu0 %v5916
    %v5994 = vpop.f32.mrb[0].mxu0
    %v5995 = vadd.f32 %v41, %v5994
    %v5996 = vpop.f32.mrb[0].mxu0
    %5997 = vmatprep.mubr.f32.mxu0 0.0
    %5998 = vmatmul.mubr.f32.gmra.mrb[0].mxu0 %v5918
    %v5999 = vpop.f32.mrb[0].mxu0
    %v6000 = vadd.f32 %v41, %v5999
    %v6001 = vpop.f32.mrb[0].mxu0
    %6002 = vmatprep.mubr.f32.mxu0 0.0
    %6003 = vmatmul.mubr.f32.gmra.mrb[0].mxu0 %v5920
    %v6004 = vpop.f32.mrb[0].mxu0
    %v6005 = vadd.f32 %v41, %v6004
    %v6006 = vpop.f32.mrb[0].mxu0
    %6007 = vdwg.mxu0
    %v6008 = vsel %vm512, %v5995, -inf
    %6009 = vmax.xlane.f32.xlu0 %v6008
    %v6010 = vpop.xlane.xlu0 %6009
    %v6011 = vsel %vm512, %v6000, -inf
    %6012 = vmax.xlane.f32.xlu0 %v6011
    %v6013 = vpop.xlane.xlu0 %6012
    %v6014 = vsel %vm512, %v6005, -inf
    %6015 = vmax.xlane.f32.xlu0 %v6014
    %v6016 = vpop.xlane.xlu0 %6015
    %v6017 = vsub.f32 %v5995, %v6010
    %v6018 = vsub.f32 %v6000, %v6013
    %v6019 = vsub.f32 %v6005, %v6016
    %v6020 = vmul.f32 %v6017, 1.442695
    %v6021 = vpow.pop %v6020
    %v6022 = vmul.f32 %v6018, 1.442695
    %v6023 = vpow.pop %v6022
    %v6024 = vmul.f32 %v6019, 1.442695
    %v6025 = vpow.pop %v6024
    %v6026 = vsel %vm512, %v6021, 0.0
    %6027 = vadd.xlane.f32.xlu0 %v6026
    %v6028 = vpop.xlane.xlu0 %6027
    %v6029 = vsel %vm512, %v6023, 0.0
    %6030 = vadd.xlane.f32.xlu0 %v6029
    %v6031 = vpop.xlane.xlu0 %6030
    %v6032 = vsel %vm512, %v6025, 0.0
    %6033 = vadd.xlane.f32.xlu0 %v6032
    %v6034 = vpop.xlane.xlu0 %6033
    %v6035 = vrcp.pop %v6028
    %v6036 = vrcp.pop %v6031
    %v6037 = vrcp.pop %v6034
    %v6038 = vmul.f32 %v6021, %v6035
    %v6039 = vmul.f32 %v6023, %v6036
    %v6040 = vmul.f32 %v6025, %v6037
    %6041 = vrot.lane.b32.xlu0 %v3616, 40
    %v6042 = vpop.permute.xlu0 %6041
    %6043 = vrot.lane.b32.xlu0 %v3621, 40
    %v6044 = vpop.permute.xlu0 %6043
    %6045 = vrot.lane.b32.xlu0 %v3626, 40
    %v6046 = vpop.permute.xlu0 %6045
    %v6051 = vsel %vm512, %v6038, 0
    %v6054 = vsel %vm512, %v6039, 0
    %v6057 = vsel %vm512, %v6040, 0
    %6059 = vmatprep.subr.mxu0 0.0
    %6060 = vmatpush1.msra.mxu0 %v6042
    %6061 = vmatprep.subr.mxu0 0.0
    %6062 = vmatpush1.msra.mxu0 %v6044
    %6063 = vmatprep.subr.mxu0 0.0
    %6064 = vmatpush1.msra.mxu0 %v6046
    %6065 = vmatprep.subr.mxu0 0.0
    %6066 = vmatpush1.msra.mxu0 0.0
    %6067 = vmatprep.subr.mxu0 0.0
    %6068 = vmatpush1.msra.mxu0 0.0
    %6069 = vmatprep.subr.mxu0 0.0
    %6070 = vmatpush1.msra.mxu0 0.0
    %6071 = vmatprep.subr.mxu0 0.0
    %6072 = vmatpush1.msra.mxu0 0.0
    %6073 = vmatprep.subr.mxu0 0.0
    %6074 = vmatpush1.msra.mxu0 0.0
    %6075 = vmatprep.subr.mxu0 0.0
    %6076 = vmatpush1.msra.mxu0 0.0
    %6077 = vmatprep.subr.mxu0 0.0
    %6078 = vmatpush1.msra.mxu0 0.0
    %6079 = vmatprep.subr.mxu0 0.0
    %6080 = vmatpush1.msra.mxu0 0.0
    %6081 = vmatprep.subr.mxu0 0.0
    %6082 = vmatpush1.msra.mxu0 0.0
    %6083 = vmatprep.subr.mxu0 0.0
    %6084 = vmatpush1.msra.mxu0 0.0
    %6085 = vmatprep.subr.mxu0 0.0
    %6086 = vmatpush1.msra.mxu0 0.0
    %6087 = vmatprep.subr.mxu0 0.0
    %6088 = vmatpush1.msra.mxu0 0.0
    %6089 = vmatprep.subr.mxu0 0.0
    %6090 = vmatpush1.msra.mxu0 0.0
    %6091 = vmatprep.subr.mxu0 0.0
    %6092 = vmatpush1.msra.mxu0 0.0
    %6093 = vmatprep.subr.mxu0 0.0
    %6094 = vmatpush1.msra.mxu0 0.0
    %6095 = vmatprep.subr.mxu0 0.0
    %6096 = vmatpush1.msra.mxu0 0.0
    %6097 = vmatprep.subr.mxu0 0.0
    %6098 = vmatpush1.msra.mxu0 0.0
    %6099 = vmatprep.subr.mxu0 0.0
    %6100 = vmatpush1.msra.mxu0 0.0
    %6101 = vmatprep.subr.mxu0 0.0
    %6102 = vmatpush1.msra.mxu0 0.0
    %6103 = vmatprep.subr.mxu0 0.0
    %6104 = vmatpush1.msra.mxu0 0.0
    %6105 = vmatprep.subr.mxu0 0.0
    %6106 = vmatpush1.msra.mxu0 0.0
    %6107 = vmatprep.subr.mxu0 0.0
    %6108 = vmatpush1.msra.mxu0 0.0
    %6109 = vmatprep.subr.mxu0 0.0
    %6110 = vmatpush1.msra.mxu0 0.0
    %6111 = vmatprep.subr.mxu0 0.0
    %6112 = vmatpush1.msra.mxu0 0.0
    %6113 = vmatprep.subr.mxu0 0.0
    %6114 = vmatpush1.msra.mxu0 0.0
    %6115 = vmatprep.subr.mxu0 0.0
    %6116 = vmatpush1.msra.mxu0 0.0
    %6117 = vmatprep.subr.mxu0 0.0
    %6118 = vmatpush1.msra.mxu0 0.0
    %6119 = vmatprep.subr.mxu0 0.0
    %6120 = vmatpush1.msra.mxu0 0.0
    %6121 = vmatprep.subr.mxu0 0.0
    %6122 = vmatpush1.msra.mxu0 0.0
    %6123 = vmatprep.mubr.f32.mxu0 0.0
    %6124 = vmatmul.mubr.f32.gmra.mrb[0].mxu0 %v6051
    %v6125 = vpop.f32.mrb[0].mxu0
    %v6126 = vadd.f32 0.0, %v6125
    %v6127 = vpop.f32.mrb[0].mxu0
    %6128 = vmatprep.mubr.f32.mxu0 0.0
    %6129 = vmatmul.mubr.f32.gmra.mrb[0].mxu0 %v6054
    %v6130 = vpop.f32.mrb[0].mxu0
    %v6131 = vadd.f32 0.0, %v6130
    %v6132 = vpop.f32.mrb[0].mxu0
    %6133 = vmatprep.mubr.f32.mxu0 0.0
    %6134 = vmatmul.mubr.f32.gmra.mrb[0].mxu0 %v6057
    %v6135 = vpop.f32.mrb[0].mxu0
    %v6136 = vadd.f32 0.0, %v6135
    %v6137 = vpop.f32.mrb[0].mxu0
    %6138 = vdwg.mxu0
    %v6140 = vsel %vm419, %v6126, 0
    %v6143 = vsel %vm419, %v6131, 0
    %v6146 = vsel %vm419, %v6136, 0
    %6148 = vmatprep.subr.mxu0 0.0
    %6149 = vmatpush1.msra.mxu0 %v3632
    %6150 = vmatprep.subr.mxu0 0.0
    %6151 = vmatpush1.msra.mxu0 0.0
    %6152 = vmatprep.subr.mxu0 0.0
    %6153 = vmatpush1.msra.mxu0 0.0
    %6154 = vmatprep.subr.mxu0 0.0
    %6155 = vmatpush1.msra.mxu0 0.0
    %6156 = vmatprep.subr.mxu0 0.0
    %6157 = vmatpush1.msra.mxu0 0.0
    %6158 = vmatprep.subr.mxu0 0.0
    %6159 = vmatpush1.msra.mxu0 0.0
    %6160 = vmatprep.subr.mxu0 0.0
    %6161 = vmatpush1.msra.mxu0 0.0
    %6162 = vmatprep.subr.mxu0 0.0
    %6163 = vmatpush1.msra.mxu0 0.0
    %6164 = vmatprep.subr.mxu0 0.0
    %6165 = vmatpush1.msra.mxu0 0.0
    %6166 = vmatprep.subr.mxu0 0.0
    %6167 = vmatpush1.msra.mxu0 0.0
    %6168 = vmatprep.subr.mxu0 0.0
    %6169 = vmatpush1.msra.mxu0 0.0
    %6170 = vmatprep.subr.mxu0 0.0
    %6171 = vmatpush1.msra.mxu0 0.0
    %6172 = vmatprep.subr.mxu0 0.0
    %6173 = vmatpush1.msra.mxu0 0.0
    %6174 = vmatprep.subr.mxu0 0.0
    %6175 = vmatpush1.msra.mxu0 0.0
    %6176 = vmatprep.subr.mxu0 0.0
    %6177 = vmatpush1.msra.mxu0 0.0
    %6178 = vmatprep.subr.mxu0 0.0
    %6179 = vmatpush1.msra.mxu0 0.0
    %6180 = vmatprep.subr.mxu0 0.0
    %6181 = vmatpush1.msra.mxu0 0.0
    %6182 = vmatprep.subr.mxu0 0.0
    %6183 = vmatpush1.msra.mxu0 0.0
    %6184 = vmatprep.subr.mxu0 0.0
    %6185 = vmatpush1.msra.mxu0 0.0
    %6186 = vmatprep.subr.mxu0 0.0
    %6187 = vmatpush1.msra.mxu0 0.0
    %6188 = vmatprep.subr.mxu0 0.0
    %6189 = vmatpush1.msra.mxu0 0.0
    %6190 = vmatprep.subr.mxu0 0.0
    %6191 = vmatpush1.msra.mxu0 0.0
    %6192 = vmatprep.subr.mxu0 0.0
    %6193 = vmatpush1.msra.mxu0 0.0
    %6194 = vmatprep.subr.mxu0 0.0
    %6195 = vmatpush1.msra.mxu0 0.0
    %6196 = vmatprep.subr.mxu0 0.0
    %6197 = vmatpush1.msra.mxu0 0.0
    %6198 = vmatprep.subr.mxu0 0.0
    %6199 = vmatpush1.msra.mxu0 0.0
    %6200 = vmatprep.subr.mxu0 0.0
    %6201 = vmatpush1.msra.mxu0 0.0
    %6202 = vmatprep.subr.mxu0 0.0
    %6203 = vmatpush1.msra.mxu0 0.0
    %6204 = vmatprep.subr.mxu0 0.0
    %6205 = vmatpush1.msra.mxu0 0.0
    %6206 = vmatprep.subr.mxu0 0.0
    %6207 = vmatpush1.msra.mxu0 0.0
    %6208 = vmatprep.subr.mxu0 0.0
    %6209 = vmatpush1.msra.mxu0 0.0
    %6210 = vmatprep.subr.mxu0 0.0
    %6211 = vmatpush1.msra.mxu0 0.0
    %6212 = vmatprep.mubr.f32.mxu0 0.0
    %6213 = vmatmul.mubr.f32.gmra.mrb[0].mxu0 %v6140
    %v6214 = vpop.f32.mrb[0].mxu0
    %v6215 = vadd.f32 0.0, %v6214
    %v6216 = vpop.f32.mrb[0].mxu0
    %6217 = vmatprep.mubr.f32.mxu0 0.0
    %6218 = vmatmul.mubr.f32.gmra.mrb[0].mxu0 %v6143
    %v6219 = vpop.f32.mrb[0].mxu0
    %v6220 = vadd.f32 0.0, %v6219
    %v6221 = vpop.f32.mrb[0].mxu0
    %6222 = vmatprep.mubr.f32.mxu0 0.0
    %6223 = vmatmul.mubr.f32.gmra.mrb[0].mxu0 %v6146
    %v6224 = vpop.f32.mrb[0].mxu0
    %v6225 = vadd.f32 0.0, %v6224
    %v6226 = vpop.f32.mrb[0].mxu0
    %6227 = vdwg.mxu0
    %v6228 = vadd.f32 %v5901, %v6215
    %v6229 = vadd.f32 %v5902, %v6220
    %v6230 = vadd.f32 %v5903, %v6225
    %v6231 = vadd.f32 %v3393, %v4929
    %v6232 = vadd.f32 %v3394, %v4930
    %v6233 = vadd.f32 %v3395, %v4931
    %v6234 = vadd.f32 %v3396, %v6228
    %v6235 = vadd.f32 %v3397, %v6229
    %v6236 = vadd.f32 %v3398, %v6230
    %v6237 = vld [vmem:[%s3399 + $0x5] sm:$0x1]
    %v6239 = vlaneseq
    %v6240 = vshrl.u32 %v6239, 7
    %v6241 = vsub.s32 0, %v6240
    %v6242 = vrot.slane %v6237, %v6241
    %v6244 = vadd.f32 %v6231, %v6242
    %v6245 = vadd.f32 %v6232, %v6242
    %v6246 = vadd.f32 %v6233, %v6242
    %v6247 = vadd.f32 %v6234, %v6242
    %v6248 = vadd.f32 %v6235, %v6242
    %v6249 = vadd.f32 %v6236, %v6242
    %v6250 = vld [vmem:[%s3399 + $0x2] sm:$0x1]
    %v6251 = vld [vmem:[%s3399 + $0x3] sm:$0x1]
    %v6252 = vsel %vm178, %v6244, 0.0
    %6253 = vadd.xlane.f32.xlu0 %v6252
    %v6254 = vpop.xlane.xlu0 %6253
    %v6255 = vsel %vm178, %v6245, 0.0
    %6256 = vadd.xlane.f32.xlu0 %v6255
    %v6257 = vpop.xlane.xlu0 %6256
    %v6258 = vsel %vm178, %v6246, 0.0
    %6259 = vadd.xlane.f32.xlu0 %v6258
    %v6260 = vpop.xlane.xlu0 %6259
    %v6261 = vsel %vm178, %v6247, 0.0
    %6262 = vadd.xlane.f32.xlu0 %v6261
    %v6263 = vpop.xlane.xlu0 %6262
    %v6264 = vsel %vm178, %v6248, 0.0
    %6265 = vadd.xlane.f32.xlu0 %v6264
    %v6266 = vpop.xlane.xlu0 %6265
    %v6267 = vsel %vm178, %v6249, 0.0
    %6268 = vadd.xlane.f32.xlu0 %v6267
    %v6269 = vpop.xlane.xlu0 %6268
    %v6270 = vmul.f32 %v6254, %v197
    %v6271 = vmul.f32 %v6257, %v197
    %v6272 = vmul.f32 %v6260, %v197
    %v6273 = vmul.f32 %v6263, %v197
    %v6274 = vmul.f32 %v6266, %v197
    %v6275 = vmul.f32 %v6269, %v197
    %v6276 = vsub.f32 %v6244, %v6270
    %v6277 = vsub.f32 %v6245, %v6271
    %v6278 = vsub.f32 %v6246, %v6272
    %v6279 = vsub.f32 %v6247, %v6273
    %v6280 = vsub.f32 %v6248, %v6274
    %v6281 = vsub.f32 %v6249, %v6275
    %v6282 = vmul.f32 %v6276, %v6276
    %v6283 = vmul.f32 %v6277, %v6277
    %v6284 = vmul.f32 %v6278, %v6278
    %v6285 = vmul.f32 %v6279, %v6279
    %v6286 = vmul.f32 %v6280, %v6280
    %v6287 = vmul.f32 %v6281, %v6281
    %v6288 = vsel %vm178, %v6282, 0.0
    %6289 = vadd.xlane.f32.xlu0 %v6288
    %v6290 = vpop.xlane.xlu0 %6289
    %v6291 = vsel %vm178, %v6283, 0.0
    %6292 = vadd.xlane.f32.xlu0 %v6291
    %v6293 = vpop.xlane.xlu0 %6292
    %v6294 = vsel %vm178, %v6284, 0.0
    %6295 = vadd.xlane.f32.xlu0 %v6294
    %v6296 = vpop.xlane.xlu0 %6295
    %v6297 = vsel %vm178, %v6285, 0.0
    %6298 = vadd.xlane.f32.xlu0 %v6297
    %v6299 = vpop.xlane.xlu0 %6298
    %v6300 = vsel %vm178, %v6286, 0.0
    %6301 = vadd.xlane.f32.xlu0 %v6300
    %v6302 = vpop.xlane.xlu0 %6301
    %v6303 = vsel %vm178, %v6287, 0.0
    %6304 = vadd.xlane.f32.xlu0 %v6303
    %v6305 = vpop.xlane.xlu0 %6304
    %v6306 = vmul.f32 %v6290, %v197
    %v6307 = vmul.f32 %v6293, %v197
    %v6308 = vmul.f32 %v6296, %v197
    %v6309 = vmul.f32 %v6299, %v197
    %v6310 = vmul.f32 %v6302, %v197
    %v6311 = vmul.f32 %v6305, %v197
    %v6312 = vadd.f32 %v6306, 1e-06
    %v6313 = vadd.f32 %v6307, 1e-06
    %v6314 = vadd.f32 %v6308, 1e-06
    %v6315 = vadd.f32 %v6309, 1e-06
    %v6316 = vadd.f32 %v6310, 1e-06
    %v6317 = vadd.f32 %v6311, 1e-06
    %v6318 = vrsqrt.pop %v6312
    %v6319 = vrsqrt.pop %v6313
    %v6320 = vrsqrt.pop %v6314
    %v6321 = vrsqrt.pop %v6315
    %v6322 = vrsqrt.pop %v6316
    %v6323 = vrsqrt.pop %v6317
    %v6324 = vmul.f32 %v6276, %v6318
    %v6325 = vmul.f32 %v6277, %v6319
    %v6326 = vmul.f32 %v6278, %v6320
    %v6327 = vmul.f32 %v6279, %v6321
    %v6328 = vmul.f32 %v6280, %v6322
    %v6329 = vmul.f32 %v6281, %v6323
    %v6331 = vlaneseq
    %v6332 = vshrl.u32 %v6331, 7
    %v6333 = vsub.s32 0, %v6332
    %v6334 = vrot.slane %v6250, %v6333
    %v6336 = vmul.f32 %v6324, %v6334
    %v6337 = vmul.f32 %v6325, %v6334
    %v6338 = vmul.f32 %v6326, %v6334
    %v6339 = vmul.f32 %v6327, %v6334
    %v6340 = vmul.f32 %v6328, %v6334
    %v6341 = vmul.f32 %v6329, %v6334
    %v6343 = vlaneseq
    %v6344 = vshrl.u32 %v6343, 7
    %v6345 = vsub.s32 0, %v6344
    %v6346 = vrot.slane %v6251, %v6345
    %v6348 = vadd.f32 %v6336, %v6346
    %v6349 = vadd.f32 %v6337, %v6346
    %v6350 = vadd.f32 %v6338, %v6346
    %v6351 = vadd.f32 %v6339, %v6346
    %v6352 = vadd.f32 %v6340, %v6346
    %v6353 = vadd.f32 %v6341, %v6346
    %v6354 = vld [vmem:[%s3504 + $0x10] sm:$0xff]
    %v6355 = vld [vmem:[%s3504 + $0x30] sm:$0xff]
    %v6356 = vld [vmem:[%s3504 + $0x50] sm:$0xff]
    %v6357 = vld [vmem:[%s3504 + $0x70] sm:$0xff]
    %v6358 = vld [vmem:[%s3399 + $0x6] sm:$0x1]
    %v6360 = vlaneseq
    %v6361 = vshrl.u32 %v6360, 7
    %v6362 = vsub.s32 0, %v6361
    %v6363 = vrot.slane %v6358, %v6362
    %v6366 = vsel %vm178, %v6348, 0
    %v6369 = vsel %vm178, %v6349, 0
    %v6372 = vsel %vm178, %v6350, 0
    %v6375 = vsel %vm178, %v6351, 0
    %v6378 = vsel %vm178, %v6352, 0
    %v6381 = vsel %vm178, %v6353, 0
    %6383 = vmatprep.subr.mxu0 0.0
    %6384 = vmatpush1.msra.mxu0 %v6354
    %6385 = vmatprep.subr.mxu0 0.0
    %6386 = vmatpush1.msra.mxu0 %v6355
    %6387 = vmatprep.subr.mxu0 0.0
    %6388 = vmatpush1.msra.mxu0 %v6356
    %6389 = vmatprep.subr.mxu0 0.0
    %6390 = vmatpush1.msra.mxu0 %v6357
    %6391 = vmatprep.subr.mxu0 0.0
    %6392 = vmatpush1.msra.mxu0 0.0
    %6393 = vmatprep.subr.mxu0 0.0
    %6394 = vmatpush1.msra.mxu0 0.0
    %6395 = vmatprep.subr.mxu0 0.0
    %6396 = vmatpush1.msra.mxu0 0.0
    %6397 = vmatprep.subr.mxu0 0.0
    %6398 = vmatpush1.msra.mxu0 0.0
    %6399 = vmatprep.subr.mxu0 0.0
    %6400 = vmatpush1.msra.mxu0 0.0
    %6401 = vmatprep.subr.mxu0 0.0
    %6402 = vmatpush1.msra.mxu0 0.0
    %6403 = vmatprep.subr.mxu0 0.0
    %6404 = vmatpush1.msra.mxu0 0.0
    %6405 = vmatprep.subr.mxu0 0.0
    %6406 = vmatpush1.msra.mxu0 0.0
    %6407 = vmatprep.subr.mxu0 0.0
    %6408 = vmatpush1.msra.mxu0 0.0
    %6409 = vmatprep.subr.mxu0 0.0
    %6410 = vmatpush1.msra.mxu0 0.0
    %6411 = vmatprep.subr.mxu0 0.0
    %6412 = vmatpush1.msra.mxu0 0.0
    %6413 = vmatprep.subr.mxu0 0.0
    %6414 = vmatpush1.msra.mxu0 0.0
    %6415 = vmatprep.subr.mxu0 0.0
    %6416 = vmatpush1.msra.mxu0 0.0
    %6417 = vmatprep.subr.mxu0 0.0
    %6418 = vmatpush1.msra.mxu0 0.0
    %6419 = vmatprep.subr.mxu0 0.0
    %6420 = vmatpush1.msra.mxu0 0.0
    %6421 = vmatprep.subr.mxu0 0.0
    %6422 = vmatpush1.msra.mxu0 0.0
    %6423 = vmatprep.subr.mxu0 0.0
    %6424 = vmatpush1.msra.mxu0 0.0
    %6425 = vmatprep.subr.mxu0 0.0
    %6426 = vmatpush1.msra.mxu0 0.0
    %6427 = vmatprep.subr.mxu0 0.0
    %6428 = vmatpush1.msra.mxu0 0.0
    %6429 = vmatprep.subr.mxu0 0.0
    %6430 = vmatpush1.msra.mxu0 0.0
    %6431 = vmatprep.subr.mxu0 0.0
    %6432 = vmatpush1.msra.mxu0 0.0
    %6433 = vmatprep.subr.mxu0 0.0
    %6434 = vmatpush1.msra.mxu0 0.0
    %6435 = vmatprep.subr.mxu0 0.0
    %6436 = vmatpush1.msra.mxu0 0.0
    %6437 = vmatprep.subr.mxu0 0.0
    %6438 = vmatpush1.msra.mxu0 0.0
    %6439 = vmatprep.subr.mxu0 0.0
    %6440 = vmatpush1.msra.mxu0 0.0
    %6441 = vmatprep.subr.mxu0 0.0
    %6442 = vmatpush1.msra.mxu0 0.0
    %6443 = vmatprep.subr.mxu0 0.0
    %6444 = vmatpush1.msra.mxu0 0.0
    %6445 = vmatprep.subr.mxu0 0.0
    %6446 = vmatpush1.msra.mxu0 0.0
    %6447 = vmatprep.mubr.f32.mxu0 0.0
    %6448 = vmatmul.mubr.f32.gmra.mrb[0].mxu0 %v6366
    %v6449 = vpop.f32.mrb[0].mxu0
    %v6450 = vadd.f32 %v6363, %v6449
    %v6451 = vpop.f32.mrb[0].mxu0
    %6452 = vmatprep.mubr.f32.mxu0 0.0
    %6453 = vmatmul.mubr.f32.gmra.mrb[0].mxu0 %v6369
    %v6454 = vpop.f32.mrb[0].mxu0
    %v6455 = vadd.f32 %v6363, %v6454
    %v6456 = vpop.f32.mrb[0].mxu0
    %6457 = vmatprep.mubr.f32.mxu0 0.0
    %6458 = vmatmul.mubr.f32.gmra.mrb[0].mxu0 %v6372
    %v6459 = vpop.f32.mrb[0].mxu0
    %v6460 = vadd.f32 %v6363, %v6459
    %v6461 = vpop.f32.mrb[0].mxu0
    %6462 = vmatprep.mubr.f32.mxu0 0.0
    %6463 = vmatmul.mubr.f32.gmra.mrb[0].mxu0 %v6375
    %v6464 = vpop.f32.mrb[0].mxu0
    %v6465 = vadd.f32 %v6363, %v6464
    %v6466 = vpop.f32.mrb[0].mxu0
    %6467 = vmatprep.mubr.f32.mxu0 0.0
    %6468 = vmatmul.mubr.f32.gmra.mrb[0].mxu0 %v6378
    %v6469 = vpop.f32.mrb[0].mxu0
    %v6470 = vadd.f32 %v6363, %v6469
    %v6471 = vpop.f32.mrb[0].mxu0
    %6472 = vmatprep.mubr.f32.mxu0 0.0
    %6473 = vmatmul.mubr.f32.gmra.mrb[0].mxu0 %v6381
    %v6474 = vpop.f32.mrb[0].mxu0
    %v6475 = vadd.f32 %v6363, %v6474
    %v6476 = vpop.f32.mrb[0].mxu0
    %6477 = vdwg.mxu0
    %v6478 = vmul.f32 %v6450, 0.5
    %v6479 = vmul.f32 %v6455, 0.5
    %v6480 = vmul.f32 %v6460, 0.5
    %v6481 = vmul.f32 %v6465, 0.5
    %v6482 = vmul.f32 %v6470, 0.5
    %v6483 = vmul.f32 %v6475, 0.5
    %v6484 = vmul.f32 %v6450, 0.70710677
    %v6485 = vmul.f32 %v6455, 0.70710677
    %v6486 = vmul.f32 %v6460, 0.70710677
    %v6487 = vmul.f32 %v6465, 0.70710677
    %v6488 = vmul.f32 %v6470, 0.70710677
    %v6489 = vmul.f32 %v6475, 0.70710677
    %v6490 = verf.f32.pop %v6484
    %v6491 = verf.f32.pop %v6485
    %v6492 = verf.f32.pop %v6486
    %v6493 = verf.f32.pop %v6487
    %v6494 = verf.f32.pop %v6488
    %v6495 = verf.f32.pop %v6489
    %v6496 = vadd.f32 %v6490, 1.0
    %v6497 = vadd.f32 %v6491, 1.0
    %v6498 = vadd.f32 %v6492, 1.0
    %v6499 = vadd.f32 %v6493, 1.0
    %v6500 = vadd.f32 %v6494, 1.0
    %v6501 = vadd.f32 %v6495, 1.0
    %v6502 = vmul.f32 %v6478, %v6496
    %v6503 = vmul.f32 %v6479, %v6497
    %v6504 = vmul.f32 %v6480, %v6498
    %v6505 = vmul.f32 %v6481, %v6499
    %v6506 = vmul.f32 %v6482, %v6500
    %v6507 = vmul.f32 %v6483, %v6501
    %v6508 = vld [vmem:[%s3504 + $0x18] sm:$0xff]
    %v6509 = vld [vmem:[%s3504 + $0x38] sm:$0xff]
    %v6510 = vld [vmem:[%s3504 + $0x58] sm:$0xff]
    %v6511 = vld [vmem:[%s3504 + $0x78] sm:$0xff]
    %v6512 = vld [vmem:[%s3399 + $0x7] sm:$0x1]
    %v6514 = vlaneseq
    %v6515 = vshrl.u32 %v6514, 7
    %v6516 = vsub.s32 0, %v6515
    %v6517 = vrot.slane %v6512, %v6516
    %6519 = vmatprep.subr.mxu0 0.0
    %6520 = vmatpush1.xpose.msra.mxu0 %v6508
    %6521 = vmatprep.subr.mxu0 0.0
    %6522 = vmatpush1.xpose.msra.mxu0 %v6509
    %6523 = vmatprep.subr.mxu0 0.0
    %6524 = vmatpush1.xpose.msra.mxu0 %v6510
    %6525 = vmatprep.subr.mxu0 0.0
    %6526 = vmatpush1.xpose.msra.mxu0 %v6511
    %6527 = vmatprep.subr.mxu0 0.0
    %6528 = vmatpush1.xpose.msra.mxu0 0.0
    %6529 = vmatprep.subr.mxu0 0.0
    %6530 = vmatpush1.xpose.msra.mxu0 0.0
    %6531 = vmatprep.subr.mxu0 0.0
    %6532 = vmatpush1.xpose.msra.mxu0 0.0
    %6533 = vmatprep.subr.mxu0 0.0
    %6534 = vmatpush1.xpose.msra.mxu0 0.0
    %6535 = vmatprep.subr.mxu0 0.0
    %6536 = vmatpush1.xpose.msra.mxu0 0.0
    %6537 = vmatprep.subr.mxu0 0.0
    %6538 = vmatpush1.xpose.msra.mxu0 0.0
    %6539 = vmatprep.subr.mxu0 0.0
    %6540 = vmatpush1.xpose.msra.mxu0 0.0
    %6541 = vmatprep.subr.mxu0 0.0
    %6542 = vmatpush1.xpose.msra.mxu0 0.0
    %6543 = vmatprep.subr.mxu0 0.0
    %6544 = vmatpush1.xpose.msra.mxu0 0.0
    %6545 = vmatprep.subr.mxu0 0.0
    %6546 = vmatpush1.xpose.msra.mxu0 0.0
    %6547 = vmatprep.subr.mxu0 0.0
    %6548 = vmatpush1.xpose.msra.mxu0 0.0
    %6549 = vmatprep.subr.mxu0 0.0
    %6550 = vmatpush1.xpose.msra.mxu0 0.0
    %6551 = vmatprep.subr.mxu0 0.0
    %6552 = vmatpush1.xpose.msra.mxu0 0.0
    %6553 = vmatprep.subr.mxu0 0.0
    %6554 = vmatpush1.xpose.msra.mxu0 0.0
    %6555 = vmatprep.subr.mxu0 0.0
    %6556 = vmatpush1.xpose.msra.mxu0 0.0
    %6557 = vmatprep.subr.mxu0 0.0
    %6558 = vmatpush1.xpose.msra.mxu0 0.0
    %6559 = vmatprep.subr.mxu0 0.0
    %6560 = vmatpush1.xpose.msra.mxu0 0.0
    %6561 = vmatprep.subr.mxu0 0.0
    %6562 = vmatpush1.xpose.msra.mxu0 0.0
    %6563 = vmatprep.subr.mxu0 0.0
    %6564 = vmatpush1.xpose.msra.mxu0 0.0
    %6565 = vmatprep.subr.mxu0 0.0
    %6566 = vmatpush1.xpose.msra.mxu0 0.0
    %6567 = vmatprep.subr.mxu0 0.0
    %6568 = vmatpush1.xpose.msra.mxu0 0.0
    %6569 = vmatprep.subr.mxu0 0.0
    %6570 = vmatpush1.xpose.msra.mxu0 0.0
    %6571 = vmatprep.subr.mxu0 0.0
    %6572 = vmatpush1.xpose.msra.mxu0 0.0
    %6573 = vmatprep.subr.mxu0 0.0
    %6574 = vmatpush1.xpose.msra.mxu0 0.0
    %6575 = vmatprep.subr.mxu0 0.0
    %6576 = vmatpush1.xpose.msra.mxu0 0.0
    %6577 = vmatprep.subr.mxu0 0.0
    %6578 = vmatpush1.xpose.msra.mxu0 0.0
    %6579 = vmatprep.subr.mxu0 0.0
    %6580 = vmatpush1.xpose.msra.mxu0 0.0
    %6581 = vmatprep.subr.mxu0 0.0
    %6582 = vmatpush1.xpose.msra.mxu0 0.0
    %6583 = vmatprep.mubr.f32.mxu0 0.0
    %6584 = vmatmul.mubr.f32.gmra.mrb[0].mxu0 %v6502
    %v6585 = vpop.f32.mrb[0].mxu0
    %v6586 = vadd.f32 %v6517, %v6585
    %v6587 = vpop.f32.mrb[0].mxu0
    %6588 = vmatprep.mubr.f32.mxu0 0.0
    %6589 = vmatmul.mubr.f32.gmra.mrb[0].mxu0 %v6503
    %v6590 = vpop.f32.mrb[0].mxu0
    %v6591 = vpop.f32.mrb[0].mxu0
    %6592 = vmatprep.mubr.f32.mxu0 0.0
    %6593 = vmatmul.mubr.f32.gmra.mrb[0].mxu0 %v6504
    %v6594 = vpop.f32.mrb[0].mxu0
    %v6595 = vpop.f32.mrb[0].mxu0
    %6596 = vmatprep.mubr.f32.mxu0 0.0
    %6597 = vmatmul.mubr.f32.gmra.mrb[0].mxu0 %v6505
    %v6598 = vpop.f32.mrb[0].mxu0
    %v6599 = vadd.f32 %v6517, %v6598
    %v6600 = vpop.f32.mrb[0].mxu0
    %6601 = vmatprep.mubr.f32.mxu0 0.0
    %6602 = vmatmul.mubr.f32.gmra.mrb[0].mxu0 %v6506
    %v6603 = vpop.f32.mrb[0].mxu0
    %v6604 = vpop.f32.mrb[0].mxu0
    %6605 = vmatprep.mubr.f32.mxu0 0.0
    %6606 = vmatmul.mubr.f32.gmra.mrb[0].mxu0 %v6507
    %v6607 = vpop.f32.mrb[0].mxu0
    %v6608 = vpop.f32.mrb[0].mxu0
    %6609 = vdwg.mxu0
    %v6610 = vadd.f32 %v6244, %v6586
    %v6611 = vadd.f32 %v6247, %v6599
    %v6613 = vrot.slane %v6611, 7
    %vm6615 = vcmask 1040384
    %v6616 = vsel %vm6615, %v6610, %v6613
    %v6617 = vld [vmem:[%s2 + $0x40] sm:$0x1]
    %v6618 = vld [vmem:[%s2 + $0x48] sm:$0x1]
    %vm6619 = vcmask 254976
    %v6620 = vsel %vm6619, %v6616, 0.0
    %6621 = vadd.xlane.f32.xlu0 %v6620
    %v6622 = vpop.xlane.xlu0 %6621
    %v6623 = vmul.f32 %v6622, %v197
    %v6624 = vsub.f32 %v6616, %v6623
    %v6625 = vmul.f32 %v6624, %v6624
    %v6626 = vsel %vm6619, %v6625, 0.0
    %6627 = vadd.xlane.f32.xlu0 %v6626
    %v6628 = vpop.xlane.xlu0 %6627
    %v6629 = vmul.f32 %v6628, %v197
    %v6630 = vadd.f32 %v6629, 1e-06
    %v6631 = vrsqrt.pop %v6630
    %v6632 = vmul.f32 %v6624, %v6631
    %v6633 = vlaneseq
    %v6634 = vshrl.u32 %v6633, 7
    %v6635 = vsub.s32 0, %v6634
    %v6636 = vrot.slane %v6617, %v6635
    %v6637 = vmul.f32 %v6632, %v6636
    %v6638 = vlaneseq
    %v6639 = vshrl.u32 %v6638, 7
    %v6640 = vsub.s32 0, %v6639
    %v6641 = vrot.slane %v6618, %v6640
    %v6642 = vadd.f32 %v6637, %v6641
    %v6643 = vld [vmem:[%s3] sm:$0xff]
    %v6644 = vld [vmem:[%s3 + $0x8] sm:$0xff]
    %v6645 = vld [vmem:[%s3 + $0x10] sm:$0xff]
    %v6646 = vld [vmem:[%s3 + $0x18] sm:$0xff]
    %v6647 = vld [vmem:[%s3 + $0x20] sm:$0x1]
    %v6648 = vlaneseq
    %v6649 = vshrl.u32 %v6648, 7
    %v6650 = vsub.s32 0, %v6649
    %v6651 = vrot.slane %v6647, %v6650
    %v6653 = vsel %vm178, %v6642, 0
    %6655 = vmatprep.subr.mxu0 0.0
    %6656 = vmatpush1.msra.mxu0 %v6643
    %6657 = vmatprep.subr.mxu0 0.0
    %6658 = vmatpush1.msra.mxu0 %v6644
    %6659 = vmatprep.subr.mxu0 0.0
    %6660 = vmatpush1.msra.mxu0 %v6645
    %6661 = vmatprep.subr.mxu0 0.0
    %6662 = vmatpush1.msra.mxu0 %v6646
    %6663 = vmatprep.subr.mxu0 0.0
    %6664 = vmatpush1.msra.mxu0 0.0
    %6665 = vmatprep.subr.mxu0 0.0
    %6666 = vmatpush1.msra.mxu0 0.0
    %6667 = vmatprep.subr.mxu0 0.0
    %6668 = vmatpush1.msra.mxu0 0.0
    %6669 = vmatprep.subr.mxu0 0.0
    %6670 = vmatpush1.msra.mxu0 0.0
    %6671 = vmatprep.subr.mxu0 0.0
    %6672 = vmatpush1.msra.mxu0 0.0
    %6673 = vmatprep.subr.mxu0 0.0
    %6674 = vmatpush1.msra.mxu0 0.0
    %6675 = vmatprep.subr.mxu0 0.0
    %6676 = vmatpush1.msra.mxu0 0.0
    %6677 = vmatprep.subr.mxu0 0.0
    %6678 = vmatpush1.msra.mxu0 0.0
    %6679 = vmatprep.subr.mxu0 0.0
    %6680 = vmatpush1.msra.mxu0 0.0
    %6681 = vmatprep.subr.mxu0 0.0
    %6682 = vmatpush1.msra.mxu0 0.0
    %6683 = vmatprep.subr.mxu0 0.0
    %6684 = vmatpush1.msra.mxu0 0.0
    %6685 = vmatprep.subr.mxu0 0.0
    %6686 = vmatpush1.msra.mxu0 0.0
    %6687 = vmatprep.subr.mxu0 0.0
    %6688 = vmatpush1.msra.mxu0 0.0
    %6689 = vmatprep.subr.mxu0 0.0
    %6690 = vmatpush1.msra.mxu0 0.0
    %6691 = vmatprep.subr.mxu0 0.0
    %6692 = vmatpush1.msra.mxu0 0.0
    %6693 = vmatprep.subr.mxu0 0.0
    %6694 = vmatpush1.msra.mxu0 0.0
    %6695 = vmatprep.subr.mxu0 0.0
    %6696 = vmatpush1.msra.mxu0 0.0
    %6697 = vmatprep.subr.mxu0 0.0
    %6698 = vmatpush1.msra.mxu0 0.0
    %6699 = vmatprep.subr.mxu0 0.0
    %6700 = vmatpush1.msra.mxu0 0.0
    %6701 = vmatprep.subr.mxu0 0.0
    %6702 = vmatpush1.msra.mxu0 0.0
    %6703 = vmatprep.subr.mxu0 0.0
    %6704 = vmatpush1.msra.mxu0 0.0
    %6705 = vmatprep.subr.mxu0 0.0
    %6706 = vmatpush1.msra.mxu0 0.0
    %6707 = vmatprep.subr.mxu0 0.0
    %6708 = vmatpush1.msra.mxu0 0.0
    %6709 = vmatprep.subr.mxu0 0.0
    %6710 = vmatpush1.msra.mxu0 0.0
    %6711 = vmatprep.subr.mxu0 0.0
    %6712 = vmatpush1.msra.mxu0 0.0
    %6713 = vmatprep.subr.mxu0 0.0
    %6714 = vmatpush1.msra.mxu0 0.0
    %6715 = vmatprep.subr.mxu0 0.0
    %6716 = vmatpush1.msra.mxu0 0.0
    %6717 = vmatprep.subr.mxu0 0.0
    %6718 = vmatpush1.msra.mxu0 0.0
    %6719 = vmatprep.mubr.f32.mxu0 0.0
    %6720 = vmatmul.mubr.f32.gmra.mrb[0].mxu0 %v6653
    %v6721 = vpop.f32.mrb[0].mxu0
    %v6722 = vadd.f32 %v6651, %v6721
    %v6723 = vpop.f32.mrb[0].mxu0
    %6724 = vdwg.mxu0
    %6725 = vst [vmem:[#allocation5] sm:$0x3] %v6722
    // Predicated region
    $region30: #{tpu_custom_call.1} parent=1 // pred_check
      _
    $region31: #{tpu_custom_call.1} parent=1 // pred_check_branch
      %6727 = sbr.rel (0) target = $region33
    $region32: #{tpu_custom_call.1} parent=1 // pred_region
      %s6729 = ssub.s32 32, 32
      %6730 = vsyncadd [#allocation4], %s6729
      %s6732 = sshll.u32 [#allocation5], 4
      %s6733 = int_to_ptr.vmem [resolvable:$true] %s6732
      %6735 = dma.vmem_to_hbm [thread:$0]  %s6733, 32, %s6, [#allocation4]
    $region33: #{tpu_custom_call.1} parent=1 // pred_fallthru
      _
    // Predicated region
    $region34: #{tpu_custom_call.1} parent=1 // pred_check
      _
    $region35: #{tpu_custom_call.1} parent=1 // pred_check_branch
      %6737 = sbr.rel (0) target = $region37
    $region36: #{tpu_custom_call.1} parent=1 // pred_region
      %6738 = dma.done [#allocation4], 32
    $region37: #{tpu_custom_call.1} parent=1 // pred_fallthru
      _
    %6739 = vsyncpa [#allocation3], 1
    %6740 = vsyncpa [#allocation4], 1

</llo_original>
